<compile_context>
chip_gen: v7x
topology: tpu7x:2x2x1
jax: 0.10.0
libtpu: 0.0.40
codegen_flags: <defaults>
</compile_context>

<pallas_src>
import functools

import jax
import jax.numpy as jnp
from jax.experimental import pallas as pl
from jax.experimental.pallas import tpu as pltpu

EPS = 1e-5  # torch.nn.BatchNorm2d default eps


def _mod(x, q):
    if q & (q - 1) == 0:                     # power of two -> bitwise (VPU-cheap)
        return jnp.bitwise_and(x, q - 1)
    return x % q


def _floordiv(x, q):
    if q & (q - 1) == 0:
        return jnp.right_shift(x, q.bit_length() - 1)
    return x // q


# ---------------- fused Pallas kernel ----------------

def _convblock_kernel(x_ref, w_ref, gamma_ref, beta_ref, out_ref, y_scr, *,
                      n, h, w, cin, cout):
    """Fused Conv3x3(pad=1) + BatchNorm(train) + ReLU + MaxPool2x2.

    x     : (M, Cin) f32, M = N*H*W flattened NHWC rows (n, h, w)
    w     : (9, Cin, Cout) bf16, tap index = kh*3 + kw
    gamma/beta: (1, Cout) f32
    out   : (N*Ho, Wo*Cout) f32 lane-dense pooled activation (NHWC flattened)
    y_scr : (M, Cout) f32 VMEM scratch holding the pre-pool activation
    """
    m = n * h * w
    ho, wo = h // 2, w // 2
    nho = n * ho

    # ---- Conv as 9 shifted/masked matmuls accumulated straight into y_scr.
    # For tap (dh, dw): y[m] += x[m + dh*W + dw] @ W_tap, valid iff the (h, w) of the
    # output row stays in-bounds after the shift (this reproduces padding=1).  Rows cut
    # off by the global slice clamp are exactly rows that the mask would zero anyway.
    # The conv bias is intentionally omitted: training-mode BN's mean subtraction
    # cancels a per-channel constant bias exactly.
    taps = [(0, 0)] + [(dh, dw) for dh in (-1, 0, 1) for dw in (-1, 0, 1)
                       if (dh, dw) != (0, 0)]
    for dh, dw in taps:
        d = dh * w + dw
        a = max(-d, 0)               # first output row receiving this tap
        b = max(d, 0)                # first input row feeding it
        span = m - abs(d)

        xs = x_ref[pl.ds(b, span), :]                                # (span, Cin) f32
        if dh != 0 or dw != 0:
            row = jax.lax.broadcasted_iota(jnp.int32, (span, 1), 0) + a
            conds = []
            if dw != 0:
                col_i = _mod(row, w)
                conds.append(col_i != (0 if dw == -1 else w - 1))
            if dh != 0:
                row_i = _mod(_floordiv(row, w), h)
                conds.append(row_i != (0 if dh == -1 else h - 1))
            valid = conds[0]
            for c in conds[1:]:
                valid = jnp.logical_and(valid, c)
            xs = jnp.where(valid, xs, 0.0)

        xs = xs.astype(w_ref.dtype)                                  # bf16 into the MXU
        wt = w_ref[(dh + 1) * 3 + (dw + 1)]                          # (Cin, Cout) bf16
        contrib = jnp.dot(xs, wt, preferred_element_type=jnp.float32)
        if dh == 0 and dw == 0:
            y_scr[...] = contrib                 # first tap: plain store, no zero-init
        else:
            y_scr[pl.ds(a, span), :] += contrib

    # ---- BatchNorm2d (training mode): one-pass biased batch stats over the N*H*W rows,
    # re-read from y_scr (no extra (M, Cout) temp), folded into scale/shift + ReLU.
    inv_m = 1.0 / float(m)
    s1 = jnp.sum(y_scr[...], axis=0, keepdims=True)                  # (1, Cout)
    s2 = jnp.sum(jnp.square(y_scr[...]), axis=0, keepdims=True)
    mean = s1 * inv_m
    var = jnp.maximum(s2 * inv_m - mean * mean, 0.0)                 # clamp (review note)
    scale = gamma_ref[...] * jax.lax.rsqrt(var + EPS)
    shift = beta_ref[...] - mean * scale
    y_scr[...] = jnp.maximum(y_scr[...] * scale + shift, 0.0)

    # ---- 2x2 / stride-2 max pool straight out of VMEM.
    # Pass 1: pair rows (h, h+1) with one contiguous slice max; valid at even h.
    hp = jnp.maximum(y_scr[pl.ds(0, m - w), :], y_scr[pl.ds(w, m - w), :])
    y_scr[pl.ds(0, m - w), :] = hp

    # Pass 2: per output column wo, pair (w, w+1) with two strided row-gathers
    # (rows (n*Ho+ho)*2W + 2wo[+1]); adjacent columns concatenated on lanes so every
    # store is a full 128-lane unmasked vst into the lane-dense (N*Ho, Wo*Cout) slab.
    def pooled_col(j):
        c0 = y_scr[pl.ds(2 * j, nho, 2 * w), :]
        c1 = y_scr[pl.ds(2 * j + 1, nho, 2 * w), :]
        return jnp.maximum(c0, c1)

    for j in range(0, wo - 1, 2):
        out_ref[:, j * cout:(j + 2) * cout] = jnp.concatenate(
            [pooled_col(j), pooled_col(j + 1)], axis=1)
    if wo % 2:
        j = wo - 1
        out_ref[:, j * cout:(j + 1) * cout] = pooled_col(j)


# ---------------- wrappers ----------------

def _convblock_fused(x_rows, w_taps, gamma, beta, n, h, w):
    cin = x_rows.shape[1]
    cout = w_taps.shape[-1]
    ho, wo = h // 2, w // 2
    kernel = functools.partial(_convblock_kernel, n=n, h=h, w=w, cin=cin, cout=cout)
    vmem = pltpu.MemorySpace.VMEM
    return pl.pallas_call(
        kernel,
        out_shape=jax.ShapeDtypeStruct((n * ho, wo * cout), jnp.float32),
        in_specs=[pl.BlockSpec(memory_space=vmem)] * 4,
        out_specs=pl.BlockSpec(memory_space=vmem),
        scratch_shapes=[pltpu.VMEM((n * h * w, cout), jnp.float32)],
    )(x_rows, w_taps, gamma, beta)


def conv_block_forward(x_nchw, w_conv, b_conv, gamma, beta):
    """Matches ConvBlock.forward: (N, Cin, H, W) -> (N, Cout, H//2, W//2)."""
    n, cin, h, w = x_nchw.shape
    cout = w_conv.shape[0]
    assert h % 2 == 0 and w % 2 == 0, "MaxPool2d(2,2) path requires even H and W"

    # NCHW -> NHWC rows (channels on lanes); im2col itself happens inside the kernel.
    x_rows = jnp.transpose(x_nchw, (0, 2, 3, 1)).reshape(n * h * w, cin)
    # PyTorch weight (Cout, Cin, 3, 3) -> (kh, kw, cin, cout) -> (9, Cin, Cout), bf16.
    w_taps = jnp.transpose(w_conv, (2, 3, 1, 0)).reshape(9, cin, cout)
    w_taps = w_taps.astype(jnp.bfloat16)

    # b_conv accepted for API parity but not applied: training-mode BatchNorm's mean
    # subtraction cancels a per-channel constant bias exactly.
    del b_conv

    out = _convblock_fused(
        x_rows, w_taps,
        gamma.reshape(1, cout).astype(jnp.float32),
        beta.reshape(1, cout).astype(jnp.float32),
        n, h, w)
    ho, wo = h // 2, w // 2
    out = out.reshape(n, ho, wo, cout)                 # free reshape of lane-dense slab
    return jnp.transpose(out, (0, 3, 1, 2))            # back to NCHW like the module


# ---------------- pure-JAX reference (sanity check only) ----------------

def _reference(x, w_conv, b_conv, gamma, beta):
    y = jax.lax.conv_general_dilated(
        x, w_conv, window_strides=(1, 1), padding=((1, 1), (1, 1)),
        dimension_numbers=("NCHW", "OIHW", "NCHW"),
        precision=jax.lax.Precision.HIGHEST)
    y = y + b_conv[None, :, None, None]
    mean = jnp.mean(y, axis=(0, 2, 3), keepdims=True)
    var = jnp.mean((y - mean) ** 2, axis=(0, 2, 3), keepdims=True)
    y = (y - mean) * jax.lax.rsqrt(var + EPS)
    y = y * gamma[None, :, None, None] + beta[None, :, None, None]
    y = jnp.maximum(y, 0.0)
    return jax.lax.reduce_window(y, -jnp.inf, jax.lax.max,
                                 (1, 1, 2, 2), (1, 1, 2, 2), "VALID")


if __name__ == "__main__":
    N, CIN, H, W = 2, 3, 16, 16          # module defaults: indim=3, out_channels=64
    COUT = 64

    key = jax.random.PRNGKey(0)
    k = jax.random.split(key, 5)
    x = jax.random.normal(k[0], (N, CIN, H, W), jnp.float32)
    w_conv = jax.random.normal(k[1], (COUT, CIN, 3, 3), jnp.float32) / jnp.sqrt(9.0 * CIN)
    b_conv = 0.01 * jax.random.normal(k[2], (COUT,), jnp.float32)
    gamma = 1.0 + 0.1 * jax.random.normal(k[3], (COUT,), jnp.float32)
    beta = 0.1 * jax.random.normal(k[4], (COUT,), jnp.float32)

    out = jax.jit(conv_block_forward)(x, w_conv, b_conv, gamma, beta)
    out = jax.block_until_ready(out)

    assert out.shape == (N, COUT, H // 2, W // 2), out.shape
    assert out.dtype == jnp.float32
    assert bool(jnp.isfinite(out).all())

    # loose tolerance: catches indexing/ordering bugs (O(1) errors) while staying
    # insensitive to the bf16 MXU inputs' rounding.
    ref = jax.block_until_ready(_reference(x, w_conv, b_conv, gamma, beta))
    max_err = float(jnp.max(jnp.abs(out - ref)))
    assert max_err < 7.5e-2, f"max abs error vs reference: {max_err}"

    print("KERNEL_OK")
</pallas_src>

<mosaic_0001>
module attributes {stable_mosaic.version = 11 : i64} {
  func.func @_convblock_kernel(%arg0: memref<512x3xf32, #tpu.memory_space<vmem>>, %arg1: memref<9x3x64xbf16, #tpu.memory_space<vmem>>, %arg2: memref<1x64xf32, #tpu.memory_space<vmem>>, %arg3: memref<1x64xf32, #tpu.memory_space<vmem>>, %arg4: memref<16x512xf32, #tpu.memory_space<vmem>>, %arg5: memref<512x64xf32, #tpu.memory_space<vmem>>) attributes {dimension_semantics = [], scalar_prefetch = 0 : i64, scratch_operands = 1 : i64, tpu.core_type = #tpu.core_type<tc>} {
    %c0 = arith.constant 0 : index
    %c0_0 = arith.constant 0 : index
    %0 = vector.load %arg0[%c0, %c0_0] : memref<512x3xf32, #tpu.memory_space<vmem>>, vector<512x3xf32>
    %1 = arith.truncf %0 : vector<512x3xf32> to vector<512x3xbf16>
    %c4 = arith.constant 4 : index
    %c0_1 = arith.constant 0 : index
    %c0_2 = arith.constant 0 : index
    %2 = vector.load %arg1[%c4, %c0_1, %c0_2] : memref<9x3x64xbf16, #tpu.memory_space<vmem>>, vector<1x3x64xbf16>
    %3 = vector.shape_cast %2 : vector<1x3x64xbf16> to vector<3x64xbf16>
    %cst = arith.constant dense<0.000000e+00> : vector<512x64xf32>
    %4 = tpu.matmul %1, %3, %cst {dimension_numbers = #tpu.dot_dimension_numbers<[1], [0], [0], [1], [0, 0, 1, 1], [], []>} : vector<512x3xbf16>, vector<3x64xbf16>, vector<512x64xf32> -> vector<512x64xf32>
    %c0_3 = arith.constant 0 : index
    %c0_4 = arith.constant 0 : index
    %5 = vector.load %arg5[%c0_3, %c0_4] : memref<512x64xf32, #tpu.memory_space<vmem>>, vector<512x64xf32>
    tpu.vector_store %arg5[%c0_3, %c0_4], %4 {strides = array<i32>} : memref<512x64xf32, #tpu.memory_space<vmem>>, vector<512x64xf32>,
    %c0_5 = arith.constant 0 : index
    %c0_6 = arith.constant 0 : index
    %6 = vector.load %arg0[%c0_5, %c0_6] : memref<512x3xf32, #tpu.memory_space<vmem>>, vector<495x3xf32>
    %7 = tpu.iota {dimensions = array<i32: 0>} : vector<495x1xi32>
    %c17_i32 = arith.constant 17 : i32
    %8 = vector.broadcast %c17_i32 : i32 to vector<495x1xi32>
    %9 = arith.addi %7, %8 : vector<495x1xi32>
    %c15_i32 = arith.constant 15 : i32
    %10 = vector.broadcast %c15_i32 : i32 to vector<495x1xi32>
    %11 = arith.andi %9, %10 : vector<495x1xi32>
    %c0_i32 = arith.constant 0 : i32
    %12 = vector.broadcast %c0_i32 : i32 to vector<495x1xi32>
    %13 = arith.cmpi ne, %11, %12 : vector<495x1xi32>
    %c4_i32 = arith.constant 4 : i32
    %14 = vector.broadcast %c4_i32 : i32 to vector<495x1xi32>
    %15 = arith.shrsi %9, %14 : vector<495x1xi32>
    %c15_i32_7 = arith.constant 15 : i32
    %16 = vector.broadcast %c15_i32_7 : i32 to vector<495x1xi32>
    %17 = arith.andi %15, %16 : vector<495x1xi32>
    %c0_i32_8 = arith.constant 0 : i32
    %18 = vector.broadcast %c0_i32_8 : i32 to vector<495x1xi32>
    %19 = arith.cmpi ne, %17, %18 : vector<495x1xi32>
    %20 = arith.andi %13, %19 : vector<495x1xi1>
    %cst_9 = arith.constant 0.000000e+00 : f32
    %21 = vector.shape_cast %20 : vector<495x1xi1> to vector<495x1xi1>
    %22 = vector.broadcast %21 : vector<495x1xi1> to vector<495x3xi1>
    %23 = vector.broadcast %cst_9 : f32 to vector<495x3xf32>
    %24 = arith.select %22, %6, %23 : vector<495x3xi1>, vector<495x3xf32>
    %25 = arith.truncf %24 : vector<495x3xf32> to vector<495x3xbf16>
    %c0_10 = arith.constant 0 : index
    %c0_11 = arith.constant 0 : index
    %c0_12 = arith.constant 0 : index
    %26 = vector.load %arg1[%c0_10, %c0_11, %c0_12] : memref<9x3x64xbf16, #tpu.memory_space<vmem>>, vector<1x3x64xbf16>
    %27 = vector.shape_cast %26 : vector<1x3x64xbf16> to vector<3x64xbf16>
    %cst_13 = arith.constant dense<0.000000e+00> : vector<495x64xf32>
    %28 = tpu.matmul %25, %27, %cst_13 {dimension_numbers = #tpu.dot_dimension_numbers<[1], [0], [0], [1], [0, 0, 1, 1], [], []>} : vector<495x3xbf16>, vector<3x64xbf16>, vector<495x64xf32> -> vector<495x64xf32>
    %c17 = arith.constant 17 : index
    %c0_14 = arith.constant 0 : index
    %29 = vector.load %arg5[%c17, %c0_14] : memref<512x64xf32, #tpu.memory_space<vmem>>, vector<495x64xf32>
    %30 = arith.addf %29, %28 : vector<495x64xf32>
    %c17_15 = arith.constant 17 : index
    %c0_16 = arith.constant 0 : index
    %31 = vector.load %arg5[%c17_15, %c0_16] : memref<512x64xf32, #tpu.memory_space<vmem>>, vector<495x64xf32>
    tpu.vector_store %arg5[%c17_15, %c0_16], %30 {strides = array<i32>} : memref<512x64xf32, #tpu.memory_space<vmem>>, vector<495x64xf32>,
    %c0_17 = arith.constant 0 : index
    %c0_18 = arith.constant 0 : index
    %32 = vector.load %arg0[%c0_17, %c0_18] : memref<512x3xf32, #tpu.memory_space<vmem>>, vector<496x3xf32>
    %33 = tpu.iota {dimensions = array<i32: 0>} : vector<496x1xi32>
    %c16_i32 = arith.constant 16 : i32
    %34 = vector.broadcast %c16_i32 : i32 to vector<496x1xi32>
    %35 = arith.addi %33, %34 : vector<496x1xi32>
    %c4_i32_19 = arith.constant 4 : i32
    %36 = vector.broadcast %c4_i32_19 : i32 to vector<496x1xi32>
    %37 = arith.shrsi %35, %36 : vector<496x1xi32>
    %c15_i32_20 = arith.constant 15 : i32
    %38 = vector.broadcast %c15_i32_20 : i32 to vector<496x1xi32>
    %39 = arith.andi %37, %38 : vector<496x1xi32>
    %c0_i32_21 = arith.constant 0 : i32
    %40 = vector.broadcast %c0_i32_21 : i32 to vector<496x1xi32>
    %41 = arith.cmpi ne, %39, %40 : vector<496x1xi32>
    %cst_22 = arith.constant 0.000000e+00 : f32
    %42 = vector.shape_cast %41 : vector<496x1xi1> to vector<496x1xi1>
    %43 = vector.broadcast %42 : vector<496x1xi1> to vector<496x3xi1>
    %44 = vector.broadcast %cst_22 : f32 to vector<496x3xf32>
    %45 = arith.select %43, %32, %44 : vector<496x3xi1>, vector<496x3xf32>
    %46 = arith.truncf %45 : vector<496x3xf32> to vector<496x3xbf16>
    %c1 = arith.constant 1 : index
    %c0_23 = arith.constant 0 : index
    %c0_24 = arith.constant 0 : index
    %47 = vector.load %arg1[%c1, %c0_23, %c0_24] : memref<9x3x64xbf16, #tpu.memory_space<vmem>>, vector<1x3x64xbf16>
    %48 = vector.shape_cast %47 : vector<1x3x64xbf16> to vector<3x64xbf16>
    %cst_25 = arith.constant dense<0.000000e+00> : vector<496x64xf32>
    %49 = tpu.matmul %46, %48, %cst_25 {dimension_numbers = #tpu.dot_dimension_numbers<[1], [0], [0], [1], [0, 0, 1, 1], [], []>} : vector<496x3xbf16>, vector<3x64xbf16>, vector<496x64xf32> -> vector<496x64xf32>
    %c16 = arith.constant 16 : index
    %c0_26 = arith.constant 0 : index
    %50 = vector.load %arg5[%c16, %c0_26] : memref<512x64xf32, #tpu.memory_space<vmem>>, vector<496x64xf32>
    %51 = arith.addf %50, %49 : vector<496x64xf32>
    %c16_27 = arith.constant 16 : index
    %c0_28 = arith.constant 0 : index
    %52 = vector.load %arg5[%c16_27, %c0_28] : memref<512x64xf32, #tpu.memory_space<vmem>>, vector<496x64xf32>
    tpu.vector_store %arg5[%c16_27, %c0_28], %51 {strides = array<i32>} : memref<512x64xf32, #tpu.memory_space<vmem>>, vector<496x64xf32>,
    %c0_29 = arith.constant 0 : index
    %c0_30 = arith.constant 0 : index
    %53 = vector.load %arg0[%c0_29, %c0_30] : memref<512x3xf32, #tpu.memory_space<vmem>>, vector<497x3xf32>
    %54 = tpu.iota {dimensions = array<i32: 0>} : vector<497x1xi32>
    %c15_i32_31 = arith.constant 15 : i32
    %55 = vector.broadcast %c15_i32_31 : i32 to vector<497x1xi32>
    %56 = arith.addi %54, %55 : vector<497x1xi32>
    %c15_i32_32 = arith.constant 15 : i32
    %57 = vector.broadcast %c15_i32_32 : i32 to vector<497x1xi32>
    %58 = arith.andi %56, %57 : vector<497x1xi32>
    %c15_i32_33 = arith.constant 15 : i32
    %59 = vector.broadcast %c15_i32_33 : i32 to vector<497x1xi32>
    %60 = arith.cmpi ne, %58, %59 : vector<497x1xi32>
    %c4_i32_34 = arith.constant 4 : i32
    %61 = vector.broadcast %c4_i32_34 : i32 to vector<497x1xi32>
    %62 = arith.shrsi %56, %61 : vector<497x1xi32>
    %c15_i32_35 = arith.constant 15 : i32
    %63 = vector.broadcast %c15_i32_35 : i32 to vector<497x1xi32>
    %64 = arith.andi %62, %63 : vector<497x1xi32>
    %c0_i32_36 = arith.constant 0 : i32
    %65 = vector.broadcast %c0_i32_36 : i32 to vector<497x1xi32>
    %66 = arith.cmpi ne, %64, %65 : vector<497x1xi32>
    %67 = arith.andi %60, %66 : vector<497x1xi1>
    %cst_37 = arith.constant 0.000000e+00 : f32
    %68 = vector.shape_cast %67 : vector<497x1xi1> to vector<497x1xi1>
    %69 = vector.broadcast %68 : vector<497x1xi1> to vector<497x3xi1>
    %70 = vector.broadcast %cst_37 : f32 to vector<497x3xf32>
    %71 = arith.select %69, %53, %70 : vector<497x3xi1>, vector<497x3xf32>
    %72 = arith.truncf %71 : vector<497x3xf32> to vector<497x3xbf16>
    %c2 = arith.constant 2 : index
    %c0_38 = arith.constant 0 : index
    %c0_39 = arith.constant 0 : index
    %73 = vector.load %arg1[%c2, %c0_38, %c0_39] : memref<9x3x64xbf16, #tpu.memory_space<vmem>>, vector<1x3x64xbf16>
    %74 = vector.shape_cast %73 : vector<1x3x64xbf16> to vector<3x64xbf16>
    %cst_40 = arith.constant dense<0.000000e+00> : vector<497x64xf32>
    %75 = tpu.matmul %72, %74, %cst_40 {dimension_numbers = #tpu.dot_dimension_numbers<[1], [0], [0], [1], [0, 0, 1, 1], [], []>} : vector<497x3xbf16>, vector<3x64xbf16>, vector<497x64xf32> -> vector<497x64xf32>
    %c15 = arith.constant 15 : index
    %c0_41 = arith.constant 0 : index
    %76 = vector.load %arg5[%c15, %c0_41] : memref<512x64xf32, #tpu.memory_space<vmem>>, vector<497x64xf32>
    %77 = arith.addf %76, %75 : vector<497x64xf32>
    %c15_42 = arith.constant 15 : index
    %c0_43 = arith.constant 0 : index
    %78 = vector.load %arg5[%c15_42, %c0_43] : memref<512x64xf32, #tpu.memory_space<vmem>>, vector<497x64xf32>
    tpu.vector_store %arg5[%c15_42, %c0_43], %77 {strides = array<i32>} : memref<512x64xf32, #tpu.memory_space<vmem>>, vector<497x64xf32>,
    %c0_44 = arith.constant 0 : index
    %c0_45 = arith.constant 0 : index
    %79 = vector.load %arg0[%c0_44, %c0_45] : memref<512x3xf32, #tpu.memory_space<vmem>>, vector<511x3xf32>
    %80 = tpu.iota {dimensions = array<i32: 0>} : vector<511x1xi32>
    %c1_i32 = arith.constant 1 : i32
    %81 = vector.broadcast %c1_i32 : i32 to vector<511x1xi32>
    %82 = arith.addi %80, %81 : vector<511x1xi32>
    %c15_i32_46 = arith.constant 15 : i32
    %83 = vector.broadcast %c15_i32_46 : i32 to vector<511x1xi32>
    %84 = arith.andi %82, %83 : vector<511x1xi32>
    %c0_i32_47 = arith.constant 0 : i32
    %85 = vector.broadcast %c0_i32_47 : i32 to vector<511x1xi32>
    %86 = arith.cmpi ne, %84, %85 : vector<511x1xi32>
    %cst_48 = arith.constant 0.000000e+00 : f32
    %87 = vector.shape_cast %86 : vector<511x1xi1> to vector<511x1xi1>
    %88 = vector.broadcast %87 : vector<511x1xi1> to vector<511x3xi1>
    %89 = vector.broadcast %cst_48 : f32 to vector<511x3xf32>
    %90 = arith.select %88, %79, %89 : vector<511x3xi1>, vector<511x3xf32>
    %91 = arith.truncf %90 : vector<511x3xf32> to vector<511x3xbf16>
    %c3 = arith.constant 3 : index
    %c0_49 = arith.constant 0 : index
    %c0_50 = arith.constant 0 : index
    %92 = vector.load %arg1[%c3, %c0_49, %c0_50] : memref<9x3x64xbf16, #tpu.memory_space<vmem>>, vector<1x3x64xbf16>
    %93 = vector.shape_cast %92 : vector<1x3x64xbf16> to vector<3x64xbf16>
    %cst_51 = arith.constant dense<0.000000e+00> : vector<511x64xf32>
    %94 = tpu.matmul %91, %93, %cst_51 {dimension_numbers = #tpu.dot_dimension_numbers<[1], [0], [0], [1], [0, 0, 1, 1], [], []>} : vector<511x3xbf16>, vector<3x64xbf16>, vector<511x64xf32> -> vector<511x64xf32>
    %c1_52 = arith.constant 1 : index
    %c0_53 = arith.constant 0 : index
    %95 = vector.load %arg5[%c1_52, %c0_53] : memref<512x64xf32, #tpu.memory_space<vmem>>, vector<511x64xf32>
    %96 = arith.addf %95, %94 : vector<511x64xf32>
    %c1_54 = arith.constant 1 : index
    %c0_55 = arith.constant 0 : index
    %97 = vector.load %arg5[%c1_54, %c0_55] : memref<512x64xf32, #tpu.memory_space<vmem>>, vector<511x64xf32>
    tpu.vector_store %arg5[%c1_54, %c0_55], %96 {strides = array<i32>} : memref<512x64xf32, #tpu.memory_space<vmem>>, vector<511x64xf32>,
    %c1_56 = arith.constant 1 : index
    %c0_57 = arith.constant 0 : index
    %98 = vector.load %arg0[%c1_56, %c0_57] : memref<512x3xf32, #tpu.memory_space<vmem>>, vector<511x3xf32>
    %99 = tpu.iota {dimensions = array<i32: 0>} : vector<511x1xi32>
    %c0_i32_58 = arith.constant 0 : i32
    %100 = vector.broadcast %c0_i32_58 : i32 to vector<511x1xi32>
    %101 = arith.addi %99, %100 : vector<511x1xi32>
    %c15_i32_59 = arith.constant 15 : i32
    %102 = vector.broadcast %c15_i32_59 : i32 to vector<511x1xi32>
    %103 = arith.andi %101, %102 : vector<511x1xi32>
    %c15_i32_60 = arith.constant 15 : i32
    %104 = vector.broadcast %c15_i32_60 : i32 to vector<511x1xi32>
    %105 = arith.cmpi ne, %103, %104 : vector<511x1xi32>
    %cst_61 = arith.constant 0.000000e+00 : f32
    %106 = vector.shape_cast %105 : vector<511x1xi1> to vector<511x1xi1>
    %107 = vector.broadcast %106 : vector<511x1xi1> to vector<511x3xi1>
    %108 = vector.broadcast %cst_61 : f32 to vector<511x3xf32>
    %109 = arith.select %107, %98, %108 : vector<511x3xi1>, vector<511x3xf32>
    %110 = arith.truncf %109 : vector<511x3xf32> to vector<511x3xbf16>
    %c5 = arith.constant 5 : index
    %c0_62 = arith.constant 0 : index
    %c0_63 = arith.constant 0 : index
    %111 = vector.load %arg1[%c5, %c0_62, %c0_63] : memref<9x3x64xbf16, #tpu.memory_space<vmem>>, vector<1x3x64xbf16>
    %112 = vector.shape_cast %111 : vector<1x3x64xbf16> to vector<3x64xbf16>
    %cst_64 = arith.constant dense<0.000000e+00> : vector<511x64xf32>
    %113 = tpu.matmul %110, %112, %cst_64 {dimension_numbers = #tpu.dot_dimension_numbers<[1], [0], [0], [1], [0, 0, 1, 1], [], []>} : vector<511x3xbf16>, vector<3x64xbf16>, vector<511x64xf32> -> vector<511x64xf32>
    %c0_65 = arith.constant 0 : index
    %c0_66 = arith.constant 0 : index
    %114 = vector.load %arg5[%c0_65, %c0_66] : memref<512x64xf32, #tpu.memory_space<vmem>>, vector<511x64xf32>
    %115 = arith.addf %114, %113 : vector<511x64xf32>
    %c0_67 = arith.constant 0 : index
    %c0_68 = arith.constant 0 : index
    %116 = vector.load %arg5[%c0_67, %c0_68] : memref<512x64xf32, #tpu.memory_space<vmem>>, vector<511x64xf32>
    tpu.vector_store %arg5[%c0_67, %c0_68], %115 {strides = array<i32>} : memref<512x64xf32, #tpu.memory_space<vmem>>, vector<511x64xf32>,
    %c15_69 = arith.constant 15 : index
    %c0_70 = arith.constant 0 : index
    %117 = vector.load %arg0[%c15_69, %c0_70] : memref<512x3xf32, #tpu.memory_space<vmem>>, vector<497x3xf32>
    %118 = tpu.iota {dimensions = array<i32: 0>} : vector<497x1xi32>
    %c0_i32_71 = arith.constant 0 : i32
    %119 = vector.broadcast %c0_i32_71 : i32 to vector<497x1xi32>
    %120 = arith.addi %118, %119 : vector<497x1xi32>
    %c15_i32_72 = arith.constant 15 : i32
    %121 = vector.broadcast %c15_i32_72 : i32 to vector<497x1xi32>
    %122 = arith.andi %120, %121 : vector<497x1xi32>
    %c0_i32_73 = arith.constant 0 : i32
    %123 = vector.broadcast %c0_i32_73 : i32 to vector<497x1xi32>
    %124 = arith.cmpi ne, %122, %123 : vector<497x1xi32>
    %c4_i32_74 = arith.constant 4 : i32
    %125 = vector.broadcast %c4_i32_74 : i32 to vector<497x1xi32>
    %126 = arith.shrsi %120, %125 : vector<497x1xi32>
    %c15_i32_75 = arith.constant 15 : i32
    %127 = vector.broadcast %c15_i32_75 : i32 to vector<497x1xi32>
    %128 = arith.andi %126, %127 : vector<497x1xi32>
    %c15_i32_76 = arith.constant 15 : i32
    %129 = vector.broadcast %c15_i32_76 : i32 to vector<497x1xi32>
    %130 = arith.cmpi ne, %128, %129 : vector<497x1xi32>
    %131 = arith.andi %124, %130 : vector<497x1xi1>
    %cst_77 = arith.constant 0.000000e+00 : f32
    %132 = vector.shape_cast %131 : vector<497x1xi1> to vector<497x1xi1>
    %133 = vector.broadcast %132 : vector<497x1xi1> to vector<497x3xi1>
    %134 = vector.broadcast %cst_77 : f32 to vector<497x3xf32>
    %135 = arith.select %133, %117, %134 : vector<497x3xi1>, vector<497x3xf32>
    %136 = arith.truncf %135 : vector<497x3xf32> to vector<497x3xbf16>
    %c6 = arith.constant 6 : index
    %c0_78 = arith.constant 0 : index
    %c0_79 = arith.constant 0 : index
    %137 = vector.load %arg1[%c6, %c0_78, %c0_79] : memref<9x3x64xbf16, #tpu.memory_space<vmem>>, vector<1x3x64xbf16>
    %138 = vector.shape_cast %137 : vector<1x3x64xbf16> to vector<3x64xbf16>
    %cst_80 = arith.constant dense<0.000000e+00> : vector<497x64xf32>
    %139 = tpu.matmul %136, %138, %cst_80 {dimension_numbers = #tpu.dot_dimension_numbers<[1], [0], [0], [1], [0, 0, 1, 1], [], []>} : vector<497x3xbf16>, vector<3x64xbf16>, vector<497x64xf32> -> vector<497x64xf32>
    %c0_81 = arith.constant 0 : index
    %c0_82 = arith.constant 0 : index
    %140 = vector.load %arg5[%c0_81, %c0_82] : memref<512x64xf32, #tpu.memory_space<vmem>>, vector<497x64xf32>
    %141 = arith.addf %140, %139 : vector<497x64xf32>
    %c0_83 = arith.constant 0 : index
    %c0_84 = arith.constant 0 : index
    %142 = vector.load %arg5[%c0_83, %c0_84] : memref<512x64xf32, #tpu.memory_space<vmem>>, vector<497x64xf32>
    tpu.vector_store %arg5[%c0_83, %c0_84], %141 {strides = array<i32>} : memref<512x64xf32, #tpu.memory_space<vmem>>, vector<497x64xf32>,
    %c16_85 = arith.constant 16 : index
    %c0_86 = arith.constant 0 : index
    %143 = vector.load %arg0[%c16_85, %c0_86] : memref<512x3xf32, #tpu.memory_space<vmem>>, vector<496x3xf32>
    %144 = tpu.iota {dimensions = array<i32: 0>} : vector<496x1xi32>
    %c0_i32_87 = arith.constant 0 : i32
    %145 = vector.broadcast %c0_i32_87 : i32 to vector<496x1xi32>
    %146 = arith.addi %144, %145 : vector<496x1xi32>
    %c4_i32_88 = arith.constant 4 : i32
    %147 = vector.broadcast %c4_i32_88 : i32 to vector<496x1xi32>
    %148 = arith.shrsi %146, %147 : vector<496x1xi32>
    %c15_i32_89 = arith.constant 15 : i32
    %149 = vector.broadcast %c15_i32_89 : i32 to vector<496x1xi32>
    %150 = arith.andi %148, %149 : vector<496x1xi32>
    %c15_i32_90 = arith.constant 15 : i32
    %151 = vector.broadcast %c15_i32_90 : i32 to vector<496x1xi32>
    %152 = arith.cmpi ne, %150, %151 : vector<496x1xi32>
    %cst_91 = arith.constant 0.000000e+00 : f32
    %153 = vector.shape_cast %152 : vector<496x1xi1> to vector<496x1xi1>
    %154 = vector.broadcast %153 : vector<496x1xi1> to vector<496x3xi1>
    %155 = vector.broadcast %cst_91 : f32 to vector<496x3xf32>
    %156 = arith.select %154, %143, %155 : vector<496x3xi1>, vector<496x3xf32>
    %157 = arith.truncf %156 : vector<496x3xf32> to vector<496x3xbf16>
    %c7 = arith.constant 7 : index
    %c0_92 = arith.constant 0 : index
    %c0_93 = arith.constant 0 : index
    %158 = vector.load %arg1[%c7, %c0_92, %c0_93] : memref<9x3x64xbf16, #tpu.memory_space<vmem>>, vector<1x3x64xbf16>
    %159 = vector.shape_cast %158 : vector<1x3x64xbf16> to vector<3x64xbf16>
    %cst_94 = arith.constant dense<0.000000e+00> : vector<496x64xf32>
    %160 = tpu.matmul %157, %159, %cst_94 {dimension_numbers = #tpu.dot_dimension_numbers<[1], [0], [0], [1], [0, 0, 1, 1], [], []>} : vector<496x3xbf16>, vector<3x64xbf16>, vector<496x64xf32> -> vector<496x64xf32>
    %c0_95 = arith.constant 0 : index
    %c0_96 = arith.constant 0 : index
    %161 = vector.load %arg5[%c0_95, %c0_96] : memref<512x64xf32, #tpu.memory_space<vmem>>, vector<496x64xf32>
    %162 = arith.addf %161, %160 : vector<496x64xf32>
    %c0_97 = arith.constant 0 : index
    %c0_98 = arith.constant 0 : index
    %163 = vector.load %arg5[%c0_97, %c0_98] : memref<512x64xf32, #tpu.memory_space<vmem>>, vector<496x64xf32>
    tpu.vector_store %arg5[%c0_97, %c0_98], %162 {strides = array<i32>} : memref<512x64xf32, #tpu.memory_space<vmem>>, vector<496x64xf32>,
    %c17_99 = arith.constant 17 : index
    %c0_100 = arith.constant 0 : index
    %164 = vector.load %arg0[%c17_99, %c0_100] : memref<512x3xf32, #tpu.memory_space<vmem>>, vector<495x3xf32>
    %165 = tpu.iota {dimensions = array<i32: 0>} : vector<495x1xi32>
    %c0_i32_101 = arith.constant 0 : i32
    %166 = vector.broadcast %c0_i32_101 : i32 to vector<495x1xi32>
    %167 = arith.addi %165, %166 : vector<495x1xi32>
    %c15_i32_102 = arith.constant 15 : i32
    %168 = vector.broadcast %c15_i32_102 : i32 to vector<495x1xi32>
    %169 = arith.andi %167, %168 : vector<495x1xi32>
    %c15_i32_103 = arith.constant 15 : i32
    %170 = vector.broadcast %c15_i32_103 : i32 to vector<495x1xi32>
    %171 = arith.cmpi ne, %169, %170 : vector<495x1xi32>
    %c4_i32_104 = arith.constant 4 : i32
    %172 = vector.broadcast %c4_i32_104 : i32 to vector<495x1xi32>
    %173 = arith.shrsi %167, %172 : vector<495x1xi32>
    %c15_i32_105 = arith.constant 15 : i32
    %174 = vector.broadcast %c15_i32_105 : i32 to vector<495x1xi32>
    %175 = arith.andi %173, %174 : vector<495x1xi32>
    %c15_i32_106 = arith.constant 15 : i32
    %176 = vector.broadcast %c15_i32_106 : i32 to vector<495x1xi32>
    %177 = arith.cmpi ne, %175, %176 : vector<495x1xi32>
    %178 = arith.andi %171, %177 : vector<495x1xi1>
    %cst_107 = arith.constant 0.000000e+00 : f32
    %179 = vector.shape_cast %178 : vector<495x1xi1> to vector<495x1xi1>
    %180 = vector.broadcast %179 : vector<495x1xi1> to vector<495x3xi1>
    %181 = vector.broadcast %cst_107 : f32 to vector<495x3xf32>
    %182 = arith.select %180, %164, %181 : vector<495x3xi1>, vector<495x3xf32>
    %183 = arith.truncf %182 : vector<495x3xf32> to vector<495x3xbf16>
    %c8 = arith.constant 8 : index
    %c0_108 = arith.constant 0 : index
    %c0_109 = arith.constant 0 : index
    %184 = vector.load %arg1[%c8, %c0_108, %c0_109] : memref<9x3x64xbf16, #tpu.memory_space<vmem>>, vector<1x3x64xbf16>
    %185 = vector.shape_cast %184 : vector<1x3x64xbf16> to vector<3x64xbf16>
    %cst_110 = arith.constant dense<0.000000e+00> : vector<495x64xf32>
    %186 = tpu.matmul %183, %185, %cst_110 {dimension_numbers = #tpu.dot_dimension_numbers<[1], [0], [0], [1], [0, 0, 1, 1], [], []>} : vector<495x3xbf16>, vector<3x64xbf16>, vector<495x64xf32> -> vector<495x64xf32>
    %c0_111 = arith.constant 0 : index
    %c0_112 = arith.constant 0 : index
    %187 = vector.load %arg5[%c0_111, %c0_112] : memref<512x64xf32, #tpu.memory_space<vmem>>, vector<495x64xf32>
    %188 = arith.addf %187, %186 : vector<495x64xf32>
    %c0_113 = arith.constant 0 : index
    %c0_114 = arith.constant 0 : index
    %189 = vector.load %arg5[%c0_113, %c0_114] : memref<512x64xf32, #tpu.memory_space<vmem>>, vector<495x64xf32>
    tpu.vector_store %arg5[%c0_113, %c0_114], %188 {strides = array<i32>} : memref<512x64xf32, #tpu.memory_space<vmem>>, vector<495x64xf32>,
    %c0_115 = arith.constant 0 : index
    %c0_116 = arith.constant 0 : index
    %190 = vector.load %arg5[%c0_115, %c0_116] : memref<512x64xf32, #tpu.memory_space<vmem>>, vector<512x64xf32>
    %cst_117 = arith.constant dense<0.000000e+00> : vector<64xf32>
    %191 = vector.multi_reduction <add>, %190, %cst_117 [0] : vector<512x64xf32> to vector<64xf32>
    %192 = vector.shape_cast %191 : vector<64xf32> to vector<1x64xf32>
    %c0_118 = arith.constant 0 : index
    %c0_119 = arith.constant 0 : index
    %193 = vector.load %arg5[%c0_118, %c0_119] : memref<512x64xf32, #tpu.memory_space<vmem>>, vector<512x64xf32>
    %194 = arith.mulf %193, %193 : vector<512x64xf32>
    %cst_120 = arith.constant dense<0.000000e+00> : vector<64xf32>
    %195 = vector.multi_reduction <add>, %194, %cst_120 [0] : vector<512x64xf32> to vector<64xf32>
    %196 = vector.shape_cast %195 : vector<64xf32> to vector<1x64xf32>
    %cst_121 = arith.constant 0.001953125 : f32
    %197 = vector.broadcast %cst_121 : f32 to vector<1x64xf32>
    %198 = arith.mulf %192, %197 : vector<1x64xf32>
    %cst_122 = arith.constant 0.001953125 : f32
    %199 = vector.broadcast %cst_122 : f32 to vector<1x64xf32>
    %200 = arith.mulf %196, %199 : vector<1x64xf32>
    %201 = arith.mulf %198, %198 : vector<1x64xf32>
    %202 = arith.subf %200, %201 : vector<1x64xf32>
    %cst_123 = arith.constant 0.000000e+00 : f32
    %203 = vector.broadcast %cst_123 : f32 to vector<1x64xf32>
    %204 = arith.maximumf %202, %203 : vector<1x64xf32>
    %c0_124 = arith.constant 0 : index
    %c0_125 = arith.constant 0 : index
    %205 = vector.load %arg2[%c0_124, %c0_125] : memref<1x64xf32, #tpu.memory_space<vmem>>, vector<1x64xf32>
    %cst_126 = arith.constant 9.99999974E-6 : f32
    %206 = vector.broadcast %cst_126 : f32 to vector<1x64xf32>
    %207 = arith.addf %204, %206 : vector<1x64xf32>
    %208 = math.rsqrt %207 : vector<1x64xf32>
    %209 = arith.mulf %205, %208 : vector<1x64xf32>
    %c0_127 = arith.constant 0 : index
    %c0_128 = arith.constant 0 : index
    %210 = vector.load %arg3[%c0_127, %c0_128] : memref<1x64xf32, #tpu.memory_space<vmem>>, vector<1x64xf32>
    %211 = arith.mulf %198, %209 : vector<1x64xf32>
    %212 = arith.subf %210, %211 : vector<1x64xf32>
    %c0_129 = arith.constant 0 : index
    %c0_130 = arith.constant 0 : index
    %213 = vector.load %arg5[%c0_129, %c0_130] : memref<512x64xf32, #tpu.memory_space<vmem>>, vector<512x64xf32>
    %214 = vector.broadcast %209 : vector<1x64xf32> to vector<512x64xf32>
    %215 = arith.mulf %213, %214 : vector<512x64xf32>
    %216 = vector.broadcast %212 : vector<1x64xf32> to vector<512x64xf32>
    %217 = arith.addf %215, %216 : vector<512x64xf32>
    %cst_131 = arith.constant 0.000000e+00 : f32
    %218 = vector.broadcast %cst_131 : f32 to vector<512x64xf32>
    %219 = arith.maximumf %217, %218 : vector<512x64xf32>
    %c0_132 = arith.constant 0 : index
    %c0_133 = arith.constant 0 : index
    %220 = vector.load %arg5[%c0_132, %c0_133] : memref<512x64xf32, #tpu.memory_space<vmem>>, vector<512x64xf32>
    tpu.vector_store %arg5[%c0_132, %c0_133], %219 {strides = array<i32>} : memref<512x64xf32, #tpu.memory_space<vmem>>, vector<512x64xf32>,
    %c0_134 = arith.constant 0 : index
    %c0_135 = arith.constant 0 : index
    %221 = vector.load %arg5[%c0_134, %c0_135] : memref<512x64xf32, #tpu.memory_space<vmem>>, vector<496x64xf32>
    %c16_136 = arith.constant 16 : index
    %c0_137 = arith.constant 0 : index
    %222 = vector.load %arg5[%c16_136, %c0_137] : memref<512x64xf32, #tpu.memory_space<vmem>>, vector<496x64xf32>
    %223 = arith.maximumf %221, %222 : vector<496x64xf32>
    %c0_138 = arith.constant 0 : index
    %c0_139 = arith.constant 0 : index
    %224 = vector.load %arg5[%c0_138, %c0_139] : memref<512x64xf32, #tpu.memory_space<vmem>>, vector<496x64xf32>
    tpu.vector_store %arg5[%c0_138, %c0_139], %223 {strides = array<i32>} : memref<512x64xf32, #tpu.memory_space<vmem>>, vector<496x64xf32>,
    %c0_140 = arith.constant 0 : index
    %c0_141 = arith.constant 0 : index
    %225 = tpu.strided_load %arg5[%c0_140, %c0_141] {strides = array<i32: 32, 1>} : memref<512x64xf32, #tpu.memory_space<vmem>>, vector<16x64xf32>
    %c1_142 = arith.constant 1 : index
    %c0_143 = arith.constant 0 : index
    %226 = tpu.strided_load %arg5[%c1_142, %c0_143] {strides = array<i32: 32, 1>} : memref<512x64xf32, #tpu.memory_space<vmem>>, vector<16x64xf32>
    %227 = arith.maximumf %225, %226 : vector<16x64xf32>
    %c2_144 = arith.constant 2 : index
    %c0_145 = arith.constant 0 : index
    %228 = tpu.strided_load %arg5[%c2_144, %c0_145] {strides = array<i32: 32, 1>} : memref<512x64xf32, #tpu.memory_space<vmem>>, vector<16x64xf32>
    %c3_146 = arith.constant 3 : index
    %c0_147 = arith.constant 0 : index
    %229 = tpu.strided_load %arg5[%c3_146, %c0_147] {strides = array<i32: 32, 1>} : memref<512x64xf32, #tpu.memory_space<vmem>>, vector<16x64xf32>
    %230 = arith.maximumf %228, %229 : vector<16x64xf32>
    %231 = tpu.concatenate %227, %230 in 1 : vector<16x64xf32>, vector<16x64xf32> -> vector<16x128xf32>
    %c0_148 = arith.constant 0 : index
    %c0_149 = arith.constant 0 : index
    %232 = vector.load %arg4[%c0_148, %c0_149] : memref<16x512xf32, #tpu.memory_space<vmem>>, vector<16x128xf32>
    tpu.vector_store %arg4[%c0_148, %c0_149], %231 {strides = array<i32>} : memref<16x512xf32, #tpu.memory_space<vmem>>, vector<16x128xf32>,
    %c4_150 = arith.constant 4 : index
    %c0_151 = arith.constant 0 : index
    %233 = tpu.strided_load %arg5[%c4_150, %c0_151] {strides = array<i32: 32, 1>} : memref<512x64xf32, #tpu.memory_space<vmem>>, vector<16x64xf32>
    %c5_152 = arith.constant 5 : index
    %c0_153 = arith.constant 0 : index
    %234 = tpu.strided_load %arg5[%c5_152, %c0_153] {strides = array<i32: 32, 1>} : memref<512x64xf32, #tpu.memory_space<vmem>>, vector<16x64xf32>
    %235 = arith.maximumf %233, %234 : vector<16x64xf32>
    %c6_154 = arith.constant 6 : index
    %c0_155 = arith.constant 0 : index
    %236 = tpu.strided_load %arg5[%c6_154, %c0_155] {strides = array<i32: 32, 1>} : memref<512x64xf32, #tpu.memory_space<vmem>>, vector<16x64xf32>
    %c7_156 = arith.constant 7 : index
    %c0_157 = arith.constant 0 : index
    %237 = tpu.strided_load %arg5[%c7_156, %c0_157] {strides = array<i32: 32, 1>} : memref<512x64xf32, #tpu.memory_space<vmem>>, vector<16x64xf32>
    %238 = arith.maximumf %236, %237 : vector<16x64xf32>
    %239 = tpu.concatenate %235, %238 in 1 : vector<16x64xf32>, vector<16x64xf32> -> vector<16x128xf32>
    %c0_158 = arith.constant 0 : index
    %c128 = arith.constant 128 : index
    %240 = vector.load %arg4[%c0_158, %c128] : memref<16x512xf32, #tpu.memory_space<vmem>>, vector<16x128xf32>
    tpu.vector_store %arg4[%c0_158, %c128], %239 {strides = array<i32>} : memref<16x512xf32, #tpu.memory_space<vmem>>, vector<16x128xf32>,
    %c8_159 = arith.constant 8 : index
    %c0_160 = arith.constant 0 : index
    %241 = tpu.strided_load %arg5[%c8_159, %c0_160] {strides = array<i32: 32, 1>} : memref<512x64xf32, #tpu.memory_space<vmem>>, vector<16x64xf32>
    %c9 = arith.constant 9 : index
    %c0_161 = arith.constant 0 : index
    %242 = tpu.strided_load %arg5[%c9, %c0_161] {strides = array<i32: 32, 1>} : memref<512x64xf32, #tpu.memory_space<vmem>>, vector<16x64xf32>
    %243 = arith.maximumf %241, %242 : vector<16x64xf32>
    %c10 = arith.constant 10 : index
    %c0_162 = arith.constant 0 : index
    %244 = tpu.strided_load %arg5[%c10, %c0_162] {strides = array<i32: 32, 1>} : memref<512x64xf32, #tpu.memory_space<vmem>>, vector<16x64xf32>
    %c11 = arith.constant 11 : index
    %c0_163 = arith.constant 0 : index
    %245 = tpu.strided_load %arg5[%c11, %c0_163] {strides = array<i32: 32, 1>} : memref<512x64xf32, #tpu.memory_space<vmem>>, vector<16x64xf32>
    %246 = arith.maximumf %244, %245 : vector<16x64xf32>
    %247 = tpu.concatenate %243, %246 in 1 : vector<16x64xf32>, vector<16x64xf32> -> vector<16x128xf32>
    %c0_164 = arith.constant 0 : index
    %c256 = arith.constant 256 : index
    %248 = vector.load %arg4[%c0_164, %c256] : memref<16x512xf32, #tpu.memory_space<vmem>>, vector<16x128xf32>
    tpu.vector_store %arg4[%c0_164, %c256], %247 {strides = array<i32>} : memref<16x512xf32, #tpu.memory_space<vmem>>, vector<16x128xf32>,
    %c12 = arith.constant 12 : index
    %c0_165 = arith.constant 0 : index
    %249 = tpu.strided_load %arg5[%c12, %c0_165] {strides = array<i32: 32, 1>} : memref<512x64xf32, #tpu.memory_space<vmem>>, vector<16x64xf32>
    %c13 = arith.constant 13 : index
    %c0_166 = arith.constant 0 : index
    %250 = tpu.strided_load %arg5[%c13, %c0_166] {strides = array<i32: 32, 1>} : memref<512x64xf32, #tpu.memory_space<vmem>>, vector<16x64xf32>
    %251 = arith.maximumf %249, %250 : vector<16x64xf32>
    %c14 = arith.constant 14 : index
    %c0_167 = arith.constant 0 : index
    %252 = tpu.strided_load %arg5[%c14, %c0_167] {strides = array<i32: 32, 1>} : memref<512x64xf32, #tpu.memory_space<vmem>>, vector<16x64xf32>
    %c15_168 = arith.constant 15 : index
    %c0_169 = arith.constant 0 : index
    %253 = tpu.strided_load %arg5[%c15_168, %c0_169] {strides = array<i32: 32, 1>} : memref<512x64xf32, #tpu.memory_space<vmem>>, vector<16x64xf32>
    %254 = arith.maximumf %252, %253 : vector<16x64xf32>
    %255 = tpu.concatenate %251, %254 in 1 : vector<16x64xf32>, vector<16x64xf32> -> vector<16x128xf32>
    %c0_170 = arith.constant 0 : index
    %c384 = arith.constant 384 : index
    %256 = vector.load %arg4[%c0_170, %c384] : memref<16x512xf32, #tpu.memory_space<vmem>>, vector<16x128xf32>
    tpu.vector_store %arg4[%c0_170, %c384], %255 {strides = array<i32>} : memref<16x512xf32, #tpu.memory_space<vmem>>, vector<16x128xf32>,
    return
  }
}

</mosaic_0001>

<llo_original>
// kernel: conv_block_forward.1
$region0: #{conv_block_forward.1}
  #allocation0 [shape = 'u32[]', space=smem, size = 0x4, offset = 0x4, fixed_abs, tag = 'smem constant byte address 0x4 - core index']
  #allocation1 [shape = 'u32[144,128]{1,0:T(1,128)}', space=vmem, size = 0x12000, scoped, tag = 'internal scratch']
  #allocation2 [shape = 'f32[512,64]{1,0:T(8,128)}', space=vmem, size = 0x40000, scoped, tag = 'scratch operand']
  %s0 = inlined_call_operand.vmem [shape: f32[512,3], index: 0, kind: input, shape index: {}]
  %s1 = inlined_call_operand.vmem [shape: bf16[9,3,64], index: 1, kind: input, shape index: {}]
  %s2 = inlined_call_operand.vmem [shape: f32[1,64], index: 2, kind: input, shape index: {}]
  %s3 = inlined_call_operand.vmem [shape: f32[1,64], index: 3, kind: input, shape index: {}]
  %s4 = inlined_call_operand.vmem [shape: f32[16,512], index: 4, kind: output, shape index: {}]
  %s5 = sld [smem:[#allocation0]]
  $region26: #{conv_block_forward.1} parent=0
    _
  %s7 = ssub.s32 1, %s5
  %s8 = scalar_select 0, %s7, %s5
  // Predicated region
  $region2: #{conv_block_forward.1} parent=0 // pred_check
    _
  $region3: #{conv_block_forward.1} parent=0 // pred_check_branch
    %10 = sbr.rel (0) target = $region5
  $region4: #{conv_block_forward.1} parent=0 // pred_region
    _
  $region5: #{conv_block_forward.1} parent=0 // pred_fallthru
    _
  // Predicated region
  $region6: #{conv_block_forward.1} parent=0 // pred_check
    _
  $region7: #{conv_block_forward.1} parent=0 // pred_check_branch
    %12 = sbr.rel (0) target = $region9
  $region8: #{conv_block_forward.1} parent=0 // pred_region
    _
  $region9: #{conv_block_forward.1} parent=0 // pred_fallthru
    _
  // Predicated region
  $region10: #{conv_block_forward.1} parent=0 // pred_check
    _
  $region11: #{conv_block_forward.1} parent=0 // pred_check_branch
    %14 = sbr.rel (0) target = $region13
  $region12: #{conv_block_forward.1} parent=0 // pred_region
    _
  $region13: #{conv_block_forward.1} parent=0 // pred_fallthru
    _
  // Predicated region
  $region14: #{conv_block_forward.1} parent=0 // pred_check
    _
  $region15: #{conv_block_forward.1} parent=0 // pred_check_branch
    %16 = sbr.rel (0) target = $region17
  $region16: #{conv_block_forward.1} parent=0 // pred_region
    _
  $region17: #{conv_block_forward.1} parent=0 // pred_fallthru
    _
  %v18 = vld [vmem:[%s0] sm:$0xff]
  %v19 = vld [vmem:[%s0 + $0x8] sm:$0xff]
  %v20 = vld [vmem:[%s0 + $0x10] sm:$0xff]
  %v21 = vld [vmem:[%s0 + $0x18] sm:$0xff]
  %v22 = vld [vmem:[%s0 + $0x20] sm:$0xff]
  %v23 = vld [vmem:[%s0 + $0x28] sm:$0xff]
  %v24 = vld [vmem:[%s0 + $0x30] sm:$0xff]
  %v25 = vld [vmem:[%s0 + $0x38] sm:$0xff]
  %v26 = vld [vmem:[%s0 + $0x40] sm:$0xff]
  %v27 = vld [vmem:[%s0 + $0x48] sm:$0xff]
  %v28 = vld [vmem:[%s0 + $0x50] sm:$0xff]
  %v29 = vld [vmem:[%s0 + $0x58] sm:$0xff]
  %v30 = vld [vmem:[%s0 + $0x60] sm:$0xff]
  %v31 = vld [vmem:[%s0 + $0x68] sm:$0xff]
  %v32 = vld [vmem:[%s0 + $0x70] sm:$0xff]
  %v33 = vld [vmem:[%s0 + $0x78] sm:$0xff]
  %v34 = vld [vmem:[%s0 + $0x80] sm:$0xff]
  %v35 = vld [vmem:[%s0 + $0x88] sm:$0xff]
  %v36 = vld [vmem:[%s0 + $0x90] sm:$0xff]
  %v37 = vld [vmem:[%s0 + $0x98] sm:$0xff]
  %v38 = vld [vmem:[%s0 + $0xa0] sm:$0xff]
  %v39 = vld [vmem:[%s0 + $0xa8] sm:$0xff]
  %v40 = vld [vmem:[%s0 + $0xb0] sm:$0xff]
  %v41 = vld [vmem:[%s0 + $0xb8] sm:$0xff]
  %v42 = vld [vmem:[%s0 + $0xc0] sm:$0xff]
  %v43 = vld [vmem:[%s0 + $0xc8] sm:$0xff]
  %v44 = vld [vmem:[%s0 + $0xd0] sm:$0xff]
  %v45 = vld [vmem:[%s0 + $0xd8] sm:$0xff]
  %v46 = vld [vmem:[%s0 + $0xe0] sm:$0xff]
  %v47 = vld [vmem:[%s0 + $0xe8] sm:$0xff]
  %v48 = vld [vmem:[%s0 + $0xf0] sm:$0xff]
  %v49 = vld [vmem:[%s0 + $0xf8] sm:$0xff]
  %v50 = vld [vmem:[%s0 + $0x100] sm:$0xff]
  %v51 = vld [vmem:[%s0 + $0x108] sm:$0xff]
  %v52 = vld [vmem:[%s0 + $0x110] sm:$0xff]
  %v53 = vld [vmem:[%s0 + $0x118] sm:$0xff]
  %v54 = vld [vmem:[%s0 + $0x120] sm:$0xff]
  %v55 = vld [vmem:[%s0 + $0x128] sm:$0xff]
  %v56 = vld [vmem:[%s0 + $0x130] sm:$0xff]
  %v57 = vld [vmem:[%s0 + $0x138] sm:$0xff]
  %v58 = vld [vmem:[%s0 + $0x140] sm:$0xff]
  %v59 = vld [vmem:[%s0 + $0x148] sm:$0xff]
  %v60 = vld [vmem:[%s0 + $0x150] sm:$0xff]
  %v61 = vld [vmem:[%s0 + $0x158] sm:$0xff]
  %v62 = vld [vmem:[%s0 + $0x160] sm:$0xff]
  %v63 = vld [vmem:[%s0 + $0x168] sm:$0xff]
  %v64 = vld [vmem:[%s0 + $0x170] sm:$0xff]
  %v65 = vld [vmem:[%s0 + $0x178] sm:$0xff]
  %v66 = vld [vmem:[%s0 + $0x180] sm:$0xff]
  %v67 = vld [vmem:[%s0 + $0x188] sm:$0xff]
  %v68 = vld [vmem:[%s0 + $0x190] sm:$0xff]
  %v69 = vld [vmem:[%s0 + $0x198] sm:$0xff]
  %v70 = vld [vmem:[%s0 + $0x1a0] sm:$0xff]
  %v71 = vld [vmem:[%s0 + $0x1a8] sm:$0xff]
  %v72 = vld [vmem:[%s0 + $0x1b0] sm:$0xff]
  %v73 = vld [vmem:[%s0 + $0x1b8] sm:$0xff]
  %v74 = vld [vmem:[%s0 + $0x1c0] sm:$0xff]
  %v75 = vld [vmem:[%s0 + $0x1c8] sm:$0xff]
  %v76 = vld [vmem:[%s0 + $0x1d0] sm:$0xff]
  %v77 = vld [vmem:[%s0 + $0x1d8] sm:$0xff]
  %v78 = vld [vmem:[%s0 + $0x1e0] sm:$0xff]
  %v79 = vld [vmem:[%s0 + $0x1e8] sm:$0xff]
  %v80 = vld [vmem:[%s0 + $0x1f0] sm:$0xff]
  %v81 = vld [vmem:[%s0 + $0x1f8] sm:$0xff]
  %v82 = vpack.c.bf16 %v19, %v18
  %v83 = vpack.c.bf16 %v21, %v20
  %v84 = vpack.c.bf16 %v23, %v22
  %v85 = vpack.c.bf16 %v25, %v24
  %v86 = vpack.c.bf16 %v27, %v26
  %v87 = vpack.c.bf16 %v29, %v28
  %v88 = vpack.c.bf16 %v31, %v30
  %v89 = vpack.c.bf16 %v33, %v32
  %v90 = vpack.c.bf16 %v35, %v34
  %v91 = vpack.c.bf16 %v37, %v36
  %v92 = vpack.c.bf16 %v39, %v38
  %v93 = vpack.c.bf16 %v41, %v40
  %v94 = vpack.c.bf16 %v43, %v42
  %v95 = vpack.c.bf16 %v45, %v44
  %v96 = vpack.c.bf16 %v47, %v46
  %v97 = vpack.c.bf16 %v49, %v48
  %v98 = vpack.c.bf16 %v51, %v50
  %v99 = vpack.c.bf16 %v53, %v52
  %v100 = vpack.c.bf16 %v55, %v54
  %v101 = vpack.c.bf16 %v57, %v56
  %v102 = vpack.c.bf16 %v59, %v58
  %v103 = vpack.c.bf16 %v61, %v60
  %v104 = vpack.c.bf16 %v63, %v62
  %v105 = vpack.c.bf16 %v65, %v64
  %v106 = vpack.c.bf16 %v67, %v66
  %v107 = vpack.c.bf16 %v69, %v68
  %v108 = vpack.c.bf16 %v71, %v70
  %v109 = vpack.c.bf16 %v73, %v72
  %v110 = vpack.c.bf16 %v75, %v74
  %v111 = vpack.c.bf16 %v77, %v76
  %v112 = vpack.c.bf16 %v79, %v78
  %v113 = vpack.c.bf16 %v81, %v80
  %s114 = scalar_lea.vmem %s1, 8
  %v115 = vld [vmem:[%s114] sm:$0x3]
  %vm116 = vcmask 23552
  %v118 = vsel %vm116, %v82, 0
  %v121 = vsel %vm116, %v83, 0
  %v124 = vsel %vm116, %v84, 0
  %v127 = vsel %vm116, %v85, 0
  %v130 = vsel %vm116, %v86, 0
  %v133 = vsel %vm116, %v87, 0
  %v136 = vsel %vm116, %v88, 0
  %v139 = vsel %vm116, %v89, 0
  %v142 = vsel %vm116, %v90, 0
  %v145 = vsel %vm116, %v91, 0
  %v148 = vsel %vm116, %v92, 0
  %v151 = vsel %vm116, %v93, 0
  %v154 = vsel %vm116, %v94, 0
  %v157 = vsel %vm116, %v95, 0
  %v160 = vsel %vm116, %v96, 0
  %v163 = vsel %vm116, %v97, 0
  %v166 = vsel %vm116, %v98, 0
  %v169 = vsel %vm116, %v99, 0
  %v172 = vsel %vm116, %v100, 0
  %v175 = vsel %vm116, %v101, 0
  %v178 = vsel %vm116, %v102, 0
  %v181 = vsel %vm116, %v103, 0
  %v184 = vsel %vm116, %v104, 0
  %v187 = vsel %vm116, %v105, 0
  %v190 = vsel %vm116, %v106, 0
  %v193 = vsel %vm116, %v107, 0
  %v196 = vsel %vm116, %v108, 0
  %v199 = vsel %vm116, %v109, 0
  %v202 = vsel %vm116, %v110, 0
  %v205 = vsel %vm116, %v111, 0
  %v208 = vsel %vm116, %v112, 0
  %v211 = vsel %vm116, %v113, 0
  %vm213 = vcmask 1040384
  %vm214 = vcmask 1041408
  %v215 = vsel %vm213, 4294967295, 65535
  %v216 = vsel %vm214, %v215, 0
  %v218 = vand.u32 %v115, %v216
  %220 = vmatprep.subr.bf16.mxu0 0
  %221 = vmatpush1.bf16.msra.mxu0 %v218
  %222 = vmatprep.subr.bf16.mxu0 0
  %223 = vmatpush1.bf16.msra.mxu0 0
  %224 = vmatprep.subr.bf16.mxu0 0
  %225 = vmatpush1.bf16.msra.mxu0 0
  %226 = vmatprep.subr.bf16.mxu0 0
  %227 = vmatpush1.bf16.msra.mxu0 0
  %228 = vmatprep.subr.bf16.mxu0 0
  %229 = vmatpush1.bf16.msra.mxu0 0
  %230 = vmatprep.subr.bf16.mxu0 0
  %231 = vmatpush1.bf16.msra.mxu0 0
  %232 = vmatprep.subr.bf16.mxu0 0
  %233 = vmatpush1.bf16.msra.mxu0 0
  %234 = vmatprep.subr.bf16.mxu0 0
  %235 = vmatpush1.bf16.msra.mxu0 0
  %236 = vmatprep.subr.bf16.mxu0 0
  %237 = vmatpush1.bf16.msra.mxu0 0
  %238 = vmatprep.subr.bf16.mxu0 0
  %239 = vmatpush1.bf16.msra.mxu0 0
  %240 = vmatprep.subr.bf16.mxu0 0
  %241 = vmatpush1.bf16.msra.mxu0 0
  %242 = vmatprep.subr.bf16.mxu0 0
  %243 = vmatpush1.bf16.msra.mxu0 0
  %244 = vmatprep.subr.bf16.mxu0 0
  %245 = vmatpush1.bf16.msra.mxu0 0
  %246 = vmatprep.subr.bf16.mxu0 0
  %247 = vmatpush1.bf16.msra.mxu0 0
  %248 = vmatprep.subr.bf16.mxu0 0
  %249 = vmatpush1.bf16.msra.mxu0 0
  %250 = vmatprep.subr.bf16.mxu0 0
  %251 = vmatpush1.bf16.msra.mxu0 0
  %252 = vmatprep.mubr.bf16.mxu0 0
  %253 = vmatmul.mubr.bf16.gmra.mrb[0].mxu0 %v118
  %v254 = vpop.f32.mrb[0].mxu0
  %v255 = vadd.f32 0.0, %v254
  %v256 = vpop.f32.mrb[0].mxu0
  %v257 = vpop.f32.mrb[0].mxu0
  %v258 = vadd.f32 0.0, %v257
  %v259 = vpop.f32.mrb[0].mxu0
  %260 = vmatprep.mubr.bf16.mxu0 0
  %261 = vmatmul.mubr.bf16.gmra.mrb[0].mxu0 %v121
  %v262 = vpop.f32.mrb[0].mxu0
  %v263 = vadd.f32 0.0, %v262
  %v264 = vpop.f32.mrb[0].mxu0
  %v265 = vpop.f32.mrb[0].mxu0
  %v266 = vadd.f32 0.0, %v265
  %v267 = vpop.f32.mrb[0].mxu0
  %268 = vmatprep.mubr.bf16.mxu0 0
  %269 = vmatmul.mubr.bf16.gmra.mrb[0].mxu0 %v124
  %v270 = vpop.f32.mrb[0].mxu0
  %v271 = vadd.f32 0.0, %v270
  %v272 = vpop.f32.mrb[0].mxu0
  %v273 = vpop.f32.mrb[0].mxu0
  %v274 = vadd.f32 0.0, %v273
  %v275 = vpop.f32.mrb[0].mxu0
  %276 = vmatprep.mubr.bf16.mxu0 0
  %277 = vmatmul.mubr.bf16.gmra.mrb[0].mxu0 %v127
  %v278 = vpop.f32.mrb[0].mxu0
  %v279 = vadd.f32 0.0, %v278
  %v280 = vpop.f32.mrb[0].mxu0
  %v281 = vpop.f32.mrb[0].mxu0
  %v282 = vadd.f32 0.0, %v281
  %v283 = vpop.f32.mrb[0].mxu0
  %284 = vmatprep.mubr.bf16.mxu0 0
  %285 = vmatmul.mubr.bf16.gmra.mrb[0].mxu0 %v130
  %v286 = vpop.f32.mrb[0].mxu0
  %v287 = vadd.f32 0.0, %v286
  %v288 = vpop.f32.mrb[0].mxu0
  %v289 = vpop.f32.mrb[0].mxu0
  %v290 = vadd.f32 0.0, %v289
  %v291 = vpop.f32.mrb[0].mxu0
  %292 = vmatprep.mubr.bf16.mxu0 0
  %293 = vmatmul.mubr.bf16.gmra.mrb[0].mxu0 %v133
  %v294 = vpop.f32.mrb[0].mxu0
  %v295 = vadd.f32 0.0, %v294
  %v296 = vpop.f32.mrb[0].mxu0
  %v297 = vpop.f32.mrb[0].mxu0
  %v298 = vadd.f32 0.0, %v297
  %v299 = vpop.f32.mrb[0].mxu0
  %300 = vmatprep.mubr.bf16.mxu0 0
  %301 = vmatmul.mubr.bf16.gmra.mrb[0].mxu0 %v136
  %v302 = vpop.f32.mrb[0].mxu0
  %v303 = vadd.f32 0.0, %v302
  %v304 = vpop.f32.mrb[0].mxu0
  %v305 = vpop.f32.mrb[0].mxu0
  %v306 = vadd.f32 0.0, %v305
  %v307 = vpop.f32.mrb[0].mxu0
  %308 = vmatprep.mubr.bf16.mxu0 0
  %309 = vmatmul.mubr.bf16.gmra.mrb[0].mxu0 %v139
  %v310 = vpop.f32.mrb[0].mxu0
  %v311 = vadd.f32 0.0, %v310
  %v312 = vpop.f32.mrb[0].mxu0
  %v313 = vpop.f32.mrb[0].mxu0
  %v314 = vadd.f32 0.0, %v313
  %v315 = vpop.f32.mrb[0].mxu0
  %316 = vmatprep.mubr.bf16.mxu0 0
  %317 = vmatmul.mubr.bf16.gmra.mrb[0].mxu0 %v142
  %v318 = vpop.f32.mrb[0].mxu0
  %v319 = vadd.f32 0.0, %v318
  %v320 = vpop.f32.mrb[0].mxu0
  %v321 = vpop.f32.mrb[0].mxu0
  %v322 = vadd.f32 0.0, %v321
  %v323 = vpop.f32.mrb[0].mxu0
  %324 = vmatprep.mubr.bf16.mxu0 0
  %325 = vmatmul.mubr.bf16.gmra.mrb[0].mxu0 %v145
  %v326 = vpop.f32.mrb[0].mxu0
  %v327 = vadd.f32 0.0, %v326
  %v328 = vpop.f32.mrb[0].mxu0
  %v329 = vpop.f32.mrb[0].mxu0
  %v330 = vadd.f32 0.0, %v329
  %v331 = vpop.f32.mrb[0].mxu0
  %332 = vmatprep.mubr.bf16.mxu0 0
  %333 = vmatmul.mubr.bf16.gmra.mrb[0].mxu0 %v148
  %v334 = vpop.f32.mrb[0].mxu0
  %v335 = vadd.f32 0.0, %v334
  %v336 = vpop.f32.mrb[0].mxu0
  %v337 = vpop.f32.mrb[0].mxu0
  %v338 = vadd.f32 0.0, %v337
  %v339 = vpop.f32.mrb[0].mxu0
  %340 = vmatprep.mubr.bf16.mxu0 0
  %341 = vmatmul.mubr.bf16.gmra.mrb[0].mxu0 %v151
  %v342 = vpop.f32.mrb[0].mxu0
  %v343 = vadd.f32 0.0, %v342
  %v344 = vpop.f32.mrb[0].mxu0
  %v345 = vpop.f32.mrb[0].mxu0
  %v346 = vadd.f32 0.0, %v345
  %v347 = vpop.f32.mrb[0].mxu0
  %348 = vmatprep.mubr.bf16.mxu0 0
  %349 = vmatmul.mubr.bf16.gmra.mrb[0].mxu0 %v154
  %v350 = vpop.f32.mrb[0].mxu0
  %v351 = vadd.f32 0.0, %v350
  %v352 = vpop.f32.mrb[0].mxu0
  %v353 = vpop.f32.mrb[0].mxu0
  %v354 = vadd.f32 0.0, %v353
  %v355 = vpop.f32.mrb[0].mxu0
  %356 = vmatprep.mubr.bf16.mxu0 0
  %357 = vmatmul.mubr.bf16.gmra.mrb[0].mxu0 %v157
  %v358 = vpop.f32.mrb[0].mxu0
  %v359 = vadd.f32 0.0, %v358
  %v360 = vpop.f32.mrb[0].mxu0
  %v361 = vpop.f32.mrb[0].mxu0
  %v362 = vadd.f32 0.0, %v361
  %v363 = vpop.f32.mrb[0].mxu0
  %364 = vmatprep.mubr.bf16.mxu0 0
  %365 = vmatmul.mubr.bf16.gmra.mrb[0].mxu0 %v160
  %v366 = vpop.f32.mrb[0].mxu0
  %v367 = vadd.f32 0.0, %v366
  %v368 = vpop.f32.mrb[0].mxu0
  %v369 = vpop.f32.mrb[0].mxu0
  %v370 = vadd.f32 0.0, %v369
  %v371 = vpop.f32.mrb[0].mxu0
  %372 = vmatprep.mubr.bf16.mxu0 0
  %373 = vmatmul.mubr.bf16.gmra.mrb[0].mxu0 %v163
  %v374 = vpop.f32.mrb[0].mxu0
  %v375 = vadd.f32 0.0, %v374
  %v376 = vpop.f32.mrb[0].mxu0
  %v377 = vpop.f32.mrb[0].mxu0
  %v378 = vadd.f32 0.0, %v377
  %v379 = vpop.f32.mrb[0].mxu0
  %380 = vmatprep.mubr.bf16.mxu0 0
  %381 = vmatmul.mubr.bf16.gmra.mrb[0].mxu0 %v166
  %v382 = vpop.f32.mrb[0].mxu0
  %v383 = vadd.f32 0.0, %v382
  %v384 = vpop.f32.mrb[0].mxu0
  %v385 = vpop.f32.mrb[0].mxu0
  %v386 = vadd.f32 0.0, %v385
  %v387 = vpop.f32.mrb[0].mxu0
  %388 = vmatprep.mubr.bf16.mxu0 0
  %389 = vmatmul.mubr.bf16.gmra.mrb[0].mxu0 %v169
  %v390 = vpop.f32.mrb[0].mxu0
  %v391 = vadd.f32 0.0, %v390
  %v392 = vpop.f32.mrb[0].mxu0
  %v393 = vpop.f32.mrb[0].mxu0
  %v394 = vadd.f32 0.0, %v393
  %v395 = vpop.f32.mrb[0].mxu0
  %396 = vmatprep.mubr.bf16.mxu0 0
  %397 = vmatmul.mubr.bf16.gmra.mrb[0].mxu0 %v172
  %v398 = vpop.f32.mrb[0].mxu0
  %v399 = vadd.f32 0.0, %v398
  %v400 = vpop.f32.mrb[0].mxu0
  %v401 = vpop.f32.mrb[0].mxu0
  %v402 = vadd.f32 0.0, %v401
  %v403 = vpop.f32.mrb[0].mxu0
  %404 = vmatprep.mubr.bf16.mxu0 0
  %405 = vmatmul.mubr.bf16.gmra.mrb[0].mxu0 %v175
  %v406 = vpop.f32.mrb[0].mxu0
  %v407 = vadd.f32 0.0, %v406
  %v408 = vpop.f32.mrb[0].mxu0
  %v409 = vpop.f32.mrb[0].mxu0
  %v410 = vadd.f32 0.0, %v409
  %v411 = vpop.f32.mrb[0].mxu0
  %412 = vmatprep.mubr.bf16.mxu0 0
  %413 = vmatmul.mubr.bf16.gmra.mrb[0].mxu0 %v178
  %v414 = vpop.f32.mrb[0].mxu0
  %v415 = vadd.f32 0.0, %v414
  %v416 = vpop.f32.mrb[0].mxu0
  %v417 = vpop.f32.mrb[0].mxu0
  %v418 = vadd.f32 0.0, %v417
  %v419 = vpop.f32.mrb[0].mxu0
  %420 = vmatprep.mubr.bf16.mxu0 0
  %421 = vmatmul.mubr.bf16.gmra.mrb[0].mxu0 %v181
  %v422 = vpop.f32.mrb[0].mxu0
  %v423 = vadd.f32 0.0, %v422
  %v424 = vpop.f32.mrb[0].mxu0
  %v425 = vpop.f32.mrb[0].mxu0
  %v426 = vadd.f32 0.0, %v425
  %v427 = vpop.f32.mrb[0].mxu0
  %428 = vmatprep.mubr.bf16.mxu0 0
  %429 = vmatmul.mubr.bf16.gmra.mrb[0].mxu0 %v184
  %v430 = vpop.f32.mrb[0].mxu0
  %v431 = vadd.f32 0.0, %v430
  %v432 = vpop.f32.mrb[0].mxu0
  %v433 = vpop.f32.mrb[0].mxu0
  %v434 = vadd.f32 0.0, %v433
  %v435 = vpop.f32.mrb[0].mxu0
  %436 = vmatprep.mubr.bf16.mxu0 0
  %437 = vmatmul.mubr.bf16.gmra.mrb[0].mxu0 %v187
  %v438 = vpop.f32.mrb[0].mxu0
  %v439 = vadd.f32 0.0, %v438
  %v440 = vpop.f32.mrb[0].mxu0
  %v441 = vpop.f32.mrb[0].mxu0
  %v442 = vadd.f32 0.0, %v441
  %v443 = vpop.f32.mrb[0].mxu0
  %444 = vmatprep.mubr.bf16.mxu0 0
  %445 = vmatmul.mubr.bf16.gmra.mrb[0].mxu0 %v190
  %v446 = vpop.f32.mrb[0].mxu0
  %v447 = vadd.f32 0.0, %v446
  %v448 = vpop.f32.mrb[0].mxu0
  %v449 = vpop.f32.mrb[0].mxu0
  %v450 = vadd.f32 0.0, %v449
  %v451 = vpop.f32.mrb[0].mxu0
  %452 = vmatprep.mubr.bf16.mxu0 0
  %453 = vmatmul.mubr.bf16.gmra.mrb[0].mxu0 %v193
  %v454 = vpop.f32.mrb[0].mxu0
  %v455 = vadd.f32 0.0, %v454
  %v456 = vpop.f32.mrb[0].mxu0
  %v457 = vpop.f32.mrb[0].mxu0
  %v458 = vadd.f32 0.0, %v457
  %v459 = vpop.f32.mrb[0].mxu0
  %460 = vmatprep.mubr.bf16.mxu0 0
  %461 = vmatmul.mubr.bf16.gmra.mrb[0].mxu0 %v196
  %v462 = vpop.f32.mrb[0].mxu0
  %v463 = vadd.f32 0.0, %v462
  %v464 = vpop.f32.mrb[0].mxu0
  %v465 = vpop.f32.mrb[0].mxu0
  %v466 = vadd.f32 0.0, %v465
  %v467 = vpop.f32.mrb[0].mxu0
  %468 = vmatprep.mubr.bf16.mxu0 0
  %469 = vmatmul.mubr.bf16.gmra.mrb[0].mxu0 %v199
  %v470 = vpop.f32.mrb[0].mxu0
  %v471 = vadd.f32 0.0, %v470
  %v472 = vpop.f32.mrb[0].mxu0
  %v473 = vpop.f32.mrb[0].mxu0
  %v474 = vadd.f32 0.0, %v473
  %v475 = vpop.f32.mrb[0].mxu0
  %476 = vmatprep.mubr.bf16.mxu0 0
  %477 = vmatmul.mubr.bf16.gmra.mrb[0].mxu0 %v202
  %v478 = vpop.f32.mrb[0].mxu0
  %v479 = vadd.f32 0.0, %v478
  %v480 = vpop.f32.mrb[0].mxu0
  %v481 = vpop.f32.mrb[0].mxu0
  %v482 = vadd.f32 0.0, %v481
  %v483 = vpop.f32.mrb[0].mxu0
  %484 = vmatprep.mubr.bf16.mxu0 0
  %485 = vmatmul.mubr.bf16.gmra.mrb[0].mxu0 %v205
  %v486 = vpop.f32.mrb[0].mxu0
  %v487 = vadd.f32 0.0, %v486
  %v488 = vpop.f32.mrb[0].mxu0
  %v489 = vpop.f32.mrb[0].mxu0
  %v490 = vadd.f32 0.0, %v489
  %v491 = vpop.f32.mrb[0].mxu0
  %492 = vmatprep.mubr.bf16.mxu0 0
  %493 = vmatmul.mubr.bf16.gmra.mrb[0].mxu0 %v208
  %v494 = vpop.f32.mrb[0].mxu0
  %v495 = vadd.f32 0.0, %v494
  %v496 = vpop.f32.mrb[0].mxu0
  %v497 = vpop.f32.mrb[0].mxu0
  %v498 = vadd.f32 0.0, %v497
  %v499 = vpop.f32.mrb[0].mxu0
  %500 = vmatprep.mubr.bf16.mxu0 0
  %501 = vmatmul.mubr.bf16.gmra.mrb[0].mxu0 %v211
  %v502 = vpop.f32.mrb[0].mxu0
  %v503 = vadd.f32 0.0, %v502
  %v504 = vpop.f32.mrb[0].mxu0
  %v505 = vpop.f32.mrb[0].mxu0
  %v506 = vadd.f32 0.0, %v505
  %v507 = vpop.f32.mrb[0].mxu0
  %508 = vdwg.mxu0
  %vm509 = vcmask 523264
  %510 = vst.msk [vmem:[#allocation2] sm:$0xff] %vm509, %v255
  %511 = vst.msk [vmem:[#allocation2 + $0x8] sm:$0xff] %vm509, %v258
  %512 = vst.msk [vmem:[#allocation2 + $0x10] sm:$0xff] %vm509, %v263
  %513 = vst.msk [vmem:[#allocation2 + $0x18] sm:$0xff] %vm509, %v266
  %514 = vst.msk [vmem:[#allocation2 + $0x20] sm:$0xff] %vm509, %v271
  %515 = vst.msk [vmem:[#allocation2 + $0x28] sm:$0xff] %vm509, %v274
  %516 = vst.msk [vmem:[#allocation2 + $0x30] sm:$0xff] %vm509, %v279
  %517 = vst.msk [vmem:[#allocation2 + $0x38] sm:$0xff] %vm509, %v282
  %518 = vst.msk [vmem:[#allocation2 + $0x40] sm:$0xff] %vm509, %v287
  %519 = vst.msk [vmem:[#allocation2 + $0x48] sm:$0xff] %vm509, %v290
  %520 = vst.msk [vmem:[#allocation2 + $0x50] sm:$0xff] %vm509, %v295
  %521 = vst.msk [vmem:[#allocation2 + $0x58] sm:$0xff] %vm509, %v298
  %522 = vst.msk [vmem:[#allocation2 + $0x60] sm:$0xff] %vm509, %v303
  %523 = vst.msk [vmem:[#allocation2 + $0x68] sm:$0xff] %vm509, %v306
  %524 = vst.msk [vmem:[#allocation2 + $0x70] sm:$0xff] %vm509, %v311
  %525 = vst.msk [vmem:[#allocation2 + $0x78] sm:$0xff] %vm509, %v314
  %526 = vst.msk [vmem:[#allocation2 + $0x80] sm:$0xff] %vm509, %v319
  %527 = vst.msk [vmem:[#allocation2 + $0x88] sm:$0xff] %vm509, %v322
  %528 = vst.msk [vmem:[#allocation2 + $0x90] sm:$0xff] %vm509, %v327
  %529 = vst.msk [vmem:[#allocation2 + $0x98] sm:$0xff] %vm509, %v330
  %530 = vst.msk [vmem:[#allocation2 + $0xa0] sm:$0xff] %vm509, %v335
  %531 = vst.msk [vmem:[#allocation2 + $0xa8] sm:$0xff] %vm509, %v338
  %532 = vst.msk [vmem:[#allocation2 + $0xb0] sm:$0xff] %vm509, %v343
  %533 = vst.msk [vmem:[#allocation2 + $0xb8] sm:$0xff] %vm509, %v346
  %534 = vst.msk [vmem:[#allocation2 + $0xc0] sm:$0xff] %vm509, %v351
  %535 = vst.msk [vmem:[#allocation2 + $0xc8] sm:$0xff] %vm509, %v354
  %536 = vst.msk [vmem:[#allocation2 + $0xd0] sm:$0xff] %vm509, %v359
  %537 = vst.msk [vmem:[#allocation2 + $0xd8] sm:$0xff] %vm509, %v362
  %538 = vst.msk [vmem:[#allocation2 + $0xe0] sm:$0xff] %vm509, %v367
  %539 = vst.msk [vmem:[#allocation2 + $0xe8] sm:$0xff] %vm509, %v370
  %540 = vst.msk [vmem:[#allocation2 + $0xf0] sm:$0xff] %vm509, %v375
  %541 = vst.msk [vmem:[#allocation2 + $0xf8] sm:$0xff] %vm509, %v378
  %542 = vst.msk [vmem:[#allocation2 + $0x100] sm:$0xff] %vm509, %v383
  %543 = vst.msk [vmem:[#allocation2 + $0x108] sm:$0xff] %vm509, %v386
  %544 = vst.msk [vmem:[#allocation2 + $0x110] sm:$0xff] %vm509, %v391
  %545 = vst.msk [vmem:[#allocation2 + $0x118] sm:$0xff] %vm509, %v394
  %546 = vst.msk [vmem:[#allocation2 + $0x120] sm:$0xff] %vm509, %v399
  %547 = vst.msk [vmem:[#allocation2 + $0x128] sm:$0xff] %vm509, %v402
  %548 = vst.msk [vmem:[#allocation2 + $0x130] sm:$0xff] %vm509, %v407
  %549 = vst.msk [vmem:[#allocation2 + $0x138] sm:$0xff] %vm509, %v410
  %550 = vst.msk [vmem:[#allocation2 + $0x140] sm:$0xff] %vm509, %v415
  %551 = vst.msk [vmem:[#allocation2 + $0x148] sm:$0xff] %vm509, %v418
  %552 = vst.msk [vmem:[#allocation2 + $0x150] sm:$0xff] %vm509, %v423
  %553 = vst.msk [vmem:[#allocation2 + $0x158] sm:$0xff] %vm509, %v426
  %554 = vst.msk [vmem:[#allocation2 + $0x160] sm:$0xff] %vm509, %v431
  %555 = vst.msk [vmem:[#allocation2 + $0x168] sm:$0xff] %vm509, %v434
  %556 = vst.msk [vmem:[#allocation2 + $0x170] sm:$0xff] %vm509, %v439
  %557 = vst.msk [vmem:[#allocation2 + $0x178] sm:$0xff] %vm509, %v442
  %558 = vst.msk [vmem:[#allocation2 + $0x180] sm:$0xff] %vm509, %v447
  %559 = vst.msk [vmem:[#allocation2 + $0x188] sm:$0xff] %vm509, %v450
  %560 = vst.msk [vmem:[#allocation2 + $0x190] sm:$0xff] %vm509, %v455
  %561 = vst.msk [vmem:[#allocation2 + $0x198] sm:$0xff] %vm509, %v458
  %562 = vst.msk [vmem:[#allocation2 + $0x1a0] sm:$0xff] %vm509, %v463
  %563 = vst.msk [vmem:[#allocation2 + $0x1a8] sm:$0xff] %vm509, %v466
  %564 = vst.msk [vmem:[#allocation2 + $0x1b0] sm:$0xff] %vm509, %v471
  %565 = vst.msk [vmem:[#allocation2 + $0x1b8] sm:$0xff] %vm509, %v474
  %566 = vst.msk [vmem:[#allocation2 + $0x1c0] sm:$0xff] %vm509, %v479
  %567 = vst.msk [vmem:[#allocation2 + $0x1c8] sm:$0xff] %vm509, %v482
  %568 = vst.msk [vmem:[#allocation2 + $0x1d0] sm:$0xff] %vm509, %v487
  %569 = vst.msk [vmem:[#allocation2 + $0x1d8] sm:$0xff] %vm509, %v490
  %570 = vst.msk [vmem:[#allocation2 + $0x1e0] sm:$0xff] %vm509, %v495
  %571 = vst.msk [vmem:[#allocation2 + $0x1e8] sm:$0xff] %vm509, %v498
  %572 = vst.msk [vmem:[#allocation2 + $0x1f0] sm:$0xff] %vm509, %v503
  %573 = vst.msk [vmem:[#allocation2 + $0x1f8] sm:$0xff] %vm509, %v506
  %v574 = vld [vmem:[%s0] sm:$0xff]
  %v575 = vld [vmem:[%s0 + $0x8] sm:$0xff]
  %v576 = vld [vmem:[%s0 + $0x10] sm:$0xff]
  %v577 = vld [vmem:[%s0 + $0x18] sm:$0xff]
  %v578 = vld [vmem:[%s0 + $0x20] sm:$0xff]
  %v579 = vld [vmem:[%s0 + $0x28] sm:$0xff]
  %v580 = vld [vmem:[%s0 + $0x30] sm:$0xff]
  %v581 = vld [vmem:[%s0 + $0x38] sm:$0xff]
  %v582 = vld [vmem:[%s0 + $0x40] sm:$0xff]
  %v583 = vld [vmem:[%s0 + $0x48] sm:$0xff]
  %v584 = vld [vmem:[%s0 + $0x50] sm:$0xff]
  %v585 = vld [vmem:[%s0 + $0x58] sm:$0xff]
  %v586 = vld [vmem:[%s0 + $0x60] sm:$0xff]
  %v587 = vld [vmem:[%s0 + $0x68] sm:$0xff]
  %v588 = vld [vmem:[%s0 + $0x70] sm:$0xff]
  %v589 = vld [vmem:[%s0 + $0x78] sm:$0xff]
  %v590 = vld [vmem:[%s0 + $0x80] sm:$0xff]
  %v591 = vld [vmem:[%s0 + $0x88] sm:$0xff]
  %v592 = vld [vmem:[%s0 + $0x90] sm:$0xff]
  %v593 = vld [vmem:[%s0 + $0x98] sm:$0xff]
  %v594 = vld [vmem:[%s0 + $0xa0] sm:$0xff]
  %v595 = vld [vmem:[%s0 + $0xa8] sm:$0xff]
  %v596 = vld [vmem:[%s0 + $0xb0] sm:$0xff]
  %v597 = vld [vmem:[%s0 + $0xb8] sm:$0xff]
  %v598 = vld [vmem:[%s0 + $0xc0] sm:$0xff]
  %v599 = vld [vmem:[%s0 + $0xc8] sm:$0xff]
  %v600 = vld [vmem:[%s0 + $0xd0] sm:$0xff]
  %v601 = vld [vmem:[%s0 + $0xd8] sm:$0xff]
  %v602 = vld [vmem:[%s0 + $0xe0] sm:$0xff]
  %v603 = vld [vmem:[%s0 + $0xe8] sm:$0xff]
  %v604 = vld [vmem:[%s0 + $0xf0] sm:$0xff]
  %v605 = vld [vmem:[%s0 + $0xf8] sm:$0xff]
  %v606 = vld [vmem:[%s0 + $0x100] sm:$0xff]
  %v607 = vld [vmem:[%s0 + $0x108] sm:$0xff]
  %v608 = vld [vmem:[%s0 + $0x110] sm:$0xff]
  %v609 = vld [vmem:[%s0 + $0x118] sm:$0xff]
  %v610 = vld [vmem:[%s0 + $0x120] sm:$0xff]
  %v611 = vld [vmem:[%s0 + $0x128] sm:$0xff]
  %v612 = vld [vmem:[%s0 + $0x130] sm:$0xff]
  %v613 = vld [vmem:[%s0 + $0x138] sm:$0xff]
  %v614 = vld [vmem:[%s0 + $0x140] sm:$0xff]
  %v615 = vld [vmem:[%s0 + $0x148] sm:$0xff]
  %v616 = vld [vmem:[%s0 + $0x150] sm:$0xff]
  %v617 = vld [vmem:[%s0 + $0x158] sm:$0xff]
  %v618 = vld [vmem:[%s0 + $0x160] sm:$0xff]
  %v619 = vld [vmem:[%s0 + $0x168] sm:$0xff]
  %v620 = vld [vmem:[%s0 + $0x170] sm:$0xff]
  %v621 = vld [vmem:[%s0 + $0x178] sm:$0xff]
  %v622 = vld [vmem:[%s0 + $0x180] sm:$0xff]
  %v623 = vld [vmem:[%s0 + $0x188] sm:$0xff]
  %v624 = vld [vmem:[%s0 + $0x190] sm:$0xff]
  %v625 = vld [vmem:[%s0 + $0x198] sm:$0xff]
  %v626 = vld [vmem:[%s0 + $0x1a0] sm:$0xff]
  %v627 = vld [vmem:[%s0 + $0x1a8] sm:$0xff]
  %v628 = vld [vmem:[%s0 + $0x1b0] sm:$0xff]
  %v629 = vld [vmem:[%s0 + $0x1b8] sm:$0xff]
  %v630 = vld [vmem:[%s0 + $0x1c0] sm:$0xff]
  %v631 = vld [vmem:[%s0 + $0x1c8] sm:$0xff]
  %v632 = vld [vmem:[%s0 + $0x1d0] sm:$0xff]
  %v633 = vld [vmem:[%s0 + $0x1d8] sm:$0xff]
  %v634 = vld [vmem:[%s0 + $0x1e0] sm:$0xff]
  %v635 = vld [vmem:[%s0 + $0x1e8] sm:$0x7f]
  %v636 = vlaneseq
  %v637 = vshrl.u32 %v636, 7
  %v638 = vadd.s32 %v637, 8
  %v639 = vadd.s32 %v637, 16
  %v640 = vadd.s32 %v637, 24
  %v641 = vadd.s32 %v637, 32
  %v642 = vadd.s32 %v637, 40
  %v643 = vadd.s32 %v637, 48
  %v644 = vadd.s32 %v637, 56
  %v645 = vadd.s32 %v637, 64
  %v646 = vadd.s32 %v637, 72
  %v647 = vadd.s32 %v637, 80
  %v648 = vadd.s32 %v637, 88
  %v649 = vadd.s32 %v637, 96
  %v650 = vadd.s32 %v637, 104
  %v651 = vadd.s32 %v637, 112
  %v652 = vadd.s32 %v637, 120
  %v653 = vadd.s32 %v637, 128
  %v654 = vadd.s32 %v637, 136
  %v655 = vadd.s32 %v637, 144
  %v656 = vadd.s32 %v637, 152
  %v657 = vadd.s32 %v637, 160
  %v658 = vadd.s32 %v637, 168
  %v659 = vadd.s32 %v637, 176
  %v660 = vadd.s32 %v637, 184
  %v661 = vadd.s32 %v637, 192
  %v662 = vadd.s32 %v637, 200
  %v663 = vadd.s32 %v637, 208
  %v664 = vadd.s32 %v637, 216
  %v665 = vadd.s32 %v637, 224
  %v666 = vadd.s32 %v637, 232
  %v667 = vadd.s32 %v637, 240
  %v668 = vadd.s32 %v637, 248
  %v669 = vadd.s32 %v637, 256
  %v670 = vadd.s32 %v637, 264
  %v671 = vadd.s32 %v637, 272
  %v672 = vadd.s32 %v637, 280
  %v673 = vadd.s32 %v637, 288
  %v674 = vadd.s32 %v637, 296
  %v675 = vadd.s32 %v637, 304
  %v676 = vadd.s32 %v637, 312
  %v677 = vadd.s32 %v637, 320
  %v678 = vadd.s32 %v637, 328
  %v679 = vadd.s32 %v637, 336
  %v680 = vadd.s32 %v637, 344
  %v681 = vadd.s32 %v637, 352
  %v682 = vadd.s32 %v637, 360
  %v683 = vadd.s32 %v637, 368
  %v684 = vadd.s32 %v637, 376
  %v685 = vadd.s32 %v637, 384
  %v686 = vadd.s32 %v637, 392
  %v687 = vadd.s32 %v637, 400
  %v688 = vadd.s32 %v637, 408
  %v689 = vadd.s32 %v637, 416
  %v690 = vadd.s32 %v637, 424
  %v691 = vadd.s32 %v637, 432
  %v692 = vadd.s32 %v637, 440
  %v693 = vadd.s32 %v637, 448
  %v694 = vadd.s32 %v637, 456
  %v695 = vadd.s32 %v637, 464
  %v696 = vadd.s32 %v637, 472
  %v697 = vadd.s32 %v637, 480
  %v698 = vadd.s32 %v637, 488
  %v699 = vadd.s32 %v637, 17
  %v700 = vadd.s32 %v638, 17
  %v701 = vadd.s32 %v639, 17
  %v702 = vadd.s32 %v640, 17
  %v703 = vadd.s32 %v641, 17
  %v704 = vadd.s32 %v642, 17
  %v705 = vadd.s32 %v643, 17
  %v706 = vadd.s32 %v644, 17
  %v707 = vadd.s32 %v645, 17
  %v708 = vadd.s32 %v646, 17
  %v709 = vadd.s32 %v647, 17
  %v710 = vadd.s32 %v648, 17
  %v711 = vadd.s32 %v649, 17
  %v712 = vadd.s32 %v650, 17
  %v713 = vadd.s32 %v651, 17
  %v714 = vadd.s32 %v652, 17
  %v715 = vadd.s32 %v653, 17
  %v716 = vadd.s32 %v654, 17
  %v717 = vadd.s32 %v655, 17
  %v718 = vadd.s32 %v656, 17
  %v719 = vadd.s32 %v657, 17
  %v720 = vadd.s32 %v658, 17
  %v721 = vadd.s32 %v659, 17
  %v722 = vadd.s32 %v660, 17
  %v723 = vadd.s32 %v661, 17
  %v724 = vadd.s32 %v662, 17
  %v725 = vadd.s32 %v663, 17
  %v726 = vadd.s32 %v664, 17
  %v727 = vadd.s32 %v665, 17
  %v728 = vadd.s32 %v666, 17
  %v729 = vadd.s32 %v667, 17
  %v730 = vadd.s32 %v668, 17
  %v731 = vadd.s32 %v669, 17
  %v732 = vadd.s32 %v670, 17
  %v733 = vadd.s32 %v671, 17
  %v734 = vadd.s32 %v672, 17
  %v735 = vadd.s32 %v673, 17
  %v736 = vadd.s32 %v674, 17
  %v737 = vadd.s32 %v675, 17
  %v738 = vadd.s32 %v676, 17
  %v739 = vadd.s32 %v677, 17
  %v740 = vadd.s32 %v678, 17
  %v741 = vadd.s32 %v679, 17
  %v742 = vadd.s32 %v680, 17
  %v743 = vadd.s32 %v681, 17
  %v744 = vadd.s32 %v682, 17
  %v745 = vadd.s32 %v683, 17
  %v746 = vadd.s32 %v684, 17
  %v747 = vadd.s32 %v685, 17
  %v748 = vadd.s32 %v686, 17
  %v749 = vadd.s32 %v687, 17
  %v750 = vadd.s32 %v688, 17
  %v751 = vadd.s32 %v689, 17
  %v752 = vadd.s32 %v690, 17
  %v753 = vadd.s32 %v691, 17
  %v754 = vadd.s32 %v692, 17
  %v755 = vadd.s32 %v693, 17
  %v756 = vadd.s32 %v694, 17
  %v757 = vadd.s32 %v695, 17
  %v758 = vadd.s32 %v696, 17
  %v759 = vadd.s32 %v697, 17
  %v760 = vadd.s32 %v698, 17
  %v761 = vand.u32 %v699, 15
  %v762 = vand.u32 %v700, 15
  %v763 = vand.u32 %v701, 15
  %v764 = vand.u32 %v702, 15
  %v765 = vand.u32 %v703, 15
  %v766 = vand.u32 %v704, 15
  %v767 = vand.u32 %v705, 15
  %v768 = vand.u32 %v706, 15
  %v769 = vand.u32 %v707, 15
  %v770 = vand.u32 %v708, 15
  %v771 = vand.u32 %v709, 15
  %v772 = vand.u32 %v710, 15
  %v773 = vand.u32 %v711, 15
  %v774 = vand.u32 %v712, 15
  %v775 = vand.u32 %v713, 15
  %v776 = vand.u32 %v714, 15
  %v777 = vand.u32 %v715, 15
  %v778 = vand.u32 %v716, 15
  %v779 = vand.u32 %v717, 15
  %v780 = vand.u32 %v718, 15
  %v781 = vand.u32 %v719, 15
  %v782 = vand.u32 %v720, 15
  %v783 = vand.u32 %v721, 15
  %v784 = vand.u32 %v722, 15
  %v785 = vand.u32 %v723, 15
  %v786 = vand.u32 %v724, 15
  %v787 = vand.u32 %v725, 15
  %v788 = vand.u32 %v726, 15
  %v789 = vand.u32 %v727, 15
  %v790 = vand.u32 %v728, 15
  %v791 = vand.u32 %v729, 15
  %v792 = vand.u32 %v730, 15
  %v793 = vand.u32 %v731, 15
  %v794 = vand.u32 %v732, 15
  %v795 = vand.u32 %v733, 15
  %v796 = vand.u32 %v734, 15
  %v797 = vand.u32 %v735, 15
  %v798 = vand.u32 %v736, 15
  %v799 = vand.u32 %v737, 15
  %v800 = vand.u32 %v738, 15
  %v801 = vand.u32 %v739, 15
  %v802 = vand.u32 %v740, 15
  %v803 = vand.u32 %v741, 15
  %v804 = vand.u32 %v742, 15
  %v805 = vand.u32 %v743, 15
  %v806 = vand.u32 %v744, 15
  %v807 = vand.u32 %v745, 15
  %v808 = vand.u32 %v746, 15
  %v809 = vand.u32 %v747, 15
  %v810 = vand.u32 %v748, 15
  %v811 = vand.u32 %v749, 15
  %v812 = vand.u32 %v750, 15
  %v813 = vand.u32 %v751, 15
  %v814 = vand.u32 %v752, 15
  %v815 = vand.u32 %v753, 15
  %v816 = vand.u32 %v754, 15
  %v817 = vand.u32 %v755, 15
  %v818 = vand.u32 %v756, 15
  %v819 = vand.u32 %v757, 15
  %v820 = vand.u32 %v758, 15
  %v821 = vand.u32 %v759, 15
  %v822 = vand.u32 %v760, 15
  %vm823 = vcmp.ne.s32.totalorder %v761, 0
  %vm824 = vcmp.ne.s32.totalorder %v762, 0
  %vm825 = vcmp.ne.s32.totalorder %v763, 0
  %vm826 = vcmp.ne.s32.totalorder %v764, 0
  %vm827 = vcmp.ne.s32.totalorder %v765, 0
  %vm828 = vcmp.ne.s32.totalorder %v766, 0
  %vm829 = vcmp.ne.s32.totalorder %v767, 0
  %vm830 = vcmp.ne.s32.totalorder %v768, 0
  %vm831 = vcmp.ne.s32.totalorder %v769, 0
  %vm832 = vcmp.ne.s32.totalorder %v770, 0
  %vm833 = vcmp.ne.s32.totalorder %v771, 0
  %vm834 = vcmp.ne.s32.totalorder %v772, 0
  %vm835 = vcmp.ne.s32.totalorder %v773, 0
  %vm836 = vcmp.ne.s32.totalorder %v774, 0
  %vm837 = vcmp.ne.s32.totalorder %v775, 0
  %vm838 = vcmp.ne.s32.totalorder %v776, 0
  %vm839 = vcmp.ne.s32.totalorder %v777, 0
  %vm840 = vcmp.ne.s32.totalorder %v778, 0
  %vm841 = vcmp.ne.s32.totalorder %v779, 0
  %vm842 = vcmp.ne.s32.totalorder %v780, 0
  %vm843 = vcmp.ne.s32.totalorder %v781, 0
  %vm844 = vcmp.ne.s32.totalorder %v782, 0
  %vm845 = vcmp.ne.s32.totalorder %v783, 0
  %vm846 = vcmp.ne.s32.totalorder %v784, 0
  %vm847 = vcmp.ne.s32.totalorder %v785, 0
  %vm848 = vcmp.ne.s32.totalorder %v786, 0
  %vm849 = vcmp.ne.s32.totalorder %v787, 0
  %vm850 = vcmp.ne.s32.totalorder %v788, 0
  %vm851 = vcmp.ne.s32.totalorder %v789, 0
  %vm852 = vcmp.ne.s32.totalorder %v790, 0
  %vm853 = vcmp.ne.s32.totalorder %v791, 0
  %vm854 = vcmp.ne.s32.totalorder %v792, 0
  %vm855 = vcmp.ne.s32.totalorder %v793, 0
  %vm856 = vcmp.ne.s32.totalorder %v794, 0
  %vm857 = vcmp.ne.s32.totalorder %v795, 0
  %vm858 = vcmp.ne.s32.totalorder %v796, 0
  %vm859 = vcmp.ne.s32.totalorder %v797, 0
  %vm860 = vcmp.ne.s32.totalorder %v798, 0
  %vm861 = vcmp.ne.s32.totalorder %v799, 0
  %vm862 = vcmp.ne.s32.totalorder %v800, 0
  %vm863 = vcmp.ne.s32.totalorder %v801, 0
  %vm864 = vcmp.ne.s32.totalorder %v802, 0
  %vm865 = vcmp.ne.s32.totalorder %v803, 0
  %vm866 = vcmp.ne.s32.totalorder %v804, 0
  %vm867 = vcmp.ne.s32.totalorder %v805, 0
  %vm868 = vcmp.ne.s32.totalorder %v806, 0
  %vm869 = vcmp.ne.s32.totalorder %v807, 0
  %vm870 = vcmp.ne.s32.totalorder %v808, 0
  %vm871 = vcmp.ne.s32.totalorder %v809, 0
  %vm872 = vcmp.ne.s32.totalorder %v810, 0
  %vm873 = vcmp.ne.s32.totalorder %v811, 0
  %vm874 = vcmp.ne.s32.totalorder %v812, 0
  %vm875 = vcmp.ne.s32.totalorder %v813, 0
  %vm876 = vcmp.ne.s32.totalorder %v814, 0
  %vm877 = vcmp.ne.s32.totalorder %v815, 0
  %vm878 = vcmp.ne.s32.totalorder %v816, 0
  %vm879 = vcmp.ne.s32.totalorder %v817, 0
  %vm880 = vcmp.ne.s32.totalorder %v818, 0
  %vm881 = vcmp.ne.s32.totalorder %v819, 0
  %vm882 = vcmp.ne.s32.totalorder %v820, 0
  %vm883 = vcmp.ne.s32.totalorder %v821, 0
  %vm884 = vcmp.ne.s32.totalorder %v822, 0
  %v885 = vshra.s32 %v699, 4
  %v886 = vshra.s32 %v700, 4
  %v887 = vshra.s32 %v701, 4
  %v888 = vshra.s32 %v702, 4
  %v889 = vshra.s32 %v703, 4
  %v890 = vshra.s32 %v704, 4
  %v891 = vshra.s32 %v705, 4
  %v892 = vshra.s32 %v706, 4
  %v893 = vshra.s32 %v707, 4
  %v894 = vshra.s32 %v708, 4
  %v895 = vshra.s32 %v709, 4
  %v896 = vshra.s32 %v710, 4
  %v897 = vshra.s32 %v711, 4
  %v898 = vshra.s32 %v712, 4
  %v899 = vshra.s32 %v713, 4
  %v900 = vshra.s32 %v714, 4
  %v901 = vshra.s32 %v715, 4
  %v902 = vshra.s32 %v716, 4
  %v903 = vshra.s32 %v717, 4
  %v904 = vshra.s32 %v718, 4
  %v905 = vshra.s32 %v719, 4
  %v906 = vshra.s32 %v720, 4
  %v907 = vshra.s32 %v721, 4
  %v908 = vshra.s32 %v722, 4
  %v909 = vshra.s32 %v723, 4
  %v910 = vshra.s32 %v724, 4
  %v911 = vshra.s32 %v725, 4
  %v912 = vshra.s32 %v726, 4
  %v913 = vshra.s32 %v727, 4
  %v914 = vshra.s32 %v728, 4
  %v915 = vshra.s32 %v729, 4
  %v916 = vshra.s32 %v730, 4
  %v917 = vshra.s32 %v731, 4
  %v918 = vshra.s32 %v732, 4
  %v919 = vshra.s32 %v733, 4
  %v920 = vshra.s32 %v734, 4
  %v921 = vshra.s32 %v735, 4
  %v922 = vshra.s32 %v736, 4
  %v923 = vshra.s32 %v737, 4
  %v924 = vshra.s32 %v738, 4
  %v925 = vshra.s32 %v739, 4
  %v926 = vshra.s32 %v740, 4
  %v927 = vshra.s32 %v741, 4
  %v928 = vshra.s32 %v742, 4
  %v929 = vshra.s32 %v743, 4
  %v930 = vshra.s32 %v744, 4
  %v931 = vshra.s32 %v745, 4
  %v932 = vshra.s32 %v746, 4
  %v933 = vshra.s32 %v747, 4
  %v934 = vshra.s32 %v748, 4
  %v935 = vshra.s32 %v749, 4
  %v936 = vshra.s32 %v750, 4
  %v937 = vshra.s32 %v751, 4
  %v938 = vshra.s32 %v752, 4
  %v939 = vshra.s32 %v753, 4
  %v940 = vshra.s32 %v754, 4
  %v941 = vshra.s32 %v755, 4
  %v942 = vshra.s32 %v756, 4
  %v943 = vshra.s32 %v757, 4
  %v944 = vshra.s32 %v758, 4
  %v945 = vshra.s32 %v759, 4
  %v946 = vshra.s32 %v760, 4
  %v947 = vand.u32 %v885, 15
  %v948 = vand.u32 %v886, 15
  %v949 = vand.u32 %v887, 15
  %v950 = vand.u32 %v888, 15
  %v951 = vand.u32 %v889, 15
  %v952 = vand.u32 %v890, 15
  %v953 = vand.u32 %v891, 15
  %v954 = vand.u32 %v892, 15
  %v955 = vand.u32 %v893, 15
  %v956 = vand.u32 %v894, 15
  %v957 = vand.u32 %v895, 15
  %v958 = vand.u32 %v896, 15
  %v959 = vand.u32 %v897, 15
  %v960 = vand.u32 %v898, 15
  %v961 = vand.u32 %v899, 15
  %v962 = vand.u32 %v900, 15
  %v963 = vand.u32 %v901, 15
  %v964 = vand.u32 %v902, 15
  %v965 = vand.u32 %v903, 15
  %v966 = vand.u32 %v904, 15
  %v967 = vand.u32 %v905, 15
  %v968 = vand.u32 %v906, 15
  %v969 = vand.u32 %v907, 15
  %v970 = vand.u32 %v908, 15
  %v971 = vand.u32 %v909, 15
  %v972 = vand.u32 %v910, 15
  %v973 = vand.u32 %v911, 15
  %v974 = vand.u32 %v912, 15
  %v975 = vand.u32 %v913, 15
  %v976 = vand.u32 %v914, 15
  %v977 = vand.u32 %v915, 15
  %v978 = vand.u32 %v916, 15
  %v979 = vand.u32 %v917, 15
  %v980 = vand.u32 %v918, 15
  %v981 = vand.u32 %v919, 15
  %v982 = vand.u32 %v920, 15
  %v983 = vand.u32 %v921, 15
  %v984 = vand.u32 %v922, 15
  %v985 = vand.u32 %v923, 15
  %v986 = vand.u32 %v924, 15
  %v987 = vand.u32 %v925, 15
  %v988 = vand.u32 %v926, 15
  %v989 = vand.u32 %v927, 15
  %v990 = vand.u32 %v928, 15
  %v991 = vand.u32 %v929, 15
  %v992 = vand.u32 %v930, 15
  %v993 = vand.u32 %v931, 15
  %v994 = vand.u32 %v932, 15
  %v995 = vand.u32 %v933, 15
  %v996 = vand.u32 %v934, 15
  %v997 = vand.u32 %v935, 15
  %v998 = vand.u32 %v936, 15
  %v999 = vand.u32 %v937, 15
  %v1000 = vand.u32 %v938, 15
  %v1001 = vand.u32 %v939, 15
  %v1002 = vand.u32 %v940, 15
  %v1003 = vand.u32 %v941, 15
  %v1004 = vand.u32 %v942, 15
  %v1005 = vand.u32 %v943, 15
  %v1006 = vand.u32 %v944, 15
  %v1007 = vand.u32 %v945, 15
  %v1008 = vand.u32 %v946, 15
  %vm1009 = vcmp.ne.s32.totalorder %v947, 0
  %vm1010 = vcmp.ne.s32.totalorder %v948, 0
  %vm1011 = vcmp.ne.s32.totalorder %v949, 0
  %vm1012 = vcmp.ne.s32.totalorder %v950, 0
  %vm1013 = vcmp.ne.s32.totalorder %v951, 0
  %vm1014 = vcmp.ne.s32.totalorder %v952, 0
  %vm1015 = vcmp.ne.s32.totalorder %v953, 0
  %vm1016 = vcmp.ne.s32.totalorder %v954, 0
  %vm1017 = vcmp.ne.s32.totalorder %v955, 0
  %vm1018 = vcmp.ne.s32.totalorder %v956, 0
  %vm1019 = vcmp.ne.s32.totalorder %v957, 0
  %vm1020 = vcmp.ne.s32.totalorder %v958, 0
  %vm1021 = vcmp.ne.s32.totalorder %v959, 0
  %vm1022 = vcmp.ne.s32.totalorder %v960, 0
  %vm1023 = vcmp.ne.s32.totalorder %v961, 0
  %vm1024 = vcmp.ne.s32.totalorder %v962, 0
  %vm1025 = vcmp.ne.s32.totalorder %v963, 0
  %vm1026 = vcmp.ne.s32.totalorder %v964, 0
  %vm1027 = vcmp.ne.s32.totalorder %v965, 0
  %vm1028 = vcmp.ne.s32.totalorder %v966, 0
  %vm1029 = vcmp.ne.s32.totalorder %v967, 0
  %vm1030 = vcmp.ne.s32.totalorder %v968, 0
  %vm1031 = vcmp.ne.s32.totalorder %v969, 0
  %vm1032 = vcmp.ne.s32.totalorder %v970, 0
  %vm1033 = vcmp.ne.s32.totalorder %v971, 0
  %vm1034 = vcmp.ne.s32.totalorder %v972, 0
  %vm1035 = vcmp.ne.s32.totalorder %v973, 0
  %vm1036 = vcmp.ne.s32.totalorder %v974, 0
  %vm1037 = vcmp.ne.s32.totalorder %v975, 0
  %vm1038 = vcmp.ne.s32.totalorder %v976, 0
  %vm1039 = vcmp.ne.s32.totalorder %v977, 0
  %vm1040 = vcmp.ne.s32.totalorder %v978, 0
  %vm1041 = vcmp.ne.s32.totalorder %v979, 0
  %vm1042 = vcmp.ne.s32.totalorder %v980, 0
  %vm1043 = vcmp.ne.s32.totalorder %v981, 0
  %vm1044 = vcmp.ne.s32.totalorder %v982, 0
  %vm1045 = vcmp.ne.s32.totalorder %v983, 0
  %vm1046 = vcmp.ne.s32.totalorder %v984, 0
  %vm1047 = vcmp.ne.s32.totalorder %v985, 0
  %vm1048 = vcmp.ne.s32.totalorder %v986, 0
  %vm1049 = vcmp.ne.s32.totalorder %v987, 0
  %vm1050 = vcmp.ne.s32.totalorder %v988, 0
  %vm1051 = vcmp.ne.s32.totalorder %v989, 0
  %vm1052 = vcmp.ne.s32.totalorder %v990, 0
  %vm1053 = vcmp.ne.s32.totalorder %v991, 0
  %vm1054 = vcmp.ne.s32.totalorder %v992, 0
  %vm1055 = vcmp.ne.s32.totalorder %v993, 0
  %vm1056 = vcmp.ne.s32.totalorder %v994, 0
  %vm1057 = vcmp.ne.s32.totalorder %v995, 0
  %vm1058 = vcmp.ne.s32.totalorder %v996, 0
  %vm1059 = vcmp.ne.s32.totalorder %v997, 0
  %vm1060 = vcmp.ne.s32.totalorder %v998, 0
  %vm1061 = vcmp.ne.s32.totalorder %v999, 0
  %vm1062 = vcmp.ne.s32.totalorder %v1000, 0
  %vm1063 = vcmp.ne.s32.totalorder %v1001, 0
  %vm1064 = vcmp.ne.s32.totalorder %v1002, 0
  %vm1065 = vcmp.ne.s32.totalorder %v1003, 0
  %vm1066 = vcmp.ne.s32.totalorder %v1004, 0
  %vm1067 = vcmp.ne.s32.totalorder %v1005, 0
  %vm1068 = vcmp.ne.s32.totalorder %v1006, 0
  %vm1069 = vcmp.ne.s32.totalorder %v1007, 0
  %vm1070 = vcmp.ne.s32.totalorder %v1008, 0
  %vm1071 = vmand %vm823, %vm1009
  %vm1072 = vmand %vm824, %vm1010
  %vm1073 = vmand %vm825, %vm1011
  %vm1074 = vmand %vm826, %vm1012
  %vm1075 = vmand %vm827, %vm1013
  %vm1076 = vmand %vm828, %vm1014
  %vm1077 = vmand %vm829, %vm1015
  %vm1078 = vmand %vm830, %vm1016
  %vm1079 = vmand %vm831, %vm1017
  %vm1080 = vmand %vm832, %vm1018
  %vm1081 = vmand %vm833, %vm1019
  %vm1082 = vmand %vm834, %vm1020
  %vm1083 = vmand %vm835, %vm1021
  %vm1084 = vmand %vm836, %vm1022
  %vm1085 = vmand %vm837, %vm1023
  %vm1086 = vmand %vm838, %vm1024
  %vm1087 = vmand %vm839, %vm1025
  %vm1088 = vmand %vm840, %vm1026
  %vm1089 = vmand %vm841, %vm1027
  %vm1090 = vmand %vm842, %vm1028
  %vm1091 = vmand %vm843, %vm1029
  %vm1092 = vmand %vm844, %vm1030
  %vm1093 = vmand %vm845, %vm1031
  %vm1094 = vmand %vm846, %vm1032
  %vm1095 = vmand %vm847, %vm1033
  %vm1096 = vmand %vm848, %vm1034
  %vm1097 = vmand %vm849, %vm1035
  %vm1098 = vmand %vm850, %vm1036
  %vm1099 = vmand %vm851, %vm1037
  %vm1100 = vmand %vm852, %vm1038
  %vm1101 = vmand %vm853, %vm1039
  %vm1102 = vmand %vm854, %vm1040
  %vm1103 = vmand %vm855, %vm1041
  %vm1104 = vmand %vm856, %vm1042
  %vm1105 = vmand %vm857, %vm1043
  %vm1106 = vmand %vm858, %vm1044
  %vm1107 = vmand %vm859, %vm1045
  %vm1108 = vmand %vm860, %vm1046
  %vm1109 = vmand %vm861, %vm1047
  %vm1110 = vmand %vm862, %vm1048
  %vm1111 = vmand %vm863, %vm1049
  %vm1112 = vmand %vm864, %vm1050
  %vm1113 = vmand %vm865, %vm1051
  %vm1114 = vmand %vm866, %vm1052
  %vm1115 = vmand %vm867, %vm1053
  %vm1116 = vmand %vm868, %vm1054
  %vm1117 = vmand %vm869, %vm1055
  %vm1118 = vmand %vm870, %vm1056
  %vm1119 = vmand %vm871, %vm1057
  %vm1120 = vmand %vm872, %vm1058
  %vm1121 = vmand %vm873, %vm1059
  %vm1122 = vmand %vm874, %vm1060
  %vm1123 = vmand %vm875, %vm1061
  %vm1124 = vmand %vm876, %vm1062
  %vm1125 = vmand %vm877, %vm1063
  %vm1126 = vmand %vm878, %vm1064
  %vm1127 = vmand %vm879, %vm1065
  %vm1128 = vmand %vm880, %vm1066
  %vm1129 = vmand %vm881, %vm1067
  %vm1130 = vmand %vm882, %vm1068
  %vm1131 = vmand %vm883, %vm1069
  %vm1132 = vmand %vm884, %vm1070
  %v1133 = vsel %vm1071, 1, 0
  %v1134 = vsel %vm1072, 1, 0
  %v1135 = vsel %vm1073, 1, 0
  %v1136 = vsel %vm1074, 1, 0
  %v1137 = vsel %vm1075, 1, 0
  %v1138 = vsel %vm1076, 1, 0
  %v1139 = vsel %vm1077, 1, 0
  %v1140 = vsel %vm1078, 1, 0
  %v1141 = vsel %vm1079, 1, 0
  %v1142 = vsel %vm1080, 1, 0
  %v1143 = vsel %vm1081, 1, 0
  %v1144 = vsel %vm1082, 1, 0
  %v1145 = vsel %vm1083, 1, 0
  %v1146 = vsel %vm1084, 1, 0
  %v1147 = vsel %vm1085, 1, 0
  %v1148 = vsel %vm1086, 1, 0
  %v1149 = vsel %vm1087, 1, 0
  %v1150 = vsel %vm1088, 1, 0
  %v1151 = vsel %vm1089, 1, 0
  %v1152 = vsel %vm1090, 1, 0
  %v1153 = vsel %vm1091, 1, 0
  %v1154 = vsel %vm1092, 1, 0
  %v1155 = vsel %vm1093, 1, 0
  %v1156 = vsel %vm1094, 1, 0
  %v1157 = vsel %vm1095, 1, 0
  %v1158 = vsel %vm1096, 1, 0
  %v1159 = vsel %vm1097, 1, 0
  %v1160 = vsel %vm1098, 1, 0
  %v1161 = vsel %vm1099, 1, 0
  %v1162 = vsel %vm1100, 1, 0
  %v1163 = vsel %vm1101, 1, 0
  %v1164 = vsel %vm1102, 1, 0
  %v1165 = vsel %vm1103, 1, 0
  %v1166 = vsel %vm1104, 1, 0
  %v1167 = vsel %vm1105, 1, 0
  %v1168 = vsel %vm1106, 1, 0
  %v1169 = vsel %vm1107, 1, 0
  %v1170 = vsel %vm1108, 1, 0
  %v1171 = vsel %vm1109, 1, 0
  %v1172 = vsel %vm1110, 1, 0
  %v1173 = vsel %vm1111, 1, 0
  %v1174 = vsel %vm1112, 1, 0
  %v1175 = vsel %vm1113, 1, 0
  %v1176 = vsel %vm1114, 1, 0
  %v1177 = vsel %vm1115, 1, 0
  %v1178 = vsel %vm1116, 1, 0
  %v1179 = vsel %vm1117, 1, 0
  %v1180 = vsel %vm1118, 1, 0
  %v1181 = vsel %vm1119, 1, 0
  %v1182 = vsel %vm1120, 1, 0
  %v1183 = vsel %vm1121, 1, 0
  %v1184 = vsel %vm1122, 1, 0
  %v1185 = vsel %vm1123, 1, 0
  %v1186 = vsel %vm1124, 1, 0
  %v1187 = vsel %vm1125, 1, 0
  %v1188 = vsel %vm1126, 1, 0
  %v1189 = vsel %vm1127, 1, 0
  %v1190 = vsel %vm1128, 1, 0
  %v1191 = vsel %vm1129, 1, 0
  %v1192 = vsel %vm1130, 1, 0
  %v1193 = vsel %vm1131, 1, 0
  %v1194 = vsel %vm1132, 1, 0
  %vm1195 = vcmp.eq.s32.totalorder %v1133, 1
  %vm1196 = vcmp.eq.s32.totalorder %v1134, 1
  %vm1197 = vcmp.eq.s32.totalorder %v1135, 1
  %vm1198 = vcmp.eq.s32.totalorder %v1136, 1
  %vm1199 = vcmp.eq.s32.totalorder %v1137, 1
  %vm1200 = vcmp.eq.s32.totalorder %v1138, 1
  %vm1201 = vcmp.eq.s32.totalorder %v1139, 1
  %vm1202 = vcmp.eq.s32.totalorder %v1140, 1
  %vm1203 = vcmp.eq.s32.totalorder %v1141, 1
  %vm1204 = vcmp.eq.s32.totalorder %v1142, 1
  %vm1205 = vcmp.eq.s32.totalorder %v1143, 1
  %vm1206 = vcmp.eq.s32.totalorder %v1144, 1
  %vm1207 = vcmp.eq.s32.totalorder %v1145, 1
  %vm1208 = vcmp.eq.s32.totalorder %v1146, 1
  %vm1209 = vcmp.eq.s32.totalorder %v1147, 1
  %vm1210 = vcmp.eq.s32.totalorder %v1148, 1
  %vm1211 = vcmp.eq.s32.totalorder %v1149, 1
  %vm1212 = vcmp.eq.s32.totalorder %v1150, 1
  %vm1213 = vcmp.eq.s32.totalorder %v1151, 1
  %vm1214 = vcmp.eq.s32.totalorder %v1152, 1
  %vm1215 = vcmp.eq.s32.totalorder %v1153, 1
  %vm1216 = vcmp.eq.s32.totalorder %v1154, 1
  %vm1217 = vcmp.eq.s32.totalorder %v1155, 1
  %vm1218 = vcmp.eq.s32.totalorder %v1156, 1
  %vm1219 = vcmp.eq.s32.totalorder %v1157, 1
  %vm1220 = vcmp.eq.s32.totalorder %v1158, 1
  %vm1221 = vcmp.eq.s32.totalorder %v1159, 1
  %vm1222 = vcmp.eq.s32.totalorder %v1160, 1
  %vm1223 = vcmp.eq.s32.totalorder %v1161, 1
  %vm1224 = vcmp.eq.s32.totalorder %v1162, 1
  %vm1225 = vcmp.eq.s32.totalorder %v1163, 1
  %vm1226 = vcmp.eq.s32.totalorder %v1164, 1
  %vm1227 = vcmp.eq.s32.totalorder %v1165, 1
  %vm1228 = vcmp.eq.s32.totalorder %v1166, 1
  %vm1229 = vcmp.eq.s32.totalorder %v1167, 1
  %vm1230 = vcmp.eq.s32.totalorder %v1168, 1
  %vm1231 = vcmp.eq.s32.totalorder %v1169, 1
  %vm1232 = vcmp.eq.s32.totalorder %v1170, 1
  %vm1233 = vcmp.eq.s32.totalorder %v1171, 1
  %vm1234 = vcmp.eq.s32.totalorder %v1172, 1
  %vm1235 = vcmp.eq.s32.totalorder %v1173, 1
  %vm1236 = vcmp.eq.s32.totalorder %v1174, 1
  %vm1237 = vcmp.eq.s32.totalorder %v1175, 1
  %vm1238 = vcmp.eq.s32.totalorder %v1176, 1
  %vm1239 = vcmp.eq.s32.totalorder %v1177, 1
  %vm1240 = vcmp.eq.s32.totalorder %v1178, 1
  %vm1241 = vcmp.eq.s32.totalorder %v1179, 1
  %vm1242 = vcmp.eq.s32.totalorder %v1180, 1
  %vm1243 = vcmp.eq.s32.totalorder %v1181, 1
  %vm1244 = vcmp.eq.s32.totalorder %v1182, 1
  %vm1245 = vcmp.eq.s32.totalorder %v1183, 1
  %vm1246 = vcmp.eq.s32.totalorder %v1184, 1
  %vm1247 = vcmp.eq.s32.totalorder %v1185, 1
  %vm1248 = vcmp.eq.s32.totalorder %v1186, 1
  %vm1249 = vcmp.eq.s32.totalorder %v1187, 1
  %vm1250 = vcmp.eq.s32.totalorder %v1188, 1
  %vm1251 = vcmp.eq.s32.totalorder %v1189, 1
  %vm1252 = vcmp.eq.s32.totalorder %v1190, 1
  %vm1253 = vcmp.eq.s32.totalorder %v1191, 1
  %vm1254 = vcmp.eq.s32.totalorder %v1192, 1
  %vm1255 = vcmp.eq.s32.totalorder %v1193, 1
  %vm1256 = vcmp.eq.s32.totalorder %v1194, 1
  %v1257 = vsel %vm1195, %v574, 0.0
  %v1258 = vsel %vm1196, %v575, 0.0
  %v1259 = vsel %vm1197, %v576, 0.0
  %v1260 = vsel %vm1198, %v577, 0.0
  %v1261 = vsel %vm1199, %v578, 0.0
  %v1262 = vsel %vm1200, %v579, 0.0
  %v1263 = vsel %vm1201, %v580, 0.0
  %v1264 = vsel %vm1202, %v581, 0.0
  %v1265 = vsel %vm1203, %v582, 0.0
  %v1266 = vsel %vm1204, %v583, 0.0
  %v1267 = vsel %vm1205, %v584, 0.0
  %v1268 = vsel %vm1206, %v585, 0.0
  %v1269 = vsel %vm1207, %v586, 0.0
  %v1270 = vsel %vm1208, %v587, 0.0
  %v1271 = vsel %vm1209, %v588, 0.0
  %v1272 = vsel %vm1210, %v589, 0.0
  %v1273 = vsel %vm1211, %v590, 0.0
  %v1274 = vsel %vm1212, %v591, 0.0
  %v1275 = vsel %vm1213, %v592, 0.0
  %v1276 = vsel %vm1214, %v593, 0.0
  %v1277 = vsel %vm1215, %v594, 0.0
  %v1278 = vsel %vm1216, %v595, 0.0
  %v1279 = vsel %vm1217, %v596, 0.0
  %v1280 = vsel %vm1218, %v597, 0.0
  %v1281 = vsel %vm1219, %v598, 0.0
  %v1282 = vsel %vm1220, %v599, 0.0
  %v1283 = vsel %vm1221, %v600, 0.0
  %v1284 = vsel %vm1222, %v601, 0.0
  %v1285 = vsel %vm1223, %v602, 0.0
  %v1286 = vsel %vm1224, %v603, 0.0
  %v1287 = vsel %vm1225, %v604, 0.0
  %v1288 = vsel %vm1226, %v605, 0.0
  %v1289 = vsel %vm1227, %v606, 0.0
  %v1290 = vsel %vm1228, %v607, 0.0
  %v1291 = vsel %vm1229, %v608, 0.0
  %v1292 = vsel %vm1230, %v609, 0.0
  %v1293 = vsel %vm1231, %v610, 0.0
  %v1294 = vsel %vm1232, %v611, 0.0
  %v1295 = vsel %vm1233, %v612, 0.0
  %v1296 = vsel %vm1234, %v613, 0.0
  %v1297 = vsel %vm1235, %v614, 0.0
  %v1298 = vsel %vm1236, %v615, 0.0
  %v1299 = vsel %vm1237, %v616, 0.0
  %v1300 = vsel %vm1238, %v617, 0.0
  %v1301 = vsel %vm1239, %v618, 0.0
  %v1302 = vsel %vm1240, %v619, 0.0
  %v1303 = vsel %vm1241, %v620, 0.0
  %v1304 = vsel %vm1242, %v621, 0.0
  %v1305 = vsel %vm1243, %v622, 0.0
  %v1306 = vsel %vm1244, %v623, 0.0
  %v1307 = vsel %vm1245, %v624, 0.0
  %v1308 = vsel %vm1246, %v625, 0.0
  %v1309 = vsel %vm1247, %v626, 0.0
  %v1310 = vsel %vm1248, %v627, 0.0
  %v1311 = vsel %vm1249, %v628, 0.0
  %v1312 = vsel %vm1250, %v629, 0.0
  %v1313 = vsel %vm1251, %v630, 0.0
  %v1314 = vsel %vm1252, %v631, 0.0
  %v1315 = vsel %vm1253, %v632, 0.0
  %v1316 = vsel %vm1254, %v633, 0.0
  %v1317 = vsel %vm1255, %v634, 0.0
  %v1318 = vsel %vm1256, %v635, 0.0
  %v1319 = vpack.c.bf16 %v1258, %v1257
  %v1320 = vpack.c.bf16 %v1260, %v1259
  %v1321 = vpack.c.bf16 %v1262, %v1261
  %v1322 = vpack.c.bf16 %v1264, %v1263
  %v1323 = vpack.c.bf16 %v1266, %v1265
  %v1324 = vpack.c.bf16 %v1268, %v1267
  %v1325 = vpack.c.bf16 %v1270, %v1269
  %v1326 = vpack.c.bf16 %v1272, %v1271
  %v1327 = vpack.c.bf16 %v1274, %v1273
  %v1328 = vpack.c.bf16 %v1276, %v1275
  %v1329 = vpack.c.bf16 %v1278, %v1277
  %v1330 = vpack.c.bf16 %v1280, %v1279
  %v1331 = vpack.c.bf16 %v1282, %v1281
  %v1332 = vpack.c.bf16 %v1284, %v1283
  %v1333 = vpack.c.bf16 %v1286, %v1285
  %v1334 = vpack.c.bf16 %v1288, %v1287
  %v1335 = vpack.c.bf16 %v1290, %v1289
  %v1336 = vpack.c.bf16 %v1292, %v1291
  %v1337 = vpack.c.bf16 %v1294, %v1293
  %v1338 = vpack.c.bf16 %v1296, %v1295
  %v1339 = vpack.c.bf16 %v1298, %v1297
  %v1340 = vpack.c.bf16 %v1300, %v1299
  %v1341 = vpack.c.bf16 %v1302, %v1301
  %v1342 = vpack.c.bf16 %v1304, %v1303
  %v1343 = vpack.c.bf16 %v1306, %v1305
  %v1344 = vpack.c.bf16 %v1308, %v1307
  %v1345 = vpack.c.bf16 %v1310, %v1309
  %v1346 = vpack.c.bf16 %v1312, %v1311
  %v1347 = vpack.c.bf16 %v1314, %v1313
  %v1348 = vpack.c.bf16 %v1316, %v1315
  %v1349 = vpack.c.bf16 %v1318, %v1317
  %v1350 = vld [vmem:[%s1] sm:$0x3]
  %v1352 = vsel %vm116, %v1319, 0
  %v1355 = vsel %vm116, %v1320, 0
  %v1358 = vsel %vm116, %v1321, 0
  %v1361 = vsel %vm116, %v1322, 0
  %v1364 = vsel %vm116, %v1323, 0
  %v1367 = vsel %vm116, %v1324, 0
  %v1370 = vsel %vm116, %v1325, 0
  %v1373 = vsel %vm116, %v1326, 0
  %v1376 = vsel %vm116, %v1327, 0
  %v1379 = vsel %vm116, %v1328, 0
  %v1382 = vsel %vm116, %v1329, 0
  %v1385 = vsel %vm116, %v1330, 0
  %v1388 = vsel %vm116, %v1331, 0
  %v1391 = vsel %vm116, %v1332, 0
  %v1394 = vsel %vm116, %v1333, 0
  %v1397 = vsel %vm116, %v1334, 0
  %v1400 = vsel %vm116, %v1335, 0
  %v1403 = vsel %vm116, %v1336, 0
  %v1406 = vsel %vm116, %v1337, 0
  %v1409 = vsel %vm116, %v1338, 0
  %v1412 = vsel %vm116, %v1339, 0
  %v1415 = vsel %vm116, %v1340, 0
  %v1418 = vsel %vm116, %v1341, 0
  %v1421 = vsel %vm116, %v1342, 0
  %v1424 = vsel %vm116, %v1343, 0
  %v1427 = vsel %vm116, %v1344, 0
  %v1430 = vsel %vm116, %v1345, 0
  %v1433 = vsel %vm116, %v1346, 0
  %v1436 = vsel %vm116, %v1347, 0
  %v1439 = vsel %vm116, %v1348, 0
  %v1442 = vsel %vm116, %v1349, 0
  %v1445 = vand.u32 %v1350, %v216
  %1447 = vmatprep.subr.bf16.mxu0 0
  %1448 = vmatpush1.bf16.msra.mxu0 %v1445
  %1449 = vmatprep.subr.bf16.mxu0 0
  %1450 = vmatpush1.bf16.msra.mxu0 0
  %1451 = vmatprep.subr.bf16.mxu0 0
  %1452 = vmatpush1.bf16.msra.mxu0 0
  %1453 = vmatprep.subr.bf16.mxu0 0
  %1454 = vmatpush1.bf16.msra.mxu0 0
  %1455 = vmatprep.subr.bf16.mxu0 0
  %1456 = vmatpush1.bf16.msra.mxu0 0
  %1457 = vmatprep.subr.bf16.mxu0 0
  %1458 = vmatpush1.bf16.msra.mxu0 0
  %1459 = vmatprep.subr.bf16.mxu0 0
  %1460 = vmatpush1.bf16.msra.mxu0 0
  %1461 = vmatprep.subr.bf16.mxu0 0
  %1462 = vmatpush1.bf16.msra.mxu0 0
  %1463 = vmatprep.subr.bf16.mxu0 0
  %1464 = vmatpush1.bf16.msra.mxu0 0
  %1465 = vmatprep.subr.bf16.mxu0 0
  %1466 = vmatpush1.bf16.msra.mxu0 0
  %1467 = vmatprep.subr.bf16.mxu0 0
  %1468 = vmatpush1.bf16.msra.mxu0 0
  %1469 = vmatprep.subr.bf16.mxu0 0
  %1470 = vmatpush1.bf16.msra.mxu0 0
  %1471 = vmatprep.subr.bf16.mxu0 0
  %1472 = vmatpush1.bf16.msra.mxu0 0
  %1473 = vmatprep.subr.bf16.mxu0 0
  %1474 = vmatpush1.bf16.msra.mxu0 0
  %1475 = vmatprep.subr.bf16.mxu0 0
  %1476 = vmatpush1.bf16.msra.mxu0 0
  %1477 = vmatprep.subr.bf16.mxu0 0
  %1478 = vmatpush1.bf16.msra.mxu0 0
  %1479 = vmatprep.mubr.bf16.mxu0 0
  %1480 = vmatmul.mubr.bf16.gmra.mrb[0].mxu0 %v1352
  %v1481 = vpop.f32.mrb[0].mxu0
  %v1482 = vadd.f32 0.0, %v1481
  %v1483 = vpop.f32.mrb[0].mxu0
  %v1484 = vpop.f32.mrb[0].mxu0
  %v1485 = vadd.f32 0.0, %v1484
  %v1486 = vpop.f32.mrb[0].mxu0
  %1487 = vmatprep.mubr.bf16.mxu0 0
  %1488 = vmatmul.mubr.bf16.gmra.mrb[0].mxu0 %v1355
  %v1489 = vpop.f32.mrb[0].mxu0
  %v1490 = vadd.f32 0.0, %v1489
  %v1491 = vpop.f32.mrb[0].mxu0
  %v1492 = vpop.f32.mrb[0].mxu0
  %v1493 = vadd.f32 0.0, %v1492
  %v1494 = vpop.f32.mrb[0].mxu0
  %1495 = vmatprep.mubr.bf16.mxu0 0
  %1496 = vmatmul.mubr.bf16.gmra.mrb[0].mxu0 %v1358
  %v1497 = vpop.f32.mrb[0].mxu0
  %v1498 = vadd.f32 0.0, %v1497
  %v1499 = vpop.f32.mrb[0].mxu0
  %v1500 = vpop.f32.mrb[0].mxu0
  %v1501 = vadd.f32 0.0, %v1500
  %v1502 = vpop.f32.mrb[0].mxu0
  %1503 = vmatprep.mubr.bf16.mxu0 0
  %1504 = vmatmul.mubr.bf16.gmra.mrb[0].mxu0 %v1361
  %v1505 = vpop.f32.mrb[0].mxu0
  %v1506 = vadd.f32 0.0, %v1505
  %v1507 = vpop.f32.mrb[0].mxu0
  %v1508 = vpop.f32.mrb[0].mxu0
  %v1509 = vadd.f32 0.0, %v1508
  %v1510 = vpop.f32.mrb[0].mxu0
  %1511 = vmatprep.mubr.bf16.mxu0 0
  %1512 = vmatmul.mubr.bf16.gmra.mrb[0].mxu0 %v1364
  %v1513 = vpop.f32.mrb[0].mxu0
  %v1514 = vadd.f32 0.0, %v1513
  %v1515 = vpop.f32.mrb[0].mxu0
  %v1516 = vpop.f32.mrb[0].mxu0
  %v1517 = vadd.f32 0.0, %v1516
  %v1518 = vpop.f32.mrb[0].mxu0
  %1519 = vmatprep.mubr.bf16.mxu0 0
  %1520 = vmatmul.mubr.bf16.gmra.mrb[0].mxu0 %v1367
  %v1521 = vpop.f32.mrb[0].mxu0
  %v1522 = vadd.f32 0.0, %v1521
  %v1523 = vpop.f32.mrb[0].mxu0
  %v1524 = vpop.f32.mrb[0].mxu0
  %v1525 = vadd.f32 0.0, %v1524
  %v1526 = vpop.f32.mrb[0].mxu0
  %1527 = vmatprep.mubr.bf16.mxu0 0
  %1528 = vmatmul.mubr.bf16.gmra.mrb[0].mxu0 %v1370
  %v1529 = vpop.f32.mrb[0].mxu0
  %v1530 = vadd.f32 0.0, %v1529
  %v1531 = vpop.f32.mrb[0].mxu0
  %v1532 = vpop.f32.mrb[0].mxu0
  %v1533 = vadd.f32 0.0, %v1532
  %v1534 = vpop.f32.mrb[0].mxu0
  %1535 = vmatprep.mubr.bf16.mxu0 0
  %1536 = vmatmul.mubr.bf16.gmra.mrb[0].mxu0 %v1373
  %v1537 = vpop.f32.mrb[0].mxu0
  %v1538 = vadd.f32 0.0, %v1537
  %v1539 = vpop.f32.mrb[0].mxu0
  %v1540 = vpop.f32.mrb[0].mxu0
  %v1541 = vadd.f32 0.0, %v1540
  %v1542 = vpop.f32.mrb[0].mxu0
  %1543 = vmatprep.mubr.bf16.mxu0 0
  %1544 = vmatmul.mubr.bf16.gmra.mrb[0].mxu0 %v1376
  %v1545 = vpop.f32.mrb[0].mxu0
  %v1546 = vadd.f32 0.0, %v1545
  %v1547 = vpop.f32.mrb[0].mxu0
  %v1548 = vpop.f32.mrb[0].mxu0
  %v1549 = vadd.f32 0.0, %v1548
  %v1550 = vpop.f32.mrb[0].mxu0
  %1551 = vmatprep.mubr.bf16.mxu0 0
  %1552 = vmatmul.mubr.bf16.gmra.mrb[0].mxu0 %v1379
  %v1553 = vpop.f32.mrb[0].mxu0
  %v1554 = vadd.f32 0.0, %v1553
  %v1555 = vpop.f32.mrb[0].mxu0
  %v1556 = vpop.f32.mrb[0].mxu0
  %v1557 = vadd.f32 0.0, %v1556
  %v1558 = vpop.f32.mrb[0].mxu0
  %1559 = vmatprep.mubr.bf16.mxu0 0
  %1560 = vmatmul.mubr.bf16.gmra.mrb[0].mxu0 %v1382
  %v1561 = vpop.f32.mrb[0].mxu0
  %v1562 = vadd.f32 0.0, %v1561
  %v1563 = vpop.f32.mrb[0].mxu0
  %v1564 = vpop.f32.mrb[0].mxu0
  %v1565 = vadd.f32 0.0, %v1564
  %v1566 = vpop.f32.mrb[0].mxu0
  %1567 = vmatprep.mubr.bf16.mxu0 0
  %1568 = vmatmul.mubr.bf16.gmra.mrb[0].mxu0 %v1385
  %v1569 = vpop.f32.mrb[0].mxu0
  %v1570 = vadd.f32 0.0, %v1569
  %v1571 = vpop.f32.mrb[0].mxu0
  %v1572 = vpop.f32.mrb[0].mxu0
  %v1573 = vadd.f32 0.0, %v1572
  %v1574 = vpop.f32.mrb[0].mxu0
  %1575 = vmatprep.mubr.bf16.mxu0 0
  %1576 = vmatmul.mubr.bf16.gmra.mrb[0].mxu0 %v1388
  %v1577 = vpop.f32.mrb[0].mxu0
  %v1578 = vadd.f32 0.0, %v1577
  %v1579 = vpop.f32.mrb[0].mxu0
  %v1580 = vpop.f32.mrb[0].mxu0
  %v1581 = vadd.f32 0.0, %v1580
  %v1582 = vpop.f32.mrb[0].mxu0
  %1583 = vmatprep.mubr.bf16.mxu0 0
  %1584 = vmatmul.mubr.bf16.gmra.mrb[0].mxu0 %v1391
  %v1585 = vpop.f32.mrb[0].mxu0
  %v1586 = vadd.f32 0.0, %v1585
  %v1587 = vpop.f32.mrb[0].mxu0
  %v1588 = vpop.f32.mrb[0].mxu0
  %v1589 = vadd.f32 0.0, %v1588
  %v1590 = vpop.f32.mrb[0].mxu0
  %1591 = vmatprep.mubr.bf16.mxu0 0
  %1592 = vmatmul.mubr.bf16.gmra.mrb[0].mxu0 %v1394
  %v1593 = vpop.f32.mrb[0].mxu0
  %v1594 = vadd.f32 0.0, %v1593
  %v1595 = vpop.f32.mrb[0].mxu0
  %v1596 = vpop.f32.mrb[0].mxu0
  %v1597 = vadd.f32 0.0, %v1596
  %v1598 = vpop.f32.mrb[0].mxu0
  %1599 = vmatprep.mubr.bf16.mxu0 0
  %1600 = vmatmul.mubr.bf16.gmra.mrb[0].mxu0 %v1397
  %v1601 = vpop.f32.mrb[0].mxu0
  %v1602 = vadd.f32 0.0, %v1601
  %v1603 = vpop.f32.mrb[0].mxu0
  %v1604 = vpop.f32.mrb[0].mxu0
  %v1605 = vadd.f32 0.0, %v1604
  %v1606 = vpop.f32.mrb[0].mxu0
  %1607 = vmatprep.mubr.bf16.mxu0 0
  %1608 = vmatmul.mubr.bf16.gmra.mrb[0].mxu0 %v1400
  %v1609 = vpop.f32.mrb[0].mxu0
  %v1610 = vadd.f32 0.0, %v1609
  %v1611 = vpop.f32.mrb[0].mxu0
  %v1612 = vpop.f32.mrb[0].mxu0
  %v1613 = vadd.f32 0.0, %v1612
  %v1614 = vpop.f32.mrb[0].mxu0
  %1615 = vmatprep.mubr.bf16.mxu0 0
  %1616 = vmatmul.mubr.bf16.gmra.mrb[0].mxu0 %v1403
  %v1617 = vpop.f32.mrb[0].mxu0
  %v1618 = vadd.f32 0.0, %v1617
  %v1619 = vpop.f32.mrb[0].mxu0
  %v1620 = vpop.f32.mrb[0].mxu0
  %v1621 = vadd.f32 0.0, %v1620
  %v1622 = vpop.f32.mrb[0].mxu0
  %1623 = vmatprep.mubr.bf16.mxu0 0
  %1624 = vmatmul.mubr.bf16.gmra.mrb[0].mxu0 %v1406
  %v1625 = vpop.f32.mrb[0].mxu0
  %v1626 = vadd.f32 0.0, %v1625
  %v1627 = vpop.f32.mrb[0].mxu0
  %v1628 = vpop.f32.mrb[0].mxu0
  %v1629 = vadd.f32 0.0, %v1628
  %v1630 = vpop.f32.mrb[0].mxu0
  %1631 = vmatprep.mubr.bf16.mxu0 0
  %1632 = vmatmul.mubr.bf16.gmra.mrb[0].mxu0 %v1409
  %v1633 = vpop.f32.mrb[0].mxu0
  %v1634 = vadd.f32 0.0, %v1633
  %v1635 = vpop.f32.mrb[0].mxu0
  %v1636 = vpop.f32.mrb[0].mxu0
  %v1637 = vadd.f32 0.0, %v1636
  %v1638 = vpop.f32.mrb[0].mxu0
  %1639 = vmatprep.mubr.bf16.mxu0 0
  %1640 = vmatmul.mubr.bf16.gmra.mrb[0].mxu0 %v1412
  %v1641 = vpop.f32.mrb[0].mxu0
  %v1642 = vadd.f32 0.0, %v1641
  %v1643 = vpop.f32.mrb[0].mxu0
  %v1644 = vpop.f32.mrb[0].mxu0
  %v1645 = vadd.f32 0.0, %v1644
  %v1646 = vpop.f32.mrb[0].mxu0
  %1647 = vmatprep.mubr.bf16.mxu0 0
  %1648 = vmatmul.mubr.bf16.gmra.mrb[0].mxu0 %v1415
  %v1649 = vpop.f32.mrb[0].mxu0
  %v1650 = vadd.f32 0.0, %v1649
  %v1651 = vpop.f32.mrb[0].mxu0
  %v1652 = vpop.f32.mrb[0].mxu0
  %v1653 = vadd.f32 0.0, %v1652
  %v1654 = vpop.f32.mrb[0].mxu0
  %1655 = vmatprep.mubr.bf16.mxu0 0
  %1656 = vmatmul.mubr.bf16.gmra.mrb[0].mxu0 %v1418
  %v1657 = vpop.f32.mrb[0].mxu0
  %v1658 = vadd.f32 0.0, %v1657
  %v1659 = vpop.f32.mrb[0].mxu0
  %v1660 = vpop.f32.mrb[0].mxu0
  %v1661 = vadd.f32 0.0, %v1660
  %v1662 = vpop.f32.mrb[0].mxu0
  %1663 = vmatprep.mubr.bf16.mxu0 0
  %1664 = vmatmul.mubr.bf16.gmra.mrb[0].mxu0 %v1421
  %v1665 = vpop.f32.mrb[0].mxu0
  %v1666 = vadd.f32 0.0, %v1665
  %v1667 = vpop.f32.mrb[0].mxu0
  %v1668 = vpop.f32.mrb[0].mxu0
  %v1669 = vadd.f32 0.0, %v1668
  %v1670 = vpop.f32.mrb[0].mxu0
  %1671 = vmatprep.mubr.bf16.mxu0 0
  %1672 = vmatmul.mubr.bf16.gmra.mrb[0].mxu0 %v1424
  %v1673 = vpop.f32.mrb[0].mxu0
  %v1674 = vadd.f32 0.0, %v1673
  %v1675 = vpop.f32.mrb[0].mxu0
  %v1676 = vpop.f32.mrb[0].mxu0
  %v1677 = vadd.f32 0.0, %v1676
  %v1678 = vpop.f32.mrb[0].mxu0
  %1679 = vmatprep.mubr.bf16.mxu0 0
  %1680 = vmatmul.mubr.bf16.gmra.mrb[0].mxu0 %v1427
  %v1681 = vpop.f32.mrb[0].mxu0
  %v1682 = vadd.f32 0.0, %v1681
  %v1683 = vpop.f32.mrb[0].mxu0
  %v1684 = vpop.f32.mrb[0].mxu0
  %v1685 = vadd.f32 0.0, %v1684
  %v1686 = vpop.f32.mrb[0].mxu0
  %1687 = vmatprep.mubr.bf16.mxu0 0
  %1688 = vmatmul.mubr.bf16.gmra.mrb[0].mxu0 %v1430
  %v1689 = vpop.f32.mrb[0].mxu0
  %v1690 = vadd.f32 0.0, %v1689
  %v1691 = vpop.f32.mrb[0].mxu0
  %v1692 = vpop.f32.mrb[0].mxu0
  %v1693 = vadd.f32 0.0, %v1692
  %v1694 = vpop.f32.mrb[0].mxu0
  %1695 = vmatprep.mubr.bf16.mxu0 0
  %1696 = vmatmul.mubr.bf16.gmra.mrb[0].mxu0 %v1433
  %v1697 = vpop.f32.mrb[0].mxu0
  %v1698 = vadd.f32 0.0, %v1697
  %v1699 = vpop.f32.mrb[0].mxu0
  %v1700 = vpop.f32.mrb[0].mxu0
  %v1701 = vadd.f32 0.0, %v1700
  %v1702 = vpop.f32.mrb[0].mxu0
  %1703 = vmatprep.mubr.bf16.mxu0 0
  %1704 = vmatmul.mubr.bf16.gmra.mrb[0].mxu0 %v1436
  %v1705 = vpop.f32.mrb[0].mxu0
  %v1706 = vadd.f32 0.0, %v1705
  %v1707 = vpop.f32.mrb[0].mxu0
  %v1708 = vpop.f32.mrb[0].mxu0
  %v1709 = vadd.f32 0.0, %v1708
  %v1710 = vpop.f32.mrb[0].mxu0
  %1711 = vmatprep.mubr.bf16.mxu0 0
  %1712 = vmatmul.mubr.bf16.gmra.mrb[0].mxu0 %v1439
  %v1713 = vpop.f32.mrb[0].mxu0
  %v1714 = vadd.f32 0.0, %v1713
  %v1715 = vpop.f32.mrb[0].mxu0
  %v1716 = vpop.f32.mrb[0].mxu0
  %v1717 = vadd.f32 0.0, %v1716
  %v1718 = vpop.f32.mrb[0].mxu0
  %1719 = vmatprep.mubr.bf16.mxu0 0
  %1720 = vmatmul.mubr.bf16.gmra.mrb[0].mxu0 %v1442
  %v1721 = vpop.f32.mrb[0].mxu0
  %v1722 = vadd.f32 0.0, %v1721
  %v1723 = vpop.f32.mrb[0].mxu0
  %v1724 = vpop.f32.mrb[0].mxu0
  %v1725 = vadd.f32 0.0, %v1724
  %v1726 = vpop.f32.mrb[0].mxu0
  %1727 = vdwg.mxu0
  %v1728 = vld [vmem:[#allocation2 + $0x11] sm:$0xff]
  %v1729 = vld [vmem:[#allocation2 + $0x19] sm:$0xff]
  %v1730 = vld [vmem:[#allocation2 + $0x21] sm:$0xff]
  %v1731 = vld [vmem:[#allocation2 + $0x29] sm:$0xff]
  %v1732 = vld [vmem:[#allocation2 + $0x31] sm:$0xff]
  %v1733 = vld [vmem:[#allocation2 + $0x39] sm:$0xff]
  %v1734 = vld [vmem:[#allocation2 + $0x41] sm:$0xff]
  %v1735 = vld [vmem:[#allocation2 + $0x49] sm:$0xff]
  %v1736 = vld [vmem:[#allocation2 + $0x51] sm:$0xff]
  %v1737 = vld [vmem:[#allocation2 + $0x59] sm:$0xff]
  %v1738 = vld [vmem:[#allocation2 + $0x61] sm:$0xff]
  %v1739 = vld [vmem:[#allocation2 + $0x69] sm:$0xff]
  %v1740 = vld [vmem:[#allocation2 + $0x71] sm:$0xff]
  %v1741 = vld [vmem:[#allocation2 + $0x79] sm:$0xff]
  %v1742 = vld [vmem:[#allocation2 + $0x81] sm:$0xff]
  %v1743 = vld [vmem:[#allocation2 + $0x89] sm:$0xff]
  %v1744 = vld [vmem:[#allocation2 + $0x91] sm:$0xff]
  %v1745 = vld [vmem:[#allocation2 + $0x99] sm:$0xff]
  %v1746 = vld [vmem:[#allocation2 + $0xa1] sm:$0xff]
  %v1747 = vld [vmem:[#allocation2 + $0xa9] sm:$0xff]
  %v1748 = vld [vmem:[#allocation2 + $0xb1] sm:$0xff]
  %v1749 = vld [vmem:[#allocation2 + $0xb9] sm:$0xff]
  %v1750 = vld [vmem:[#allocation2 + $0xc1] sm:$0xff]
  %v1751 = vld [vmem:[#allocation2 + $0xc9] sm:$0xff]
  %v1752 = vld [vmem:[#allocation2 + $0xd1] sm:$0xff]
  %v1753 = vld [vmem:[#allocation2 + $0xd9] sm:$0xff]
  %v1754 = vld [vmem:[#allocation2 + $0xe1] sm:$0xff]
  %v1755 = vld [vmem:[#allocation2 + $0xe9] sm:$0xff]
  %v1756 = vld [vmem:[#allocation2 + $0xf1] sm:$0xff]
  %v1757 = vld [vmem:[#allocation2 + $0xf9] sm:$0xff]
  %v1758 = vld [vmem:[#allocation2 + $0x101] sm:$0xff]
  %v1759 = vld [vmem:[#allocation2 + $0x109] sm:$0xff]
  %v1760 = vld [vmem:[#allocation2 + $0x111] sm:$0xff]
  %v1761 = vld [vmem:[#allocation2 + $0x119] sm:$0xff]
  %v1762 = vld [vmem:[#allocation2 + $0x121] sm:$0xff]
  %v1763 = vld [vmem:[#allocation2 + $0x129] sm:$0xff]
  %v1764 = vld [vmem:[#allocation2 + $0x131] sm:$0xff]
  %v1765 = vld [vmem:[#allocation2 + $0x139] sm:$0xff]
  %v1766 = vld [vmem:[#allocation2 + $0x141] sm:$0xff]
  %v1767 = vld [vmem:[#allocation2 + $0x149] sm:$0xff]
  %v1768 = vld [vmem:[#allocation2 + $0x151] sm:$0xff]
  %v1769 = vld [vmem:[#allocation2 + $0x159] sm:$0xff]
  %v1770 = vld [vmem:[#allocation2 + $0x161] sm:$0xff]
  %v1771 = vld [vmem:[#allocation2 + $0x169] sm:$0xff]
  %v1772 = vld [vmem:[#allocation2 + $0x171] sm:$0xff]
  %v1773 = vld [vmem:[#allocation2 + $0x179] sm:$0xff]
  %v1774 = vld [vmem:[#allocation2 + $0x181] sm:$0xff]
  %v1775 = vld [vmem:[#allocation2 + $0x189] sm:$0xff]
  %v1776 = vld [vmem:[#allocation2 + $0x191] sm:$0xff]
  %v1777 = vld [vmem:[#allocation2 + $0x199] sm:$0xff]
  %v1778 = vld [vmem:[#allocation2 + $0x1a1] sm:$0xff]
  %v1779 = vld [vmem:[#allocation2 + $0x1a9] sm:$0xff]
  %v1780 = vld [vmem:[#allocation2 + $0x1b1] sm:$0xff]
  %v1781 = vld [vmem:[#allocation2 + $0x1b9] sm:$0xff]
  %v1782 = vld [vmem:[#allocation2 + $0x1c1] sm:$0xff]
  %v1783 = vld [vmem:[#allocation2 + $0x1c9] sm:$0xff]
  %v1784 = vld [vmem:[#allocation2 + $0x1d1] sm:$0xff]
  %v1785 = vld [vmem:[#allocation2 + $0x1d9] sm:$0xff]
  %v1786 = vld [vmem:[#allocation2 + $0x1e1] sm:$0xff]
  %v1787 = vld [vmem:[#allocation2 + $0x1e9] sm:$0xff]
  %v1788 = vld [vmem:[#allocation2 + $0x1f1] sm:$0xff]
  %v1789 = vld [vmem:[#allocation2 + $0x1f9] sm:$0x7f]
  %v1790 = vadd.f32 %v1728, %v1482
  %v1791 = vadd.f32 %v1729, %v1485
  %v1792 = vadd.f32 %v1730, %v1490
  %v1793 = vadd.f32 %v1731, %v1493
  %v1794 = vadd.f32 %v1732, %v1498
  %v1795 = vadd.f32 %v1733, %v1501
  %v1796 = vadd.f32 %v1734, %v1506
  %v1797 = vadd.f32 %v1735, %v1509
  %v1798 = vadd.f32 %v1736, %v1514
  %v1799 = vadd.f32 %v1737, %v1517
  %v1800 = vadd.f32 %v1738, %v1522
  %v1801 = vadd.f32 %v1739, %v1525
  %v1802 = vadd.f32 %v1740, %v1530
  %v1803 = vadd.f32 %v1741, %v1533
  %v1804 = vadd.f32 %v1742, %v1538
  %v1805 = vadd.f32 %v1743, %v1541
  %v1806 = vadd.f32 %v1744, %v1546
  %v1807 = vadd.f32 %v1745, %v1549
  %v1808 = vadd.f32 %v1746, %v1554
  %v1809 = vadd.f32 %v1747, %v1557
  %v1810 = vadd.f32 %v1748, %v1562
  %v1811 = vadd.f32 %v1749, %v1565
  %v1812 = vadd.f32 %v1750, %v1570
  %v1813 = vadd.f32 %v1751, %v1573
  %v1814 = vadd.f32 %v1752, %v1578
  %v1815 = vadd.f32 %v1753, %v1581
  %v1816 = vadd.f32 %v1754, %v1586
  %v1817 = vadd.f32 %v1755, %v1589
  %v1818 = vadd.f32 %v1756, %v1594
  %v1819 = vadd.f32 %v1757, %v1597
  %v1820 = vadd.f32 %v1758, %v1602
  %v1821 = vadd.f32 %v1759, %v1605
  %v1822 = vadd.f32 %v1760, %v1610
  %v1823 = vadd.f32 %v1761, %v1613
  %v1824 = vadd.f32 %v1762, %v1618
  %v1825 = vadd.f32 %v1763, %v1621
  %v1826 = vadd.f32 %v1764, %v1626
  %v1827 = vadd.f32 %v1765, %v1629
  %v1828 = vadd.f32 %v1766, %v1634
  %v1829 = vadd.f32 %v1767, %v1637
  %v1830 = vadd.f32 %v1768, %v1642
  %v1831 = vadd.f32 %v1769, %v1645
  %v1832 = vadd.f32 %v1770, %v1650
  %v1833 = vadd.f32 %v1771, %v1653
  %v1834 = vadd.f32 %v1772, %v1658
  %v1835 = vadd.f32 %v1773, %v1661
  %v1836 = vadd.f32 %v1774, %v1666
  %v1837 = vadd.f32 %v1775, %v1669
  %v1838 = vadd.f32 %v1776, %v1674
  %v1839 = vadd.f32 %v1777, %v1677
  %v1840 = vadd.f32 %v1778, %v1682
  %v1841 = vadd.f32 %v1779, %v1685
  %v1842 = vadd.f32 %v1780, %v1690
  %v1843 = vadd.f32 %v1781, %v1693
  %v1844 = vadd.f32 %v1782, %v1698
  %v1845 = vadd.f32 %v1783, %v1701
  %v1846 = vadd.f32 %v1784, %v1706
  %v1847 = vadd.f32 %v1785, %v1709
  %v1848 = vadd.f32 %v1786, %v1714
  %v1849 = vadd.f32 %v1787, %v1717
  %v1850 = vadd.f32 %v1788, %v1722
  %v1851 = vadd.f32 %v1789, %v1725
  %1852 = vst.msk [vmem:[#allocation2 + $0x11] sm:$0xff] %vm509, %v1790
  %1853 = vst.msk [vmem:[#allocation2 + $0x19] sm:$0xff] %vm509, %v1791
  %1854 = vst.msk [vmem:[#allocation2 + $0x21] sm:$0xff] %vm509, %v1792
  %1855 = vst.msk [vmem:[#allocation2 + $0x29] sm:$0xff] %vm509, %v1793
  %1856 = vst.msk [vmem:[#allocation2 + $0x31] sm:$0xff] %vm509, %v1794
  %1857 = vst.msk [vmem:[#allocation2 + $0x39] sm:$0xff] %vm509, %v1795
  %1858 = vst.msk [vmem:[#allocation2 + $0x41] sm:$0xff] %vm509, %v1796
  %1859 = vst.msk [vmem:[#allocation2 + $0x49] sm:$0xff] %vm509, %v1797
  %1860 = vst.msk [vmem:[#allocation2 + $0x51] sm:$0xff] %vm509, %v1798
  %1861 = vst.msk [vmem:[#allocation2 + $0x59] sm:$0xff] %vm509, %v1799
  %1862 = vst.msk [vmem:[#allocation2 + $0x61] sm:$0xff] %vm509, %v1800
  %1863 = vst.msk [vmem:[#allocation2 + $0x69] sm:$0xff] %vm509, %v1801
  %1864 = vst.msk [vmem:[#allocation2 + $0x71] sm:$0xff] %vm509, %v1802
  %1865 = vst.msk [vmem:[#allocation2 + $0x79] sm:$0xff] %vm509, %v1803
  %1866 = vst.msk [vmem:[#allocation2 + $0x81] sm:$0xff] %vm509, %v1804
  %1867 = vst.msk [vmem:[#allocation2 + $0x89] sm:$0xff] %vm509, %v1805
  %1868 = vst.msk [vmem:[#allocation2 + $0x91] sm:$0xff] %vm509, %v1806
  %1869 = vst.msk [vmem:[#allocation2 + $0x99] sm:$0xff] %vm509, %v1807
  %1870 = vst.msk [vmem:[#allocation2 + $0xa1] sm:$0xff] %vm509, %v1808
  %1871 = vst.msk [vmem:[#allocation2 + $0xa9] sm:$0xff] %vm509, %v1809
  %1872 = vst.msk [vmem:[#allocation2 + $0xb1] sm:$0xff] %vm509, %v1810
  %1873 = vst.msk [vmem:[#allocation2 + $0xb9] sm:$0xff] %vm509, %v1811
  %1874 = vst.msk [vmem:[#allocation2 + $0xc1] sm:$0xff] %vm509, %v1812
  %1875 = vst.msk [vmem:[#allocation2 + $0xc9] sm:$0xff] %vm509, %v1813
  %1876 = vst.msk [vmem:[#allocation2 + $0xd1] sm:$0xff] %vm509, %v1814
  %1877 = vst.msk [vmem:[#allocation2 + $0xd9] sm:$0xff] %vm509, %v1815
  %1878 = vst.msk [vmem:[#allocation2 + $0xe1] sm:$0xff] %vm509, %v1816
  %1879 = vst.msk [vmem:[#allocation2 + $0xe9] sm:$0xff] %vm509, %v1817
  %1880 = vst.msk [vmem:[#allocation2 + $0xf1] sm:$0xff] %vm509, %v1818
  %1881 = vst.msk [vmem:[#allocation2 + $0xf9] sm:$0xff] %vm509, %v1819
  %1882 = vst.msk [vmem:[#allocation2 + $0x101] sm:$0xff] %vm509, %v1820
  %1883 = vst.msk [vmem:[#allocation2 + $0x109] sm:$0xff] %vm509, %v1821
  %1884 = vst.msk [vmem:[#allocation2 + $0x111] sm:$0xff] %vm509, %v1822
  %1885 = vst.msk [vmem:[#allocation2 + $0x119] sm:$0xff] %vm509, %v1823
  %1886 = vst.msk [vmem:[#allocation2 + $0x121] sm:$0xff] %vm509, %v1824
  %1887 = vst.msk [vmem:[#allocation2 + $0x129] sm:$0xff] %vm509, %v1825
  %1888 = vst.msk [vmem:[#allocation2 + $0x131] sm:$0xff] %vm509, %v1826
  %1889 = vst.msk [vmem:[#allocation2 + $0x139] sm:$0xff] %vm509, %v1827
  %1890 = vst.msk [vmem:[#allocation2 + $0x141] sm:$0xff] %vm509, %v1828
  %1891 = vst.msk [vmem:[#allocation2 + $0x149] sm:$0xff] %vm509, %v1829
  %1892 = vst.msk [vmem:[#allocation2 + $0x151] sm:$0xff] %vm509, %v1830
  %1893 = vst.msk [vmem:[#allocation2 + $0x159] sm:$0xff] %vm509, %v1831
  %1894 = vst.msk [vmem:[#allocation2 + $0x161] sm:$0xff] %vm509, %v1832
  %1895 = vst.msk [vmem:[#allocation2 + $0x169] sm:$0xff] %vm509, %v1833
  %1896 = vst.msk [vmem:[#allocation2 + $0x171] sm:$0xff] %vm509, %v1834
  %1897 = vst.msk [vmem:[#allocation2 + $0x179] sm:$0xff] %vm509, %v1835
  %1898 = vst.msk [vmem:[#allocation2 + $0x181] sm:$0xff] %vm509, %v1836
  %1899 = vst.msk [vmem:[#allocation2 + $0x189] sm:$0xff] %vm509, %v1837
  %1900 = vst.msk [vmem:[#allocation2 + $0x191] sm:$0xff] %vm509, %v1838
  %1901 = vst.msk [vmem:[#allocation2 + $0x199] sm:$0xff] %vm509, %v1839
  %1902 = vst.msk [vmem:[#allocation2 + $0x1a1] sm:$0xff] %vm509, %v1840
  %1903 = vst.msk [vmem:[#allocation2 + $0x1a9] sm:$0xff] %vm509, %v1841
  %1904 = vst.msk [vmem:[#allocation2 + $0x1b1] sm:$0xff] %vm509, %v1842
  %1905 = vst.msk [vmem:[#allocation2 + $0x1b9] sm:$0xff] %vm509, %v1843
  %1906 = vst.msk [vmem:[#allocation2 + $0x1c1] sm:$0xff] %vm509, %v1844
  %1907 = vst.msk [vmem:[#allocation2 + $0x1c9] sm:$0xff] %vm509, %v1845
  %1908 = vst.msk [vmem:[#allocation2 + $0x1d1] sm:$0xff] %vm509, %v1846
  %1909 = vst.msk [vmem:[#allocation2 + $0x1d9] sm:$0xff] %vm509, %v1847
  %1910 = vst.msk [vmem:[#allocation2 + $0x1e1] sm:$0xff] %vm509, %v1848
  %1911 = vst.msk [vmem:[#allocation2 + $0x1e9] sm:$0xff] %vm509, %v1849
  %1912 = vst.msk [vmem:[#allocation2 + $0x1f1] sm:$0xff] %vm509, %v1850
  %vm1913 = vcmask 522240
  %1914 = vst.msk [vmem:[#allocation2 + $0x1f9] sm:$0x7f] %vm1913, %v1851
  %v1915 = vld [vmem:[%s0] sm:$0xff]
  %v1916 = vld [vmem:[%s0 + $0x8] sm:$0xff]
  %v1917 = vld [vmem:[%s0 + $0x10] sm:$0xff]
  %v1918 = vld [vmem:[%s0 + $0x18] sm:$0xff]
  %v1919 = vld [vmem:[%s0 + $0x20] sm:$0xff]
  %v1920 = vld [vmem:[%s0 + $0x28] sm:$0xff]
  %v1921 = vld [vmem:[%s0 + $0x30] sm:$0xff]
  %v1922 = vld [vmem:[%s0 + $0x38] sm:$0xff]
  %v1923 = vld [vmem:[%s0 + $0x40] sm:$0xff]
  %v1924 = vld [vmem:[%s0 + $0x48] sm:$0xff]
  %v1925 = vld [vmem:[%s0 + $0x50] sm:$0xff]
  %v1926 = vld [vmem:[%s0 + $0x58] sm:$0xff]
  %v1927 = vld [vmem:[%s0 + $0x60] sm:$0xff]
  %v1928 = vld [vmem:[%s0 + $0x68] sm:$0xff]
  %v1929 = vld [vmem:[%s0 + $0x70] sm:$0xff]
  %v1930 = vld [vmem:[%s0 + $0x78] sm:$0xff]
  %v1931 = vld [vmem:[%s0 + $0x80] sm:$0xff]
  %v1932 = vld [vmem:[%s0 + $0x88] sm:$0xff]
  %v1933 = vld [vmem:[%s0 + $0x90] sm:$0xff]
  %v1934 = vld [vmem:[%s0 + $0x98] sm:$0xff]
  %v1935 = vld [vmem:[%s0 + $0xa0] sm:$0xff]
  %v1936 = vld [vmem:[%s0 + $0xa8] sm:$0xff]
  %v1937 = vld [vmem:[%s0 + $0xb0] sm:$0xff]
  %v1938 = vld [vmem:[%s0 + $0xb8] sm:$0xff]
  %v1939 = vld [vmem:[%s0 + $0xc0] sm:$0xff]
  %v1940 = vld [vmem:[%s0 + $0xc8] sm:$0xff]
  %v1941 = vld [vmem:[%s0 + $0xd0] sm:$0xff]
  %v1942 = vld [vmem:[%s0 + $0xd8] sm:$0xff]
  %v1943 = vld [vmem:[%s0 + $0xe0] sm:$0xff]
  %v1944 = vld [vmem:[%s0 + $0xe8] sm:$0xff]
  %v1945 = vld [vmem:[%s0 + $0xf0] sm:$0xff]
  %v1946 = vld [vmem:[%s0 + $0xf8] sm:$0xff]
  %v1947 = vld [vmem:[%s0 + $0x100] sm:$0xff]
  %v1948 = vld [vmem:[%s0 + $0x108] sm:$0xff]
  %v1949 = vld [vmem:[%s0 + $0x110] sm:$0xff]
  %v1950 = vld [vmem:[%s0 + $0x118] sm:$0xff]
  %v1951 = vld [vmem:[%s0 + $0x120] sm:$0xff]
  %v1952 = vld [vmem:[%s0 + $0x128] sm:$0xff]
  %v1953 = vld [vmem:[%s0 + $0x130] sm:$0xff]
  %v1954 = vld [vmem:[%s0 + $0x138] sm:$0xff]
  %v1955 = vld [vmem:[%s0 + $0x140] sm:$0xff]
  %v1956 = vld [vmem:[%s0 + $0x148] sm:$0xff]
  %v1957 = vld [vmem:[%s0 + $0x150] sm:$0xff]
  %v1958 = vld [vmem:[%s0 + $0x158] sm:$0xff]
  %v1959 = vld [vmem:[%s0 + $0x160] sm:$0xff]
  %v1960 = vld [vmem:[%s0 + $0x168] sm:$0xff]
  %v1961 = vld [vmem:[%s0 + $0x170] sm:$0xff]
  %v1962 = vld [vmem:[%s0 + $0x178] sm:$0xff]
  %v1963 = vld [vmem:[%s0 + $0x180] sm:$0xff]
  %v1964 = vld [vmem:[%s0 + $0x188] sm:$0xff]
  %v1965 = vld [vmem:[%s0 + $0x190] sm:$0xff]
  %v1966 = vld [vmem:[%s0 + $0x198] sm:$0xff]
  %v1967 = vld [vmem:[%s0 + $0x1a0] sm:$0xff]
  %v1968 = vld [vmem:[%s0 + $0x1a8] sm:$0xff]
  %v1969 = vld [vmem:[%s0 + $0x1b0] sm:$0xff]
  %v1970 = vld [vmem:[%s0 + $0x1b8] sm:$0xff]
  %v1971 = vld [vmem:[%s0 + $0x1c0] sm:$0xff]
  %v1972 = vld [vmem:[%s0 + $0x1c8] sm:$0xff]
  %v1973 = vld [vmem:[%s0 + $0x1d0] sm:$0xff]
  %v1974 = vld [vmem:[%s0 + $0x1d8] sm:$0xff]
  %v1975 = vld [vmem:[%s0 + $0x1e0] sm:$0xff]
  %v1976 = vld [vmem:[%s0 + $0x1e8] sm:$0xff]
  %v1977 = vadd.s32 %v638, 16
  %v1978 = vadd.s32 %v639, 16
  %v1979 = vadd.s32 %v640, 16
  %v1980 = vadd.s32 %v641, 16
  %v1981 = vadd.s32 %v642, 16
  %v1982 = vadd.s32 %v643, 16
  %v1983 = vadd.s32 %v644, 16
  %v1984 = vadd.s32 %v645, 16
  %v1985 = vadd.s32 %v646, 16
  %v1986 = vadd.s32 %v647, 16
  %v1987 = vadd.s32 %v648, 16
  %v1988 = vadd.s32 %v649, 16
  %v1989 = vadd.s32 %v650, 16
  %v1990 = vadd.s32 %v651, 16
  %v1991 = vadd.s32 %v652, 16
  %v1992 = vadd.s32 %v653, 16
  %v1993 = vadd.s32 %v654, 16
  %v1994 = vadd.s32 %v655, 16
  %v1995 = vadd.s32 %v656, 16
  %v1996 = vadd.s32 %v657, 16
  %v1997 = vadd.s32 %v658, 16
  %v1998 = vadd.s32 %v659, 16
  %v1999 = vadd.s32 %v660, 16
  %v2000 = vadd.s32 %v661, 16
  %v2001 = vadd.s32 %v662, 16
  %v2002 = vadd.s32 %v663, 16
  %v2003 = vadd.s32 %v664, 16
  %v2004 = vadd.s32 %v665, 16
  %v2005 = vadd.s32 %v666, 16
  %v2006 = vadd.s32 %v667, 16
  %v2007 = vadd.s32 %v668, 16
  %v2008 = vadd.s32 %v669, 16
  %v2009 = vadd.s32 %v670, 16
  %v2010 = vadd.s32 %v671, 16
  %v2011 = vadd.s32 %v672, 16
  %v2012 = vadd.s32 %v673, 16
  %v2013 = vadd.s32 %v674, 16
  %v2014 = vadd.s32 %v675, 16
  %v2015 = vadd.s32 %v676, 16
  %v2016 = vadd.s32 %v677, 16
  %v2017 = vadd.s32 %v678, 16
  %v2018 = vadd.s32 %v679, 16
  %v2019 = vadd.s32 %v680, 16
  %v2020 = vadd.s32 %v681, 16
  %v2021 = vadd.s32 %v682, 16
  %v2022 = vadd.s32 %v683, 16
  %v2023 = vadd.s32 %v684, 16
  %v2024 = vadd.s32 %v685, 16
  %v2025 = vadd.s32 %v686, 16
  %v2026 = vadd.s32 %v687, 16
  %v2027 = vadd.s32 %v688, 16
  %v2028 = vadd.s32 %v689, 16
  %v2029 = vadd.s32 %v690, 16
  %v2030 = vadd.s32 %v691, 16
  %v2031 = vadd.s32 %v692, 16
  %v2032 = vadd.s32 %v693, 16
  %v2033 = vadd.s32 %v694, 16
  %v2034 = vadd.s32 %v695, 16
  %v2035 = vadd.s32 %v696, 16
  %v2036 = vadd.s32 %v697, 16
  %v2037 = vadd.s32 %v698, 16
  %v2038 = vshra.s32 %v639, 4
  %v2039 = vshra.s32 %v1977, 4
  %v2040 = vshra.s32 %v1978, 4
  %v2041 = vshra.s32 %v1979, 4
  %v2042 = vshra.s32 %v1980, 4
  %v2043 = vshra.s32 %v1981, 4
  %v2044 = vshra.s32 %v1982, 4
  %v2045 = vshra.s32 %v1983, 4
  %v2046 = vshra.s32 %v1984, 4
  %v2047 = vshra.s32 %v1985, 4
  %v2048 = vshra.s32 %v1986, 4
  %v2049 = vshra.s32 %v1987, 4
  %v2050 = vshra.s32 %v1988, 4
  %v2051 = vshra.s32 %v1989, 4
  %v2052 = vshra.s32 %v1990, 4
  %v2053 = vshra.s32 %v1991, 4
  %v2054 = vshra.s32 %v1992, 4
  %v2055 = vshra.s32 %v1993, 4
  %v2056 = vshra.s32 %v1994, 4
  %v2057 = vshra.s32 %v1995, 4
  %v2058 = vshra.s32 %v1996, 4
  %v2059 = vshra.s32 %v1997, 4
  %v2060 = vshra.s32 %v1998, 4
  %v2061 = vshra.s32 %v1999, 4
  %v2062 = vshra.s32 %v2000, 4
  %v2063 = vshra.s32 %v2001, 4
  %v2064 = vshra.s32 %v2002, 4
  %v2065 = vshra.s32 %v2003, 4
  %v2066 = vshra.s32 %v2004, 4
  %v2067 = vshra.s32 %v2005, 4
  %v2068 = vshra.s32 %v2006, 4
  %v2069 = vshra.s32 %v2007, 4
  %v2070 = vshra.s32 %v2008, 4
  %v2071 = vshra.s32 %v2009, 4
  %v2072 = vshra.s32 %v2010, 4
  %v2073 = vshra.s32 %v2011, 4
  %v2074 = vshra.s32 %v2012, 4
  %v2075 = vshra.s32 %v2013, 4
  %v2076 = vshra.s32 %v2014, 4
  %v2077 = vshra.s32 %v2015, 4
  %v2078 = vshra.s32 %v2016, 4
  %v2079 = vshra.s32 %v2017, 4
  %v2080 = vshra.s32 %v2018, 4
  %v2081 = vshra.s32 %v2019, 4
  %v2082 = vshra.s32 %v2020, 4
  %v2083 = vshra.s32 %v2021, 4
  %v2084 = vshra.s32 %v2022, 4
  %v2085 = vshra.s32 %v2023, 4
  %v2086 = vshra.s32 %v2024, 4
  %v2087 = vshra.s32 %v2025, 4
  %v2088 = vshra.s32 %v2026, 4
  %v2089 = vshra.s32 %v2027, 4
  %v2090 = vshra.s32 %v2028, 4
  %v2091 = vshra.s32 %v2029, 4
  %v2092 = vshra.s32 %v2030, 4
  %v2093 = vshra.s32 %v2031, 4
  %v2094 = vshra.s32 %v2032, 4
  %v2095 = vshra.s32 %v2033, 4
  %v2096 = vshra.s32 %v2034, 4
  %v2097 = vshra.s32 %v2035, 4
  %v2098 = vshra.s32 %v2036, 4
  %v2099 = vshra.s32 %v2037, 4
  %v2100 = vand.u32 %v2038, 15
  %v2101 = vand.u32 %v2039, 15
  %v2102 = vand.u32 %v2040, 15
  %v2103 = vand.u32 %v2041, 15
  %v2104 = vand.u32 %v2042, 15
  %v2105 = vand.u32 %v2043, 15
  %v2106 = vand.u32 %v2044, 15
  %v2107 = vand.u32 %v2045, 15
  %v2108 = vand.u32 %v2046, 15
  %v2109 = vand.u32 %v2047, 15
  %v2110 = vand.u32 %v2048, 15
  %v2111 = vand.u32 %v2049, 15
  %v2112 = vand.u32 %v2050, 15
  %v2113 = vand.u32 %v2051, 15
  %v2114 = vand.u32 %v2052, 15
  %v2115 = vand.u32 %v2053, 15
  %v2116 = vand.u32 %v2054, 15
  %v2117 = vand.u32 %v2055, 15
  %v2118 = vand.u32 %v2056, 15
  %v2119 = vand.u32 %v2057, 15
  %v2120 = vand.u32 %v2058, 15
  %v2121 = vand.u32 %v2059, 15
  %v2122 = vand.u32 %v2060, 15
  %v2123 = vand.u32 %v2061, 15
  %v2124 = vand.u32 %v2062, 15
  %v2125 = vand.u32 %v2063, 15
  %v2126 = vand.u32 %v2064, 15
  %v2127 = vand.u32 %v2065, 15
  %v2128 = vand.u32 %v2066, 15
  %v2129 = vand.u32 %v2067, 15
  %v2130 = vand.u32 %v2068, 15
  %v2131 = vand.u32 %v2069, 15
  %v2132 = vand.u32 %v2070, 15
  %v2133 = vand.u32 %v2071, 15
  %v2134 = vand.u32 %v2072, 15
  %v2135 = vand.u32 %v2073, 15
  %v2136 = vand.u32 %v2074, 15
  %v2137 = vand.u32 %v2075, 15
  %v2138 = vand.u32 %v2076, 15
  %v2139 = vand.u32 %v2077, 15
  %v2140 = vand.u32 %v2078, 15
  %v2141 = vand.u32 %v2079, 15
  %v2142 = vand.u32 %v2080, 15
  %v2143 = vand.u32 %v2081, 15
  %v2144 = vand.u32 %v2082, 15
  %v2145 = vand.u32 %v2083, 15
  %v2146 = vand.u32 %v2084, 15
  %v2147 = vand.u32 %v2085, 15
  %v2148 = vand.u32 %v2086, 15
  %v2149 = vand.u32 %v2087, 15
  %v2150 = vand.u32 %v2088, 15
  %v2151 = vand.u32 %v2089, 15
  %v2152 = vand.u32 %v2090, 15
  %v2153 = vand.u32 %v2091, 15
  %v2154 = vand.u32 %v2092, 15
  %v2155 = vand.u32 %v2093, 15
  %v2156 = vand.u32 %v2094, 15
  %v2157 = vand.u32 %v2095, 15
  %v2158 = vand.u32 %v2096, 15
  %v2159 = vand.u32 %v2097, 15
  %v2160 = vand.u32 %v2098, 15
  %v2161 = vand.u32 %v2099, 15
  %vm2162 = vcmp.ne.s32.totalorder %v2100, 0
  %vm2163 = vcmp.ne.s32.totalorder %v2101, 0
  %vm2164 = vcmp.ne.s32.totalorder %v2102, 0
  %vm2165 = vcmp.ne.s32.totalorder %v2103, 0
  %vm2166 = vcmp.ne.s32.totalorder %v2104, 0
  %vm2167 = vcmp.ne.s32.totalorder %v2105, 0
  %vm2168 = vcmp.ne.s32.totalorder %v2106, 0
  %vm2169 = vcmp.ne.s32.totalorder %v2107, 0
  %vm2170 = vcmp.ne.s32.totalorder %v2108, 0
  %vm2171 = vcmp.ne.s32.totalorder %v2109, 0
  %vm2172 = vcmp.ne.s32.totalorder %v2110, 0
  %vm2173 = vcmp.ne.s32.totalorder %v2111, 0
  %vm2174 = vcmp.ne.s32.totalorder %v2112, 0
  %vm2175 = vcmp.ne.s32.totalorder %v2113, 0
  %vm2176 = vcmp.ne.s32.totalorder %v2114, 0
  %vm2177 = vcmp.ne.s32.totalorder %v2115, 0
  %vm2178 = vcmp.ne.s32.totalorder %v2116, 0
  %vm2179 = vcmp.ne.s32.totalorder %v2117, 0
  %vm2180 = vcmp.ne.s32.totalorder %v2118, 0
  %vm2181 = vcmp.ne.s32.totalorder %v2119, 0
  %vm2182 = vcmp.ne.s32.totalorder %v2120, 0
  %vm2183 = vcmp.ne.s32.totalorder %v2121, 0
  %vm2184 = vcmp.ne.s32.totalorder %v2122, 0
  %vm2185 = vcmp.ne.s32.totalorder %v2123, 0
  %vm2186 = vcmp.ne.s32.totalorder %v2124, 0
  %vm2187 = vcmp.ne.s32.totalorder %v2125, 0
  %vm2188 = vcmp.ne.s32.totalorder %v2126, 0
  %vm2189 = vcmp.ne.s32.totalorder %v2127, 0
  %vm2190 = vcmp.ne.s32.totalorder %v2128, 0
  %vm2191 = vcmp.ne.s32.totalorder %v2129, 0
  %vm2192 = vcmp.ne.s32.totalorder %v2130, 0
  %vm2193 = vcmp.ne.s32.totalorder %v2131, 0
  %vm2194 = vcmp.ne.s32.totalorder %v2132, 0
  %vm2195 = vcmp.ne.s32.totalorder %v2133, 0
  %vm2196 = vcmp.ne.s32.totalorder %v2134, 0
  %vm2197 = vcmp.ne.s32.totalorder %v2135, 0
  %vm2198 = vcmp.ne.s32.totalorder %v2136, 0
  %vm2199 = vcmp.ne.s32.totalorder %v2137, 0
  %vm2200 = vcmp.ne.s32.totalorder %v2138, 0
  %vm2201 = vcmp.ne.s32.totalorder %v2139, 0
  %vm2202 = vcmp.ne.s32.totalorder %v2140, 0
  %vm2203 = vcmp.ne.s32.totalorder %v2141, 0
  %vm2204 = vcmp.ne.s32.totalorder %v2142, 0
  %vm2205 = vcmp.ne.s32.totalorder %v2143, 0
  %vm2206 = vcmp.ne.s32.totalorder %v2144, 0
  %vm2207 = vcmp.ne.s32.totalorder %v2145, 0
  %vm2208 = vcmp.ne.s32.totalorder %v2146, 0
  %vm2209 = vcmp.ne.s32.totalorder %v2147, 0
  %vm2210 = vcmp.ne.s32.totalorder %v2148, 0
  %vm2211 = vcmp.ne.s32.totalorder %v2149, 0
  %vm2212 = vcmp.ne.s32.totalorder %v2150, 0
  %vm2213 = vcmp.ne.s32.totalorder %v2151, 0
  %vm2214 = vcmp.ne.s32.totalorder %v2152, 0
  %vm2215 = vcmp.ne.s32.totalorder %v2153, 0
  %vm2216 = vcmp.ne.s32.totalorder %v2154, 0
  %vm2217 = vcmp.ne.s32.totalorder %v2155, 0
  %vm2218 = vcmp.ne.s32.totalorder %v2156, 0
  %vm2219 = vcmp.ne.s32.totalorder %v2157, 0
  %vm2220 = vcmp.ne.s32.totalorder %v2158, 0
  %vm2221 = vcmp.ne.s32.totalorder %v2159, 0
  %vm2222 = vcmp.ne.s32.totalorder %v2160, 0
  %vm2223 = vcmp.ne.s32.totalorder %v2161, 0
  %v2224 = vsel %vm2162, 1, 0
  %v2225 = vsel %vm2163, 1, 0
  %v2226 = vsel %vm2164, 1, 0
  %v2227 = vsel %vm2165, 1, 0
  %v2228 = vsel %vm2166, 1, 0
  %v2229 = vsel %vm2167, 1, 0
  %v2230 = vsel %vm2168, 1, 0
  %v2231 = vsel %vm2169, 1, 0
  %v2232 = vsel %vm2170, 1, 0
  %v2233 = vsel %vm2171, 1, 0
  %v2234 = vsel %vm2172, 1, 0
  %v2235 = vsel %vm2173, 1, 0
  %v2236 = vsel %vm2174, 1, 0
  %v2237 = vsel %vm2175, 1, 0
  %v2238 = vsel %vm2176, 1, 0
  %v2239 = vsel %vm2177, 1, 0
  %v2240 = vsel %vm2178, 1, 0
  %v2241 = vsel %vm2179, 1, 0
  %v2242 = vsel %vm2180, 1, 0
  %v2243 = vsel %vm2181, 1, 0
  %v2244 = vsel %vm2182, 1, 0
  %v2245 = vsel %vm2183, 1, 0
  %v2246 = vsel %vm2184, 1, 0
  %v2247 = vsel %vm2185, 1, 0
  %v2248 = vsel %vm2186, 1, 0
  %v2249 = vsel %vm2187, 1, 0
  %v2250 = vsel %vm2188, 1, 0
  %v2251 = vsel %vm2189, 1, 0
  %v2252 = vsel %vm2190, 1, 0
  %v2253 = vsel %vm2191, 1, 0
  %v2254 = vsel %vm2192, 1, 0
  %v2255 = vsel %vm2193, 1, 0
  %v2256 = vsel %vm2194, 1, 0
  %v2257 = vsel %vm2195, 1, 0
  %v2258 = vsel %vm2196, 1, 0
  %v2259 = vsel %vm2197, 1, 0
  %v2260 = vsel %vm2198, 1, 0
  %v2261 = vsel %vm2199, 1, 0
  %v2262 = vsel %vm2200, 1, 0
  %v2263 = vsel %vm2201, 1, 0
  %v2264 = vsel %vm2202, 1, 0
  %v2265 = vsel %vm2203, 1, 0
  %v2266 = vsel %vm2204, 1, 0
  %v2267 = vsel %vm2205, 1, 0
  %v2268 = vsel %vm2206, 1, 0
  %v2269 = vsel %vm2207, 1, 0
  %v2270 = vsel %vm2208, 1, 0
  %v2271 = vsel %vm2209, 1, 0
  %v2272 = vsel %vm2210, 1, 0
  %v2273 = vsel %vm2211, 1, 0
  %v2274 = vsel %vm2212, 1, 0
  %v2275 = vsel %vm2213, 1, 0
  %v2276 = vsel %vm2214, 1, 0
  %v2277 = vsel %vm2215, 1, 0
  %v2278 = vsel %vm2216, 1, 0
  %v2279 = vsel %vm2217, 1, 0
  %v2280 = vsel %vm2218, 1, 0
  %v2281 = vsel %vm2219, 1, 0
  %v2282 = vsel %vm2220, 1, 0
  %v2283 = vsel %vm2221, 1, 0
  %v2284 = vsel %vm2222, 1, 0
  %v2285 = vsel %vm2223, 1, 0
  %vm2286 = vcmp.eq.s32.totalorder %v2224, 1
  %vm2287 = vcmp.eq.s32.totalorder %v2225, 1
  %vm2288 = vcmp.eq.s32.totalorder %v2226, 1
  %vm2289 = vcmp.eq.s32.totalorder %v2227, 1
  %vm2290 = vcmp.eq.s32.totalorder %v2228, 1
  %vm2291 = vcmp.eq.s32.totalorder %v2229, 1
  %vm2292 = vcmp.eq.s32.totalorder %v2230, 1
  %vm2293 = vcmp.eq.s32.totalorder %v2231, 1
  %vm2294 = vcmp.eq.s32.totalorder %v2232, 1
  %vm2295 = vcmp.eq.s32.totalorder %v2233, 1
  %vm2296 = vcmp.eq.s32.totalorder %v2234, 1
  %vm2297 = vcmp.eq.s32.totalorder %v2235, 1
  %vm2298 = vcmp.eq.s32.totalorder %v2236, 1
  %vm2299 = vcmp.eq.s32.totalorder %v2237, 1
  %vm2300 = vcmp.eq.s32.totalorder %v2238, 1
  %vm2301 = vcmp.eq.s32.totalorder %v2239, 1
  %vm2302 = vcmp.eq.s32.totalorder %v2240, 1
  %vm2303 = vcmp.eq.s32.totalorder %v2241, 1
  %vm2304 = vcmp.eq.s32.totalorder %v2242, 1
  %vm2305 = vcmp.eq.s32.totalorder %v2243, 1
  %vm2306 = vcmp.eq.s32.totalorder %v2244, 1
  %vm2307 = vcmp.eq.s32.totalorder %v2245, 1
  %vm2308 = vcmp.eq.s32.totalorder %v2246, 1
  %vm2309 = vcmp.eq.s32.totalorder %v2247, 1
  %vm2310 = vcmp.eq.s32.totalorder %v2248, 1
  %vm2311 = vcmp.eq.s32.totalorder %v2249, 1
  %vm2312 = vcmp.eq.s32.totalorder %v2250, 1
  %vm2313 = vcmp.eq.s32.totalorder %v2251, 1
  %vm2314 = vcmp.eq.s32.totalorder %v2252, 1
  %vm2315 = vcmp.eq.s32.totalorder %v2253, 1
  %vm2316 = vcmp.eq.s32.totalorder %v2254, 1
  %vm2317 = vcmp.eq.s32.totalorder %v2255, 1
  %vm2318 = vcmp.eq.s32.totalorder %v2256, 1
  %vm2319 = vcmp.eq.s32.totalorder %v2257, 1
  %vm2320 = vcmp.eq.s32.totalorder %v2258, 1
  %vm2321 = vcmp.eq.s32.totalorder %v2259, 1
  %vm2322 = vcmp.eq.s32.totalorder %v2260, 1
  %vm2323 = vcmp.eq.s32.totalorder %v2261, 1
  %vm2324 = vcmp.eq.s32.totalorder %v2262, 1
  %vm2325 = vcmp.eq.s32.totalorder %v2263, 1
  %vm2326 = vcmp.eq.s32.totalorder %v2264, 1
  %vm2327 = vcmp.eq.s32.totalorder %v2265, 1
  %vm2328 = vcmp.eq.s32.totalorder %v2266, 1
  %vm2329 = vcmp.eq.s32.totalorder %v2267, 1
  %vm2330 = vcmp.eq.s32.totalorder %v2268, 1
  %vm2331 = vcmp.eq.s32.totalorder %v2269, 1
  %vm2332 = vcmp.eq.s32.totalorder %v2270, 1
  %vm2333 = vcmp.eq.s32.totalorder %v2271, 1
  %vm2334 = vcmp.eq.s32.totalorder %v2272, 1
  %vm2335 = vcmp.eq.s32.totalorder %v2273, 1
  %vm2336 = vcmp.eq.s32.totalorder %v2274, 1
  %vm2337 = vcmp.eq.s32.totalorder %v2275, 1
  %vm2338 = vcmp.eq.s32.totalorder %v2276, 1
  %vm2339 = vcmp.eq.s32.totalorder %v2277, 1
  %vm2340 = vcmp.eq.s32.totalorder %v2278, 1
  %vm2341 = vcmp.eq.s32.totalorder %v2279, 1
  %vm2342 = vcmp.eq.s32.totalorder %v2280, 1
  %vm2343 = vcmp.eq.s32.totalorder %v2281, 1
  %vm2344 = vcmp.eq.s32.totalorder %v2282, 1
  %vm2345 = vcmp.eq.s32.totalorder %v2283, 1
  %vm2346 = vcmp.eq.s32.totalorder %v2284, 1
  %vm2347 = vcmp.eq.s32.totalorder %v2285, 1
  %v2348 = vsel %vm2286, %v1915, 0.0
  %v2349 = vsel %vm2287, %v1916, 0.0
  %v2350 = vsel %vm2288, %v1917, 0.0
  %v2351 = vsel %vm2289, %v1918, 0.0
  %v2352 = vsel %vm2290, %v1919, 0.0
  %v2353 = vsel %vm2291, %v1920, 0.0
  %v2354 = vsel %vm2292, %v1921, 0.0
  %v2355 = vsel %vm2293, %v1922, 0.0
  %v2356 = vsel %vm2294, %v1923, 0.0
  %v2357 = vsel %vm2295, %v1924, 0.0
  %v2358 = vsel %vm2296, %v1925, 0.0
  %v2359 = vsel %vm2297, %v1926, 0.0
  %v2360 = vsel %vm2298, %v1927, 0.0
  %v2361 = vsel %vm2299, %v1928, 0.0
  %v2362 = vsel %vm2300, %v1929, 0.0
  %v2363 = vsel %vm2301, %v1930, 0.0
  %v2364 = vsel %vm2302, %v1931, 0.0
  %v2365 = vsel %vm2303, %v1932, 0.0
  %v2366 = vsel %vm2304, %v1933, 0.0
  %v2367 = vsel %vm2305, %v1934, 0.0
  %v2368 = vsel %vm2306, %v1935, 0.0
  %v2369 = vsel %vm2307, %v1936, 0.0
  %v2370 = vsel %vm2308, %v1937, 0.0
  %v2371 = vsel %vm2309, %v1938, 0.0
  %v2372 = vsel %vm2310, %v1939, 0.0
  %v2373 = vsel %vm2311, %v1940, 0.0
  %v2374 = vsel %vm2312, %v1941, 0.0
  %v2375 = vsel %vm2313, %v1942, 0.0
  %v2376 = vsel %vm2314, %v1943, 0.0
  %v2377 = vsel %vm2315, %v1944, 0.0
  %v2378 = vsel %vm2316, %v1945, 0.0
  %v2379 = vsel %vm2317, %v1946, 0.0
  %v2380 = vsel %vm2318, %v1947, 0.0
  %v2381 = vsel %vm2319, %v1948, 0.0
  %v2382 = vsel %vm2320, %v1949, 0.0
  %v2383 = vsel %vm2321, %v1950, 0.0
  %v2384 = vsel %vm2322, %v1951, 0.0
  %v2385 = vsel %vm2323, %v1952, 0.0
  %v2386 = vsel %vm2324, %v1953, 0.0
  %v2387 = vsel %vm2325, %v1954, 0.0
  %v2388 = vsel %vm2326, %v1955, 0.0
  %v2389 = vsel %vm2327, %v1956, 0.0
  %v2390 = vsel %vm2328, %v1957, 0.0
  %v2391 = vsel %vm2329, %v1958, 0.0
  %v2392 = vsel %vm2330, %v1959, 0.0
  %v2393 = vsel %vm2331, %v1960, 0.0
  %v2394 = vsel %vm2332, %v1961, 0.0
  %v2395 = vsel %vm2333, %v1962, 0.0
  %v2396 = vsel %vm2334, %v1963, 0.0
  %v2397 = vsel %vm2335, %v1964, 0.0
  %v2398 = vsel %vm2336, %v1965, 0.0
  %v2399 = vsel %vm2337, %v1966, 0.0
  %v2400 = vsel %vm2338, %v1967, 0.0
  %v2401 = vsel %vm2339, %v1968, 0.0
  %v2402 = vsel %vm2340, %v1969, 0.0
  %v2403 = vsel %vm2341, %v1970, 0.0
  %v2404 = vsel %vm2342, %v1971, 0.0
  %v2405 = vsel %vm2343, %v1972, 0.0
  %v2406 = vsel %vm2344, %v1973, 0.0
  %v2407 = vsel %vm2345, %v1974, 0.0
  %v2408 = vsel %vm2346, %v1975, 0.0
  %v2409 = vsel %vm2347, %v1976, 0.0
  %v2410 = vpack.c.bf16 %v2349, %v2348
  %v2411 = vpack.c.bf16 %v2351, %v2350
  %v2412 = vpack.c.bf16 %v2353, %v2352
  %v2413 = vpack.c.bf16 %v2355, %v2354
  %v2414 = vpack.c.bf16 %v2357, %v2356
  %v2415 = vpack.c.bf16 %v2359, %v2358
  %v2416 = vpack.c.bf16 %v2361, %v2360
  %v2417 = vpack.c.bf16 %v2363, %v2362
  %v2418 = vpack.c.bf16 %v2365, %v2364
  %v2419 = vpack.c.bf16 %v2367, %v2366
  %v2420 = vpack.c.bf16 %v2369, %v2368
  %v2421 = vpack.c.bf16 %v2371, %v2370
  %v2422 = vpack.c.bf16 %v2373, %v2372
  %v2423 = vpack.c.bf16 %v2375, %v2374
  %v2424 = vpack.c.bf16 %v2377, %v2376
  %v2425 = vpack.c.bf16 %v2379, %v2378
  %v2426 = vpack.c.bf16 %v2381, %v2380
  %v2427 = vpack.c.bf16 %v2383, %v2382
  %v2428 = vpack.c.bf16 %v2385, %v2384
  %v2429 = vpack.c.bf16 %v2387, %v2386
  %v2430 = vpack.c.bf16 %v2389, %v2388
  %v2431 = vpack.c.bf16 %v2391, %v2390
  %v2432 = vpack.c.bf16 %v2393, %v2392
  %v2433 = vpack.c.bf16 %v2395, %v2394
  %v2434 = vpack.c.bf16 %v2397, %v2396
  %v2435 = vpack.c.bf16 %v2399, %v2398
  %v2436 = vpack.c.bf16 %v2401, %v2400
  %v2437 = vpack.c.bf16 %v2403, %v2402
  %v2438 = vpack.c.bf16 %v2405, %v2404
  %v2439 = vpack.c.bf16 %v2407, %v2406
  %v2440 = vpack.c.bf16 %v2409, %v2408
  %s2441 = scalar_lea.vmem %s1, 2
  %v2442 = vld [vmem:[%s2441] sm:$0x3]
  %v2444 = vsel %vm116, %v2410, 0
  %v2447 = vsel %vm116, %v2411, 0
  %v2450 = vsel %vm116, %v2412, 0
  %v2453 = vsel %vm116, %v2413, 0
  %v2456 = vsel %vm116, %v2414, 0
  %v2459 = vsel %vm116, %v2415, 0
  %v2462 = vsel %vm116, %v2416, 0
  %v2465 = vsel %vm116, %v2417, 0
  %v2468 = vsel %vm116, %v2418, 0
  %v2471 = vsel %vm116, %v2419, 0
  %v2474 = vsel %vm116, %v2420, 0
  %v2477 = vsel %vm116, %v2421, 0
  %v2480 = vsel %vm116, %v2422, 0
  %v2483 = vsel %vm116, %v2423, 0
  %v2486 = vsel %vm116, %v2424, 0
  %v2489 = vsel %vm116, %v2425, 0
  %v2492 = vsel %vm116, %v2426, 0
  %v2495 = vsel %vm116, %v2427, 0
  %v2498 = vsel %vm116, %v2428, 0
  %v2501 = vsel %vm116, %v2429, 0
  %v2504 = vsel %vm116, %v2430, 0
  %v2507 = vsel %vm116, %v2431, 0
  %v2510 = vsel %vm116, %v2432, 0
  %v2513 = vsel %vm116, %v2433, 0
  %v2516 = vsel %vm116, %v2434, 0
  %v2519 = vsel %vm116, %v2435, 0
  %v2522 = vsel %vm116, %v2436, 0
  %v2525 = vsel %vm116, %v2437, 0
  %v2528 = vsel %vm116, %v2438, 0
  %v2531 = vsel %vm116, %v2439, 0
  %v2534 = vsel %vm116, %v2440, 0
  %v2537 = vand.u32 %v2442, %v216
  %2539 = vmatprep.subr.bf16.mxu0 0
  %2540 = vmatpush1.bf16.msra.mxu0 %v2537
  %2541 = vmatprep.subr.bf16.mxu0 0
  %2542 = vmatpush1.bf16.msra.mxu0 0
  %2543 = vmatprep.subr.bf16.mxu0 0
  %2544 = vmatpush1.bf16.msra.mxu0 0
  %2545 = vmatprep.subr.bf16.mxu0 0
  %2546 = vmatpush1.bf16.msra.mxu0 0
  %2547 = vmatprep.subr.bf16.mxu0 0
  %2548 = vmatpush1.bf16.msra.mxu0 0
  %2549 = vmatprep.subr.bf16.mxu0 0
  %2550 = vmatpush1.bf16.msra.mxu0 0
  %2551 = vmatprep.subr.bf16.mxu0 0
  %2552 = vmatpush1.bf16.msra.mxu0 0
  %2553 = vmatprep.subr.bf16.mxu0 0
  %2554 = vmatpush1.bf16.msra.mxu0 0
  %2555 = vmatprep.subr.bf16.mxu0 0
  %2556 = vmatpush1.bf16.msra.mxu0 0
  %2557 = vmatprep.subr.bf16.mxu0 0
  %2558 = vmatpush1.bf16.msra.mxu0 0
  %2559 = vmatprep.subr.bf16.mxu0 0
  %2560 = vmatpush1.bf16.msra.mxu0 0
  %2561 = vmatprep.subr.bf16.mxu0 0
  %2562 = vmatpush1.bf16.msra.mxu0 0
  %2563 = vmatprep.subr.bf16.mxu0 0
  %2564 = vmatpush1.bf16.msra.mxu0 0
  %2565 = vmatprep.subr.bf16.mxu0 0
  %2566 = vmatpush1.bf16.msra.mxu0 0
  %2567 = vmatprep.subr.bf16.mxu0 0
  %2568 = vmatpush1.bf16.msra.mxu0 0
  %2569 = vmatprep.subr.bf16.mxu0 0
  %2570 = vmatpush1.bf16.msra.mxu0 0
  %2571 = vmatprep.mubr.bf16.mxu0 0
  %2572 = vmatmul.mubr.bf16.gmra.mrb[0].mxu0 %v2444
  %v2573 = vpop.f32.mrb[0].mxu0
  %v2574 = vadd.f32 0.0, %v2573
  %v2575 = vpop.f32.mrb[0].mxu0
  %v2576 = vpop.f32.mrb[0].mxu0
  %v2577 = vadd.f32 0.0, %v2576
  %v2578 = vpop.f32.mrb[0].mxu0
  %2579 = vmatprep.mubr.bf16.mxu0 0
  %2580 = vmatmul.mubr.bf16.gmra.mrb[0].mxu0 %v2447
  %v2581 = vpop.f32.mrb[0].mxu0
  %v2582 = vadd.f32 0.0, %v2581
  %v2583 = vpop.f32.mrb[0].mxu0
  %v2584 = vpop.f32.mrb[0].mxu0
  %v2585 = vadd.f32 0.0, %v2584
  %v2586 = vpop.f32.mrb[0].mxu0
  %2587 = vmatprep.mubr.bf16.mxu0 0
  %2588 = vmatmul.mubr.bf16.gmra.mrb[0].mxu0 %v2450
  %v2589 = vpop.f32.mrb[0].mxu0
  %v2590 = vadd.f32 0.0, %v2589
  %v2591 = vpop.f32.mrb[0].mxu0
  %v2592 = vpop.f32.mrb[0].mxu0
  %v2593 = vadd.f32 0.0, %v2592
  %v2594 = vpop.f32.mrb[0].mxu0
  %2595 = vmatprep.mubr.bf16.mxu0 0
  %2596 = vmatmul.mubr.bf16.gmra.mrb[0].mxu0 %v2453
  %v2597 = vpop.f32.mrb[0].mxu0
  %v2598 = vadd.f32 0.0, %v2597
  %v2599 = vpop.f32.mrb[0].mxu0
  %v2600 = vpop.f32.mrb[0].mxu0
  %v2601 = vadd.f32 0.0, %v2600
  %v2602 = vpop.f32.mrb[0].mxu0
  %2603 = vmatprep.mubr.bf16.mxu0 0
  %2604 = vmatmul.mubr.bf16.gmra.mrb[0].mxu0 %v2456
  %v2605 = vpop.f32.mrb[0].mxu0
  %v2606 = vadd.f32 0.0, %v2605
  %v2607 = vpop.f32.mrb[0].mxu0
  %v2608 = vpop.f32.mrb[0].mxu0
  %v2609 = vadd.f32 0.0, %v2608
  %v2610 = vpop.f32.mrb[0].mxu0
  %2611 = vmatprep.mubr.bf16.mxu0 0
  %2612 = vmatmul.mubr.bf16.gmra.mrb[0].mxu0 %v2459
  %v2613 = vpop.f32.mrb[0].mxu0
  %v2614 = vadd.f32 0.0, %v2613
  %v2615 = vpop.f32.mrb[0].mxu0
  %v2616 = vpop.f32.mrb[0].mxu0
  %v2617 = vadd.f32 0.0, %v2616
  %v2618 = vpop.f32.mrb[0].mxu0
  %2619 = vmatprep.mubr.bf16.mxu0 0
  %2620 = vmatmul.mubr.bf16.gmra.mrb[0].mxu0 %v2462
  %v2621 = vpop.f32.mrb[0].mxu0
  %v2622 = vadd.f32 0.0, %v2621
  %v2623 = vpop.f32.mrb[0].mxu0
  %v2624 = vpop.f32.mrb[0].mxu0
  %v2625 = vadd.f32 0.0, %v2624
  %v2626 = vpop.f32.mrb[0].mxu0
  %2627 = vmatprep.mubr.bf16.mxu0 0
  %2628 = vmatmul.mubr.bf16.gmra.mrb[0].mxu0 %v2465
  %v2629 = vpop.f32.mrb[0].mxu0
  %v2630 = vadd.f32 0.0, %v2629
  %v2631 = vpop.f32.mrb[0].mxu0
  %v2632 = vpop.f32.mrb[0].mxu0
  %v2633 = vadd.f32 0.0, %v2632
  %v2634 = vpop.f32.mrb[0].mxu0
  %2635 = vmatprep.mubr.bf16.mxu0 0
  %2636 = vmatmul.mubr.bf16.gmra.mrb[0].mxu0 %v2468
  %v2637 = vpop.f32.mrb[0].mxu0
  %v2638 = vadd.f32 0.0, %v2637
  %v2639 = vpop.f32.mrb[0].mxu0
  %v2640 = vpop.f32.mrb[0].mxu0
  %v2641 = vadd.f32 0.0, %v2640
  %v2642 = vpop.f32.mrb[0].mxu0
  %2643 = vmatprep.mubr.bf16.mxu0 0
  %2644 = vmatmul.mubr.bf16.gmra.mrb[0].mxu0 %v2471
  %v2645 = vpop.f32.mrb[0].mxu0
  %v2646 = vadd.f32 0.0, %v2645
  %v2647 = vpop.f32.mrb[0].mxu0
  %v2648 = vpop.f32.mrb[0].mxu0
  %v2649 = vadd.f32 0.0, %v2648
  %v2650 = vpop.f32.mrb[0].mxu0
  %2651 = vmatprep.mubr.bf16.mxu0 0
  %2652 = vmatmul.mubr.bf16.gmra.mrb[0].mxu0 %v2474
  %v2653 = vpop.f32.mrb[0].mxu0
  %v2654 = vadd.f32 0.0, %v2653
  %v2655 = vpop.f32.mrb[0].mxu0
  %v2656 = vpop.f32.mrb[0].mxu0
  %v2657 = vadd.f32 0.0, %v2656
  %v2658 = vpop.f32.mrb[0].mxu0
  %2659 = vmatprep.mubr.bf16.mxu0 0
  %2660 = vmatmul.mubr.bf16.gmra.mrb[0].mxu0 %v2477
  %v2661 = vpop.f32.mrb[0].mxu0
  %v2662 = vadd.f32 0.0, %v2661
  %v2663 = vpop.f32.mrb[0].mxu0
  %v2664 = vpop.f32.mrb[0].mxu0
  %v2665 = vadd.f32 0.0, %v2664
  %v2666 = vpop.f32.mrb[0].mxu0
  %2667 = vmatprep.mubr.bf16.mxu0 0
  %2668 = vmatmul.mubr.bf16.gmra.mrb[0].mxu0 %v2480
  %v2669 = vpop.f32.mrb[0].mxu0
  %v2670 = vadd.f32 0.0, %v2669
  %v2671 = vpop.f32.mrb[0].mxu0
  %v2672 = vpop.f32.mrb[0].mxu0
  %v2673 = vadd.f32 0.0, %v2672
  %v2674 = vpop.f32.mrb[0].mxu0
  %2675 = vmatprep.mubr.bf16.mxu0 0
  %2676 = vmatmul.mubr.bf16.gmra.mrb[0].mxu0 %v2483
  %v2677 = vpop.f32.mrb[0].mxu0
  %v2678 = vadd.f32 0.0, %v2677
  %v2679 = vpop.f32.mrb[0].mxu0
  %v2680 = vpop.f32.mrb[0].mxu0
  %v2681 = vadd.f32 0.0, %v2680
  %v2682 = vpop.f32.mrb[0].mxu0
  %2683 = vmatprep.mubr.bf16.mxu0 0
  %2684 = vmatmul.mubr.bf16.gmra.mrb[0].mxu0 %v2486
  %v2685 = vpop.f32.mrb[0].mxu0
  %v2686 = vadd.f32 0.0, %v2685
  %v2687 = vpop.f32.mrb[0].mxu0
  %v2688 = vpop.f32.mrb[0].mxu0
  %v2689 = vadd.f32 0.0, %v2688
  %v2690 = vpop.f32.mrb[0].mxu0
  %2691 = vmatprep.mubr.bf16.mxu0 0
  %2692 = vmatmul.mubr.bf16.gmra.mrb[0].mxu0 %v2489
  %v2693 = vpop.f32.mrb[0].mxu0
  %v2694 = vadd.f32 0.0, %v2693
  %v2695 = vpop.f32.mrb[0].mxu0
  %v2696 = vpop.f32.mrb[0].mxu0
  %v2697 = vadd.f32 0.0, %v2696
  %v2698 = vpop.f32.mrb[0].mxu0
  %2699 = vmatprep.mubr.bf16.mxu0 0
  %2700 = vmatmul.mubr.bf16.gmra.mrb[0].mxu0 %v2492
  %v2701 = vpop.f32.mrb[0].mxu0
  %v2702 = vadd.f32 0.0, %v2701
  %v2703 = vpop.f32.mrb[0].mxu0
  %v2704 = vpop.f32.mrb[0].mxu0
  %v2705 = vadd.f32 0.0, %v2704
  %v2706 = vpop.f32.mrb[0].mxu0
  %2707 = vmatprep.mubr.bf16.mxu0 0
  %2708 = vmatmul.mubr.bf16.gmra.mrb[0].mxu0 %v2495
  %v2709 = vpop.f32.mrb[0].mxu0
  %v2710 = vadd.f32 0.0, %v2709
  %v2711 = vpop.f32.mrb[0].mxu0
  %v2712 = vpop.f32.mrb[0].mxu0
  %v2713 = vadd.f32 0.0, %v2712
  %v2714 = vpop.f32.mrb[0].mxu0
  %2715 = vmatprep.mubr.bf16.mxu0 0
  %2716 = vmatmul.mubr.bf16.gmra.mrb[0].mxu0 %v2498
  %v2717 = vpop.f32.mrb[0].mxu0
  %v2718 = vadd.f32 0.0, %v2717
  %v2719 = vpop.f32.mrb[0].mxu0
  %v2720 = vpop.f32.mrb[0].mxu0
  %v2721 = vadd.f32 0.0, %v2720
  %v2722 = vpop.f32.mrb[0].mxu0
  %2723 = vmatprep.mubr.bf16.mxu0 0
  %2724 = vmatmul.mubr.bf16.gmra.mrb[0].mxu0 %v2501
  %v2725 = vpop.f32.mrb[0].mxu0
  %v2726 = vadd.f32 0.0, %v2725
  %v2727 = vpop.f32.mrb[0].mxu0
  %v2728 = vpop.f32.mrb[0].mxu0
  %v2729 = vadd.f32 0.0, %v2728
  %v2730 = vpop.f32.mrb[0].mxu0
  %2731 = vmatprep.mubr.bf16.mxu0 0
  %2732 = vmatmul.mubr.bf16.gmra.mrb[0].mxu0 %v2504
  %v2733 = vpop.f32.mrb[0].mxu0
  %v2734 = vadd.f32 0.0, %v2733
  %v2735 = vpop.f32.mrb[0].mxu0
  %v2736 = vpop.f32.mrb[0].mxu0
  %v2737 = vadd.f32 0.0, %v2736
  %v2738 = vpop.f32.mrb[0].mxu0
  %2739 = vmatprep.mubr.bf16.mxu0 0
  %2740 = vmatmul.mubr.bf16.gmra.mrb[0].mxu0 %v2507
  %v2741 = vpop.f32.mrb[0].mxu0
  %v2742 = vadd.f32 0.0, %v2741
  %v2743 = vpop.f32.mrb[0].mxu0
  %v2744 = vpop.f32.mrb[0].mxu0
  %v2745 = vadd.f32 0.0, %v2744
  %v2746 = vpop.f32.mrb[0].mxu0
  %2747 = vmatprep.mubr.bf16.mxu0 0
  %2748 = vmatmul.mubr.bf16.gmra.mrb[0].mxu0 %v2510
  %v2749 = vpop.f32.mrb[0].mxu0
  %v2750 = vadd.f32 0.0, %v2749
  %v2751 = vpop.f32.mrb[0].mxu0
  %v2752 = vpop.f32.mrb[0].mxu0
  %v2753 = vadd.f32 0.0, %v2752
  %v2754 = vpop.f32.mrb[0].mxu0
  %2755 = vmatprep.mubr.bf16.mxu0 0
  %2756 = vmatmul.mubr.bf16.gmra.mrb[0].mxu0 %v2513
  %v2757 = vpop.f32.mrb[0].mxu0
  %v2758 = vadd.f32 0.0, %v2757
  %v2759 = vpop.f32.mrb[0].mxu0
  %v2760 = vpop.f32.mrb[0].mxu0
  %v2761 = vadd.f32 0.0, %v2760
  %v2762 = vpop.f32.mrb[0].mxu0
  %2763 = vmatprep.mubr.bf16.mxu0 0
  %2764 = vmatmul.mubr.bf16.gmra.mrb[0].mxu0 %v2516
  %v2765 = vpop.f32.mrb[0].mxu0
  %v2766 = vadd.f32 0.0, %v2765
  %v2767 = vpop.f32.mrb[0].mxu0
  %v2768 = vpop.f32.mrb[0].mxu0
  %v2769 = vadd.f32 0.0, %v2768
  %v2770 = vpop.f32.mrb[0].mxu0
  %2771 = vmatprep.mubr.bf16.mxu0 0
  %2772 = vmatmul.mubr.bf16.gmra.mrb[0].mxu0 %v2519
  %v2773 = vpop.f32.mrb[0].mxu0
  %v2774 = vadd.f32 0.0, %v2773
  %v2775 = vpop.f32.mrb[0].mxu0
  %v2776 = vpop.f32.mrb[0].mxu0
  %v2777 = vadd.f32 0.0, %v2776
  %v2778 = vpop.f32.mrb[0].mxu0
  %2779 = vmatprep.mubr.bf16.mxu0 0
  %2780 = vmatmul.mubr.bf16.gmra.mrb[0].mxu0 %v2522
  %v2781 = vpop.f32.mrb[0].mxu0
  %v2782 = vadd.f32 0.0, %v2781
  %v2783 = vpop.f32.mrb[0].mxu0
  %v2784 = vpop.f32.mrb[0].mxu0
  %v2785 = vadd.f32 0.0, %v2784
  %v2786 = vpop.f32.mrb[0].mxu0
  %2787 = vmatprep.mubr.bf16.mxu0 0
  %2788 = vmatmul.mubr.bf16.gmra.mrb[0].mxu0 %v2525
  %v2789 = vpop.f32.mrb[0].mxu0
  %v2790 = vadd.f32 0.0, %v2789
  %v2791 = vpop.f32.mrb[0].mxu0
  %v2792 = vpop.f32.mrb[0].mxu0
  %v2793 = vadd.f32 0.0, %v2792
  %v2794 = vpop.f32.mrb[0].mxu0
  %2795 = vmatprep.mubr.bf16.mxu0 0
  %2796 = vmatmul.mubr.bf16.gmra.mrb[0].mxu0 %v2528
  %v2797 = vpop.f32.mrb[0].mxu0
  %v2798 = vadd.f32 0.0, %v2797
  %v2799 = vpop.f32.mrb[0].mxu0
  %v2800 = vpop.f32.mrb[0].mxu0
  %v2801 = vadd.f32 0.0, %v2800
  %v2802 = vpop.f32.mrb[0].mxu0
  %2803 = vmatprep.mubr.bf16.mxu0 0
  %2804 = vmatmul.mubr.bf16.gmra.mrb[0].mxu0 %v2531
  %v2805 = vpop.f32.mrb[0].mxu0
  %v2806 = vadd.f32 0.0, %v2805
  %v2807 = vpop.f32.mrb[0].mxu0
  %v2808 = vpop.f32.mrb[0].mxu0
  %v2809 = vadd.f32 0.0, %v2808
  %v2810 = vpop.f32.mrb[0].mxu0
  %2811 = vmatprep.mubr.bf16.mxu0 0
  %2812 = vmatmul.mubr.bf16.gmra.mrb[0].mxu0 %v2534
  %v2813 = vpop.f32.mrb[0].mxu0
  %v2814 = vadd.f32 0.0, %v2813
  %v2815 = vpop.f32.mrb[0].mxu0
  %v2816 = vpop.f32.mrb[0].mxu0
  %v2817 = vadd.f32 0.0, %v2816
  %v2818 = vpop.f32.mrb[0].mxu0
  %2819 = vdwg.mxu0
  %v2820 = vld [vmem:[#allocation2 + $0x10] sm:$0xff]
  %v2821 = vld [vmem:[#allocation2 + $0x18] sm:$0xff]
  %v2822 = vld [vmem:[#allocation2 + $0x20] sm:$0xff]
  %v2823 = vld [vmem:[#allocation2 + $0x28] sm:$0xff]
  %v2824 = vld [vmem:[#allocation2 + $0x30] sm:$0xff]
  %v2825 = vld [vmem:[#allocation2 + $0x38] sm:$0xff]
  %v2826 = vld [vmem:[#allocation2 + $0x40] sm:$0xff]
  %v2827 = vld [vmem:[#allocation2 + $0x48] sm:$0xff]
  %v2828 = vld [vmem:[#allocation2 + $0x50] sm:$0xff]
  %v2829 = vld [vmem:[#allocation2 + $0x58] sm:$0xff]
  %v2830 = vld [vmem:[#allocation2 + $0x60] sm:$0xff]
  %v2831 = vld [vmem:[#allocation2 + $0x68] sm:$0xff]
  %v2832 = vld [vmem:[#allocation2 + $0x70] sm:$0xff]
  %v2833 = vld [vmem:[#allocation2 + $0x78] sm:$0xff]
  %v2834 = vld [vmem:[#allocation2 + $0x80] sm:$0xff]
  %v2835 = vld [vmem:[#allocation2 + $0x88] sm:$0xff]
  %v2836 = vld [vmem:[#allocation2 + $0x90] sm:$0xff]
  %v2837 = vld [vmem:[#allocation2 + $0x98] sm:$0xff]
  %v2838 = vld [vmem:[#allocation2 + $0xa0] sm:$0xff]
  %v2839 = vld [vmem:[#allocation2 + $0xa8] sm:$0xff]
  %v2840 = vld [vmem:[#allocation2 + $0xb0] sm:$0xff]
  %v2841 = vld [vmem:[#allocation2 + $0xb8] sm:$0xff]
  %v2842 = vld [vmem:[#allocation2 + $0xc0] sm:$0xff]
  %v2843 = vld [vmem:[#allocation2 + $0xc8] sm:$0xff]
  %v2844 = vld [vmem:[#allocation2 + $0xd0] sm:$0xff]
  %v2845 = vld [vmem:[#allocation2 + $0xd8] sm:$0xff]
  %v2846 = vld [vmem:[#allocation2 + $0xe0] sm:$0xff]
  %v2847 = vld [vmem:[#allocation2 + $0xe8] sm:$0xff]
  %v2848 = vld [vmem:[#allocation2 + $0xf0] sm:$0xff]
  %v2849 = vld [vmem:[#allocation2 + $0xf8] sm:$0xff]
  %v2850 = vld [vmem:[#allocation2 + $0x100] sm:$0xff]
  %v2851 = vld [vmem:[#allocation2 + $0x108] sm:$0xff]
  %v2852 = vld [vmem:[#allocation2 + $0x110] sm:$0xff]
  %v2853 = vld [vmem:[#allocation2 + $0x118] sm:$0xff]
  %v2854 = vld [vmem:[#allocation2 + $0x120] sm:$0xff]
  %v2855 = vld [vmem:[#allocation2 + $0x128] sm:$0xff]
  %v2856 = vld [vmem:[#allocation2 + $0x130] sm:$0xff]
  %v2857 = vld [vmem:[#allocation2 + $0x138] sm:$0xff]
  %v2858 = vld [vmem:[#allocation2 + $0x140] sm:$0xff]
  %v2859 = vld [vmem:[#allocation2 + $0x148] sm:$0xff]
  %v2860 = vld [vmem:[#allocation2 + $0x150] sm:$0xff]
  %v2861 = vld [vmem:[#allocation2 + $0x158] sm:$0xff]
  %v2862 = vld [vmem:[#allocation2 + $0x160] sm:$0xff]
  %v2863 = vld [vmem:[#allocation2 + $0x168] sm:$0xff]
  %v2864 = vld [vmem:[#allocation2 + $0x170] sm:$0xff]
  %v2865 = vld [vmem:[#allocation2 + $0x178] sm:$0xff]
  %v2866 = vld [vmem:[#allocation2 + $0x180] sm:$0xff]
  %v2867 = vld [vmem:[#allocation2 + $0x188] sm:$0xff]
  %v2868 = vld [vmem:[#allocation2 + $0x190] sm:$0xff]
  %v2869 = vld [vmem:[#allocation2 + $0x198] sm:$0xff]
  %v2870 = vld [vmem:[#allocation2 + $0x1a0] sm:$0xff]
  %v2871 = vld [vmem:[#allocation2 + $0x1a8] sm:$0xff]
  %v2872 = vld [vmem:[#allocation2 + $0x1b0] sm:$0xff]
  %v2873 = vld [vmem:[#allocation2 + $0x1b8] sm:$0xff]
  %v2874 = vld [vmem:[#allocation2 + $0x1c0] sm:$0xff]
  %v2875 = vld [vmem:[#allocation2 + $0x1c8] sm:$0xff]
  %v2876 = vld [vmem:[#allocation2 + $0x1d0] sm:$0xff]
  %v2877 = vld [vmem:[#allocation2 + $0x1d8] sm:$0xff]
  %v2878 = vld [vmem:[#allocation2 + $0x1e0] sm:$0xff]
  %v2879 = vld [vmem:[#allocation2 + $0x1e8] sm:$0xff]
  %v2880 = vld [vmem:[#allocation2 + $0x1f0] sm:$0xff]
  %v2881 = vld [vmem:[#allocation2 + $0x1f8] sm:$0xff]
  %v2882 = vadd.f32 %v2820, %v2574
  %v2883 = vadd.f32 %v2821, %v2577
  %v2884 = vadd.f32 %v2822, %v2582
  %v2885 = vadd.f32 %v2823, %v2585
  %v2886 = vadd.f32 %v2824, %v2590
  %v2887 = vadd.f32 %v2825, %v2593
  %v2888 = vadd.f32 %v2826, %v2598
  %v2889 = vadd.f32 %v2827, %v2601
  %v2890 = vadd.f32 %v2828, %v2606
  %v2891 = vadd.f32 %v2829, %v2609
  %v2892 = vadd.f32 %v2830, %v2614
  %v2893 = vadd.f32 %v2831, %v2617
  %v2894 = vadd.f32 %v2832, %v2622
  %v2895 = vadd.f32 %v2833, %v2625
  %v2896 = vadd.f32 %v2834, %v2630
  %v2897 = vadd.f32 %v2835, %v2633
  %v2898 = vadd.f32 %v2836, %v2638
  %v2899 = vadd.f32 %v2837, %v2641
  %v2900 = vadd.f32 %v2838, %v2646
  %v2901 = vadd.f32 %v2839, %v2649
  %v2902 = vadd.f32 %v2840, %v2654
  %v2903 = vadd.f32 %v2841, %v2657
  %v2904 = vadd.f32 %v2842, %v2662
  %v2905 = vadd.f32 %v2843, %v2665
  %v2906 = vadd.f32 %v2844, %v2670
  %v2907 = vadd.f32 %v2845, %v2673
  %v2908 = vadd.f32 %v2846, %v2678
  %v2909 = vadd.f32 %v2847, %v2681
  %v2910 = vadd.f32 %v2848, %v2686
  %v2911 = vadd.f32 %v2849, %v2689
  %v2912 = vadd.f32 %v2850, %v2694
  %v2913 = vadd.f32 %v2851, %v2697
  %v2914 = vadd.f32 %v2852, %v2702
  %v2915 = vadd.f32 %v2853, %v2705
  %v2916 = vadd.f32 %v2854, %v2710
  %v2917 = vadd.f32 %v2855, %v2713
  %v2918 = vadd.f32 %v2856, %v2718
  %v2919 = vadd.f32 %v2857, %v2721
  %v2920 = vadd.f32 %v2858, %v2726
  %v2921 = vadd.f32 %v2859, %v2729
  %v2922 = vadd.f32 %v2860, %v2734
  %v2923 = vadd.f32 %v2861, %v2737
  %v2924 = vadd.f32 %v2862, %v2742
  %v2925 = vadd.f32 %v2863, %v2745
  %v2926 = vadd.f32 %v2864, %v2750
  %v2927 = vadd.f32 %v2865, %v2753
  %v2928 = vadd.f32 %v2866, %v2758
  %v2929 = vadd.f32 %v2867, %v2761
  %v2930 = vadd.f32 %v2868, %v2766
  %v2931 = vadd.f32 %v2869, %v2769
  %v2932 = vadd.f32 %v2870, %v2774
  %v2933 = vadd.f32 %v2871, %v2777
  %v2934 = vadd.f32 %v2872, %v2782
  %v2935 = vadd.f32 %v2873, %v2785
  %v2936 = vadd.f32 %v2874, %v2790
  %v2937 = vadd.f32 %v2875, %v2793
  %v2938 = vadd.f32 %v2876, %v2798
  %v2939 = vadd.f32 %v2877, %v2801
  %v2940 = vadd.f32 %v2878, %v2806
  %v2941 = vadd.f32 %v2879, %v2809
  %v2942 = vadd.f32 %v2880, %v2814
  %v2943 = vadd.f32 %v2881, %v2817
  %2944 = vst.msk [vmem:[#allocation2 + $0x10] sm:$0xff] %vm509, %v2882
  %2945 = vst.msk [vmem:[#allocation2 + $0x18] sm:$0xff] %vm509, %v2883
  %2946 = vst.msk [vmem:[#allocation2 + $0x20] sm:$0xff] %vm509, %v2884
  %2947 = vst.msk [vmem:[#allocation2 + $0x28] sm:$0xff] %vm509, %v2885
  %2948 = vst.msk [vmem:[#allocation2 + $0x30] sm:$0xff] %vm509, %v2886
  %2949 = vst.msk [vmem:[#allocation2 + $0x38] sm:$0xff] %vm509, %v2887
  %2950 = vst.msk [vmem:[#allocation2 + $0x40] sm:$0xff] %vm509, %v2888
  %2951 = vst.msk [vmem:[#allocation2 + $0x48] sm:$0xff] %vm509, %v2889
  %2952 = vst.msk [vmem:[#allocation2 + $0x50] sm:$0xff] %vm509, %v2890
  %2953 = vst.msk [vmem:[#allocation2 + $0x58] sm:$0xff] %vm509, %v2891
  %2954 = vst.msk [vmem:[#allocation2 + $0x60] sm:$0xff] %vm509, %v2892
  %2955 = vst.msk [vmem:[#allocation2 + $0x68] sm:$0xff] %vm509, %v2893
  %2956 = vst.msk [vmem:[#allocation2 + $0x70] sm:$0xff] %vm509, %v2894
  %2957 = vst.msk [vmem:[#allocation2 + $0x78] sm:$0xff] %vm509, %v2895
  %2958 = vst.msk [vmem:[#allocation2 + $0x80] sm:$0xff] %vm509, %v2896
  %2959 = vst.msk [vmem:[#allocation2 + $0x88] sm:$0xff] %vm509, %v2897
  %2960 = vst.msk [vmem:[#allocation2 + $0x90] sm:$0xff] %vm509, %v2898
  %2961 = vst.msk [vmem:[#allocation2 + $0x98] sm:$0xff] %vm509, %v2899
  %2962 = vst.msk [vmem:[#allocation2 + $0xa0] sm:$0xff] %vm509, %v2900
  %2963 = vst.msk [vmem:[#allocation2 + $0xa8] sm:$0xff] %vm509, %v2901
  %2964 = vst.msk [vmem:[#allocation2 + $0xb0] sm:$0xff] %vm509, %v2902
  %2965 = vst.msk [vmem:[#allocation2 + $0xb8] sm:$0xff] %vm509, %v2903
  %2966 = vst.msk [vmem:[#allocation2 + $0xc0] sm:$0xff] %vm509, %v2904
  %2967 = vst.msk [vmem:[#allocation2 + $0xc8] sm:$0xff] %vm509, %v2905
  %2968 = vst.msk [vmem:[#allocation2 + $0xd0] sm:$0xff] %vm509, %v2906
  %2969 = vst.msk [vmem:[#allocation2 + $0xd8] sm:$0xff] %vm509, %v2907
  %2970 = vst.msk [vmem:[#allocation2 + $0xe0] sm:$0xff] %vm509, %v2908
  %2971 = vst.msk [vmem:[#allocation2 + $0xe8] sm:$0xff] %vm509, %v2909
  %2972 = vst.msk [vmem:[#allocation2 + $0xf0] sm:$0xff] %vm509, %v2910
  %2973 = vst.msk [vmem:[#allocation2 + $0xf8] sm:$0xff] %vm509, %v2911
  %2974 = vst.msk [vmem:[#allocation2 + $0x100] sm:$0xff] %vm509, %v2912
  %2975 = vst.msk [vmem:[#allocation2 + $0x108] sm:$0xff] %vm509, %v2913
  %2976 = vst.msk [vmem:[#allocation2 + $0x110] sm:$0xff] %vm509, %v2914
  %2977 = vst.msk [vmem:[#allocation2 + $0x118] sm:$0xff] %vm509, %v2915
  %2978 = vst.msk [vmem:[#allocation2 + $0x120] sm:$0xff] %vm509, %v2916
  %2979 = vst.msk [vmem:[#allocation2 + $0x128] sm:$0xff] %vm509, %v2917
  %2980 = vst.msk [vmem:[#allocation2 + $0x130] sm:$0xff] %vm509, %v2918
  %2981 = vst.msk [vmem:[#allocation2 + $0x138] sm:$0xff] %vm509, %v2919
  %2982 = vst.msk [vmem:[#allocation2 + $0x140] sm:$0xff] %vm509, %v2920
  %2983 = vst.msk [vmem:[#allocation2 + $0x148] sm:$0xff] %vm509, %v2921
  %2984 = vst.msk [vmem:[#allocation2 + $0x150] sm:$0xff] %vm509, %v2922
  %2985 = vst.msk [vmem:[#allocation2 + $0x158] sm:$0xff] %vm509, %v2923
  %2986 = vst.msk [vmem:[#allocation2 + $0x160] sm:$0xff] %vm509, %v2924
  %2987 = vst.msk [vmem:[#allocation2 + $0x168] sm:$0xff] %vm509, %v2925
  %2988 = vst.msk [vmem:[#allocation2 + $0x170] sm:$0xff] %vm509, %v2926
  %2989 = vst.msk [vmem:[#allocation2 + $0x178] sm:$0xff] %vm509, %v2927
  %2990 = vst.msk [vmem:[#allocation2 + $0x180] sm:$0xff] %vm509, %v2928
  %2991 = vst.msk [vmem:[#allocation2 + $0x188] sm:$0xff] %vm509, %v2929
  %2992 = vst.msk [vmem:[#allocation2 + $0x190] sm:$0xff] %vm509, %v2930
  %2993 = vst.msk [vmem:[#allocation2 + $0x198] sm:$0xff] %vm509, %v2931
  %2994 = vst.msk [vmem:[#allocation2 + $0x1a0] sm:$0xff] %vm509, %v2932
  %2995 = vst.msk [vmem:[#allocation2 + $0x1a8] sm:$0xff] %vm509, %v2933
  %2996 = vst.msk [vmem:[#allocation2 + $0x1b0] sm:$0xff] %vm509, %v2934
  %2997 = vst.msk [vmem:[#allocation2 + $0x1b8] sm:$0xff] %vm509, %v2935
  %2998 = vst.msk [vmem:[#allocation2 + $0x1c0] sm:$0xff] %vm509, %v2936
  %2999 = vst.msk [vmem:[#allocation2 + $0x1c8] sm:$0xff] %vm509, %v2937
  %3000 = vst.msk [vmem:[#allocation2 + $0x1d0] sm:$0xff] %vm509, %v2938
  %3001 = vst.msk [vmem:[#allocation2 + $0x1d8] sm:$0xff] %vm509, %v2939
  %3002 = vst.msk [vmem:[#allocation2 + $0x1e0] sm:$0xff] %vm509, %v2940
  %3003 = vst.msk [vmem:[#allocation2 + $0x1e8] sm:$0xff] %vm509, %v2941
  %3004 = vst.msk [vmem:[#allocation2 + $0x1f0] sm:$0xff] %vm509, %v2942
  %3005 = vst.msk [vmem:[#allocation2 + $0x1f8] sm:$0xff] %vm509, %v2943
  %v3006 = vld [vmem:[%s0] sm:$0xff]
  %v3007 = vld [vmem:[%s0 + $0x8] sm:$0xff]
  %v3008 = vld [vmem:[%s0 + $0x10] sm:$0xff]
  %v3009 = vld [vmem:[%s0 + $0x18] sm:$0xff]
  %v3010 = vld [vmem:[%s0 + $0x20] sm:$0xff]
  %v3011 = vld [vmem:[%s0 + $0x28] sm:$0xff]
  %v3012 = vld [vmem:[%s0 + $0x30] sm:$0xff]
  %v3013 = vld [vmem:[%s0 + $0x38] sm:$0xff]
  %v3014 = vld [vmem:[%s0 + $0x40] sm:$0xff]
  %v3015 = vld [vmem:[%s0 + $0x48] sm:$0xff]
  %v3016 = vld [vmem:[%s0 + $0x50] sm:$0xff]
  %v3017 = vld [vmem:[%s0 + $0x58] sm:$0xff]
  %v3018 = vld [vmem:[%s0 + $0x60] sm:$0xff]
  %v3019 = vld [vmem:[%s0 + $0x68] sm:$0xff]
  %v3020 = vld [vmem:[%s0 + $0x70] sm:$0xff]
  %v3021 = vld [vmem:[%s0 + $0x78] sm:$0xff]
  %v3022 = vld [vmem:[%s0 + $0x80] sm:$0xff]
  %v3023 = vld [vmem:[%s0 + $0x88] sm:$0xff]
  %v3024 = vld [vmem:[%s0 + $0x90] sm:$0xff]
  %v3025 = vld [vmem:[%s0 + $0x98] sm:$0xff]
  %v3026 = vld [vmem:[%s0 + $0xa0] sm:$0xff]
  %v3027 = vld [vmem:[%s0 + $0xa8] sm:$0xff]
  %v3028 = vld [vmem:[%s0 + $0xb0] sm:$0xff]
  %v3029 = vld [vmem:[%s0 + $0xb8] sm:$0xff]
  %v3030 = vld [vmem:[%s0 + $0xc0] sm:$0xff]
  %v3031 = vld [vmem:[%s0 + $0xc8] sm:$0xff]
  %v3032 = vld [vmem:[%s0 + $0xd0] sm:$0xff]
  %v3033 = vld [vmem:[%s0 + $0xd8] sm:$0xff]
  %v3034 = vld [vmem:[%s0 + $0xe0] sm:$0xff]
  %v3035 = vld [vmem:[%s0 + $0xe8] sm:$0xff]
  %v3036 = vld [vmem:[%s0 + $0xf0] sm:$0xff]
  %v3037 = vld [vmem:[%s0 + $0xf8] sm:$0xff]
  %v3038 = vld [vmem:[%s0 + $0x100] sm:$0xff]
  %v3039 = vld [vmem:[%s0 + $0x108] sm:$0xff]
  %v3040 = vld [vmem:[%s0 + $0x110] sm:$0xff]
  %v3041 = vld [vmem:[%s0 + $0x118] sm:$0xff]
  %v3042 = vld [vmem:[%s0 + $0x120] sm:$0xff]
  %v3043 = vld [vmem:[%s0 + $0x128] sm:$0xff]
  %v3044 = vld [vmem:[%s0 + $0x130] sm:$0xff]
  %v3045 = vld [vmem:[%s0 + $0x138] sm:$0xff]
  %v3046 = vld [vmem:[%s0 + $0x140] sm:$0xff]
  %v3047 = vld [vmem:[%s0 + $0x148] sm:$0xff]
  %v3048 = vld [vmem:[%s0 + $0x150] sm:$0xff]
  %v3049 = vld [vmem:[%s0 + $0x158] sm:$0xff]
  %v3050 = vld [vmem:[%s0 + $0x160] sm:$0xff]
  %v3051 = vld [vmem:[%s0 + $0x168] sm:$0xff]
  %v3052 = vld [vmem:[%s0 + $0x170] sm:$0xff]
  %v3053 = vld [vmem:[%s0 + $0x178] sm:$0xff]
  %v3054 = vld [vmem:[%s0 + $0x180] sm:$0xff]
  %v3055 = vld [vmem:[%s0 + $0x188] sm:$0xff]
  %v3056 = vld [vmem:[%s0 + $0x190] sm:$0xff]
  %v3057 = vld [vmem:[%s0 + $0x198] sm:$0xff]
  %v3058 = vld [vmem:[%s0 + $0x1a0] sm:$0xff]
  %v3059 = vld [vmem:[%s0 + $0x1a8] sm:$0xff]
  %v3060 = vld [vmem:[%s0 + $0x1b0] sm:$0xff]
  %v3061 = vld [vmem:[%s0 + $0x1b8] sm:$0xff]
  %v3062 = vld [vmem:[%s0 + $0x1c0] sm:$0xff]
  %v3063 = vld [vmem:[%s0 + $0x1c8] sm:$0xff]
  %v3064 = vld [vmem:[%s0 + $0x1d0] sm:$0xff]
  %v3065 = vld [vmem:[%s0 + $0x1d8] sm:$0xff]
  %v3066 = vld [vmem:[%s0 + $0x1e0] sm:$0xff]
  %v3067 = vld [vmem:[%s0 + $0x1e8] sm:$0xff]
  %v3068 = vld [vmem:[%s0 + $0x1f0] sm:$0x1]
  %v3069 = vadd.s32 %v637, 496
  %v3070 = vadd.s32 %v637, 15
  %v3071 = vadd.s32 %v638, 15
  %v3072 = vadd.s32 %v639, 15
  %v3073 = vadd.s32 %v640, 15
  %v3074 = vadd.s32 %v641, 15
  %v3075 = vadd.s32 %v642, 15
  %v3076 = vadd.s32 %v643, 15
  %v3077 = vadd.s32 %v644, 15
  %v3078 = vadd.s32 %v645, 15
  %v3079 = vadd.s32 %v646, 15
  %v3080 = vadd.s32 %v647, 15
  %v3081 = vadd.s32 %v648, 15
  %v3082 = vadd.s32 %v649, 15
  %v3083 = vadd.s32 %v650, 15
  %v3084 = vadd.s32 %v651, 15
  %v3085 = vadd.s32 %v652, 15
  %v3086 = vadd.s32 %v653, 15
  %v3087 = vadd.s32 %v654, 15
  %v3088 = vadd.s32 %v655, 15
  %v3089 = vadd.s32 %v656, 15
  %v3090 = vadd.s32 %v657, 15
  %v3091 = vadd.s32 %v658, 15
  %v3092 = vadd.s32 %v659, 15
  %v3093 = vadd.s32 %v660, 15
  %v3094 = vadd.s32 %v661, 15
  %v3095 = vadd.s32 %v662, 15
  %v3096 = vadd.s32 %v663, 15
  %v3097 = vadd.s32 %v664, 15
  %v3098 = vadd.s32 %v665, 15
  %v3099 = vadd.s32 %v666, 15
  %v3100 = vadd.s32 %v667, 15
  %v3101 = vadd.s32 %v668, 15
  %v3102 = vadd.s32 %v669, 15
  %v3103 = vadd.s32 %v670, 15
  %v3104 = vadd.s32 %v671, 15
  %v3105 = vadd.s32 %v672, 15
  %v3106 = vadd.s32 %v673, 15
  %v3107 = vadd.s32 %v674, 15
  %v3108 = vadd.s32 %v675, 15
  %v3109 = vadd.s32 %v676, 15
  %v3110 = vadd.s32 %v677, 15
  %v3111 = vadd.s32 %v678, 15
  %v3112 = vadd.s32 %v679, 15
  %v3113 = vadd.s32 %v680, 15
  %v3114 = vadd.s32 %v681, 15
  %v3115 = vadd.s32 %v682, 15
  %v3116 = vadd.s32 %v683, 15
  %v3117 = vadd.s32 %v684, 15
  %v3118 = vadd.s32 %v685, 15
  %v3119 = vadd.s32 %v686, 15
  %v3120 = vadd.s32 %v687, 15
  %v3121 = vadd.s32 %v688, 15
  %v3122 = vadd.s32 %v689, 15
  %v3123 = vadd.s32 %v690, 15
  %v3124 = vadd.s32 %v691, 15
  %v3125 = vadd.s32 %v692, 15
  %v3126 = vadd.s32 %v693, 15
  %v3127 = vadd.s32 %v694, 15
  %v3128 = vadd.s32 %v695, 15
  %v3129 = vadd.s32 %v696, 15
  %v3130 = vadd.s32 %v697, 15
  %v3131 = vadd.s32 %v698, 15
  %v3132 = vadd.s32 %v3069, 15
  %v3133 = vand.u32 %v3070, 15
  %v3134 = vand.u32 %v3071, 15
  %v3135 = vand.u32 %v3072, 15
  %v3136 = vand.u32 %v3073, 15
  %v3137 = vand.u32 %v3074, 15
  %v3138 = vand.u32 %v3075, 15
  %v3139 = vand.u32 %v3076, 15
  %v3140 = vand.u32 %v3077, 15
  %v3141 = vand.u32 %v3078, 15
  %v3142 = vand.u32 %v3079, 15
  %v3143 = vand.u32 %v3080, 15
  %v3144 = vand.u32 %v3081, 15
  %v3145 = vand.u32 %v3082, 15
  %v3146 = vand.u32 %v3083, 15
  %v3147 = vand.u32 %v3084, 15
  %v3148 = vand.u32 %v3085, 15
  %v3149 = vand.u32 %v3086, 15
  %v3150 = vand.u32 %v3087, 15
  %v3151 = vand.u32 %v3088, 15
  %v3152 = vand.u32 %v3089, 15
  %v3153 = vand.u32 %v3090, 15
  %v3154 = vand.u32 %v3091, 15
  %v3155 = vand.u32 %v3092, 15
  %v3156 = vand.u32 %v3093, 15
  %v3157 = vand.u32 %v3094, 15
  %v3158 = vand.u32 %v3095, 15
  %v3159 = vand.u32 %v3096, 15
  %v3160 = vand.u32 %v3097, 15
  %v3161 = vand.u32 %v3098, 15
  %v3162 = vand.u32 %v3099, 15
  %v3163 = vand.u32 %v3100, 15
  %v3164 = vand.u32 %v3101, 15
  %v3165 = vand.u32 %v3102, 15
  %v3166 = vand.u32 %v3103, 15
  %v3167 = vand.u32 %v3104, 15
  %v3168 = vand.u32 %v3105, 15
  %v3169 = vand.u32 %v3106, 15
  %v3170 = vand.u32 %v3107, 15
  %v3171 = vand.u32 %v3108, 15
  %v3172 = vand.u32 %v3109, 15
  %v3173 = vand.u32 %v3110, 15
  %v3174 = vand.u32 %v3111, 15
  %v3175 = vand.u32 %v3112, 15
  %v3176 = vand.u32 %v3113, 15
  %v3177 = vand.u32 %v3114, 15
  %v3178 = vand.u32 %v3115, 15
  %v3179 = vand.u32 %v3116, 15
  %v3180 = vand.u32 %v3117, 15
  %v3181 = vand.u32 %v3118, 15
  %v3182 = vand.u32 %v3119, 15
  %v3183 = vand.u32 %v3120, 15
  %v3184 = vand.u32 %v3121, 15
  %v3185 = vand.u32 %v3122, 15
  %v3186 = vand.u32 %v3123, 15
  %v3187 = vand.u32 %v3124, 15
  %v3188 = vand.u32 %v3125, 15
  %v3189 = vand.u32 %v3126, 15
  %v3190 = vand.u32 %v3127, 15
  %v3191 = vand.u32 %v3128, 15
  %v3192 = vand.u32 %v3129, 15
  %v3193 = vand.u32 %v3130, 15
  %v3194 = vand.u32 %v3131, 15
  %v3195 = vand.u32 %v3132, 15
  %vm3196 = vcmp.ne.s32.totalorder %v3133, 15
  %vm3197 = vcmp.ne.s32.totalorder %v3134, 15
  %vm3198 = vcmp.ne.s32.totalorder %v3135, 15
  %vm3199 = vcmp.ne.s32.totalorder %v3136, 15
  %vm3200 = vcmp.ne.s32.totalorder %v3137, 15
  %vm3201 = vcmp.ne.s32.totalorder %v3138, 15
  %vm3202 = vcmp.ne.s32.totalorder %v3139, 15
  %vm3203 = vcmp.ne.s32.totalorder %v3140, 15
  %vm3204 = vcmp.ne.s32.totalorder %v3141, 15
  %vm3205 = vcmp.ne.s32.totalorder %v3142, 15
  %vm3206 = vcmp.ne.s32.totalorder %v3143, 15
  %vm3207 = vcmp.ne.s32.totalorder %v3144, 15
  %vm3208 = vcmp.ne.s32.totalorder %v3145, 15
  %vm3209 = vcmp.ne.s32.totalorder %v3146, 15
  %vm3210 = vcmp.ne.s32.totalorder %v3147, 15
  %vm3211 = vcmp.ne.s32.totalorder %v3148, 15
  %vm3212 = vcmp.ne.s32.totalorder %v3149, 15
  %vm3213 = vcmp.ne.s32.totalorder %v3150, 15
  %vm3214 = vcmp.ne.s32.totalorder %v3151, 15
  %vm3215 = vcmp.ne.s32.totalorder %v3152, 15
  %vm3216 = vcmp.ne.s32.totalorder %v3153, 15
  %vm3217 = vcmp.ne.s32.totalorder %v3154, 15
  %vm3218 = vcmp.ne.s32.totalorder %v3155, 15
  %vm3219 = vcmp.ne.s32.totalorder %v3156, 15
  %vm3220 = vcmp.ne.s32.totalorder %v3157, 15
  %vm3221 = vcmp.ne.s32.totalorder %v3158, 15
  %vm3222 = vcmp.ne.s32.totalorder %v3159, 15
  %vm3223 = vcmp.ne.s32.totalorder %v3160, 15
  %vm3224 = vcmp.ne.s32.totalorder %v3161, 15
  %vm3225 = vcmp.ne.s32.totalorder %v3162, 15
  %vm3226 = vcmp.ne.s32.totalorder %v3163, 15
  %vm3227 = vcmp.ne.s32.totalorder %v3164, 15
  %vm3228 = vcmp.ne.s32.totalorder %v3165, 15
  %vm3229 = vcmp.ne.s32.totalorder %v3166, 15
  %vm3230 = vcmp.ne.s32.totalorder %v3167, 15
  %vm3231 = vcmp.ne.s32.totalorder %v3168, 15
  %vm3232 = vcmp.ne.s32.totalorder %v3169, 15
  %vm3233 = vcmp.ne.s32.totalorder %v3170, 15
  %vm3234 = vcmp.ne.s32.totalorder %v3171, 15
  %vm3235 = vcmp.ne.s32.totalorder %v3172, 15
  %vm3236 = vcmp.ne.s32.totalorder %v3173, 15
  %vm3237 = vcmp.ne.s32.totalorder %v3174, 15
  %vm3238 = vcmp.ne.s32.totalorder %v3175, 15
  %vm3239 = vcmp.ne.s32.totalorder %v3176, 15
  %vm3240 = vcmp.ne.s32.totalorder %v3177, 15
  %vm3241 = vcmp.ne.s32.totalorder %v3178, 15
  %vm3242 = vcmp.ne.s32.totalorder %v3179, 15
  %vm3243 = vcmp.ne.s32.totalorder %v3180, 15
  %vm3244 = vcmp.ne.s32.totalorder %v3181, 15
  %vm3245 = vcmp.ne.s32.totalorder %v3182, 15
  %vm3246 = vcmp.ne.s32.totalorder %v3183, 15
  %vm3247 = vcmp.ne.s32.totalorder %v3184, 15
  %vm3248 = vcmp.ne.s32.totalorder %v3185, 15
  %vm3249 = vcmp.ne.s32.totalorder %v3186, 15
  %vm3250 = vcmp.ne.s32.totalorder %v3187, 15
  %vm3251 = vcmp.ne.s32.totalorder %v3188, 15
  %vm3252 = vcmp.ne.s32.totalorder %v3189, 15
  %vm3253 = vcmp.ne.s32.totalorder %v3190, 15
  %vm3254 = vcmp.ne.s32.totalorder %v3191, 15
  %vm3255 = vcmp.ne.s32.totalorder %v3192, 15
  %vm3256 = vcmp.ne.s32.totalorder %v3193, 15
  %vm3257 = vcmp.ne.s32.totalorder %v3194, 15
  %vm3258 = vcmp.ne.s32.totalorder %v3195, 15
  %v3259 = vshra.s32 %v3070, 4
  %v3260 = vshra.s32 %v3071, 4
  %v3261 = vshra.s32 %v3072, 4
  %v3262 = vshra.s32 %v3073, 4
  %v3263 = vshra.s32 %v3074, 4
  %v3264 = vshra.s32 %v3075, 4
  %v3265 = vshra.s32 %v3076, 4
  %v3266 = vshra.s32 %v3077, 4
  %v3267 = vshra.s32 %v3078, 4
  %v3268 = vshra.s32 %v3079, 4
  %v3269 = vshra.s32 %v3080, 4
  %v3270 = vshra.s32 %v3081, 4
  %v3271 = vshra.s32 %v3082, 4
  %v3272 = vshra.s32 %v3083, 4
  %v3273 = vshra.s32 %v3084, 4
  %v3274 = vshra.s32 %v3085, 4
  %v3275 = vshra.s32 %v3086, 4
  %v3276 = vshra.s32 %v3087, 4
  %v3277 = vshra.s32 %v3088, 4
  %v3278 = vshra.s32 %v3089, 4
  %v3279 = vshra.s32 %v3090, 4
  %v3280 = vshra.s32 %v3091, 4
  %v3281 = vshra.s32 %v3092, 4
  %v3282 = vshra.s32 %v3093, 4
  %v3283 = vshra.s32 %v3094, 4
  %v3284 = vshra.s32 %v3095, 4
  %v3285 = vshra.s32 %v3096, 4
  %v3286 = vshra.s32 %v3097, 4
  %v3287 = vshra.s32 %v3098, 4
  %v3288 = vshra.s32 %v3099, 4
  %v3289 = vshra.s32 %v3100, 4
  %v3290 = vshra.s32 %v3101, 4
  %v3291 = vshra.s32 %v3102, 4
  %v3292 = vshra.s32 %v3103, 4
  %v3293 = vshra.s32 %v3104, 4
  %v3294 = vshra.s32 %v3105, 4
  %v3295 = vshra.s32 %v3106, 4
  %v3296 = vshra.s32 %v3107, 4
  %v3297 = vshra.s32 %v3108, 4
  %v3298 = vshra.s32 %v3109, 4
  %v3299 = vshra.s32 %v3110, 4
  %v3300 = vshra.s32 %v3111, 4
  %v3301 = vshra.s32 %v3112, 4
  %v3302 = vshra.s32 %v3113, 4
  %v3303 = vshra.s32 %v3114, 4
  %v3304 = vshra.s32 %v3115, 4
  %v3305 = vshra.s32 %v3116, 4
  %v3306 = vshra.s32 %v3117, 4
  %v3307 = vshra.s32 %v3118, 4
  %v3308 = vshra.s32 %v3119, 4
  %v3309 = vshra.s32 %v3120, 4
  %v3310 = vshra.s32 %v3121, 4
  %v3311 = vshra.s32 %v3122, 4
  %v3312 = vshra.s32 %v3123, 4
  %v3313 = vshra.s32 %v3124, 4
  %v3314 = vshra.s32 %v3125, 4
  %v3315 = vshra.s32 %v3126, 4
  %v3316 = vshra.s32 %v3127, 4
  %v3317 = vshra.s32 %v3128, 4
  %v3318 = vshra.s32 %v3129, 4
  %v3319 = vshra.s32 %v3130, 4
  %v3320 = vshra.s32 %v3131, 4
  %v3321 = vshra.s32 %v3132, 4
  %v3322 = vand.u32 %v3259, 15
  %v3323 = vand.u32 %v3260, 15
  %v3324 = vand.u32 %v3261, 15
  %v3325 = vand.u32 %v3262, 15
  %v3326 = vand.u32 %v3263, 15
  %v3327 = vand.u32 %v3264, 15
  %v3328 = vand.u32 %v3265, 15
  %v3329 = vand.u32 %v3266, 15
  %v3330 = vand.u32 %v3267, 15
  %v3331 = vand.u32 %v3268, 15
  %v3332 = vand.u32 %v3269, 15
  %v3333 = vand.u32 %v3270, 15
  %v3334 = vand.u32 %v3271, 15
  %v3335 = vand.u32 %v3272, 15
  %v3336 = vand.u32 %v3273, 15
  %v3337 = vand.u32 %v3274, 15
  %v3338 = vand.u32 %v3275, 15
  %v3339 = vand.u32 %v3276, 15
  %v3340 = vand.u32 %v3277, 15
  %v3341 = vand.u32 %v3278, 15
  %v3342 = vand.u32 %v3279, 15
  %v3343 = vand.u32 %v3280, 15
  %v3344 = vand.u32 %v3281, 15
  %v3345 = vand.u32 %v3282, 15
  %v3346 = vand.u32 %v3283, 15
  %v3347 = vand.u32 %v3284, 15
  %v3348 = vand.u32 %v3285, 15
  %v3349 = vand.u32 %v3286, 15
  %v3350 = vand.u32 %v3287, 15
  %v3351 = vand.u32 %v3288, 15
  %v3352 = vand.u32 %v3289, 15
  %v3353 = vand.u32 %v3290, 15
  %v3354 = vand.u32 %v3291, 15
  %v3355 = vand.u32 %v3292, 15
  %v3356 = vand.u32 %v3293, 15
  %v3357 = vand.u32 %v3294, 15
  %v3358 = vand.u32 %v3295, 15
  %v3359 = vand.u32 %v3296, 15
  %v3360 = vand.u32 %v3297, 15
  %v3361 = vand.u32 %v3298, 15
  %v3362 = vand.u32 %v3299, 15
  %v3363 = vand.u32 %v3300, 15
  %v3364 = vand.u32 %v3301, 15
  %v3365 = vand.u32 %v3302, 15
  %v3366 = vand.u32 %v3303, 15
  %v3367 = vand.u32 %v3304, 15
  %v3368 = vand.u32 %v3305, 15
  %v3369 = vand.u32 %v3306, 15
  %v3370 = vand.u32 %v3307, 15
  %v3371 = vand.u32 %v3308, 15
  %v3372 = vand.u32 %v3309, 15
  %v3373 = vand.u32 %v3310, 15
  %v3374 = vand.u32 %v3311, 15
  %v3375 = vand.u32 %v3312, 15
  %v3376 = vand.u32 %v3313, 15
  %v3377 = vand.u32 %v3314, 15
  %v3378 = vand.u32 %v3315, 15
  %v3379 = vand.u32 %v3316, 15
  %v3380 = vand.u32 %v3317, 15
  %v3381 = vand.u32 %v3318, 15
  %v3382 = vand.u32 %v3319, 15
  %v3383 = vand.u32 %v3320, 15
  %v3384 = vand.u32 %v3321, 15
  %vm3385 = vcmp.ne.s32.totalorder %v3322, 0
  %vm3386 = vcmp.ne.s32.totalorder %v3323, 0
  %vm3387 = vcmp.ne.s32.totalorder %v3324, 0
  %vm3388 = vcmp.ne.s32.totalorder %v3325, 0
  %vm3389 = vcmp.ne.s32.totalorder %v3326, 0
  %vm3390 = vcmp.ne.s32.totalorder %v3327, 0
  %vm3391 = vcmp.ne.s32.totalorder %v3328, 0
  %vm3392 = vcmp.ne.s32.totalorder %v3329, 0
  %vm3393 = vcmp.ne.s32.totalorder %v3330, 0
  %vm3394 = vcmp.ne.s32.totalorder %v3331, 0
  %vm3395 = vcmp.ne.s32.totalorder %v3332, 0
  %vm3396 = vcmp.ne.s32.totalorder %v3333, 0
  %vm3397 = vcmp.ne.s32.totalorder %v3334, 0
  %vm3398 = vcmp.ne.s32.totalorder %v3335, 0
  %vm3399 = vcmp.ne.s32.totalorder %v3336, 0
  %vm3400 = vcmp.ne.s32.totalorder %v3337, 0
  %vm3401 = vcmp.ne.s32.totalorder %v3338, 0
  %vm3402 = vcmp.ne.s32.totalorder %v3339, 0
  %vm3403 = vcmp.ne.s32.totalorder %v3340, 0
  %vm3404 = vcmp.ne.s32.totalorder %v3341, 0
  %vm3405 = vcmp.ne.s32.totalorder %v3342, 0
  %vm3406 = vcmp.ne.s32.totalorder %v3343, 0
  %vm3407 = vcmp.ne.s32.totalorder %v3344, 0
  %vm3408 = vcmp.ne.s32.totalorder %v3345, 0
  %vm3409 = vcmp.ne.s32.totalorder %v3346, 0
  %vm3410 = vcmp.ne.s32.totalorder %v3347, 0
  %vm3411 = vcmp.ne.s32.totalorder %v3348, 0
  %vm3412 = vcmp.ne.s32.totalorder %v3349, 0
  %vm3413 = vcmp.ne.s32.totalorder %v3350, 0
  %vm3414 = vcmp.ne.s32.totalorder %v3351, 0
  %vm3415 = vcmp.ne.s32.totalorder %v3352, 0
  %vm3416 = vcmp.ne.s32.totalorder %v3353, 0
  %vm3417 = vcmp.ne.s32.totalorder %v3354, 0
  %vm3418 = vcmp.ne.s32.totalorder %v3355, 0
  %vm3419 = vcmp.ne.s32.totalorder %v3356, 0
  %vm3420 = vcmp.ne.s32.totalorder %v3357, 0
  %vm3421 = vcmp.ne.s32.totalorder %v3358, 0
  %vm3422 = vcmp.ne.s32.totalorder %v3359, 0
  %vm3423 = vcmp.ne.s32.totalorder %v3360, 0
  %vm3424 = vcmp.ne.s32.totalorder %v3361, 0
  %vm3425 = vcmp.ne.s32.totalorder %v3362, 0
  %vm3426 = vcmp.ne.s32.totalorder %v3363, 0
  %vm3427 = vcmp.ne.s32.totalorder %v3364, 0
  %vm3428 = vcmp.ne.s32.totalorder %v3365, 0
  %vm3429 = vcmp.ne.s32.totalorder %v3366, 0
  %vm3430 = vcmp.ne.s32.totalorder %v3367, 0
  %vm3431 = vcmp.ne.s32.totalorder %v3368, 0
  %vm3432 = vcmp.ne.s32.totalorder %v3369, 0
  %vm3433 = vcmp.ne.s32.totalorder %v3370, 0
  %vm3434 = vcmp.ne.s32.totalorder %v3371, 0
  %vm3435 = vcmp.ne.s32.totalorder %v3372, 0
  %vm3436 = vcmp.ne.s32.totalorder %v3373, 0
  %vm3437 = vcmp.ne.s32.totalorder %v3374, 0
  %vm3438 = vcmp.ne.s32.totalorder %v3375, 0
  %vm3439 = vcmp.ne.s32.totalorder %v3376, 0
  %vm3440 = vcmp.ne.s32.totalorder %v3377, 0
  %vm3441 = vcmp.ne.s32.totalorder %v3378, 0
  %vm3442 = vcmp.ne.s32.totalorder %v3379, 0
  %vm3443 = vcmp.ne.s32.totalorder %v3380, 0
  %vm3444 = vcmp.ne.s32.totalorder %v3381, 0
  %vm3445 = vcmp.ne.s32.totalorder %v3382, 0
  %vm3446 = vcmp.ne.s32.totalorder %v3383, 0
  %vm3447 = vcmp.ne.s32.totalorder %v3384, 0
  %vm3448 = vmand %vm3196, %vm3385
  %vm3449 = vmand %vm3197, %vm3386
  %vm3450 = vmand %vm3198, %vm3387
  %vm3451 = vmand %vm3199, %vm3388
  %vm3452 = vmand %vm3200, %vm3389
  %vm3453 = vmand %vm3201, %vm3390
  %vm3454 = vmand %vm3202, %vm3391
  %vm3455 = vmand %vm3203, %vm3392
  %vm3456 = vmand %vm3204, %vm3393
  %vm3457 = vmand %vm3205, %vm3394
  %vm3458 = vmand %vm3206, %vm3395
  %vm3459 = vmand %vm3207, %vm3396
  %vm3460 = vmand %vm3208, %vm3397
  %vm3461 = vmand %vm3209, %vm3398
  %vm3462 = vmand %vm3210, %vm3399
  %vm3463 = vmand %vm3211, %vm3400
  %vm3464 = vmand %vm3212, %vm3401
  %vm3465 = vmand %vm3213, %vm3402
  %vm3466 = vmand %vm3214, %vm3403
  %vm3467 = vmand %vm3215, %vm3404
  %vm3468 = vmand %vm3216, %vm3405
  %vm3469 = vmand %vm3217, %vm3406
  %vm3470 = vmand %vm3218, %vm3407
  %vm3471 = vmand %vm3219, %vm3408
  %vm3472 = vmand %vm3220, %vm3409
  %vm3473 = vmand %vm3221, %vm3410
  %vm3474 = vmand %vm3222, %vm3411
  %vm3475 = vmand %vm3223, %vm3412
  %vm3476 = vmand %vm3224, %vm3413
  %vm3477 = vmand %vm3225, %vm3414
  %vm3478 = vmand %vm3226, %vm3415
  %vm3479 = vmand %vm3227, %vm3416
  %vm3480 = vmand %vm3228, %vm3417
  %vm3481 = vmand %vm3229, %vm3418
  %vm3482 = vmand %vm3230, %vm3419
  %vm3483 = vmand %vm3231, %vm3420
  %vm3484 = vmand %vm3232, %vm3421
  %vm3485 = vmand %vm3233, %vm3422
  %vm3486 = vmand %vm3234, %vm3423
  %vm3487 = vmand %vm3235, %vm3424
  %vm3488 = vmand %vm3236, %vm3425
  %vm3489 = vmand %vm3237, %vm3426
  %vm3490 = vmand %vm3238, %vm3427
  %vm3491 = vmand %vm3239, %vm3428
  %vm3492 = vmand %vm3240, %vm3429
  %vm3493 = vmand %vm3241, %vm3430
  %vm3494 = vmand %vm3242, %vm3431
  %vm3495 = vmand %vm3243, %vm3432
  %vm3496 = vmand %vm3244, %vm3433
  %vm3497 = vmand %vm3245, %vm3434
  %vm3498 = vmand %vm3246, %vm3435
  %vm3499 = vmand %vm3247, %vm3436
  %vm3500 = vmand %vm3248, %vm3437
  %vm3501 = vmand %vm3249, %vm3438
  %vm3502 = vmand %vm3250, %vm3439
  %vm3503 = vmand %vm3251, %vm3440
  %vm3504 = vmand %vm3252, %vm3441
  %vm3505 = vmand %vm3253, %vm3442
  %vm3506 = vmand %vm3254, %vm3443
  %vm3507 = vmand %vm3255, %vm3444
  %vm3508 = vmand %vm3256, %vm3445
  %vm3509 = vmand %vm3257, %vm3446
  %vm3510 = vmand %vm3258, %vm3447
  %v3511 = vsel %vm3448, 1, 0
  %v3512 = vsel %vm3449, 1, 0
  %v3513 = vsel %vm3450, 1, 0
  %v3514 = vsel %vm3451, 1, 0
  %v3515 = vsel %vm3452, 1, 0
  %v3516 = vsel %vm3453, 1, 0
  %v3517 = vsel %vm3454, 1, 0
  %v3518 = vsel %vm3455, 1, 0
  %v3519 = vsel %vm3456, 1, 0
  %v3520 = vsel %vm3457, 1, 0
  %v3521 = vsel %vm3458, 1, 0
  %v3522 = vsel %vm3459, 1, 0
  %v3523 = vsel %vm3460, 1, 0
  %v3524 = vsel %vm3461, 1, 0
  %v3525 = vsel %vm3462, 1, 0
  %v3526 = vsel %vm3463, 1, 0
  %v3527 = vsel %vm3464, 1, 0
  %v3528 = vsel %vm3465, 1, 0
  %v3529 = vsel %vm3466, 1, 0
  %v3530 = vsel %vm3467, 1, 0
  %v3531 = vsel %vm3468, 1, 0
  %v3532 = vsel %vm3469, 1, 0
  %v3533 = vsel %vm3470, 1, 0
  %v3534 = vsel %vm3471, 1, 0
  %v3535 = vsel %vm3472, 1, 0
  %v3536 = vsel %vm3473, 1, 0
  %v3537 = vsel %vm3474, 1, 0
  %v3538 = vsel %vm3475, 1, 0
  %v3539 = vsel %vm3476, 1, 0
  %v3540 = vsel %vm3477, 1, 0
  %v3541 = vsel %vm3478, 1, 0
  %v3542 = vsel %vm3479, 1, 0
  %v3543 = vsel %vm3480, 1, 0
  %v3544 = vsel %vm3481, 1, 0
  %v3545 = vsel %vm3482, 1, 0
  %v3546 = vsel %vm3483, 1, 0
  %v3547 = vsel %vm3484, 1, 0
  %v3548 = vsel %vm3485, 1, 0
  %v3549 = vsel %vm3486, 1, 0
  %v3550 = vsel %vm3487, 1, 0
  %v3551 = vsel %vm3488, 1, 0
  %v3552 = vsel %vm3489, 1, 0
  %v3553 = vsel %vm3490, 1, 0
  %v3554 = vsel %vm3491, 1, 0
  %v3555 = vsel %vm3492, 1, 0
  %v3556 = vsel %vm3493, 1, 0
  %v3557 = vsel %vm3494, 1, 0
  %v3558 = vsel %vm3495, 1, 0
  %v3559 = vsel %vm3496, 1, 0
  %v3560 = vsel %vm3497, 1, 0
  %v3561 = vsel %vm3498, 1, 0
  %v3562 = vsel %vm3499, 1, 0
  %v3563 = vsel %vm3500, 1, 0
  %v3564 = vsel %vm3501, 1, 0
  %v3565 = vsel %vm3502, 1, 0
  %v3566 = vsel %vm3503, 1, 0
  %v3567 = vsel %vm3504, 1, 0
  %v3568 = vsel %vm3505, 1, 0
  %v3569 = vsel %vm3506, 1, 0
  %v3570 = vsel %vm3507, 1, 0
  %v3571 = vsel %vm3508, 1, 0
  %v3572 = vsel %vm3509, 1, 0
  %v3573 = vsel %vm3510, 1, 0
  %vm3574 = vcmp.eq.s32.totalorder %v3511, 1
  %vm3575 = vcmp.eq.s32.totalorder %v3512, 1
  %vm3576 = vcmp.eq.s32.totalorder %v3513, 1
  %vm3577 = vcmp.eq.s32.totalorder %v3514, 1
  %vm3578 = vcmp.eq.s32.totalorder %v3515, 1
  %vm3579 = vcmp.eq.s32.totalorder %v3516, 1
  %vm3580 = vcmp.eq.s32.totalorder %v3517, 1
  %vm3581 = vcmp.eq.s32.totalorder %v3518, 1
  %vm3582 = vcmp.eq.s32.totalorder %v3519, 1
  %vm3583 = vcmp.eq.s32.totalorder %v3520, 1
  %vm3584 = vcmp.eq.s32.totalorder %v3521, 1
  %vm3585 = vcmp.eq.s32.totalorder %v3522, 1
  %vm3586 = vcmp.eq.s32.totalorder %v3523, 1
  %vm3587 = vcmp.eq.s32.totalorder %v3524, 1
  %vm3588 = vcmp.eq.s32.totalorder %v3525, 1
  %vm3589 = vcmp.eq.s32.totalorder %v3526, 1
  %vm3590 = vcmp.eq.s32.totalorder %v3527, 1
  %vm3591 = vcmp.eq.s32.totalorder %v3528, 1
  %vm3592 = vcmp.eq.s32.totalorder %v3529, 1
  %vm3593 = vcmp.eq.s32.totalorder %v3530, 1
  %vm3594 = vcmp.eq.s32.totalorder %v3531, 1
  %vm3595 = vcmp.eq.s32.totalorder %v3532, 1
  %vm3596 = vcmp.eq.s32.totalorder %v3533, 1
  %vm3597 = vcmp.eq.s32.totalorder %v3534, 1
  %vm3598 = vcmp.eq.s32.totalorder %v3535, 1
  %vm3599 = vcmp.eq.s32.totalorder %v3536, 1
  %vm3600 = vcmp.eq.s32.totalorder %v3537, 1
  %vm3601 = vcmp.eq.s32.totalorder %v3538, 1
  %vm3602 = vcmp.eq.s32.totalorder %v3539, 1
  %vm3603 = vcmp.eq.s32.totalorder %v3540, 1
  %vm3604 = vcmp.eq.s32.totalorder %v3541, 1
  %vm3605 = vcmp.eq.s32.totalorder %v3542, 1
  %vm3606 = vcmp.eq.s32.totalorder %v3543, 1
  %vm3607 = vcmp.eq.s32.totalorder %v3544, 1
  %vm3608 = vcmp.eq.s32.totalorder %v3545, 1
  %vm3609 = vcmp.eq.s32.totalorder %v3546, 1
  %vm3610 = vcmp.eq.s32.totalorder %v3547, 1
  %vm3611 = vcmp.eq.s32.totalorder %v3548, 1
  %vm3612 = vcmp.eq.s32.totalorder %v3549, 1
  %vm3613 = vcmp.eq.s32.totalorder %v3550, 1
  %vm3614 = vcmp.eq.s32.totalorder %v3551, 1
  %vm3615 = vcmp.eq.s32.totalorder %v3552, 1
  %vm3616 = vcmp.eq.s32.totalorder %v3553, 1
  %vm3617 = vcmp.eq.s32.totalorder %v3554, 1
  %vm3618 = vcmp.eq.s32.totalorder %v3555, 1
  %vm3619 = vcmp.eq.s32.totalorder %v3556, 1
  %vm3620 = vcmp.eq.s32.totalorder %v3557, 1
  %vm3621 = vcmp.eq.s32.totalorder %v3558, 1
  %vm3622 = vcmp.eq.s32.totalorder %v3559, 1
  %vm3623 = vcmp.eq.s32.totalorder %v3560, 1
  %vm3624 = vcmp.eq.s32.totalorder %v3561, 1
  %vm3625 = vcmp.eq.s32.totalorder %v3562, 1
  %vm3626 = vcmp.eq.s32.totalorder %v3563, 1
  %vm3627 = vcmp.eq.s32.totalorder %v3564, 1
  %vm3628 = vcmp.eq.s32.totalorder %v3565, 1
  %vm3629 = vcmp.eq.s32.totalorder %v3566, 1
  %vm3630 = vcmp.eq.s32.totalorder %v3567, 1
  %vm3631 = vcmp.eq.s32.totalorder %v3568, 1
  %vm3632 = vcmp.eq.s32.totalorder %v3569, 1
  %vm3633 = vcmp.eq.s32.totalorder %v3570, 1
  %vm3634 = vcmp.eq.s32.totalorder %v3571, 1
  %vm3635 = vcmp.eq.s32.totalorder %v3572, 1
  %vm3636 = vcmp.eq.s32.totalorder %v3573, 1
  %v3637 = vsel %vm3574, %v3006, 0.0
  %v3638 = vsel %vm3575, %v3007, 0.0
  %v3639 = vsel %vm3576, %v3008, 0.0
  %v3640 = vsel %vm3577, %v3009, 0.0
  %v3641 = vsel %vm3578, %v3010, 0.0
  %v3642 = vsel %vm3579, %v3011, 0.0
  %v3643 = vsel %vm3580, %v3012, 0.0
  %v3644 = vsel %vm3581, %v3013, 0.0
  %v3645 = vsel %vm3582, %v3014, 0.0
  %v3646 = vsel %vm3583, %v3015, 0.0
  %v3647 = vsel %vm3584, %v3016, 0.0
  %v3648 = vsel %vm3585, %v3017, 0.0
  %v3649 = vsel %vm3586, %v3018, 0.0
  %v3650 = vsel %vm3587, %v3019, 0.0
  %v3651 = vsel %vm3588, %v3020, 0.0
  %v3652 = vsel %vm3589, %v3021, 0.0
  %v3653 = vsel %vm3590, %v3022, 0.0
  %v3654 = vsel %vm3591, %v3023, 0.0
  %v3655 = vsel %vm3592, %v3024, 0.0
  %v3656 = vsel %vm3593, %v3025, 0.0
  %v3657 = vsel %vm3594, %v3026, 0.0
  %v3658 = vsel %vm3595, %v3027, 0.0
  %v3659 = vsel %vm3596, %v3028, 0.0
  %v3660 = vsel %vm3597, %v3029, 0.0
  %v3661 = vsel %vm3598, %v3030, 0.0
  %v3662 = vsel %vm3599, %v3031, 0.0
  %v3663 = vsel %vm3600, %v3032, 0.0
  %v3664 = vsel %vm3601, %v3033, 0.0
  %v3665 = vsel %vm3602, %v3034, 0.0
  %v3666 = vsel %vm3603, %v3035, 0.0
  %v3667 = vsel %vm3604, %v3036, 0.0
  %v3668 = vsel %vm3605, %v3037, 0.0
  %v3669 = vsel %vm3606, %v3038, 0.0
  %v3670 = vsel %vm3607, %v3039, 0.0
  %v3671 = vsel %vm3608, %v3040, 0.0
  %v3672 = vsel %vm3609, %v3041, 0.0
  %v3673 = vsel %vm3610, %v3042, 0.0
  %v3674 = vsel %vm3611, %v3043, 0.0
  %v3675 = vsel %vm3612, %v3044, 0.0
  %v3676 = vsel %vm3613, %v3045, 0.0
  %v3677 = vsel %vm3614, %v3046, 0.0
  %v3678 = vsel %vm3615, %v3047, 0.0
  %v3679 = vsel %vm3616, %v3048, 0.0
  %v3680 = vsel %vm3617, %v3049, 0.0
  %v3681 = vsel %vm3618, %v3050, 0.0
  %v3682 = vsel %vm3619, %v3051, 0.0
  %v3683 = vsel %vm3620, %v3052, 0.0
  %v3684 = vsel %vm3621, %v3053, 0.0
  %v3685 = vsel %vm3622, %v3054, 0.0
  %v3686 = vsel %vm3623, %v3055, 0.0
  %v3687 = vsel %vm3624, %v3056, 0.0
  %v3688 = vsel %vm3625, %v3057, 0.0
  %v3689 = vsel %vm3626, %v3058, 0.0
  %v3690 = vsel %vm3627, %v3059, 0.0
  %v3691 = vsel %vm3628, %v3060, 0.0
  %v3692 = vsel %vm3629, %v3061, 0.0
  %v3693 = vsel %vm3630, %v3062, 0.0
  %v3694 = vsel %vm3631, %v3063, 0.0
  %v3695 = vsel %vm3632, %v3064, 0.0
  %v3696 = vsel %vm3633, %v3065, 0.0
  %v3697 = vsel %vm3634, %v3066, 0.0
  %v3698 = vsel %vm3635, %v3067, 0.0
  %v3699 = vsel %vm3636, %v3068, 0.0
  %v3700 = vpack.c.bf16 %v3638, %v3637
  %v3701 = vpack.c.bf16 %v3640, %v3639
  %v3702 = vpack.c.bf16 %v3642, %v3641
  %v3703 = vpack.c.bf16 %v3644, %v3643
  %v3704 = vpack.c.bf16 %v3646, %v3645
  %v3705 = vpack.c.bf16 %v3648, %v3647
  %v3706 = vpack.c.bf16 %v3650, %v3649
  %v3707 = vpack.c.bf16 %v3652, %v3651
  %v3708 = vpack.c.bf16 %v3654, %v3653
  %v3709 = vpack.c.bf16 %v3656, %v3655
  %v3710 = vpack.c.bf16 %v3658, %v3657
  %v3711 = vpack.c.bf16 %v3660, %v3659
  %v3712 = vpack.c.bf16 %v3662, %v3661
  %v3713 = vpack.c.bf16 %v3664, %v3663
  %v3714 = vpack.c.bf16 %v3666, %v3665
  %v3715 = vpack.c.bf16 %v3668, %v3667
  %v3716 = vpack.c.bf16 %v3670, %v3669
  %v3717 = vpack.c.bf16 %v3672, %v3671
  %v3718 = vpack.c.bf16 %v3674, %v3673
  %v3719 = vpack.c.bf16 %v3676, %v3675
  %v3720 = vpack.c.bf16 %v3678, %v3677
  %v3721 = vpack.c.bf16 %v3680, %v3679
  %v3722 = vpack.c.bf16 %v3682, %v3681
  %v3723 = vpack.c.bf16 %v3684, %v3683
  %v3724 = vpack.c.bf16 %v3686, %v3685
  %v3725 = vpack.c.bf16 %v3688, %v3687
  %v3726 = vpack.c.bf16 %v3690, %v3689
  %v3727 = vpack.c.bf16 %v3692, %v3691
  %v3728 = vpack.c.bf16 %v3694, %v3693
  %v3729 = vpack.c.bf16 %v3696, %v3695
  %v3730 = vpack.c.bf16 %v3698, %v3697
  %v3731 = vpack.c.bf16 %v3699, %v3699
  %s3732 = scalar_lea.vmem %s1, 4
  %v3733 = vld [vmem:[%s3732] sm:$0x3]
  %v3735 = vsel %vm116, %v3700, 0
  %v3738 = vsel %vm116, %v3701, 0
  %v3741 = vsel %vm116, %v3702, 0
  %v3744 = vsel %vm116, %v3703, 0
  %v3747 = vsel %vm116, %v3704, 0
  %v3750 = vsel %vm116, %v3705, 0
  %v3753 = vsel %vm116, %v3706, 0
  %v3756 = vsel %vm116, %v3707, 0
  %v3759 = vsel %vm116, %v3708, 0
  %v3762 = vsel %vm116, %v3709, 0
  %v3765 = vsel %vm116, %v3710, 0
  %v3768 = vsel %vm116, %v3711, 0
  %v3771 = vsel %vm116, %v3712, 0
  %v3774 = vsel %vm116, %v3713, 0
  %v3777 = vsel %vm116, %v3714, 0
  %v3780 = vsel %vm116, %v3715, 0
  %v3783 = vsel %vm116, %v3716, 0
  %v3786 = vsel %vm116, %v3717, 0
  %v3789 = vsel %vm116, %v3718, 0
  %v3792 = vsel %vm116, %v3719, 0
  %v3795 = vsel %vm116, %v3720, 0
  %v3798 = vsel %vm116, %v3721, 0
  %v3801 = vsel %vm116, %v3722, 0
  %v3804 = vsel %vm116, %v3723, 0
  %v3807 = vsel %vm116, %v3724, 0
  %v3810 = vsel %vm116, %v3725, 0
  %v3813 = vsel %vm116, %v3726, 0
  %v3816 = vsel %vm116, %v3727, 0
  %v3819 = vsel %vm116, %v3728, 0
  %v3822 = vsel %vm116, %v3729, 0
  %v3825 = vsel %vm116, %v3730, 0
  %v3828 = vsel %vm116, %v3731, 0
  %v3831 = vand.u32 %v3733, %v216
  %3833 = vmatprep.subr.bf16.mxu0 0
  %3834 = vmatpush1.bf16.msra.mxu0 %v3831
  %3835 = vmatprep.subr.bf16.mxu0 0
  %3836 = vmatpush1.bf16.msra.mxu0 0
  %3837 = vmatprep.subr.bf16.mxu0 0
  %3838 = vmatpush1.bf16.msra.mxu0 0
  %3839 = vmatprep.subr.bf16.mxu0 0
  %3840 = vmatpush1.bf16.msra.mxu0 0
  %3841 = vmatprep.subr.bf16.mxu0 0
  %3842 = vmatpush1.bf16.msra.mxu0 0
  %3843 = vmatprep.subr.bf16.mxu0 0
  %3844 = vmatpush1.bf16.msra.mxu0 0
  %3845 = vmatprep.subr.bf16.mxu0 0
  %3846 = vmatpush1.bf16.msra.mxu0 0
  %3847 = vmatprep.subr.bf16.mxu0 0
  %3848 = vmatpush1.bf16.msra.mxu0 0
  %3849 = vmatprep.subr.bf16.mxu0 0
  %3850 = vmatpush1.bf16.msra.mxu0 0
  %3851 = vmatprep.subr.bf16.mxu0 0
  %3852 = vmatpush1.bf16.msra.mxu0 0
  %3853 = vmatprep.subr.bf16.mxu0 0
  %3854 = vmatpush1.bf16.msra.mxu0 0
  %3855 = vmatprep.subr.bf16.mxu0 0
  %3856 = vmatpush1.bf16.msra.mxu0 0
  %3857 = vmatprep.subr.bf16.mxu0 0
  %3858 = vmatpush1.bf16.msra.mxu0 0
  %3859 = vmatprep.subr.bf16.mxu0 0
  %3860 = vmatpush1.bf16.msra.mxu0 0
  %3861 = vmatprep.subr.bf16.mxu0 0
  %3862 = vmatpush1.bf16.msra.mxu0 0
  %3863 = vmatprep.subr.bf16.mxu0 0
  %3864 = vmatpush1.bf16.msra.mxu0 0
  %3865 = vmatprep.mubr.bf16.mxu0 0
  %3866 = vmatmul.mubr.bf16.gmra.mrb[0].mxu0 %v3735
  %v3867 = vpop.f32.mrb[0].mxu0
  %v3868 = vadd.f32 0.0, %v3867
  %v3869 = vpop.f32.mrb[0].mxu0
  %v3870 = vpop.f32.mrb[0].mxu0
  %v3871 = vadd.f32 0.0, %v3870
  %v3872 = vpop.f32.mrb[0].mxu0
  %3873 = vmatprep.mubr.bf16.mxu0 0
  %3874 = vmatmul.mubr.bf16.gmra.mrb[0].mxu0 %v3738
  %v3875 = vpop.f32.mrb[0].mxu0
  %v3876 = vadd.f32 0.0, %v3875
  %v3877 = vpop.f32.mrb[0].mxu0
  %v3878 = vpop.f32.mrb[0].mxu0
  %v3879 = vadd.f32 0.0, %v3878
  %v3880 = vpop.f32.mrb[0].mxu0
  %3881 = vmatprep.mubr.bf16.mxu0 0
  %3882 = vmatmul.mubr.bf16.gmra.mrb[0].mxu0 %v3741
  %v3883 = vpop.f32.mrb[0].mxu0
  %v3884 = vadd.f32 0.0, %v3883
  %v3885 = vpop.f32.mrb[0].mxu0
  %v3886 = vpop.f32.mrb[0].mxu0
  %v3887 = vadd.f32 0.0, %v3886
  %v3888 = vpop.f32.mrb[0].mxu0
  %3889 = vmatprep.mubr.bf16.mxu0 0
  %3890 = vmatmul.mubr.bf16.gmra.mrb[0].mxu0 %v3744
  %v3891 = vpop.f32.mrb[0].mxu0
  %v3892 = vadd.f32 0.0, %v3891
  %v3893 = vpop.f32.mrb[0].mxu0
  %v3894 = vpop.f32.mrb[0].mxu0
  %v3895 = vadd.f32 0.0, %v3894
  %v3896 = vpop.f32.mrb[0].mxu0
  %3897 = vmatprep.mubr.bf16.mxu0 0
  %3898 = vmatmul.mubr.bf16.gmra.mrb[0].mxu0 %v3747
  %v3899 = vpop.f32.mrb[0].mxu0
  %v3900 = vadd.f32 0.0, %v3899
  %v3901 = vpop.f32.mrb[0].mxu0
  %v3902 = vpop.f32.mrb[0].mxu0
  %v3903 = vadd.f32 0.0, %v3902
  %v3904 = vpop.f32.mrb[0].mxu0
  %3905 = vmatprep.mubr.bf16.mxu0 0
  %3906 = vmatmul.mubr.bf16.gmra.mrb[0].mxu0 %v3750
  %v3907 = vpop.f32.mrb[0].mxu0
  %v3908 = vadd.f32 0.0, %v3907
  %v3909 = vpop.f32.mrb[0].mxu0
  %v3910 = vpop.f32.mrb[0].mxu0
  %v3911 = vadd.f32 0.0, %v3910
  %v3912 = vpop.f32.mrb[0].mxu0
  %3913 = vmatprep.mubr.bf16.mxu0 0
  %3914 = vmatmul.mubr.bf16.gmra.mrb[0].mxu0 %v3753
  %v3915 = vpop.f32.mrb[0].mxu0
  %v3916 = vadd.f32 0.0, %v3915
  %v3917 = vpop.f32.mrb[0].mxu0
  %v3918 = vpop.f32.mrb[0].mxu0
  %v3919 = vadd.f32 0.0, %v3918
  %v3920 = vpop.f32.mrb[0].mxu0
  %3921 = vmatprep.mubr.bf16.mxu0 0
  %3922 = vmatmul.mubr.bf16.gmra.mrb[0].mxu0 %v3756
  %v3923 = vpop.f32.mrb[0].mxu0
  %v3924 = vadd.f32 0.0, %v3923
  %v3925 = vpop.f32.mrb[0].mxu0
  %v3926 = vpop.f32.mrb[0].mxu0
  %v3927 = vadd.f32 0.0, %v3926
  %v3928 = vpop.f32.mrb[0].mxu0
  %3929 = vmatprep.mubr.bf16.mxu0 0
  %3930 = vmatmul.mubr.bf16.gmra.mrb[0].mxu0 %v3759
  %v3931 = vpop.f32.mrb[0].mxu0
  %v3932 = vadd.f32 0.0, %v3931
  %v3933 = vpop.f32.mrb[0].mxu0
  %v3934 = vpop.f32.mrb[0].mxu0
  %v3935 = vadd.f32 0.0, %v3934
  %v3936 = vpop.f32.mrb[0].mxu0
  %3937 = vmatprep.mubr.bf16.mxu0 0
  %3938 = vmatmul.mubr.bf16.gmra.mrb[0].mxu0 %v3762
  %v3939 = vpop.f32.mrb[0].mxu0
  %v3940 = vadd.f32 0.0, %v3939
  %v3941 = vpop.f32.mrb[0].mxu0
  %v3942 = vpop.f32.mrb[0].mxu0
  %v3943 = vadd.f32 0.0, %v3942
  %v3944 = vpop.f32.mrb[0].mxu0
  %3945 = vmatprep.mubr.bf16.mxu0 0
  %3946 = vmatmul.mubr.bf16.gmra.mrb[0].mxu0 %v3765
  %v3947 = vpop.f32.mrb[0].mxu0
  %v3948 = vadd.f32 0.0, %v3947
  %v3949 = vpop.f32.mrb[0].mxu0
  %v3950 = vpop.f32.mrb[0].mxu0
  %v3951 = vadd.f32 0.0, %v3950
  %v3952 = vpop.f32.mrb[0].mxu0
  %3953 = vmatprep.mubr.bf16.mxu0 0
  %3954 = vmatmul.mubr.bf16.gmra.mrb[0].mxu0 %v3768
  %v3955 = vpop.f32.mrb[0].mxu0
  %v3956 = vadd.f32 0.0, %v3955
  %v3957 = vpop.f32.mrb[0].mxu0
  %v3958 = vpop.f32.mrb[0].mxu0
  %v3959 = vadd.f32 0.0, %v3958
  %v3960 = vpop.f32.mrb[0].mxu0
  %3961 = vmatprep.mubr.bf16.mxu0 0
  %3962 = vmatmul.mubr.bf16.gmra.mrb[0].mxu0 %v3771
  %v3963 = vpop.f32.mrb[0].mxu0
  %v3964 = vadd.f32 0.0, %v3963
  %v3965 = vpop.f32.mrb[0].mxu0
  %v3966 = vpop.f32.mrb[0].mxu0
  %v3967 = vadd.f32 0.0, %v3966
  %v3968 = vpop.f32.mrb[0].mxu0
  %3969 = vmatprep.mubr.bf16.mxu0 0
  %3970 = vmatmul.mubr.bf16.gmra.mrb[0].mxu0 %v3774
  %v3971 = vpop.f32.mrb[0].mxu0
  %v3972 = vadd.f32 0.0, %v3971
  %v3973 = vpop.f32.mrb[0].mxu0
  %v3974 = vpop.f32.mrb[0].mxu0
  %v3975 = vadd.f32 0.0, %v3974
  %v3976 = vpop.f32.mrb[0].mxu0
  %3977 = vmatprep.mubr.bf16.mxu0 0
  %3978 = vmatmul.mubr.bf16.gmra.mrb[0].mxu0 %v3777
  %v3979 = vpop.f32.mrb[0].mxu0
  %v3980 = vadd.f32 0.0, %v3979
  %v3981 = vpop.f32.mrb[0].mxu0
  %v3982 = vpop.f32.mrb[0].mxu0
  %v3983 = vadd.f32 0.0, %v3982
  %v3984 = vpop.f32.mrb[0].mxu0
  %3985 = vmatprep.mubr.bf16.mxu0 0
  %3986 = vmatmul.mubr.bf16.gmra.mrb[0].mxu0 %v3780
  %v3987 = vpop.f32.mrb[0].mxu0
  %v3988 = vadd.f32 0.0, %v3987
  %v3989 = vpop.f32.mrb[0].mxu0
  %v3990 = vpop.f32.mrb[0].mxu0
  %v3991 = vadd.f32 0.0, %v3990
  %v3992 = vpop.f32.mrb[0].mxu0
  %3993 = vmatprep.mubr.bf16.mxu0 0
  %3994 = vmatmul.mubr.bf16.gmra.mrb[0].mxu0 %v3783
  %v3995 = vpop.f32.mrb[0].mxu0
  %v3996 = vadd.f32 0.0, %v3995
  %v3997 = vpop.f32.mrb[0].mxu0
  %v3998 = vpop.f32.mrb[0].mxu0
  %v3999 = vadd.f32 0.0, %v3998
  %v4000 = vpop.f32.mrb[0].mxu0
  %4001 = vmatprep.mubr.bf16.mxu0 0
  %4002 = vmatmul.mubr.bf16.gmra.mrb[0].mxu0 %v3786
  %v4003 = vpop.f32.mrb[0].mxu0
  %v4004 = vadd.f32 0.0, %v4003
  %v4005 = vpop.f32.mrb[0].mxu0
  %v4006 = vpop.f32.mrb[0].mxu0
  %v4007 = vadd.f32 0.0, %v4006
  %v4008 = vpop.f32.mrb[0].mxu0
  %4009 = vmatprep.mubr.bf16.mxu0 0
  %4010 = vmatmul.mubr.bf16.gmra.mrb[0].mxu0 %v3789
  %v4011 = vpop.f32.mrb[0].mxu0
  %v4012 = vadd.f32 0.0, %v4011
  %v4013 = vpop.f32.mrb[0].mxu0
  %v4014 = vpop.f32.mrb[0].mxu0
  %v4015 = vadd.f32 0.0, %v4014
  %v4016 = vpop.f32.mrb[0].mxu0
  %4017 = vmatprep.mubr.bf16.mxu0 0
  %4018 = vmatmul.mubr.bf16.gmra.mrb[0].mxu0 %v3792
  %v4019 = vpop.f32.mrb[0].mxu0
  %v4020 = vadd.f32 0.0, %v4019
  %v4021 = vpop.f32.mrb[0].mxu0
  %v4022 = vpop.f32.mrb[0].mxu0
  %v4023 = vadd.f32 0.0, %v4022
  %v4024 = vpop.f32.mrb[0].mxu0
  %4025 = vmatprep.mubr.bf16.mxu0 0
  %4026 = vmatmul.mubr.bf16.gmra.mrb[0].mxu0 %v3795
  %v4027 = vpop.f32.mrb[0].mxu0
  %v4028 = vadd.f32 0.0, %v4027
  %v4029 = vpop.f32.mrb[0].mxu0
  %v4030 = vpop.f32.mrb[0].mxu0
  %v4031 = vadd.f32 0.0, %v4030
  %v4032 = vpop.f32.mrb[0].mxu0
  %4033 = vmatprep.mubr.bf16.mxu0 0
  %4034 = vmatmul.mubr.bf16.gmra.mrb[0].mxu0 %v3798
  %v4035 = vpop.f32.mrb[0].mxu0
  %v4036 = vadd.f32 0.0, %v4035
  %v4037 = vpop.f32.mrb[0].mxu0
  %v4038 = vpop.f32.mrb[0].mxu0
  %v4039 = vadd.f32 0.0, %v4038
  %v4040 = vpop.f32.mrb[0].mxu0
  %4041 = vmatprep.mubr.bf16.mxu0 0
  %4042 = vmatmul.mubr.bf16.gmra.mrb[0].mxu0 %v3801
  %v4043 = vpop.f32.mrb[0].mxu0
  %v4044 = vadd.f32 0.0, %v4043
  %v4045 = vpop.f32.mrb[0].mxu0
  %v4046 = vpop.f32.mrb[0].mxu0
  %v4047 = vadd.f32 0.0, %v4046
  %v4048 = vpop.f32.mrb[0].mxu0
  %4049 = vmatprep.mubr.bf16.mxu0 0
  %4050 = vmatmul.mubr.bf16.gmra.mrb[0].mxu0 %v3804
  %v4051 = vpop.f32.mrb[0].mxu0
  %v4052 = vadd.f32 0.0, %v4051
  %v4053 = vpop.f32.mrb[0].mxu0
  %v4054 = vpop.f32.mrb[0].mxu0
  %v4055 = vadd.f32 0.0, %v4054
  %v4056 = vpop.f32.mrb[0].mxu0
  %4057 = vmatprep.mubr.bf16.mxu0 0
  %4058 = vmatmul.mubr.bf16.gmra.mrb[0].mxu0 %v3807
  %v4059 = vpop.f32.mrb[0].mxu0
  %v4060 = vadd.f32 0.0, %v4059
  %v4061 = vpop.f32.mrb[0].mxu0
  %v4062 = vpop.f32.mrb[0].mxu0
  %v4063 = vadd.f32 0.0, %v4062
  %v4064 = vpop.f32.mrb[0].mxu0
  %4065 = vmatprep.mubr.bf16.mxu0 0
  %4066 = vmatmul.mubr.bf16.gmra.mrb[0].mxu0 %v3810
  %v4067 = vpop.f32.mrb[0].mxu0
  %v4068 = vadd.f32 0.0, %v4067
  %v4069 = vpop.f32.mrb[0].mxu0
  %v4070 = vpop.f32.mrb[0].mxu0
  %v4071 = vadd.f32 0.0, %v4070
  %v4072 = vpop.f32.mrb[0].mxu0
  %4073 = vmatprep.mubr.bf16.mxu0 0
  %4074 = vmatmul.mubr.bf16.gmra.mrb[0].mxu0 %v3813
  %v4075 = vpop.f32.mrb[0].mxu0
  %v4076 = vadd.f32 0.0, %v4075
  %v4077 = vpop.f32.mrb[0].mxu0
  %v4078 = vpop.f32.mrb[0].mxu0
  %v4079 = vadd.f32 0.0, %v4078
  %v4080 = vpop.f32.mrb[0].mxu0
  %4081 = vmatprep.mubr.bf16.mxu0 0
  %4082 = vmatmul.mubr.bf16.gmra.mrb[0].mxu0 %v3816
  %v4083 = vpop.f32.mrb[0].mxu0
  %v4084 = vadd.f32 0.0, %v4083
  %v4085 = vpop.f32.mrb[0].mxu0
  %v4086 = vpop.f32.mrb[0].mxu0
  %v4087 = vadd.f32 0.0, %v4086
  %v4088 = vpop.f32.mrb[0].mxu0
  %4089 = vmatprep.mubr.bf16.mxu0 0
  %4090 = vmatmul.mubr.bf16.gmra.mrb[0].mxu0 %v3819
  %v4091 = vpop.f32.mrb[0].mxu0
  %v4092 = vadd.f32 0.0, %v4091
  %v4093 = vpop.f32.mrb[0].mxu0
  %v4094 = vpop.f32.mrb[0].mxu0
  %v4095 = vadd.f32 0.0, %v4094
  %v4096 = vpop.f32.mrb[0].mxu0
  %4097 = vmatprep.mubr.bf16.mxu0 0
  %4098 = vmatmul.mubr.bf16.gmra.mrb[0].mxu0 %v3822
  %v4099 = vpop.f32.mrb[0].mxu0
  %v4100 = vadd.f32 0.0, %v4099
  %v4101 = vpop.f32.mrb[0].mxu0
  %v4102 = vpop.f32.mrb[0].mxu0
  %v4103 = vadd.f32 0.0, %v4102
  %v4104 = vpop.f32.mrb[0].mxu0
  %4105 = vmatprep.mubr.bf16.mxu0 0
  %4106 = vmatmul.mubr.bf16.gmra.mrb[0].mxu0 %v3825
  %v4107 = vpop.f32.mrb[0].mxu0
  %v4108 = vadd.f32 0.0, %v4107
  %v4109 = vpop.f32.mrb[0].mxu0
  %v4110 = vpop.f32.mrb[0].mxu0
  %v4111 = vadd.f32 0.0, %v4110
  %v4112 = vpop.f32.mrb[0].mxu0
  %4113 = vmatprep.mubr.bf16.mxu0 0
  %4114 = vmatmul.mubr.bf16.gmra.mrb[0].mxu0 %v3828
  %v4115 = vpop.f32.mrb[0].mxu0
  %v4116 = vadd.f32 0.0, %v4115
  %v4117 = vpop.f32.mrb[0].mxu0
  %v4118 = vpop.f32.mrb[0].mxu0
  %v4119 = vpop.f32.mrb[0].mxu0
  %4120 = vdwg.mxu0
  %v4121 = vld [vmem:[#allocation2 + $0xf] sm:$0xff]
  %v4122 = vld [vmem:[#allocation2 + $0x17] sm:$0xff]
  %v4123 = vld [vmem:[#allocation2 + $0x1f] sm:$0xff]
  %v4124 = vld [vmem:[#allocation2 + $0x27] sm:$0xff]
  %v4125 = vld [vmem:[#allocation2 + $0x2f] sm:$0xff]
  %v4126 = vld [vmem:[#allocation2 + $0x37] sm:$0xff]
  %v4127 = vld [vmem:[#allocation2 + $0x3f] sm:$0xff]
  %v4128 = vld [vmem:[#allocation2 + $0x47] sm:$0xff]
  %v4129 = vld [vmem:[#allocation2 + $0x4f] sm:$0xff]
  %v4130 = vld [vmem:[#allocation2 + $0x57] sm:$0xff]
  %v4131 = vld [vmem:[#allocation2 + $0x5f] sm:$0xff]
  %v4132 = vld [vmem:[#allocation2 + $0x67] sm:$0xff]
  %v4133 = vld [vmem:[#allocation2 + $0x6f] sm:$0xff]
  %v4134 = vld [vmem:[#allocation2 + $0x77] sm:$0xff]
  %v4135 = vld [vmem:[#allocation2 + $0x7f] sm:$0xff]
  %v4136 = vld [vmem:[#allocation2 + $0x87] sm:$0xff]
  %v4137 = vld [vmem:[#allocation2 + $0x8f] sm:$0xff]
  %v4138 = vld [vmem:[#allocation2 + $0x97] sm:$0xff]
  %v4139 = vld [vmem:[#allocation2 + $0x9f] sm:$0xff]
  %v4140 = vld [vmem:[#allocation2 + $0xa7] sm:$0xff]
  %v4141 = vld [vmem:[#allocation2 + $0xaf] sm:$0xff]
  %v4142 = vld [vmem:[#allocation2 + $0xb7] sm:$0xff]
  %v4143 = vld [vmem:[#allocation2 + $0xbf] sm:$0xff]
  %v4144 = vld [vmem:[#allocation2 + $0xc7] sm:$0xff]
  %v4145 = vld [vmem:[#allocation2 + $0xcf] sm:$0xff]
  %v4146 = vld [vmem:[#allocation2 + $0xd7] sm:$0xff]
  %v4147 = vld [vmem:[#allocation2 + $0xdf] sm:$0xff]
  %v4148 = vld [vmem:[#allocation2 + $0xe7] sm:$0xff]
  %v4149 = vld [vmem:[#allocation2 + $0xef] sm:$0xff]
  %v4150 = vld [vmem:[#allocation2 + $0xf7] sm:$0xff]
  %v4151 = vld [vmem:[#allocation2 + $0xff] sm:$0xff]
  %v4152 = vld [vmem:[#allocation2 + $0x107] sm:$0xff]
  %v4153 = vld [vmem:[#allocation2 + $0x10f] sm:$0xff]
  %v4154 = vld [vmem:[#allocation2 + $0x117] sm:$0xff]
  %v4155 = vld [vmem:[#allocation2 + $0x11f] sm:$0xff]
  %v4156 = vld [vmem:[#allocation2 + $0x127] sm:$0xff]
  %v4157 = vld [vmem:[#allocation2 + $0x12f] sm:$0xff]
  %v4158 = vld [vmem:[#allocation2 + $0x137] sm:$0xff]
  %v4159 = vld [vmem:[#allocation2 + $0x13f] sm:$0xff]
  %v4160 = vld [vmem:[#allocation2 + $0x147] sm:$0xff]
  %v4161 = vld [vmem:[#allocation2 + $0x14f] sm:$0xff]
  %v4162 = vld [vmem:[#allocation2 + $0x157] sm:$0xff]
  %v4163 = vld [vmem:[#allocation2 + $0x15f] sm:$0xff]
  %v4164 = vld [vmem:[#allocation2 + $0x167] sm:$0xff]
  %v4165 = vld [vmem:[#allocation2 + $0x16f] sm:$0xff]
  %v4166 = vld [vmem:[#allocation2 + $0x177] sm:$0xff]
  %v4167 = vld [vmem:[#allocation2 + $0x17f] sm:$0xff]
  %v4168 = vld [vmem:[#allocation2 + $0x187] sm:$0xff]
  %v4169 = vld [vmem:[#allocation2 + $0x18f] sm:$0xff]
  %v4170 = vld [vmem:[#allocation2 + $0x197] sm:$0xff]
  %v4171 = vld [vmem:[#allocation2 + $0x19f] sm:$0xff]
  %v4172 = vld [vmem:[#allocation2 + $0x1a7] sm:$0xff]
  %v4173 = vld [vmem:[#allocation2 + $0x1af] sm:$0xff]
  %v4174 = vld [vmem:[#allocation2 + $0x1b7] sm:$0xff]
  %v4175 = vld [vmem:[#allocation2 + $0x1bf] sm:$0xff]
  %v4176 = vld [vmem:[#allocation2 + $0x1c7] sm:$0xff]
  %v4177 = vld [vmem:[#allocation2 + $0x1cf] sm:$0xff]
  %v4178 = vld [vmem:[#allocation2 + $0x1d7] sm:$0xff]
  %v4179 = vld [vmem:[#allocation2 + $0x1df] sm:$0xff]
  %v4180 = vld [vmem:[#allocation2 + $0x1e7] sm:$0xff]
  %v4181 = vld [vmem:[#allocation2 + $0x1ef] sm:$0xff]
  %v4182 = vld [vmem:[#allocation2 + $0x1f7] sm:$0xff]
  %v4183 = vld [vmem:[#allocation2 + $0x1ff] sm:$0x1]
  %v4184 = vadd.f32 %v4121, %v3868
  %v4185 = vadd.f32 %v4122, %v3871
  %v4186 = vadd.f32 %v4123, %v3876
  %v4187 = vadd.f32 %v4124, %v3879
  %v4188 = vadd.f32 %v4125, %v3884
  %v4189 = vadd.f32 %v4126, %v3887
  %v4190 = vadd.f32 %v4127, %v3892
  %v4191 = vadd.f32 %v4128, %v3895
  %v4192 = vadd.f32 %v4129, %v3900
  %v4193 = vadd.f32 %v4130, %v3903
  %v4194 = vadd.f32 %v4131, %v3908
  %v4195 = vadd.f32 %v4132, %v3911
  %v4196 = vadd.f32 %v4133, %v3916
  %v4197 = vadd.f32 %v4134, %v3919
  %v4198 = vadd.f32 %v4135, %v3924
  %v4199 = vadd.f32 %v4136, %v3927
  %v4200 = vadd.f32 %v4137, %v3932
  %v4201 = vadd.f32 %v4138, %v3935
  %v4202 = vadd.f32 %v4139, %v3940
  %v4203 = vadd.f32 %v4140, %v3943
  %v4204 = vadd.f32 %v4141, %v3948
  %v4205 = vadd.f32 %v4142, %v3951
  %v4206 = vadd.f32 %v4143, %v3956
  %v4207 = vadd.f32 %v4144, %v3959
  %v4208 = vadd.f32 %v4145, %v3964
  %v4209 = vadd.f32 %v4146, %v3967
  %v4210 = vadd.f32 %v4147, %v3972
  %v4211 = vadd.f32 %v4148, %v3975
  %v4212 = vadd.f32 %v4149, %v3980
  %v4213 = vadd.f32 %v4150, %v3983
  %v4214 = vadd.f32 %v4151, %v3988
  %v4215 = vadd.f32 %v4152, %v3991
  %v4216 = vadd.f32 %v4153, %v3996
  %v4217 = vadd.f32 %v4154, %v3999
  %v4218 = vadd.f32 %v4155, %v4004
  %v4219 = vadd.f32 %v4156, %v4007
  %v4220 = vadd.f32 %v4157, %v4012
  %v4221 = vadd.f32 %v4158, %v4015
  %v4222 = vadd.f32 %v4159, %v4020
  %v4223 = vadd.f32 %v4160, %v4023
  %v4224 = vadd.f32 %v4161, %v4028
  %v4225 = vadd.f32 %v4162, %v4031
  %v4226 = vadd.f32 %v4163, %v4036
  %v4227 = vadd.f32 %v4164, %v4039
  %v4228 = vadd.f32 %v4165, %v4044
  %v4229 = vadd.f32 %v4166, %v4047
  %v4230 = vadd.f32 %v4167, %v4052
  %v4231 = vadd.f32 %v4168, %v4055
  %v4232 = vadd.f32 %v4169, %v4060
  %v4233 = vadd.f32 %v4170, %v4063
  %v4234 = vadd.f32 %v4171, %v4068
  %v4235 = vadd.f32 %v4172, %v4071
  %v4236 = vadd.f32 %v4173, %v4076
  %v4237 = vadd.f32 %v4174, %v4079
  %v4238 = vadd.f32 %v4175, %v4084
  %v4239 = vadd.f32 %v4176, %v4087
  %v4240 = vadd.f32 %v4177, %v4092
  %v4241 = vadd.f32 %v4178, %v4095
  %v4242 = vadd.f32 %v4179, %v4100
  %v4243 = vadd.f32 %v4180, %v4103
  %v4244 = vadd.f32 %v4181, %v4108
  %v4245 = vadd.f32 %v4182, %v4111
  %v4246 = vadd.f32 %v4183, %v4116
  %4247 = vst.msk [vmem:[#allocation2 + $0xf] sm:$0xff] %vm509, %v4184
  %4248 = vst.msk [vmem:[#allocation2 + $0x17] sm:$0xff] %vm509, %v4185
  %4249 = vst.msk [vmem:[#allocation2 + $0x1f] sm:$0xff] %vm509, %v4186
  %4250 = vst.msk [vmem:[#allocation2 + $0x27] sm:$0xff] %vm509, %v4187
  %4251 = vst.msk [vmem:[#allocation2 + $0x2f] sm:$0xff] %vm509, %v4188
  %4252 = vst.msk [vmem:[#allocation2 + $0x37] sm:$0xff] %vm509, %v4189
  %4253 = vst.msk [vmem:[#allocation2 + $0x3f] sm:$0xff] %vm509, %v4190
  %4254 = vst.msk [vmem:[#allocation2 + $0x47] sm:$0xff] %vm509, %v4191
  %4255 = vst.msk [vmem:[#allocation2 + $0x4f] sm:$0xff] %vm509, %v4192
  %4256 = vst.msk [vmem:[#allocation2 + $0x57] sm:$0xff] %vm509, %v4193
  %4257 = vst.msk [vmem:[#allocation2 + $0x5f] sm:$0xff] %vm509, %v4194
  %4258 = vst.msk [vmem:[#allocation2 + $0x67] sm:$0xff] %vm509, %v4195
  %4259 = vst.msk [vmem:[#allocation2 + $0x6f] sm:$0xff] %vm509, %v4196
  %4260 = vst.msk [vmem:[#allocation2 + $0x77] sm:$0xff] %vm509, %v4197
  %4261 = vst.msk [vmem:[#allocation2 + $0x7f] sm:$0xff] %vm509, %v4198
  %4262 = vst.msk [vmem:[#allocation2 + $0x87] sm:$0xff] %vm509, %v4199
  %4263 = vst.msk [vmem:[#allocation2 + $0x8f] sm:$0xff] %vm509, %v4200
  %4264 = vst.msk [vmem:[#allocation2 + $0x97] sm:$0xff] %vm509, %v4201
  %4265 = vst.msk [vmem:[#allocation2 + $0x9f] sm:$0xff] %vm509, %v4202
  %4266 = vst.msk [vmem:[#allocation2 + $0xa7] sm:$0xff] %vm509, %v4203
  %4267 = vst.msk [vmem:[#allocation2 + $0xaf] sm:$0xff] %vm509, %v4204
  %4268 = vst.msk [vmem:[#allocation2 + $0xb7] sm:$0xff] %vm509, %v4205
  %4269 = vst.msk [vmem:[#allocation2 + $0xbf] sm:$0xff] %vm509, %v4206
  %4270 = vst.msk [vmem:[#allocation2 + $0xc7] sm:$0xff] %vm509, %v4207
  %4271 = vst.msk [vmem:[#allocation2 + $0xcf] sm:$0xff] %vm509, %v4208
  %4272 = vst.msk [vmem:[#allocation2 + $0xd7] sm:$0xff] %vm509, %v4209
  %4273 = vst.msk [vmem:[#allocation2 + $0xdf] sm:$0xff] %vm509, %v4210
  %4274 = vst.msk [vmem:[#allocation2 + $0xe7] sm:$0xff] %vm509, %v4211
  %4275 = vst.msk [vmem:[#allocation2 + $0xef] sm:$0xff] %vm509, %v4212
  %4276 = vst.msk [vmem:[#allocation2 + $0xf7] sm:$0xff] %vm509, %v4213
  %4277 = vst.msk [vmem:[#allocation2 + $0xff] sm:$0xff] %vm509, %v4214
  %4278 = vst.msk [vmem:[#allocation2 + $0x107] sm:$0xff] %vm509, %v4215
  %4279 = vst.msk [vmem:[#allocation2 + $0x10f] sm:$0xff] %vm509, %v4216
  %4280 = vst.msk [vmem:[#allocation2 + $0x117] sm:$0xff] %vm509, %v4217
  %4281 = vst.msk [vmem:[#allocation2 + $0x11f] sm:$0xff] %vm509, %v4218
  %4282 = vst.msk [vmem:[#allocation2 + $0x127] sm:$0xff] %vm509, %v4219
  %4283 = vst.msk [vmem:[#allocation2 + $0x12f] sm:$0xff] %vm509, %v4220
  %4284 = vst.msk [vmem:[#allocation2 + $0x137] sm:$0xff] %vm509, %v4221
  %4285 = vst.msk [vmem:[#allocation2 + $0x13f] sm:$0xff] %vm509, %v4222
  %4286 = vst.msk [vmem:[#allocation2 + $0x147] sm:$0xff] %vm509, %v4223
  %4287 = vst.msk [vmem:[#allocation2 + $0x14f] sm:$0xff] %vm509, %v4224
  %4288 = vst.msk [vmem:[#allocation2 + $0x157] sm:$0xff] %vm509, %v4225
  %4289 = vst.msk [vmem:[#allocation2 + $0x15f] sm:$0xff] %vm509, %v4226
  %4290 = vst.msk [vmem:[#allocation2 + $0x167] sm:$0xff] %vm509, %v4227
  %4291 = vst.msk [vmem:[#allocation2 + $0x16f] sm:$0xff] %vm509, %v4228
  %4292 = vst.msk [vmem:[#allocation2 + $0x177] sm:$0xff] %vm509, %v4229
  %4293 = vst.msk [vmem:[#allocation2 + $0x17f] sm:$0xff] %vm509, %v4230
  %4294 = vst.msk [vmem:[#allocation2 + $0x187] sm:$0xff] %vm509, %v4231
  %4295 = vst.msk [vmem:[#allocation2 + $0x18f] sm:$0xff] %vm509, %v4232
  %4296 = vst.msk [vmem:[#allocation2 + $0x197] sm:$0xff] %vm509, %v4233
  %4297 = vst.msk [vmem:[#allocation2 + $0x19f] sm:$0xff] %vm509, %v4234
  %4298 = vst.msk [vmem:[#allocation2 + $0x1a7] sm:$0xff] %vm509, %v4235
  %4299 = vst.msk [vmem:[#allocation2 + $0x1af] sm:$0xff] %vm509, %v4236
  %4300 = vst.msk [vmem:[#allocation2 + $0x1b7] sm:$0xff] %vm509, %v4237
  %4301 = vst.msk [vmem:[#allocation2 + $0x1bf] sm:$0xff] %vm509, %v4238
  %4302 = vst.msk [vmem:[#allocation2 + $0x1c7] sm:$0xff] %vm509, %v4239
  %4303 = vst.msk [vmem:[#allocation2 + $0x1cf] sm:$0xff] %vm509, %v4240
  %4304 = vst.msk [vmem:[#allocation2 + $0x1d7] sm:$0xff] %vm509, %v4241
  %4305 = vst.msk [vmem:[#allocation2 + $0x1df] sm:$0xff] %vm509, %v4242
  %4306 = vst.msk [vmem:[#allocation2 + $0x1e7] sm:$0xff] %vm509, %v4243
  %4307 = vst.msk [vmem:[#allocation2 + $0x1ef] sm:$0xff] %vm509, %v4244
  %4308 = vst.msk [vmem:[#allocation2 + $0x1f7] sm:$0xff] %vm509, %v4245
  %vm4309 = vcmask 516096
  %4310 = vst.msk [vmem:[#allocation2 + $0x1ff] sm:$0x1] %vm4309, %v4246
  %v4311 = vld [vmem:[%s0] sm:$0xff]
  %v4312 = vld [vmem:[%s0 + $0x8] sm:$0xff]
  %v4313 = vld [vmem:[%s0 + $0x10] sm:$0xff]
  %v4314 = vld [vmem:[%s0 + $0x18] sm:$0xff]
  %v4315 = vld [vmem:[%s0 + $0x20] sm:$0xff]
  %v4316 = vld [vmem:[%s0 + $0x28] sm:$0xff]
  %v4317 = vld [vmem:[%s0 + $0x30] sm:$0xff]
  %v4318 = vld [vmem:[%s0 + $0x38] sm:$0xff]
  %v4319 = vld [vmem:[%s0 + $0x40] sm:$0xff]
  %v4320 = vld [vmem:[%s0 + $0x48] sm:$0xff]
  %v4321 = vld [vmem:[%s0 + $0x50] sm:$0xff]
  %v4322 = vld [vmem:[%s0 + $0x58] sm:$0xff]
  %v4323 = vld [vmem:[%s0 + $0x60] sm:$0xff]
  %v4324 = vld [vmem:[%s0 + $0x68] sm:$0xff]
  %v4325 = vld [vmem:[%s0 + $0x70] sm:$0xff]
  %v4326 = vld [vmem:[%s0 + $0x78] sm:$0xff]
  %v4327 = vld [vmem:[%s0 + $0x80] sm:$0xff]
  %v4328 = vld [vmem:[%s0 + $0x88] sm:$0xff]
  %v4329 = vld [vmem:[%s0 + $0x90] sm:$0xff]
  %v4330 = vld [vmem:[%s0 + $0x98] sm:$0xff]
  %v4331 = vld [vmem:[%s0 + $0xa0] sm:$0xff]
  %v4332 = vld [vmem:[%s0 + $0xa8] sm:$0xff]
  %v4333 = vld [vmem:[%s0 + $0xb0] sm:$0xff]
  %v4334 = vld [vmem:[%s0 + $0xb8] sm:$0xff]
  %v4335 = vld [vmem:[%s0 + $0xc0] sm:$0xff]
  %v4336 = vld [vmem:[%s0 + $0xc8] sm:$0xff]
  %v4337 = vld [vmem:[%s0 + $0xd0] sm:$0xff]
  %v4338 = vld [vmem:[%s0 + $0xd8] sm:$0xff]
  %v4339 = vld [vmem:[%s0 + $0xe0] sm:$0xff]
  %v4340 = vld [vmem:[%s0 + $0xe8] sm:$0xff]
  %v4341 = vld [vmem:[%s0 + $0xf0] sm:$0xff]
  %v4342 = vld [vmem:[%s0 + $0xf8] sm:$0xff]
  %v4343 = vld [vmem:[%s0 + $0x100] sm:$0xff]
  %v4344 = vld [vmem:[%s0 + $0x108] sm:$0xff]
  %v4345 = vld [vmem:[%s0 + $0x110] sm:$0xff]
  %v4346 = vld [vmem:[%s0 + $0x118] sm:$0xff]
  %v4347 = vld [vmem:[%s0 + $0x120] sm:$0xff]
  %v4348 = vld [vmem:[%s0 + $0x128] sm:$0xff]
  %v4349 = vld [vmem:[%s0 + $0x130] sm:$0xff]
  %v4350 = vld [vmem:[%s0 + $0x138] sm:$0xff]
  %v4351 = vld [vmem:[%s0 + $0x140] sm:$0xff]
  %v4352 = vld [vmem:[%s0 + $0x148] sm:$0xff]
  %v4353 = vld [vmem:[%s0 + $0x150] sm:$0xff]
  %v4354 = vld [vmem:[%s0 + $0x158] sm:$0xff]
  %v4355 = vld [vmem:[%s0 + $0x160] sm:$0xff]
  %v4356 = vld [vmem:[%s0 + $0x168] sm:$0xff]
  %v4357 = vld [vmem:[%s0 + $0x170] sm:$0xff]
  %v4358 = vld [vmem:[%s0 + $0x178] sm:$0xff]
  %v4359 = vld [vmem:[%s0 + $0x180] sm:$0xff]
  %v4360 = vld [vmem:[%s0 + $0x188] sm:$0xff]
  %v4361 = vld [vmem:[%s0 + $0x190] sm:$0xff]
  %v4362 = vld [vmem:[%s0 + $0x198] sm:$0xff]
  %v4363 = vld [vmem:[%s0 + $0x1a0] sm:$0xff]
  %v4364 = vld [vmem:[%s0 + $0x1a8] sm:$0xff]
  %v4365 = vld [vmem:[%s0 + $0x1b0] sm:$0xff]
  %v4366 = vld [vmem:[%s0 + $0x1b8] sm:$0xff]
  %v4367 = vld [vmem:[%s0 + $0x1c0] sm:$0xff]
  %v4368 = vld [vmem:[%s0 + $0x1c8] sm:$0xff]
  %v4369 = vld [vmem:[%s0 + $0x1d0] sm:$0xff]
  %v4370 = vld [vmem:[%s0 + $0x1d8] sm:$0xff]
  %v4371 = vld [vmem:[%s0 + $0x1e0] sm:$0xff]
  %v4372 = vld [vmem:[%s0 + $0x1e8] sm:$0xff]
  %v4373 = vld [vmem:[%s0 + $0x1f0] sm:$0xff]
  %v4374 = vld [vmem:[%s0 + $0x1f8] sm:$0x7f]
  %v4375 = vadd.s32 %v637, 504
  %v4376 = vadd.s32 %v637, 1
  %v4377 = vadd.s32 %v638, 1
  %v4378 = vadd.s32 %v639, 1
  %v4379 = vadd.s32 %v640, 1
  %v4380 = vadd.s32 %v641, 1
  %v4381 = vadd.s32 %v642, 1
  %v4382 = vadd.s32 %v643, 1
  %v4383 = vadd.s32 %v644, 1
  %v4384 = vadd.s32 %v645, 1
  %v4385 = vadd.s32 %v646, 1
  %v4386 = vadd.s32 %v647, 1
  %v4387 = vadd.s32 %v648, 1
  %v4388 = vadd.s32 %v649, 1
  %v4389 = vadd.s32 %v650, 1
  %v4390 = vadd.s32 %v651, 1
  %v4391 = vadd.s32 %v652, 1
  %v4392 = vadd.s32 %v653, 1
  %v4393 = vadd.s32 %v654, 1
  %v4394 = vadd.s32 %v655, 1
  %v4395 = vadd.s32 %v656, 1
  %v4396 = vadd.s32 %v657, 1
  %v4397 = vadd.s32 %v658, 1
  %v4398 = vadd.s32 %v659, 1
  %v4399 = vadd.s32 %v660, 1
  %v4400 = vadd.s32 %v661, 1
  %v4401 = vadd.s32 %v662, 1
  %v4402 = vadd.s32 %v663, 1
  %v4403 = vadd.s32 %v664, 1
  %v4404 = vadd.s32 %v665, 1
  %v4405 = vadd.s32 %v666, 1
  %v4406 = vadd.s32 %v667, 1
  %v4407 = vadd.s32 %v668, 1
  %v4408 = vadd.s32 %v669, 1
  %v4409 = vadd.s32 %v670, 1
  %v4410 = vadd.s32 %v671, 1
  %v4411 = vadd.s32 %v672, 1
  %v4412 = vadd.s32 %v673, 1
  %v4413 = vadd.s32 %v674, 1
  %v4414 = vadd.s32 %v675, 1
  %v4415 = vadd.s32 %v676, 1
  %v4416 = vadd.s32 %v677, 1
  %v4417 = vadd.s32 %v678, 1
  %v4418 = vadd.s32 %v679, 1
  %v4419 = vadd.s32 %v680, 1
  %v4420 = vadd.s32 %v681, 1
  %v4421 = vadd.s32 %v682, 1
  %v4422 = vadd.s32 %v683, 1
  %v4423 = vadd.s32 %v684, 1
  %v4424 = vadd.s32 %v685, 1
  %v4425 = vadd.s32 %v686, 1
  %v4426 = vadd.s32 %v687, 1
  %v4427 = vadd.s32 %v688, 1
  %v4428 = vadd.s32 %v689, 1
  %v4429 = vadd.s32 %v690, 1
  %v4430 = vadd.s32 %v691, 1
  %v4431 = vadd.s32 %v692, 1
  %v4432 = vadd.s32 %v693, 1
  %v4433 = vadd.s32 %v694, 1
  %v4434 = vadd.s32 %v695, 1
  %v4435 = vadd.s32 %v696, 1
  %v4436 = vadd.s32 %v697, 1
  %v4437 = vadd.s32 %v698, 1
  %v4438 = vadd.s32 %v3069, 1
  %v4439 = vadd.s32 %v4375, 1
  %v4440 = vand.u32 %v4376, 15
  %v4441 = vand.u32 %v4377, 15
  %v4442 = vand.u32 %v4378, 15
  %v4443 = vand.u32 %v4379, 15
  %v4444 = vand.u32 %v4380, 15
  %v4445 = vand.u32 %v4381, 15
  %v4446 = vand.u32 %v4382, 15
  %v4447 = vand.u32 %v4383, 15
  %v4448 = vand.u32 %v4384, 15
  %v4449 = vand.u32 %v4385, 15
  %v4450 = vand.u32 %v4386, 15
  %v4451 = vand.u32 %v4387, 15
  %v4452 = vand.u32 %v4388, 15
  %v4453 = vand.u32 %v4389, 15
  %v4454 = vand.u32 %v4390, 15
  %v4455 = vand.u32 %v4391, 15
  %v4456 = vand.u32 %v4392, 15
  %v4457 = vand.u32 %v4393, 15
  %v4458 = vand.u32 %v4394, 15
  %v4459 = vand.u32 %v4395, 15
  %v4460 = vand.u32 %v4396, 15
  %v4461 = vand.u32 %v4397, 15
  %v4462 = vand.u32 %v4398, 15
  %v4463 = vand.u32 %v4399, 15
  %v4464 = vand.u32 %v4400, 15
  %v4465 = vand.u32 %v4401, 15
  %v4466 = vand.u32 %v4402, 15
  %v4467 = vand.u32 %v4403, 15
  %v4468 = vand.u32 %v4404, 15
  %v4469 = vand.u32 %v4405, 15
  %v4470 = vand.u32 %v4406, 15
  %v4471 = vand.u32 %v4407, 15
  %v4472 = vand.u32 %v4408, 15
  %v4473 = vand.u32 %v4409, 15
  %v4474 = vand.u32 %v4410, 15
  %v4475 = vand.u32 %v4411, 15
  %v4476 = vand.u32 %v4412, 15
  %v4477 = vand.u32 %v4413, 15
  %v4478 = vand.u32 %v4414, 15
  %v4479 = vand.u32 %v4415, 15
  %v4480 = vand.u32 %v4416, 15
  %v4481 = vand.u32 %v4417, 15
  %v4482 = vand.u32 %v4418, 15
  %v4483 = vand.u32 %v4419, 15
  %v4484 = vand.u32 %v4420, 15
  %v4485 = vand.u32 %v4421, 15
  %v4486 = vand.u32 %v4422, 15
  %v4487 = vand.u32 %v4423, 15
  %v4488 = vand.u32 %v4424, 15
  %v4489 = vand.u32 %v4425, 15
  %v4490 = vand.u32 %v4426, 15
  %v4491 = vand.u32 %v4427, 15
  %v4492 = vand.u32 %v4428, 15
  %v4493 = vand.u32 %v4429, 15
  %v4494 = vand.u32 %v4430, 15
  %v4495 = vand.u32 %v4431, 15
  %v4496 = vand.u32 %v4432, 15
  %v4497 = vand.u32 %v4433, 15
  %v4498 = vand.u32 %v4434, 15
  %v4499 = vand.u32 %v4435, 15
  %v4500 = vand.u32 %v4436, 15
  %v4501 = vand.u32 %v4437, 15
  %v4502 = vand.u32 %v4438, 15
  %v4503 = vand.u32 %v4439, 15
  %vm4504 = vcmp.ne.s32.totalorder %v4440, 0
  %vm4505 = vcmp.ne.s32.totalorder %v4441, 0
  %vm4506 = vcmp.ne.s32.totalorder %v4442, 0
  %vm4507 = vcmp.ne.s32.totalorder %v4443, 0
  %vm4508 = vcmp.ne.s32.totalorder %v4444, 0
  %vm4509 = vcmp.ne.s32.totalorder %v4445, 0
  %vm4510 = vcmp.ne.s32.totalorder %v4446, 0
  %vm4511 = vcmp.ne.s32.totalorder %v4447, 0
  %vm4512 = vcmp.ne.s32.totalorder %v4448, 0
  %vm4513 = vcmp.ne.s32.totalorder %v4449, 0
  %vm4514 = vcmp.ne.s32.totalorder %v4450, 0
  %vm4515 = vcmp.ne.s32.totalorder %v4451, 0
  %vm4516 = vcmp.ne.s32.totalorder %v4452, 0
  %vm4517 = vcmp.ne.s32.totalorder %v4453, 0
  %vm4518 = vcmp.ne.s32.totalorder %v4454, 0
  %vm4519 = vcmp.ne.s32.totalorder %v4455, 0
  %vm4520 = vcmp.ne.s32.totalorder %v4456, 0
  %vm4521 = vcmp.ne.s32.totalorder %v4457, 0
  %vm4522 = vcmp.ne.s32.totalorder %v4458, 0
  %vm4523 = vcmp.ne.s32.totalorder %v4459, 0
  %vm4524 = vcmp.ne.s32.totalorder %v4460, 0
  %vm4525 = vcmp.ne.s32.totalorder %v4461, 0
  %vm4526 = vcmp.ne.s32.totalorder %v4462, 0
  %vm4527 = vcmp.ne.s32.totalorder %v4463, 0
  %vm4528 = vcmp.ne.s32.totalorder %v4464, 0
  %vm4529 = vcmp.ne.s32.totalorder %v4465, 0
  %vm4530 = vcmp.ne.s32.totalorder %v4466, 0
  %vm4531 = vcmp.ne.s32.totalorder %v4467, 0
  %vm4532 = vcmp.ne.s32.totalorder %v4468, 0
  %vm4533 = vcmp.ne.s32.totalorder %v4469, 0
  %vm4534 = vcmp.ne.s32.totalorder %v4470, 0
  %vm4535 = vcmp.ne.s32.totalorder %v4471, 0
  %vm4536 = vcmp.ne.s32.totalorder %v4472, 0
  %vm4537 = vcmp.ne.s32.totalorder %v4473, 0
  %vm4538 = vcmp.ne.s32.totalorder %v4474, 0
  %vm4539 = vcmp.ne.s32.totalorder %v4475, 0
  %vm4540 = vcmp.ne.s32.totalorder %v4476, 0
  %vm4541 = vcmp.ne.s32.totalorder %v4477, 0
  %vm4542 = vcmp.ne.s32.totalorder %v4478, 0
  %vm4543 = vcmp.ne.s32.totalorder %v4479, 0
  %vm4544 = vcmp.ne.s32.totalorder %v4480, 0
  %vm4545 = vcmp.ne.s32.totalorder %v4481, 0
  %vm4546 = vcmp.ne.s32.totalorder %v4482, 0
  %vm4547 = vcmp.ne.s32.totalorder %v4483, 0
  %vm4548 = vcmp.ne.s32.totalorder %v4484, 0
  %vm4549 = vcmp.ne.s32.totalorder %v4485, 0
  %vm4550 = vcmp.ne.s32.totalorder %v4486, 0
  %vm4551 = vcmp.ne.s32.totalorder %v4487, 0
  %vm4552 = vcmp.ne.s32.totalorder %v4488, 0
  %vm4553 = vcmp.ne.s32.totalorder %v4489, 0
  %vm4554 = vcmp.ne.s32.totalorder %v4490, 0
  %vm4555 = vcmp.ne.s32.totalorder %v4491, 0
  %vm4556 = vcmp.ne.s32.totalorder %v4492, 0
  %vm4557 = vcmp.ne.s32.totalorder %v4493, 0
  %vm4558 = vcmp.ne.s32.totalorder %v4494, 0
  %vm4559 = vcmp.ne.s32.totalorder %v4495, 0
  %vm4560 = vcmp.ne.s32.totalorder %v4496, 0
  %vm4561 = vcmp.ne.s32.totalorder %v4497, 0
  %vm4562 = vcmp.ne.s32.totalorder %v4498, 0
  %vm4563 = vcmp.ne.s32.totalorder %v4499, 0
  %vm4564 = vcmp.ne.s32.totalorder %v4500, 0
  %vm4565 = vcmp.ne.s32.totalorder %v4501, 0
  %vm4566 = vcmp.ne.s32.totalorder %v4502, 0
  %vm4567 = vcmp.ne.s32.totalorder %v4503, 0
  %v4568 = vsel %vm4504, 1, 0
  %v4569 = vsel %vm4505, 1, 0
  %v4570 = vsel %vm4506, 1, 0
  %v4571 = vsel %vm4507, 1, 0
  %v4572 = vsel %vm4508, 1, 0
  %v4573 = vsel %vm4509, 1, 0
  %v4574 = vsel %vm4510, 1, 0
  %v4575 = vsel %vm4511, 1, 0
  %v4576 = vsel %vm4512, 1, 0
  %v4577 = vsel %vm4513, 1, 0
  %v4578 = vsel %vm4514, 1, 0
  %v4579 = vsel %vm4515, 1, 0
  %v4580 = vsel %vm4516, 1, 0
  %v4581 = vsel %vm4517, 1, 0
  %v4582 = vsel %vm4518, 1, 0
  %v4583 = vsel %vm4519, 1, 0
  %v4584 = vsel %vm4520, 1, 0
  %v4585 = vsel %vm4521, 1, 0
  %v4586 = vsel %vm4522, 1, 0
  %v4587 = vsel %vm4523, 1, 0
  %v4588 = vsel %vm4524, 1, 0
  %v4589 = vsel %vm4525, 1, 0
  %v4590 = vsel %vm4526, 1, 0
  %v4591 = vsel %vm4527, 1, 0
  %v4592 = vsel %vm4528, 1, 0
  %v4593 = vsel %vm4529, 1, 0
  %v4594 = vsel %vm4530, 1, 0
  %v4595 = vsel %vm4531, 1, 0
  %v4596 = vsel %vm4532, 1, 0
  %v4597 = vsel %vm4533, 1, 0
  %v4598 = vsel %vm4534, 1, 0
  %v4599 = vsel %vm4535, 1, 0
  %v4600 = vsel %vm4536, 1, 0
  %v4601 = vsel %vm4537, 1, 0
  %v4602 = vsel %vm4538, 1, 0
  %v4603 = vsel %vm4539, 1, 0
  %v4604 = vsel %vm4540, 1, 0
  %v4605 = vsel %vm4541, 1, 0
  %v4606 = vsel %vm4542, 1, 0
  %v4607 = vsel %vm4543, 1, 0
  %v4608 = vsel %vm4544, 1, 0
  %v4609 = vsel %vm4545, 1, 0
  %v4610 = vsel %vm4546, 1, 0
  %v4611 = vsel %vm4547, 1, 0
  %v4612 = vsel %vm4548, 1, 0
  %v4613 = vsel %vm4549, 1, 0
  %v4614 = vsel %vm4550, 1, 0
  %v4615 = vsel %vm4551, 1, 0
  %v4616 = vsel %vm4552, 1, 0
  %v4617 = vsel %vm4553, 1, 0
  %v4618 = vsel %vm4554, 1, 0
  %v4619 = vsel %vm4555, 1, 0
  %v4620 = vsel %vm4556, 1, 0
  %v4621 = vsel %vm4557, 1, 0
  %v4622 = vsel %vm4558, 1, 0
  %v4623 = vsel %vm4559, 1, 0
  %v4624 = vsel %vm4560, 1, 0
  %v4625 = vsel %vm4561, 1, 0
  %v4626 = vsel %vm4562, 1, 0
  %v4627 = vsel %vm4563, 1, 0
  %v4628 = vsel %vm4564, 1, 0
  %v4629 = vsel %vm4565, 1, 0
  %v4630 = vsel %vm4566, 1, 0
  %v4631 = vsel %vm4567, 1, 0
  %vm4632 = vcmp.eq.s32.totalorder %v4568, 1
  %vm4633 = vcmp.eq.s32.totalorder %v4569, 1
  %vm4634 = vcmp.eq.s32.totalorder %v4570, 1
  %vm4635 = vcmp.eq.s32.totalorder %v4571, 1
  %vm4636 = vcmp.eq.s32.totalorder %v4572, 1
  %vm4637 = vcmp.eq.s32.totalorder %v4573, 1
  %vm4638 = vcmp.eq.s32.totalorder %v4574, 1
  %vm4639 = vcmp.eq.s32.totalorder %v4575, 1
  %vm4640 = vcmp.eq.s32.totalorder %v4576, 1
  %vm4641 = vcmp.eq.s32.totalorder %v4577, 1
  %vm4642 = vcmp.eq.s32.totalorder %v4578, 1
  %vm4643 = vcmp.eq.s32.totalorder %v4579, 1
  %vm4644 = vcmp.eq.s32.totalorder %v4580, 1
  %vm4645 = vcmp.eq.s32.totalorder %v4581, 1
  %vm4646 = vcmp.eq.s32.totalorder %v4582, 1
  %vm4647 = vcmp.eq.s32.totalorder %v4583, 1
  %vm4648 = vcmp.eq.s32.totalorder %v4584, 1
  %vm4649 = vcmp.eq.s32.totalorder %v4585, 1
  %vm4650 = vcmp.eq.s32.totalorder %v4586, 1
  %vm4651 = vcmp.eq.s32.totalorder %v4587, 1
  %vm4652 = vcmp.eq.s32.totalorder %v4588, 1
  %vm4653 = vcmp.eq.s32.totalorder %v4589, 1
  %vm4654 = vcmp.eq.s32.totalorder %v4590, 1
  %vm4655 = vcmp.eq.s32.totalorder %v4591, 1
  %vm4656 = vcmp.eq.s32.totalorder %v4592, 1
  %vm4657 = vcmp.eq.s32.totalorder %v4593, 1
  %vm4658 = vcmp.eq.s32.totalorder %v4594, 1
  %vm4659 = vcmp.eq.s32.totalorder %v4595, 1
  %vm4660 = vcmp.eq.s32.totalorder %v4596, 1
  %vm4661 = vcmp.eq.s32.totalorder %v4597, 1
  %vm4662 = vcmp.eq.s32.totalorder %v4598, 1
  %vm4663 = vcmp.eq.s32.totalorder %v4599, 1
  %vm4664 = vcmp.eq.s32.totalorder %v4600, 1
  %vm4665 = vcmp.eq.s32.totalorder %v4601, 1
  %vm4666 = vcmp.eq.s32.totalorder %v4602, 1
  %vm4667 = vcmp.eq.s32.totalorder %v4603, 1
  %vm4668 = vcmp.eq.s32.totalorder %v4604, 1
  %vm4669 = vcmp.eq.s32.totalorder %v4605, 1
  %vm4670 = vcmp.eq.s32.totalorder %v4606, 1
  %vm4671 = vcmp.eq.s32.totalorder %v4607, 1
  %vm4672 = vcmp.eq.s32.totalorder %v4608, 1
  %vm4673 = vcmp.eq.s32.totalorder %v4609, 1
  %vm4674 = vcmp.eq.s32.totalorder %v4610, 1
  %vm4675 = vcmp.eq.s32.totalorder %v4611, 1
  %vm4676 = vcmp.eq.s32.totalorder %v4612, 1
  %vm4677 = vcmp.eq.s32.totalorder %v4613, 1
  %vm4678 = vcmp.eq.s32.totalorder %v4614, 1
  %vm4679 = vcmp.eq.s32.totalorder %v4615, 1
  %vm4680 = vcmp.eq.s32.totalorder %v4616, 1
  %vm4681 = vcmp.eq.s32.totalorder %v4617, 1
  %vm4682 = vcmp.eq.s32.totalorder %v4618, 1
  %vm4683 = vcmp.eq.s32.totalorder %v4619, 1
  %vm4684 = vcmp.eq.s32.totalorder %v4620, 1
  %vm4685 = vcmp.eq.s32.totalorder %v4621, 1
  %vm4686 = vcmp.eq.s32.totalorder %v4622, 1
  %vm4687 = vcmp.eq.s32.totalorder %v4623, 1
  %vm4688 = vcmp.eq.s32.totalorder %v4624, 1
  %vm4689 = vcmp.eq.s32.totalorder %v4625, 1
  %vm4690 = vcmp.eq.s32.totalorder %v4626, 1
  %vm4691 = vcmp.eq.s32.totalorder %v4627, 1
  %vm4692 = vcmp.eq.s32.totalorder %v4628, 1
  %vm4693 = vcmp.eq.s32.totalorder %v4629, 1
  %vm4694 = vcmp.eq.s32.totalorder %v4630, 1
  %vm4695 = vcmp.eq.s32.totalorder %v4631, 1
  %v4696 = vsel %vm4632, %v4311, 0.0
  %v4697 = vsel %vm4633, %v4312, 0.0
  %v4698 = vsel %vm4634, %v4313, 0.0
  %v4699 = vsel %vm4635, %v4314, 0.0
  %v4700 = vsel %vm4636, %v4315, 0.0
  %v4701 = vsel %vm4637, %v4316, 0.0
  %v4702 = vsel %vm4638, %v4317, 0.0
  %v4703 = vsel %vm4639, %v4318, 0.0
  %v4704 = vsel %vm4640, %v4319, 0.0
  %v4705 = vsel %vm4641, %v4320, 0.0
  %v4706 = vsel %vm4642, %v4321, 0.0
  %v4707 = vsel %vm4643, %v4322, 0.0
  %v4708 = vsel %vm4644, %v4323, 0.0
  %v4709 = vsel %vm4645, %v4324, 0.0
  %v4710 = vsel %vm4646, %v4325, 0.0
  %v4711 = vsel %vm4647, %v4326, 0.0
  %v4712 = vsel %vm4648, %v4327, 0.0
  %v4713 = vsel %vm4649, %v4328, 0.0
  %v4714 = vsel %vm4650, %v4329, 0.0
  %v4715 = vsel %vm4651, %v4330, 0.0
  %v4716 = vsel %vm4652, %v4331, 0.0
  %v4717 = vsel %vm4653, %v4332, 0.0
  %v4718 = vsel %vm4654, %v4333, 0.0
  %v4719 = vsel %vm4655, %v4334, 0.0
  %v4720 = vsel %vm4656, %v4335, 0.0
  %v4721 = vsel %vm4657, %v4336, 0.0
  %v4722 = vsel %vm4658, %v4337, 0.0
  %v4723 = vsel %vm4659, %v4338, 0.0
  %v4724 = vsel %vm4660, %v4339, 0.0
  %v4725 = vsel %vm4661, %v4340, 0.0
  %v4726 = vsel %vm4662, %v4341, 0.0
  %v4727 = vsel %vm4663, %v4342, 0.0
  %v4728 = vsel %vm4664, %v4343, 0.0
  %v4729 = vsel %vm4665, %v4344, 0.0
  %v4730 = vsel %vm4666, %v4345, 0.0
  %v4731 = vsel %vm4667, %v4346, 0.0
  %v4732 = vsel %vm4668, %v4347, 0.0
  %v4733 = vsel %vm4669, %v4348, 0.0
  %v4734 = vsel %vm4670, %v4349, 0.0
  %v4735 = vsel %vm4671, %v4350, 0.0
  %v4736 = vsel %vm4672, %v4351, 0.0
  %v4737 = vsel %vm4673, %v4352, 0.0
  %v4738 = vsel %vm4674, %v4353, 0.0
  %v4739 = vsel %vm4675, %v4354, 0.0
  %v4740 = vsel %vm4676, %v4355, 0.0
  %v4741 = vsel %vm4677, %v4356, 0.0
  %v4742 = vsel %vm4678, %v4357, 0.0
  %v4743 = vsel %vm4679, %v4358, 0.0
  %v4744 = vsel %vm4680, %v4359, 0.0
  %v4745 = vsel %vm4681, %v4360, 0.0
  %v4746 = vsel %vm4682, %v4361, 0.0
  %v4747 = vsel %vm4683, %v4362, 0.0
  %v4748 = vsel %vm4684, %v4363, 0.0
  %v4749 = vsel %vm4685, %v4364, 0.0
  %v4750 = vsel %vm4686, %v4365, 0.0
  %v4751 = vsel %vm4687, %v4366, 0.0
  %v4752 = vsel %vm4688, %v4367, 0.0
  %v4753 = vsel %vm4689, %v4368, 0.0
  %v4754 = vsel %vm4690, %v4369, 0.0
  %v4755 = vsel %vm4691, %v4370, 0.0
  %v4756 = vsel %vm4692, %v4371, 0.0
  %v4757 = vsel %vm4693, %v4372, 0.0
  %v4758 = vsel %vm4694, %v4373, 0.0
  %v4759 = vsel %vm4695, %v4374, 0.0
  %v4760 = vpack.c.bf16 %v4697, %v4696
  %v4761 = vpack.c.bf16 %v4699, %v4698
  %v4762 = vpack.c.bf16 %v4701, %v4700
  %v4763 = vpack.c.bf16 %v4703, %v4702
  %v4764 = vpack.c.bf16 %v4705, %v4704
  %v4765 = vpack.c.bf16 %v4707, %v4706
  %v4766 = vpack.c.bf16 %v4709, %v4708
  %v4767 = vpack.c.bf16 %v4711, %v4710
  %v4768 = vpack.c.bf16 %v4713, %v4712
  %v4769 = vpack.c.bf16 %v4715, %v4714
  %v4770 = vpack.c.bf16 %v4717, %v4716
  %v4771 = vpack.c.bf16 %v4719, %v4718
  %v4772 = vpack.c.bf16 %v4721, %v4720
  %v4773 = vpack.c.bf16 %v4723, %v4722
  %v4774 = vpack.c.bf16 %v4725, %v4724
  %v4775 = vpack.c.bf16 %v4727, %v4726
  %v4776 = vpack.c.bf16 %v4729, %v4728
  %v4777 = vpack.c.bf16 %v4731, %v4730
  %v4778 = vpack.c.bf16 %v4733, %v4732
  %v4779 = vpack.c.bf16 %v4735, %v4734
  %v4780 = vpack.c.bf16 %v4737, %v4736
  %v4781 = vpack.c.bf16 %v4739, %v4738
  %v4782 = vpack.c.bf16 %v4741, %v4740
  %v4783 = vpack.c.bf16 %v4743, %v4742
  %v4784 = vpack.c.bf16 %v4745, %v4744
  %v4785 = vpack.c.bf16 %v4747, %v4746
  %v4786 = vpack.c.bf16 %v4749, %v4748
  %v4787 = vpack.c.bf16 %v4751, %v4750
  %v4788 = vpack.c.bf16 %v4753, %v4752
  %v4789 = vpack.c.bf16 %v4755, %v4754
  %v4790 = vpack.c.bf16 %v4757, %v4756
  %v4791 = vpack.c.bf16 %v4759, %v4758
  %s4792 = scalar_lea.vmem %s1, 6
  %v4793 = vld [vmem:[%s4792] sm:$0x3]
  %v4795 = vsel %vm116, %v4760, 0
  %v4798 = vsel %vm116, %v4761, 0
  %v4801 = vsel %vm116, %v4762, 0
  %v4804 = vsel %vm116, %v4763, 0
  %v4807 = vsel %vm116, %v4764, 0
  %v4810 = vsel %vm116, %v4765, 0
  %v4813 = vsel %vm116, %v4766, 0
  %v4816 = vsel %vm116, %v4767, 0
  %v4819 = vsel %vm116, %v4768, 0
  %v4822 = vsel %vm116, %v4769, 0
  %v4825 = vsel %vm116, %v4770, 0
  %v4828 = vsel %vm116, %v4771, 0
  %v4831 = vsel %vm116, %v4772, 0
  %v4834 = vsel %vm116, %v4773, 0
  %v4837 = vsel %vm116, %v4774, 0
  %v4840 = vsel %vm116, %v4775, 0
  %v4843 = vsel %vm116, %v4776, 0
  %v4846 = vsel %vm116, %v4777, 0
  %v4849 = vsel %vm116, %v4778, 0
  %v4852 = vsel %vm116, %v4779, 0
  %v4855 = vsel %vm116, %v4780, 0
  %v4858 = vsel %vm116, %v4781, 0
  %v4861 = vsel %vm116, %v4782, 0
  %v4864 = vsel %vm116, %v4783, 0
  %v4867 = vsel %vm116, %v4784, 0
  %v4870 = vsel %vm116, %v4785, 0
  %v4873 = vsel %vm116, %v4786, 0
  %v4876 = vsel %vm116, %v4787, 0
  %v4879 = vsel %vm116, %v4788, 0
  %v4882 = vsel %vm116, %v4789, 0
  %v4885 = vsel %vm116, %v4790, 0
  %v4888 = vsel %vm116, %v4791, 0
  %v4891 = vand.u32 %v4793, %v216
  %4893 = vmatprep.subr.bf16.mxu0 0
  %4894 = vmatpush1.bf16.msra.mxu0 %v4891
  %4895 = vmatprep.subr.bf16.mxu0 0
  %4896 = vmatpush1.bf16.msra.mxu0 0
  %4897 = vmatprep.subr.bf16.mxu0 0
  %4898 = vmatpush1.bf16.msra.mxu0 0
  %4899 = vmatprep.subr.bf16.mxu0 0
  %4900 = vmatpush1.bf16.msra.mxu0 0
  %4901 = vmatprep.subr.bf16.mxu0 0
  %4902 = vmatpush1.bf16.msra.mxu0 0
  %4903 = vmatprep.subr.bf16.mxu0 0
  %4904 = vmatpush1.bf16.msra.mxu0 0
  %4905 = vmatprep.subr.bf16.mxu0 0
  %4906 = vmatpush1.bf16.msra.mxu0 0
  %4907 = vmatprep.subr.bf16.mxu0 0
  %4908 = vmatpush1.bf16.msra.mxu0 0
  %4909 = vmatprep.subr.bf16.mxu0 0
  %4910 = vmatpush1.bf16.msra.mxu0 0
  %4911 = vmatprep.subr.bf16.mxu0 0
  %4912 = vmatpush1.bf16.msra.mxu0 0
  %4913 = vmatprep.subr.bf16.mxu0 0
  %4914 = vmatpush1.bf16.msra.mxu0 0
  %4915 = vmatprep.subr.bf16.mxu0 0
  %4916 = vmatpush1.bf16.msra.mxu0 0
  %4917 = vmatprep.subr.bf16.mxu0 0
  %4918 = vmatpush1.bf16.msra.mxu0 0
  %4919 = vmatprep.subr.bf16.mxu0 0
  %4920 = vmatpush1.bf16.msra.mxu0 0
  %4921 = vmatprep.subr.bf16.mxu0 0
  %4922 = vmatpush1.bf16.msra.mxu0 0
  %4923 = vmatprep.subr.bf16.mxu0 0
  %4924 = vmatpush1.bf16.msra.mxu0 0
  %4925 = vmatprep.mubr.bf16.mxu0 0
  %4926 = vmatmul.mubr.bf16.gmra.mrb[0].mxu0 %v4795
  %v4927 = vpop.f32.mrb[0].mxu0
  %v4928 = vadd.f32 0.0, %v4927
  %v4929 = vpop.f32.mrb[0].mxu0
  %v4930 = vpop.f32.mrb[0].mxu0
  %v4931 = vadd.f32 0.0, %v4930
  %v4932 = vpop.f32.mrb[0].mxu0
  %4933 = vmatprep.mubr.bf16.mxu0 0
  %4934 = vmatmul.mubr.bf16.gmra.mrb[0].mxu0 %v4798
  %v4935 = vpop.f32.mrb[0].mxu0
  %v4936 = vadd.f32 0.0, %v4935
  %v4937 = vpop.f32.mrb[0].mxu0
  %v4938 = vpop.f32.mrb[0].mxu0
  %v4939 = vadd.f32 0.0, %v4938
  %v4940 = vpop.f32.mrb[0].mxu0
  %4941 = vmatprep.mubr.bf16.mxu0 0
  %4942 = vmatmul.mubr.bf16.gmra.mrb[0].mxu0 %v4801
  %v4943 = vpop.f32.mrb[0].mxu0
  %v4944 = vadd.f32 0.0, %v4943
  %v4945 = vpop.f32.mrb[0].mxu0
  %v4946 = vpop.f32.mrb[0].mxu0
  %v4947 = vadd.f32 0.0, %v4946
  %v4948 = vpop.f32.mrb[0].mxu0
  %4949 = vmatprep.mubr.bf16.mxu0 0
  %4950 = vmatmul.mubr.bf16.gmra.mrb[0].mxu0 %v4804
  %v4951 = vpop.f32.mrb[0].mxu0
  %v4952 = vadd.f32 0.0, %v4951
  %v4953 = vpop.f32.mrb[0].mxu0
  %v4954 = vpop.f32.mrb[0].mxu0
  %v4955 = vadd.f32 0.0, %v4954
  %v4956 = vpop.f32.mrb[0].mxu0
  %4957 = vmatprep.mubr.bf16.mxu0 0
  %4958 = vmatmul.mubr.bf16.gmra.mrb[0].mxu0 %v4807
  %v4959 = vpop.f32.mrb[0].mxu0
  %v4960 = vadd.f32 0.0, %v4959
  %v4961 = vpop.f32.mrb[0].mxu0
  %v4962 = vpop.f32.mrb[0].mxu0
  %v4963 = vadd.f32 0.0, %v4962
  %v4964 = vpop.f32.mrb[0].mxu0
  %4965 = vmatprep.mubr.bf16.mxu0 0
  %4966 = vmatmul.mubr.bf16.gmra.mrb[0].mxu0 %v4810
  %v4967 = vpop.f32.mrb[0].mxu0
  %v4968 = vadd.f32 0.0, %v4967
  %v4969 = vpop.f32.mrb[0].mxu0
  %v4970 = vpop.f32.mrb[0].mxu0
  %v4971 = vadd.f32 0.0, %v4970
  %v4972 = vpop.f32.mrb[0].mxu0
  %4973 = vmatprep.mubr.bf16.mxu0 0
  %4974 = vmatmul.mubr.bf16.gmra.mrb[0].mxu0 %v4813
  %v4975 = vpop.f32.mrb[0].mxu0
  %v4976 = vadd.f32 0.0, %v4975
  %v4977 = vpop.f32.mrb[0].mxu0
  %v4978 = vpop.f32.mrb[0].mxu0
  %v4979 = vadd.f32 0.0, %v4978
  %v4980 = vpop.f32.mrb[0].mxu0
  %4981 = vmatprep.mubr.bf16.mxu0 0
  %4982 = vmatmul.mubr.bf16.gmra.mrb[0].mxu0 %v4816
  %v4983 = vpop.f32.mrb[0].mxu0
  %v4984 = vadd.f32 0.0, %v4983
  %v4985 = vpop.f32.mrb[0].mxu0
  %v4986 = vpop.f32.mrb[0].mxu0
  %v4987 = vadd.f32 0.0, %v4986
  %v4988 = vpop.f32.mrb[0].mxu0
  %4989 = vmatprep.mubr.bf16.mxu0 0
  %4990 = vmatmul.mubr.bf16.gmra.mrb[0].mxu0 %v4819
  %v4991 = vpop.f32.mrb[0].mxu0
  %v4992 = vadd.f32 0.0, %v4991
  %v4993 = vpop.f32.mrb[0].mxu0
  %v4994 = vpop.f32.mrb[0].mxu0
  %v4995 = vadd.f32 0.0, %v4994
  %v4996 = vpop.f32.mrb[0].mxu0
  %4997 = vmatprep.mubr.bf16.mxu0 0
  %4998 = vmatmul.mubr.bf16.gmra.mrb[0].mxu0 %v4822
  %v4999 = vpop.f32.mrb[0].mxu0
  %v5000 = vadd.f32 0.0, %v4999
  %v5001 = vpop.f32.mrb[0].mxu0
  %v5002 = vpop.f32.mrb[0].mxu0
  %v5003 = vadd.f32 0.0, %v5002
  %v5004 = vpop.f32.mrb[0].mxu0
  %5005 = vmatprep.mubr.bf16.mxu0 0
  %5006 = vmatmul.mubr.bf16.gmra.mrb[0].mxu0 %v4825
  %v5007 = vpop.f32.mrb[0].mxu0
  %v5008 = vadd.f32 0.0, %v5007
  %v5009 = vpop.f32.mrb[0].mxu0
  %v5010 = vpop.f32.mrb[0].mxu0
  %v5011 = vadd.f32 0.0, %v5010
  %v5012 = vpop.f32.mrb[0].mxu0
  %5013 = vmatprep.mubr.bf16.mxu0 0
  %5014 = vmatmul.mubr.bf16.gmra.mrb[0].mxu0 %v4828
  %v5015 = vpop.f32.mrb[0].mxu0
  %v5016 = vadd.f32 0.0, %v5015
  %v5017 = vpop.f32.mrb[0].mxu0
  %v5018 = vpop.f32.mrb[0].mxu0
  %v5019 = vadd.f32 0.0, %v5018
  %v5020 = vpop.f32.mrb[0].mxu0
  %5021 = vmatprep.mubr.bf16.mxu0 0
  %5022 = vmatmul.mubr.bf16.gmra.mrb[0].mxu0 %v4831
  %v5023 = vpop.f32.mrb[0].mxu0
  %v5024 = vadd.f32 0.0, %v5023
  %v5025 = vpop.f32.mrb[0].mxu0
  %v5026 = vpop.f32.mrb[0].mxu0
  %v5027 = vadd.f32 0.0, %v5026
  %v5028 = vpop.f32.mrb[0].mxu0
  %5029 = vmatprep.mubr.bf16.mxu0 0
  %5030 = vmatmul.mubr.bf16.gmra.mrb[0].mxu0 %v4834
  %v5031 = vpop.f32.mrb[0].mxu0
  %v5032 = vadd.f32 0.0, %v5031
  %v5033 = vpop.f32.mrb[0].mxu0
  %v5034 = vpop.f32.mrb[0].mxu0
  %v5035 = vadd.f32 0.0, %v5034
  %v5036 = vpop.f32.mrb[0].mxu0
  %5037 = vmatprep.mubr.bf16.mxu0 0
  %5038 = vmatmul.mubr.bf16.gmra.mrb[0].mxu0 %v4837
  %v5039 = vpop.f32.mrb[0].mxu0
  %v5040 = vadd.f32 0.0, %v5039
  %v5041 = vpop.f32.mrb[0].mxu0
  %v5042 = vpop.f32.mrb[0].mxu0
  %v5043 = vadd.f32 0.0, %v5042
  %v5044 = vpop.f32.mrb[0].mxu0
  %5045 = vmatprep.mubr.bf16.mxu0 0
  %5046 = vmatmul.mubr.bf16.gmra.mrb[0].mxu0 %v4840
  %v5047 = vpop.f32.mrb[0].mxu0
  %v5048 = vadd.f32 0.0, %v5047
  %v5049 = vpop.f32.mrb[0].mxu0
  %v5050 = vpop.f32.mrb[0].mxu0
  %v5051 = vadd.f32 0.0, %v5050
  %v5052 = vpop.f32.mrb[0].mxu0
  %5053 = vmatprep.mubr.bf16.mxu0 0
  %5054 = vmatmul.mubr.bf16.gmra.mrb[0].mxu0 %v4843
  %v5055 = vpop.f32.mrb[0].mxu0
  %v5056 = vadd.f32 0.0, %v5055
  %v5057 = vpop.f32.mrb[0].mxu0
  %v5058 = vpop.f32.mrb[0].mxu0
  %v5059 = vadd.f32 0.0, %v5058
  %v5060 = vpop.f32.mrb[0].mxu0
  %5061 = vmatprep.mubr.bf16.mxu0 0
  %5062 = vmatmul.mubr.bf16.gmra.mrb[0].mxu0 %v4846
  %v5063 = vpop.f32.mrb[0].mxu0
  %v5064 = vadd.f32 0.0, %v5063
  %v5065 = vpop.f32.mrb[0].mxu0
  %v5066 = vpop.f32.mrb[0].mxu0
  %v5067 = vadd.f32 0.0, %v5066
  %v5068 = vpop.f32.mrb[0].mxu0
  %5069 = vmatprep.mubr.bf16.mxu0 0
  %5070 = vmatmul.mubr.bf16.gmra.mrb[0].mxu0 %v4849
  %v5071 = vpop.f32.mrb[0].mxu0
  %v5072 = vadd.f32 0.0, %v5071
  %v5073 = vpop.f32.mrb[0].mxu0
  %v5074 = vpop.f32.mrb[0].mxu0
  %v5075 = vadd.f32 0.0, %v5074
  %v5076 = vpop.f32.mrb[0].mxu0
  %5077 = vmatprep.mubr.bf16.mxu0 0
  %5078 = vmatmul.mubr.bf16.gmra.mrb[0].mxu0 %v4852
  %v5079 = vpop.f32.mrb[0].mxu0
  %v5080 = vadd.f32 0.0, %v5079
  %v5081 = vpop.f32.mrb[0].mxu0
  %v5082 = vpop.f32.mrb[0].mxu0
  %v5083 = vadd.f32 0.0, %v5082
  %v5084 = vpop.f32.mrb[0].mxu0
  %5085 = vmatprep.mubr.bf16.mxu0 0
  %5086 = vmatmul.mubr.bf16.gmra.mrb[0].mxu0 %v4855
  %v5087 = vpop.f32.mrb[0].mxu0
  %v5088 = vadd.f32 0.0, %v5087
  %v5089 = vpop.f32.mrb[0].mxu0
  %v5090 = vpop.f32.mrb[0].mxu0
  %v5091 = vadd.f32 0.0, %v5090
  %v5092 = vpop.f32.mrb[0].mxu0
  %5093 = vmatprep.mubr.bf16.mxu0 0
  %5094 = vmatmul.mubr.bf16.gmra.mrb[0].mxu0 %v4858
  %v5095 = vpop.f32.mrb[0].mxu0
  %v5096 = vadd.f32 0.0, %v5095
  %v5097 = vpop.f32.mrb[0].mxu0
  %v5098 = vpop.f32.mrb[0].mxu0
  %v5099 = vadd.f32 0.0, %v5098
  %v5100 = vpop.f32.mrb[0].mxu0
  %5101 = vmatprep.mubr.bf16.mxu0 0
  %5102 = vmatmul.mubr.bf16.gmra.mrb[0].mxu0 %v4861
  %v5103 = vpop.f32.mrb[0].mxu0
  %v5104 = vadd.f32 0.0, %v5103
  %v5105 = vpop.f32.mrb[0].mxu0
  %v5106 = vpop.f32.mrb[0].mxu0
  %v5107 = vadd.f32 0.0, %v5106
  %v5108 = vpop.f32.mrb[0].mxu0
  %5109 = vmatprep.mubr.bf16.mxu0 0
  %5110 = vmatmul.mubr.bf16.gmra.mrb[0].mxu0 %v4864
  %v5111 = vpop.f32.mrb[0].mxu0
  %v5112 = vadd.f32 0.0, %v5111
  %v5113 = vpop.f32.mrb[0].mxu0
  %v5114 = vpop.f32.mrb[0].mxu0
  %v5115 = vadd.f32 0.0, %v5114
  %v5116 = vpop.f32.mrb[0].mxu0
  %5117 = vmatprep.mubr.bf16.mxu0 0
  %5118 = vmatmul.mubr.bf16.gmra.mrb[0].mxu0 %v4867
  %v5119 = vpop.f32.mrb[0].mxu0
  %v5120 = vadd.f32 0.0, %v5119
  %v5121 = vpop.f32.mrb[0].mxu0
  %v5122 = vpop.f32.mrb[0].mxu0
  %v5123 = vadd.f32 0.0, %v5122
  %v5124 = vpop.f32.mrb[0].mxu0
  %5125 = vmatprep.mubr.bf16.mxu0 0
  %5126 = vmatmul.mubr.bf16.gmra.mrb[0].mxu0 %v4870
  %v5127 = vpop.f32.mrb[0].mxu0
  %v5128 = vadd.f32 0.0, %v5127
  %v5129 = vpop.f32.mrb[0].mxu0
  %v5130 = vpop.f32.mrb[0].mxu0
  %v5131 = vadd.f32 0.0, %v5130
  %v5132 = vpop.f32.mrb[0].mxu0
  %5133 = vmatprep.mubr.bf16.mxu0 0
  %5134 = vmatmul.mubr.bf16.gmra.mrb[0].mxu0 %v4873
  %v5135 = vpop.f32.mrb[0].mxu0
  %v5136 = vadd.f32 0.0, %v5135
  %v5137 = vpop.f32.mrb[0].mxu0
  %v5138 = vpop.f32.mrb[0].mxu0
  %v5139 = vadd.f32 0.0, %v5138
  %v5140 = vpop.f32.mrb[0].mxu0
  %5141 = vmatprep.mubr.bf16.mxu0 0
  %5142 = vmatmul.mubr.bf16.gmra.mrb[0].mxu0 %v4876
  %v5143 = vpop.f32.mrb[0].mxu0
  %v5144 = vadd.f32 0.0, %v5143
  %v5145 = vpop.f32.mrb[0].mxu0
  %v5146 = vpop.f32.mrb[0].mxu0
  %v5147 = vadd.f32 0.0, %v5146
  %v5148 = vpop.f32.mrb[0].mxu0
  %5149 = vmatprep.mubr.bf16.mxu0 0
  %5150 = vmatmul.mubr.bf16.gmra.mrb[0].mxu0 %v4879
  %v5151 = vpop.f32.mrb[0].mxu0
  %v5152 = vadd.f32 0.0, %v5151
  %v5153 = vpop.f32.mrb[0].mxu0
  %v5154 = vpop.f32.mrb[0].mxu0
  %v5155 = vadd.f32 0.0, %v5154
  %v5156 = vpop.f32.mrb[0].mxu0
  %5157 = vmatprep.mubr.bf16.mxu0 0
  %5158 = vmatmul.mubr.bf16.gmra.mrb[0].mxu0 %v4882
  %v5159 = vpop.f32.mrb[0].mxu0
  %v5160 = vadd.f32 0.0, %v5159
  %v5161 = vpop.f32.mrb[0].mxu0
  %v5162 = vpop.f32.mrb[0].mxu0
  %v5163 = vadd.f32 0.0, %v5162
  %v5164 = vpop.f32.mrb[0].mxu0
  %5165 = vmatprep.mubr.bf16.mxu0 0
  %5166 = vmatmul.mubr.bf16.gmra.mrb[0].mxu0 %v4885
  %v5167 = vpop.f32.mrb[0].mxu0
  %v5168 = vadd.f32 0.0, %v5167
  %v5169 = vpop.f32.mrb[0].mxu0
  %v5170 = vpop.f32.mrb[0].mxu0
  %v5171 = vadd.f32 0.0, %v5170
  %v5172 = vpop.f32.mrb[0].mxu0
  %5173 = vmatprep.mubr.bf16.mxu0 0
  %5174 = vmatmul.mubr.bf16.gmra.mrb[0].mxu0 %v4888
  %v5175 = vpop.f32.mrb[0].mxu0
  %v5176 = vadd.f32 0.0, %v5175
  %v5177 = vpop.f32.mrb[0].mxu0
  %v5178 = vpop.f32.mrb[0].mxu0
  %v5179 = vadd.f32 0.0, %v5178
  %v5180 = vpop.f32.mrb[0].mxu0
  %5181 = vdwg.mxu0
  %v5182 = vld [vmem:[#allocation2 + $0x1] sm:$0xff]
  %v5183 = vld [vmem:[#allocation2 + $0x9] sm:$0xff]
  %v5184 = vld [vmem:[#allocation2 + $0x11] sm:$0xff]
  %v5185 = vld [vmem:[#allocation2 + $0x19] sm:$0xff]
  %v5186 = vld [vmem:[#allocation2 + $0x21] sm:$0xff]
  %v5187 = vld [vmem:[#allocation2 + $0x29] sm:$0xff]
  %v5188 = vld [vmem:[#allocation2 + $0x31] sm:$0xff]
  %v5189 = vld [vmem:[#allocation2 + $0x39] sm:$0xff]
  %v5190 = vld [vmem:[#allocation2 + $0x41] sm:$0xff]
  %v5191 = vld [vmem:[#allocation2 + $0x49] sm:$0xff]
  %v5192 = vld [vmem:[#allocation2 + $0x51] sm:$0xff]
  %v5193 = vld [vmem:[#allocation2 + $0x59] sm:$0xff]
  %v5194 = vld [vmem:[#allocation2 + $0x61] sm:$0xff]
  %v5195 = vld [vmem:[#allocation2 + $0x69] sm:$0xff]
  %v5196 = vld [vmem:[#allocation2 + $0x71] sm:$0xff]
  %v5197 = vld [vmem:[#allocation2 + $0x79] sm:$0xff]
  %v5198 = vld [vmem:[#allocation2 + $0x81] sm:$0xff]
  %v5199 = vld [vmem:[#allocation2 + $0x89] sm:$0xff]
  %v5200 = vld [vmem:[#allocation2 + $0x91] sm:$0xff]
  %v5201 = vld [vmem:[#allocation2 + $0x99] sm:$0xff]
  %v5202 = vld [vmem:[#allocation2 + $0xa1] sm:$0xff]
  %v5203 = vld [vmem:[#allocation2 + $0xa9] sm:$0xff]
  %v5204 = vld [vmem:[#allocation2 + $0xb1] sm:$0xff]
  %v5205 = vld [vmem:[#allocation2 + $0xb9] sm:$0xff]
  %v5206 = vld [vmem:[#allocation2 + $0xc1] sm:$0xff]
  %v5207 = vld [vmem:[#allocation2 + $0xc9] sm:$0xff]
  %v5208 = vld [vmem:[#allocation2 + $0xd1] sm:$0xff]
  %v5209 = vld [vmem:[#allocation2 + $0xd9] sm:$0xff]
  %v5210 = vld [vmem:[#allocation2 + $0xe1] sm:$0xff]
  %v5211 = vld [vmem:[#allocation2 + $0xe9] sm:$0xff]
  %v5212 = vld [vmem:[#allocation2 + $0xf1] sm:$0xff]
  %v5213 = vld [vmem:[#allocation2 + $0xf9] sm:$0xff]
  %v5214 = vld [vmem:[#allocation2 + $0x101] sm:$0xff]
  %v5215 = vld [vmem:[#allocation2 + $0x109] sm:$0xff]
  %v5216 = vld [vmem:[#allocation2 + $0x111] sm:$0xff]
  %v5217 = vld [vmem:[#allocation2 + $0x119] sm:$0xff]
  %v5218 = vld [vmem:[#allocation2 + $0x121] sm:$0xff]
  %v5219 = vld [vmem:[#allocation2 + $0x129] sm:$0xff]
  %v5220 = vld [vmem:[#allocation2 + $0x131] sm:$0xff]
  %v5221 = vld [vmem:[#allocation2 + $0x139] sm:$0xff]
  %v5222 = vld [vmem:[#allocation2 + $0x141] sm:$0xff]
  %v5223 = vld [vmem:[#allocation2 + $0x149] sm:$0xff]
  %v5224 = vld [vmem:[#allocation2 + $0x151] sm:$0xff]
  %v5225 = vld [vmem:[#allocation2 + $0x159] sm:$0xff]
  %v5226 = vld [vmem:[#allocation2 + $0x161] sm:$0xff]
  %v5227 = vld [vmem:[#allocation2 + $0x169] sm:$0xff]
  %v5228 = vld [vmem:[#allocation2 + $0x171] sm:$0xff]
  %v5229 = vld [vmem:[#allocation2 + $0x179] sm:$0xff]
  %v5230 = vld [vmem:[#allocation2 + $0x181] sm:$0xff]
  %v5231 = vld [vmem:[#allocation2 + $0x189] sm:$0xff]
  %v5232 = vld [vmem:[#allocation2 + $0x191] sm:$0xff]
  %v5233 = vld [vmem:[#allocation2 + $0x199] sm:$0xff]
  %v5234 = vld [vmem:[#allocation2 + $0x1a1] sm:$0xff]
  %v5235 = vld [vmem:[#allocation2 + $0x1a9] sm:$0xff]
  %v5236 = vld [vmem:[#allocation2 + $0x1b1] sm:$0xff]
  %v5237 = vld [vmem:[#allocation2 + $0x1b9] sm:$0xff]
  %v5238 = vld [vmem:[#allocation2 + $0x1c1] sm:$0xff]
  %v5239 = vld [vmem:[#allocation2 + $0x1c9] sm:$0xff]
  %v5240 = vld [vmem:[#allocation2 + $0x1d1] sm:$0xff]
  %v5241 = vld [vmem:[#allocation2 + $0x1d9] sm:$0xff]
  %v5242 = vld [vmem:[#allocation2 + $0x1e1] sm:$0xff]
  %v5243 = vld [vmem:[#allocation2 + $0x1e9] sm:$0xff]
  %v5244 = vld [vmem:[#allocation2 + $0x1f1] sm:$0xff]
  %v5245 = vld [vmem:[#allocation2 + $0x1f9] sm:$0x7f]
  %v5246 = vadd.f32 %v5182, %v4928
  %v5247 = vadd.f32 %v5183, %v4931
  %v5248 = vadd.f32 %v5184, %v4936
  %v5249 = vadd.f32 %v5185, %v4939
  %v5250 = vadd.f32 %v5186, %v4944
  %v5251 = vadd.f32 %v5187, %v4947
  %v5252 = vadd.f32 %v5188, %v4952
  %v5253 = vadd.f32 %v5189, %v4955
  %v5254 = vadd.f32 %v5190, %v4960
  %v5255 = vadd.f32 %v5191, %v4963
  %v5256 = vadd.f32 %v5192, %v4968
  %v5257 = vadd.f32 %v5193, %v4971
  %v5258 = vadd.f32 %v5194, %v4976
  %v5259 = vadd.f32 %v5195, %v4979
  %v5260 = vadd.f32 %v5196, %v4984
  %v5261 = vadd.f32 %v5197, %v4987
  %v5262 = vadd.f32 %v5198, %v4992
  %v5263 = vadd.f32 %v5199, %v4995
  %v5264 = vadd.f32 %v5200, %v5000
  %v5265 = vadd.f32 %v5201, %v5003
  %v5266 = vadd.f32 %v5202, %v5008
  %v5267 = vadd.f32 %v5203, %v5011
  %v5268 = vadd.f32 %v5204, %v5016
  %v5269 = vadd.f32 %v5205, %v5019
  %v5270 = vadd.f32 %v5206, %v5024
  %v5271 = vadd.f32 %v5207, %v5027
  %v5272 = vadd.f32 %v5208, %v5032
  %v5273 = vadd.f32 %v5209, %v5035
  %v5274 = vadd.f32 %v5210, %v5040
  %v5275 = vadd.f32 %v5211, %v5043
  %v5276 = vadd.f32 %v5212, %v5048
  %v5277 = vadd.f32 %v5213, %v5051
  %v5278 = vadd.f32 %v5214, %v5056
  %v5279 = vadd.f32 %v5215, %v5059
  %v5280 = vadd.f32 %v5216, %v5064
  %v5281 = vadd.f32 %v5217, %v5067
  %v5282 = vadd.f32 %v5218, %v5072
  %v5283 = vadd.f32 %v5219, %v5075
  %v5284 = vadd.f32 %v5220, %v5080
  %v5285 = vadd.f32 %v5221, %v5083
  %v5286 = vadd.f32 %v5222, %v5088
  %v5287 = vadd.f32 %v5223, %v5091
  %v5288 = vadd.f32 %v5224, %v5096
  %v5289 = vadd.f32 %v5225, %v5099
  %v5290 = vadd.f32 %v5226, %v5104
  %v5291 = vadd.f32 %v5227, %v5107
  %v5292 = vadd.f32 %v5228, %v5112
  %v5293 = vadd.f32 %v5229, %v5115
  %v5294 = vadd.f32 %v5230, %v5120
  %v5295 = vadd.f32 %v5231, %v5123
  %v5296 = vadd.f32 %v5232, %v5128
  %v5297 = vadd.f32 %v5233, %v5131
  %v5298 = vadd.f32 %v5234, %v5136
  %v5299 = vadd.f32 %v5235, %v5139
  %v5300 = vadd.f32 %v5236, %v5144
  %v5301 = vadd.f32 %v5237, %v5147
  %v5302 = vadd.f32 %v5238, %v5152
  %v5303 = vadd.f32 %v5239, %v5155
  %v5304 = vadd.f32 %v5240, %v5160
  %v5305 = vadd.f32 %v5241, %v5163
  %v5306 = vadd.f32 %v5242, %v5168
  %v5307 = vadd.f32 %v5243, %v5171
  %v5308 = vadd.f32 %v5244, %v5176
  %v5309 = vadd.f32 %v5245, %v5179
  %5310 = vst.msk [vmem:[#allocation2 + $0x1] sm:$0xff] %vm509, %v5246
  %5311 = vst.msk [vmem:[#allocation2 + $0x9] sm:$0xff] %vm509, %v5247
  %5312 = vst.msk [vmem:[#allocation2 + $0x11] sm:$0xff] %vm509, %v5248
  %5313 = vst.msk [vmem:[#allocation2 + $0x19] sm:$0xff] %vm509, %v5249
  %5314 = vst.msk [vmem:[#allocation2 + $0x21] sm:$0xff] %vm509, %v5250
  %5315 = vst.msk [vmem:[#allocation2 + $0x29] sm:$0xff] %vm509, %v5251
  %5316 = vst.msk [vmem:[#allocation2 + $0x31] sm:$0xff] %vm509, %v5252
  %5317 = vst.msk [vmem:[#allocation2 + $0x39] sm:$0xff] %vm509, %v5253
  %5318 = vst.msk [vmem:[#allocation2 + $0x41] sm:$0xff] %vm509, %v5254
  %5319 = vst.msk [vmem:[#allocation2 + $0x49] sm:$0xff] %vm509, %v5255
  %5320 = vst.msk [vmem:[#allocation2 + $0x51] sm:$0xff] %vm509, %v5256
  %5321 = vst.msk [vmem:[#allocation2 + $0x59] sm:$0xff] %vm509, %v5257
  %5322 = vst.msk [vmem:[#allocation2 + $0x61] sm:$0xff] %vm509, %v5258
  %5323 = vst.msk [vmem:[#allocation2 + $0x69] sm:$0xff] %vm509, %v5259
  %5324 = vst.msk [vmem:[#allocation2 + $0x71] sm:$0xff] %vm509, %v5260
  %5325 = vst.msk [vmem:[#allocation2 + $0x79] sm:$0xff] %vm509, %v5261
  %5326 = vst.msk [vmem:[#allocation2 + $0x81] sm:$0xff] %vm509, %v5262
  %5327 = vst.msk [vmem:[#allocation2 + $0x89] sm:$0xff] %vm509, %v5263
  %5328 = vst.msk [vmem:[#allocation2 + $0x91] sm:$0xff] %vm509, %v5264
  %5329 = vst.msk [vmem:[#allocation2 + $0x99] sm:$0xff] %vm509, %v5265
  %5330 = vst.msk [vmem:[#allocation2 + $0xa1] sm:$0xff] %vm509, %v5266
  %5331 = vst.msk [vmem:[#allocation2 + $0xa9] sm:$0xff] %vm509, %v5267
  %5332 = vst.msk [vmem:[#allocation2 + $0xb1] sm:$0xff] %vm509, %v5268
  %5333 = vst.msk [vmem:[#allocation2 + $0xb9] sm:$0xff] %vm509, %v5269
  %5334 = vst.msk [vmem:[#allocation2 + $0xc1] sm:$0xff] %vm509, %v5270
  %5335 = vst.msk [vmem:[#allocation2 + $0xc9] sm:$0xff] %vm509, %v5271
  %5336 = vst.msk [vmem:[#allocation2 + $0xd1] sm:$0xff] %vm509, %v5272
  %5337 = vst.msk [vmem:[#allocation2 + $0xd9] sm:$0xff] %vm509, %v5273
  %5338 = vst.msk [vmem:[#allocation2 + $0xe1] sm:$0xff] %vm509, %v5274
  %5339 = vst.msk [vmem:[#allocation2 + $0xe9] sm:$0xff] %vm509, %v5275
  %5340 = vst.msk [vmem:[#allocation2 + $0xf1] sm:$0xff] %vm509, %v5276
  %5341 = vst.msk [vmem:[#allocation2 + $0xf9] sm:$0xff] %vm509, %v5277
  %5342 = vst.msk [vmem:[#allocation2 + $0x101] sm:$0xff] %vm509, %v5278
  %5343 = vst.msk [vmem:[#allocation2 + $0x109] sm:$0xff] %vm509, %v5279
  %5344 = vst.msk [vmem:[#allocation2 + $0x111] sm:$0xff] %vm509, %v5280
  %5345 = vst.msk [vmem:[#allocation2 + $0x119] sm:$0xff] %vm509, %v5281
  %5346 = vst.msk [vmem:[#allocation2 + $0x121] sm:$0xff] %vm509, %v5282
  %5347 = vst.msk [vmem:[#allocation2 + $0x129] sm:$0xff] %vm509, %v5283
  %5348 = vst.msk [vmem:[#allocation2 + $0x131] sm:$0xff] %vm509, %v5284
  %5349 = vst.msk [vmem:[#allocation2 + $0x139] sm:$0xff] %vm509, %v5285
  %5350 = vst.msk [vmem:[#allocation2 + $0x141] sm:$0xff] %vm509, %v5286
  %5351 = vst.msk [vmem:[#allocation2 + $0x149] sm:$0xff] %vm509, %v5287
  %5352 = vst.msk [vmem:[#allocation2 + $0x151] sm:$0xff] %vm509, %v5288
  %5353 = vst.msk [vmem:[#allocation2 + $0x159] sm:$0xff] %vm509, %v5289
  %5354 = vst.msk [vmem:[#allocation2 + $0x161] sm:$0xff] %vm509, %v5290
  %5355 = vst.msk [vmem:[#allocation2 + $0x169] sm:$0xff] %vm509, %v5291
  %5356 = vst.msk [vmem:[#allocation2 + $0x171] sm:$0xff] %vm509, %v5292
  %5357 = vst.msk [vmem:[#allocation2 + $0x179] sm:$0xff] %vm509, %v5293
  %5358 = vst.msk [vmem:[#allocation2 + $0x181] sm:$0xff] %vm509, %v5294
  %5359 = vst.msk [vmem:[#allocation2 + $0x189] sm:$0xff] %vm509, %v5295
  %5360 = vst.msk [vmem:[#allocation2 + $0x191] sm:$0xff] %vm509, %v5296
  %5361 = vst.msk [vmem:[#allocation2 + $0x199] sm:$0xff] %vm509, %v5297
  %5362 = vst.msk [vmem:[#allocation2 + $0x1a1] sm:$0xff] %vm509, %v5298
  %5363 = vst.msk [vmem:[#allocation2 + $0x1a9] sm:$0xff] %vm509, %v5299
  %5364 = vst.msk [vmem:[#allocation2 + $0x1b1] sm:$0xff] %vm509, %v5300
  %5365 = vst.msk [vmem:[#allocation2 + $0x1b9] sm:$0xff] %vm509, %v5301
  %5366 = vst.msk [vmem:[#allocation2 + $0x1c1] sm:$0xff] %vm509, %v5302
  %5367 = vst.msk [vmem:[#allocation2 + $0x1c9] sm:$0xff] %vm509, %v5303
  %5368 = vst.msk [vmem:[#allocation2 + $0x1d1] sm:$0xff] %vm509, %v5304
  %5369 = vst.msk [vmem:[#allocation2 + $0x1d9] sm:$0xff] %vm509, %v5305
  %5370 = vst.msk [vmem:[#allocation2 + $0x1e1] sm:$0xff] %vm509, %v5306
  %5371 = vst.msk [vmem:[#allocation2 + $0x1e9] sm:$0xff] %vm509, %v5307
  %5372 = vst.msk [vmem:[#allocation2 + $0x1f1] sm:$0xff] %vm509, %v5308
  %5373 = vst.msk [vmem:[#allocation2 + $0x1f9] sm:$0x7f] %vm1913, %v5309
  %v5374 = vld [vmem:[%s0 + $0x1] sm:$0xff]
  %v5375 = vld [vmem:[%s0 + $0x9] sm:$0xff]
  %v5376 = vld [vmem:[%s0 + $0x11] sm:$0xff]
  %v5377 = vld [vmem:[%s0 + $0x19] sm:$0xff]
  %v5378 = vld [vmem:[%s0 + $0x21] sm:$0xff]
  %v5379 = vld [vmem:[%s0 + $0x29] sm:$0xff]
  %v5380 = vld [vmem:[%s0 + $0x31] sm:$0xff]
  %v5381 = vld [vmem:[%s0 + $0x39] sm:$0xff]
  %v5382 = vld [vmem:[%s0 + $0x41] sm:$0xff]
  %v5383 = vld [vmem:[%s0 + $0x49] sm:$0xff]
  %v5384 = vld [vmem:[%s0 + $0x51] sm:$0xff]
  %v5385 = vld [vmem:[%s0 + $0x59] sm:$0xff]
  %v5386 = vld [vmem:[%s0 + $0x61] sm:$0xff]
  %v5387 = vld [vmem:[%s0 + $0x69] sm:$0xff]
  %v5388 = vld [vmem:[%s0 + $0x71] sm:$0xff]
  %v5389 = vld [vmem:[%s0 + $0x79] sm:$0xff]
  %v5390 = vld [vmem:[%s0 + $0x81] sm:$0xff]
  %v5391 = vld [vmem:[%s0 + $0x89] sm:$0xff]
  %v5392 = vld [vmem:[%s0 + $0x91] sm:$0xff]
  %v5393 = vld [vmem:[%s0 + $0x99] sm:$0xff]
  %v5394 = vld [vmem:[%s0 + $0xa1] sm:$0xff]
  %v5395 = vld [vmem:[%s0 + $0xa9] sm:$0xff]
  %v5396 = vld [vmem:[%s0 + $0xb1] sm:$0xff]
  %v5397 = vld [vmem:[%s0 + $0xb9] sm:$0xff]
  %v5398 = vld [vmem:[%s0 + $0xc1] sm:$0xff]
  %v5399 = vld [vmem:[%s0 + $0xc9] sm:$0xff]
  %v5400 = vld [vmem:[%s0 + $0xd1] sm:$0xff]
  %v5401 = vld [vmem:[%s0 + $0xd9] sm:$0xff]
  %v5402 = vld [vmem:[%s0 + $0xe1] sm:$0xff]
  %v5403 = vld [vmem:[%s0 + $0xe9] sm:$0xff]
  %v5404 = vld [vmem:[%s0 + $0xf1] sm:$0xff]
  %v5405 = vld [vmem:[%s0 + $0xf9] sm:$0xff]
  %v5406 = vld [vmem:[%s0 + $0x101] sm:$0xff]
  %v5407 = vld [vmem:[%s0 + $0x109] sm:$0xff]
  %v5408 = vld [vmem:[%s0 + $0x111] sm:$0xff]
  %v5409 = vld [vmem:[%s0 + $0x119] sm:$0xff]
  %v5410 = vld [vmem:[%s0 + $0x121] sm:$0xff]
  %v5411 = vld [vmem:[%s0 + $0x129] sm:$0xff]
  %v5412 = vld [vmem:[%s0 + $0x131] sm:$0xff]
  %v5413 = vld [vmem:[%s0 + $0x139] sm:$0xff]
  %v5414 = vld [vmem:[%s0 + $0x141] sm:$0xff]
  %v5415 = vld [vmem:[%s0 + $0x149] sm:$0xff]
  %v5416 = vld [vmem:[%s0 + $0x151] sm:$0xff]
  %v5417 = vld [vmem:[%s0 + $0x159] sm:$0xff]
  %v5418 = vld [vmem:[%s0 + $0x161] sm:$0xff]
  %v5419 = vld [vmem:[%s0 + $0x169] sm:$0xff]
  %v5420 = vld [vmem:[%s0 + $0x171] sm:$0xff]
  %v5421 = vld [vmem:[%s0 + $0x179] sm:$0xff]
  %v5422 = vld [vmem:[%s0 + $0x181] sm:$0xff]
  %v5423 = vld [vmem:[%s0 + $0x189] sm:$0xff]
  %v5424 = vld [vmem:[%s0 + $0x191] sm:$0xff]
  %v5425 = vld [vmem:[%s0 + $0x199] sm:$0xff]
  %v5426 = vld [vmem:[%s0 + $0x1a1] sm:$0xff]
  %v5427 = vld [vmem:[%s0 + $0x1a9] sm:$0xff]
  %v5428 = vld [vmem:[%s0 + $0x1b1] sm:$0xff]
  %v5429 = vld [vmem:[%s0 + $0x1b9] sm:$0xff]
  %v5430 = vld [vmem:[%s0 + $0x1c1] sm:$0xff]
  %v5431 = vld [vmem:[%s0 + $0x1c9] sm:$0xff]
  %v5432 = vld [vmem:[%s0 + $0x1d1] sm:$0xff]
  %v5433 = vld [vmem:[%s0 + $0x1d9] sm:$0xff]
  %v5434 = vld [vmem:[%s0 + $0x1e1] sm:$0xff]
  %v5435 = vld [vmem:[%s0 + $0x1e9] sm:$0xff]
  %v5436 = vld [vmem:[%s0 + $0x1f1] sm:$0xff]
  %v5437 = vld [vmem:[%s0 + $0x1f9] sm:$0x7f]
  %v5438 = vand.u32 %v637, 15
  %v5439 = vand.u32 %v638, 15
  %v5440 = vand.u32 %v639, 15
  %v5441 = vand.u32 %v640, 15
  %v5442 = vand.u32 %v641, 15
  %v5443 = vand.u32 %v642, 15
  %v5444 = vand.u32 %v643, 15
  %v5445 = vand.u32 %v644, 15
  %v5446 = vand.u32 %v645, 15
  %v5447 = vand.u32 %v646, 15
  %v5448 = vand.u32 %v647, 15
  %v5449 = vand.u32 %v648, 15
  %v5450 = vand.u32 %v649, 15
  %v5451 = vand.u32 %v650, 15
  %v5452 = vand.u32 %v651, 15
  %v5453 = vand.u32 %v652, 15
  %v5454 = vand.u32 %v653, 15
  %v5455 = vand.u32 %v654, 15
  %v5456 = vand.u32 %v655, 15
  %v5457 = vand.u32 %v656, 15
  %v5458 = vand.u32 %v657, 15
  %v5459 = vand.u32 %v658, 15
  %v5460 = vand.u32 %v659, 15
  %v5461 = vand.u32 %v660, 15
  %v5462 = vand.u32 %v661, 15
  %v5463 = vand.u32 %v662, 15
  %v5464 = vand.u32 %v663, 15
  %v5465 = vand.u32 %v664, 15
  %v5466 = vand.u32 %v665, 15
  %v5467 = vand.u32 %v666, 15
  %v5468 = vand.u32 %v667, 15
  %v5469 = vand.u32 %v668, 15
  %v5470 = vand.u32 %v669, 15
  %v5471 = vand.u32 %v670, 15
  %v5472 = vand.u32 %v671, 15
  %v5473 = vand.u32 %v672, 15
  %v5474 = vand.u32 %v673, 15
  %v5475 = vand.u32 %v674, 15
  %v5476 = vand.u32 %v675, 15
  %v5477 = vand.u32 %v676, 15
  %v5478 = vand.u32 %v677, 15
  %v5479 = vand.u32 %v678, 15
  %v5480 = vand.u32 %v679, 15
  %v5481 = vand.u32 %v680, 15
  %v5482 = vand.u32 %v681, 15
  %v5483 = vand.u32 %v682, 15
  %v5484 = vand.u32 %v683, 15
  %v5485 = vand.u32 %v684, 15
  %v5486 = vand.u32 %v685, 15
  %v5487 = vand.u32 %v686, 15
  %v5488 = vand.u32 %v687, 15
  %v5489 = vand.u32 %v688, 15
  %v5490 = vand.u32 %v689, 15
  %v5491 = vand.u32 %v690, 15
  %v5492 = vand.u32 %v691, 15
  %v5493 = vand.u32 %v692, 15
  %v5494 = vand.u32 %v693, 15
  %v5495 = vand.u32 %v694, 15
  %v5496 = vand.u32 %v695, 15
  %v5497 = vand.u32 %v696, 15
  %v5498 = vand.u32 %v697, 15
  %v5499 = vand.u32 %v698, 15
  %v5500 = vand.u32 %v3069, 15
  %v5501 = vand.u32 %v4375, 15
  %vm5502 = vcmp.ne.s32.totalorder %v5438, 15
  %vm5503 = vcmp.ne.s32.totalorder %v5439, 15
  %vm5504 = vcmp.ne.s32.totalorder %v5440, 15
  %vm5505 = vcmp.ne.s32.totalorder %v5441, 15
  %vm5506 = vcmp.ne.s32.totalorder %v5442, 15
  %vm5507 = vcmp.ne.s32.totalorder %v5443, 15
  %vm5508 = vcmp.ne.s32.totalorder %v5444, 15
  %vm5509 = vcmp.ne.s32.totalorder %v5445, 15
  %vm5510 = vcmp.ne.s32.totalorder %v5446, 15
  %vm5511 = vcmp.ne.s32.totalorder %v5447, 15
  %vm5512 = vcmp.ne.s32.totalorder %v5448, 15
  %vm5513 = vcmp.ne.s32.totalorder %v5449, 15
  %vm5514 = vcmp.ne.s32.totalorder %v5450, 15
  %vm5515 = vcmp.ne.s32.totalorder %v5451, 15
  %vm5516 = vcmp.ne.s32.totalorder %v5452, 15
  %vm5517 = vcmp.ne.s32.totalorder %v5453, 15
  %vm5518 = vcmp.ne.s32.totalorder %v5454, 15
  %vm5519 = vcmp.ne.s32.totalorder %v5455, 15
  %vm5520 = vcmp.ne.s32.totalorder %v5456, 15
  %vm5521 = vcmp.ne.s32.totalorder %v5457, 15
  %vm5522 = vcmp.ne.s32.totalorder %v5458, 15
  %vm5523 = vcmp.ne.s32.totalorder %v5459, 15
  %vm5524 = vcmp.ne.s32.totalorder %v5460, 15
  %vm5525 = vcmp.ne.s32.totalorder %v5461, 15
  %vm5526 = vcmp.ne.s32.totalorder %v5462, 15
  %vm5527 = vcmp.ne.s32.totalorder %v5463, 15
  %vm5528 = vcmp.ne.s32.totalorder %v5464, 15
  %vm5529 = vcmp.ne.s32.totalorder %v5465, 15
  %vm5530 = vcmp.ne.s32.totalorder %v5466, 15
  %vm5531 = vcmp.ne.s32.totalorder %v5467, 15
  %vm5532 = vcmp.ne.s32.totalorder %v5468, 15
  %vm5533 = vcmp.ne.s32.totalorder %v5469, 15
  %vm5534 = vcmp.ne.s32.totalorder %v5470, 15
  %vm5535 = vcmp.ne.s32.totalorder %v5471, 15
  %vm5536 = vcmp.ne.s32.totalorder %v5472, 15
  %vm5537 = vcmp.ne.s32.totalorder %v5473, 15
  %vm5538 = vcmp.ne.s32.totalorder %v5474, 15
  %vm5539 = vcmp.ne.s32.totalorder %v5475, 15
  %vm5540 = vcmp.ne.s32.totalorder %v5476, 15
  %vm5541 = vcmp.ne.s32.totalorder %v5477, 15
  %vm5542 = vcmp.ne.s32.totalorder %v5478, 15
  %vm5543 = vcmp.ne.s32.totalorder %v5479, 15
  %vm5544 = vcmp.ne.s32.totalorder %v5480, 15
  %vm5545 = vcmp.ne.s32.totalorder %v5481, 15
  %vm5546 = vcmp.ne.s32.totalorder %v5482, 15
  %vm5547 = vcmp.ne.s32.totalorder %v5483, 15
  %vm5548 = vcmp.ne.s32.totalorder %v5484, 15
  %vm5549 = vcmp.ne.s32.totalorder %v5485, 15
  %vm5550 = vcmp.ne.s32.totalorder %v5486, 15
  %vm5551 = vcmp.ne.s32.totalorder %v5487, 15
  %vm5552 = vcmp.ne.s32.totalorder %v5488, 15
  %vm5553 = vcmp.ne.s32.totalorder %v5489, 15
  %vm5554 = vcmp.ne.s32.totalorder %v5490, 15
  %vm5555 = vcmp.ne.s32.totalorder %v5491, 15
  %vm5556 = vcmp.ne.s32.totalorder %v5492, 15
  %vm5557 = vcmp.ne.s32.totalorder %v5493, 15
  %vm5558 = vcmp.ne.s32.totalorder %v5494, 15
  %vm5559 = vcmp.ne.s32.totalorder %v5495, 15
  %vm5560 = vcmp.ne.s32.totalorder %v5496, 15
  %vm5561 = vcmp.ne.s32.totalorder %v5497, 15
  %vm5562 = vcmp.ne.s32.totalorder %v5498, 15
  %vm5563 = vcmp.ne.s32.totalorder %v5499, 15
  %vm5564 = vcmp.ne.s32.totalorder %v5500, 15
  %vm5565 = vcmp.ne.s32.totalorder %v5501, 15
  %v5566 = vsel %vm5502, 1, 0
  %v5567 = vsel %vm5503, 1, 0
  %v5568 = vsel %vm5504, 1, 0
  %v5569 = vsel %vm5505, 1, 0
  %v5570 = vsel %vm5506, 1, 0
  %v5571 = vsel %vm5507, 1, 0
  %v5572 = vsel %vm5508, 1, 0
  %v5573 = vsel %vm5509, 1, 0
  %v5574 = vsel %vm5510, 1, 0
  %v5575 = vsel %vm5511, 1, 0
  %v5576 = vsel %vm5512, 1, 0
  %v5577 = vsel %vm5513, 1, 0
  %v5578 = vsel %vm5514, 1, 0
  %v5579 = vsel %vm5515, 1, 0
  %v5580 = vsel %vm5516, 1, 0
  %v5581 = vsel %vm5517, 1, 0
  %v5582 = vsel %vm5518, 1, 0
  %v5583 = vsel %vm5519, 1, 0
  %v5584 = vsel %vm5520, 1, 0
  %v5585 = vsel %vm5521, 1, 0
  %v5586 = vsel %vm5522, 1, 0
  %v5587 = vsel %vm5523, 1, 0
  %v5588 = vsel %vm5524, 1, 0
  %v5589 = vsel %vm5525, 1, 0
  %v5590 = vsel %vm5526, 1, 0
  %v5591 = vsel %vm5527, 1, 0
  %v5592 = vsel %vm5528, 1, 0
  %v5593 = vsel %vm5529, 1, 0
  %v5594 = vsel %vm5530, 1, 0
  %v5595 = vsel %vm5531, 1, 0
  %v5596 = vsel %vm5532, 1, 0
  %v5597 = vsel %vm5533, 1, 0
  %v5598 = vsel %vm5534, 1, 0
  %v5599 = vsel %vm5535, 1, 0
  %v5600 = vsel %vm5536, 1, 0
  %v5601 = vsel %vm5537, 1, 0
  %v5602 = vsel %vm5538, 1, 0
  %v5603 = vsel %vm5539, 1, 0
  %v5604 = vsel %vm5540, 1, 0
  %v5605 = vsel %vm5541, 1, 0
  %v5606 = vsel %vm5542, 1, 0
  %v5607 = vsel %vm5543, 1, 0
  %v5608 = vsel %vm5544, 1, 0
  %v5609 = vsel %vm5545, 1, 0
  %v5610 = vsel %vm5546, 1, 0
  %v5611 = vsel %vm5547, 1, 0
  %v5612 = vsel %vm5548, 1, 0
  %v5613 = vsel %vm5549, 1, 0
  %v5614 = vsel %vm5550, 1, 0
  %v5615 = vsel %vm5551, 1, 0
  %v5616 = vsel %vm5552, 1, 0
  %v5617 = vsel %vm5553, 1, 0
  %v5618 = vsel %vm5554, 1, 0
  %v5619 = vsel %vm5555, 1, 0
  %v5620 = vsel %vm5556, 1, 0
  %v5621 = vsel %vm5557, 1, 0
  %v5622 = vsel %vm5558, 1, 0
  %v5623 = vsel %vm5559, 1, 0
  %v5624 = vsel %vm5560, 1, 0
  %v5625 = vsel %vm5561, 1, 0
  %v5626 = vsel %vm5562, 1, 0
  %v5627 = vsel %vm5563, 1, 0
  %v5628 = vsel %vm5564, 1, 0
  %v5629 = vsel %vm5565, 1, 0
  %vm5630 = vcmp.eq.s32.totalorder %v5566, 1
  %vm5631 = vcmp.eq.s32.totalorder %v5567, 1
  %vm5632 = vcmp.eq.s32.totalorder %v5568, 1
  %vm5633 = vcmp.eq.s32.totalorder %v5569, 1
  %vm5634 = vcmp.eq.s32.totalorder %v5570, 1
  %vm5635 = vcmp.eq.s32.totalorder %v5571, 1
  %vm5636 = vcmp.eq.s32.totalorder %v5572, 1
  %vm5637 = vcmp.eq.s32.totalorder %v5573, 1
  %vm5638 = vcmp.eq.s32.totalorder %v5574, 1
  %vm5639 = vcmp.eq.s32.totalorder %v5575, 1
  %vm5640 = vcmp.eq.s32.totalorder %v5576, 1
  %vm5641 = vcmp.eq.s32.totalorder %v5577, 1
  %vm5642 = vcmp.eq.s32.totalorder %v5578, 1
  %vm5643 = vcmp.eq.s32.totalorder %v5579, 1
  %vm5644 = vcmp.eq.s32.totalorder %v5580, 1
  %vm5645 = vcmp.eq.s32.totalorder %v5581, 1
  %vm5646 = vcmp.eq.s32.totalorder %v5582, 1
  %vm5647 = vcmp.eq.s32.totalorder %v5583, 1
  %vm5648 = vcmp.eq.s32.totalorder %v5584, 1
  %vm5649 = vcmp.eq.s32.totalorder %v5585, 1
  %vm5650 = vcmp.eq.s32.totalorder %v5586, 1
  %vm5651 = vcmp.eq.s32.totalorder %v5587, 1
  %vm5652 = vcmp.eq.s32.totalorder %v5588, 1
  %vm5653 = vcmp.eq.s32.totalorder %v5589, 1
  %vm5654 = vcmp.eq.s32.totalorder %v5590, 1
  %vm5655 = vcmp.eq.s32.totalorder %v5591, 1
  %vm5656 = vcmp.eq.s32.totalorder %v5592, 1
  %vm5657 = vcmp.eq.s32.totalorder %v5593, 1
  %vm5658 = vcmp.eq.s32.totalorder %v5594, 1
  %vm5659 = vcmp.eq.s32.totalorder %v5595, 1
  %vm5660 = vcmp.eq.s32.totalorder %v5596, 1
  %vm5661 = vcmp.eq.s32.totalorder %v5597, 1
  %vm5662 = vcmp.eq.s32.totalorder %v5598, 1
  %vm5663 = vcmp.eq.s32.totalorder %v5599, 1
  %vm5664 = vcmp.eq.s32.totalorder %v5600, 1
  %vm5665 = vcmp.eq.s32.totalorder %v5601, 1
  %vm5666 = vcmp.eq.s32.totalorder %v5602, 1
  %vm5667 = vcmp.eq.s32.totalorder %v5603, 1
  %vm5668 = vcmp.eq.s32.totalorder %v5604, 1
  %vm5669 = vcmp.eq.s32.totalorder %v5605, 1
  %vm5670 = vcmp.eq.s32.totalorder %v5606, 1
  %vm5671 = vcmp.eq.s32.totalorder %v5607, 1
  %vm5672 = vcmp.eq.s32.totalorder %v5608, 1
  %vm5673 = vcmp.eq.s32.totalorder %v5609, 1
  %vm5674 = vcmp.eq.s32.totalorder %v5610, 1
  %vm5675 = vcmp.eq.s32.totalorder %v5611, 1
  %vm5676 = vcmp.eq.s32.totalorder %v5612, 1
  %vm5677 = vcmp.eq.s32.totalorder %v5613, 1
  %vm5678 = vcmp.eq.s32.totalorder %v5614, 1
  %vm5679 = vcmp.eq.s32.totalorder %v5615, 1
  %vm5680 = vcmp.eq.s32.totalorder %v5616, 1
  %vm5681 = vcmp.eq.s32.totalorder %v5617, 1
  %vm5682 = vcmp.eq.s32.totalorder %v5618, 1
  %vm5683 = vcmp.eq.s32.totalorder %v5619, 1
  %vm5684 = vcmp.eq.s32.totalorder %v5620, 1
  %vm5685 = vcmp.eq.s32.totalorder %v5621, 1
  %vm5686 = vcmp.eq.s32.totalorder %v5622, 1
  %vm5687 = vcmp.eq.s32.totalorder %v5623, 1
  %vm5688 = vcmp.eq.s32.totalorder %v5624, 1
  %vm5689 = vcmp.eq.s32.totalorder %v5625, 1
  %vm5690 = vcmp.eq.s32.totalorder %v5626, 1
  %vm5691 = vcmp.eq.s32.totalorder %v5627, 1
  %vm5692 = vcmp.eq.s32.totalorder %v5628, 1
  %vm5693 = vcmp.eq.s32.totalorder %v5629, 1
  %v5694 = vsel %vm5630, %v5374, 0.0
  %v5695 = vsel %vm5631, %v5375, 0.0
  %v5696 = vsel %vm5632, %v5376, 0.0
  %v5697 = vsel %vm5633, %v5377, 0.0
  %v5698 = vsel %vm5634, %v5378, 0.0
  %v5699 = vsel %vm5635, %v5379, 0.0
  %v5700 = vsel %vm5636, %v5380, 0.0
  %v5701 = vsel %vm5637, %v5381, 0.0
  %v5702 = vsel %vm5638, %v5382, 0.0
  %v5703 = vsel %vm5639, %v5383, 0.0
  %v5704 = vsel %vm5640, %v5384, 0.0
  %v5705 = vsel %vm5641, %v5385, 0.0
  %v5706 = vsel %vm5642, %v5386, 0.0
  %v5707 = vsel %vm5643, %v5387, 0.0
  %v5708 = vsel %vm5644, %v5388, 0.0
  %v5709 = vsel %vm5645, %v5389, 0.0
  %v5710 = vsel %vm5646, %v5390, 0.0
  %v5711 = vsel %vm5647, %v5391, 0.0
  %v5712 = vsel %vm5648, %v5392, 0.0
  %v5713 = vsel %vm5649, %v5393, 0.0
  %v5714 = vsel %vm5650, %v5394, 0.0
  %v5715 = vsel %vm5651, %v5395, 0.0
  %v5716 = vsel %vm5652, %v5396, 0.0
  %v5717 = vsel %vm5653, %v5397, 0.0
  %v5718 = vsel %vm5654, %v5398, 0.0
  %v5719 = vsel %vm5655, %v5399, 0.0
  %v5720 = vsel %vm5656, %v5400, 0.0
  %v5721 = vsel %vm5657, %v5401, 0.0
  %v5722 = vsel %vm5658, %v5402, 0.0
  %v5723 = vsel %vm5659, %v5403, 0.0
  %v5724 = vsel %vm5660, %v5404, 0.0
  %v5725 = vsel %vm5661, %v5405, 0.0
  %v5726 = vsel %vm5662, %v5406, 0.0
  %v5727 = vsel %vm5663, %v5407, 0.0
  %v5728 = vsel %vm5664, %v5408, 0.0
  %v5729 = vsel %vm5665, %v5409, 0.0
  %v5730 = vsel %vm5666, %v5410, 0.0
  %v5731 = vsel %vm5667, %v5411, 0.0
  %v5732 = vsel %vm5668, %v5412, 0.0
  %v5733 = vsel %vm5669, %v5413, 0.0
  %v5734 = vsel %vm5670, %v5414, 0.0
  %v5735 = vsel %vm5671, %v5415, 0.0
  %v5736 = vsel %vm5672, %v5416, 0.0
  %v5737 = vsel %vm5673, %v5417, 0.0
  %v5738 = vsel %vm5674, %v5418, 0.0
  %v5739 = vsel %vm5675, %v5419, 0.0
  %v5740 = vsel %vm5676, %v5420, 0.0
  %v5741 = vsel %vm5677, %v5421, 0.0
  %v5742 = vsel %vm5678, %v5422, 0.0
  %v5743 = vsel %vm5679, %v5423, 0.0
  %v5744 = vsel %vm5680, %v5424, 0.0
  %v5745 = vsel %vm5681, %v5425, 0.0
  %v5746 = vsel %vm5682, %v5426, 0.0
  %v5747 = vsel %vm5683, %v5427, 0.0
  %v5748 = vsel %vm5684, %v5428, 0.0
  %v5749 = vsel %vm5685, %v5429, 0.0
  %v5750 = vsel %vm5686, %v5430, 0.0
  %v5751 = vsel %vm5687, %v5431, 0.0
  %v5752 = vsel %vm5688, %v5432, 0.0
  %v5753 = vsel %vm5689, %v5433, 0.0
  %v5754 = vsel %vm5690, %v5434, 0.0
  %v5755 = vsel %vm5691, %v5435, 0.0
  %v5756 = vsel %vm5692, %v5436, 0.0
  %v5757 = vsel %vm5693, %v5437, 0.0
  %v5758 = vpack.c.bf16 %v5695, %v5694
  %v5759 = vpack.c.bf16 %v5697, %v5696
  %v5760 = vpack.c.bf16 %v5699, %v5698
  %v5761 = vpack.c.bf16 %v5701, %v5700
  %v5762 = vpack.c.bf16 %v5703, %v5702
  %v5763 = vpack.c.bf16 %v5705, %v5704
  %v5764 = vpack.c.bf16 %v5707, %v5706
  %v5765 = vpack.c.bf16 %v5709, %v5708
  %v5766 = vpack.c.bf16 %v5711, %v5710
  %v5767 = vpack.c.bf16 %v5713, %v5712
  %v5768 = vpack.c.bf16 %v5715, %v5714
  %v5769 = vpack.c.bf16 %v5717, %v5716
  %v5770 = vpack.c.bf16 %v5719, %v5718
  %v5771 = vpack.c.bf16 %v5721, %v5720
  %v5772 = vpack.c.bf16 %v5723, %v5722
  %v5773 = vpack.c.bf16 %v5725, %v5724
  %v5774 = vpack.c.bf16 %v5727, %v5726
  %v5775 = vpack.c.bf16 %v5729, %v5728
  %v5776 = vpack.c.bf16 %v5731, %v5730
  %v5777 = vpack.c.bf16 %v5733, %v5732
  %v5778 = vpack.c.bf16 %v5735, %v5734
  %v5779 = vpack.c.bf16 %v5737, %v5736
  %v5780 = vpack.c.bf16 %v5739, %v5738
  %v5781 = vpack.c.bf16 %v5741, %v5740
  %v5782 = vpack.c.bf16 %v5743, %v5742
  %v5783 = vpack.c.bf16 %v5745, %v5744
  %v5784 = vpack.c.bf16 %v5747, %v5746
  %v5785 = vpack.c.bf16 %v5749, %v5748
  %v5786 = vpack.c.bf16 %v5751, %v5750
  %v5787 = vpack.c.bf16 %v5753, %v5752
  %v5788 = vpack.c.bf16 %v5755, %v5754
  %v5789 = vpack.c.bf16 %v5757, %v5756
  %s5790 = scalar_lea.vmem %s1, 10
  %v5791 = vld [vmem:[%s5790] sm:$0x3]
  %v5793 = vsel %vm116, %v5758, 0
  %v5796 = vsel %vm116, %v5759, 0
  %v5799 = vsel %vm116, %v5760, 0
  %v5802 = vsel %vm116, %v5761, 0
  %v5805 = vsel %vm116, %v5762, 0
  %v5808 = vsel %vm116, %v5763, 0
  %v5811 = vsel %vm116, %v5764, 0
  %v5814 = vsel %vm116, %v5765, 0
  %v5817 = vsel %vm116, %v5766, 0
  %v5820 = vsel %vm116, %v5767, 0
  %v5823 = vsel %vm116, %v5768, 0
  %v5826 = vsel %vm116, %v5769, 0
  %v5829 = vsel %vm116, %v5770, 0
  %v5832 = vsel %vm116, %v5771, 0
  %v5835 = vsel %vm116, %v5772, 0
  %v5838 = vsel %vm116, %v5773, 0
  %v5841 = vsel %vm116, %v5774, 0
  %v5844 = vsel %vm116, %v5775, 0
  %v5847 = vsel %vm116, %v5776, 0
  %v5850 = vsel %vm116, %v5777, 0
  %v5853 = vsel %vm116, %v5778, 0
  %v5856 = vsel %vm116, %v5779, 0
  %v5859 = vsel %vm116, %v5780, 0
  %v5862 = vsel %vm116, %v5781, 0
  %v5865 = vsel %vm116, %v5782, 0
  %v5868 = vsel %vm116, %v5783, 0
  %v5871 = vsel %vm116, %v5784, 0
  %v5874 = vsel %vm116, %v5785, 0
  %v5877 = vsel %vm116, %v5786, 0
  %v5880 = vsel %vm116, %v5787, 0
  %v5883 = vsel %vm116, %v5788, 0
  %v5886 = vsel %vm116, %v5789, 0
  %v5889 = vand.u32 %v5791, %v216
  %5891 = vmatprep.subr.bf16.mxu0 0
  %5892 = vmatpush1.bf16.msra.mxu0 %v5889
  %5893 = vmatprep.subr.bf16.mxu0 0
  %5894 = vmatpush1.bf16.msra.mxu0 0
  %5895 = vmatprep.subr.bf16.mxu0 0
  %5896 = vmatpush1.bf16.msra.mxu0 0
  %5897 = vmatprep.subr.bf16.mxu0 0
  %5898 = vmatpush1.bf16.msra.mxu0 0
  %5899 = vmatprep.subr.bf16.mxu0 0
  %5900 = vmatpush1.bf16.msra.mxu0 0
  %5901 = vmatprep.subr.bf16.mxu0 0
  %5902 = vmatpush1.bf16.msra.mxu0 0
  %5903 = vmatprep.subr.bf16.mxu0 0
  %5904 = vmatpush1.bf16.msra.mxu0 0
  %5905 = vmatprep.subr.bf16.mxu0 0
  %5906 = vmatpush1.bf16.msra.mxu0 0
  %5907 = vmatprep.subr.bf16.mxu0 0
  %5908 = vmatpush1.bf16.msra.mxu0 0
  %5909 = vmatprep.subr.bf16.mxu0 0
  %5910 = vmatpush1.bf16.msra.mxu0 0
  %5911 = vmatprep.subr.bf16.mxu0 0
  %5912 = vmatpush1.bf16.msra.mxu0 0
  %5913 = vmatprep.subr.bf16.mxu0 0
  %5914 = vmatpush1.bf16.msra.mxu0 0
  %5915 = vmatprep.subr.bf16.mxu0 0
  %5916 = vmatpush1.bf16.msra.mxu0 0
  %5917 = vmatprep.subr.bf16.mxu0 0
  %5918 = vmatpush1.bf16.msra.mxu0 0
  %5919 = vmatprep.subr.bf16.mxu0 0
  %5920 = vmatpush1.bf16.msra.mxu0 0
  %5921 = vmatprep.subr.bf16.mxu0 0
  %5922 = vmatpush1.bf16.msra.mxu0 0
  %5923 = vmatprep.mubr.bf16.mxu0 0
  %5924 = vmatmul.mubr.bf16.gmra.mrb[0].mxu0 %v5793
  %v5925 = vpop.f32.mrb[0].mxu0
  %v5926 = vadd.f32 0.0, %v5925
  %v5927 = vpop.f32.mrb[0].mxu0
  %v5928 = vpop.f32.mrb[0].mxu0
  %v5929 = vadd.f32 0.0, %v5928
  %v5930 = vpop.f32.mrb[0].mxu0
  %5931 = vmatprep.mubr.bf16.mxu0 0
  %5932 = vmatmul.mubr.bf16.gmra.mrb[0].mxu0 %v5796
  %v5933 = vpop.f32.mrb[0].mxu0
  %v5934 = vadd.f32 0.0, %v5933
  %v5935 = vpop.f32.mrb[0].mxu0
  %v5936 = vpop.f32.mrb[0].mxu0
  %v5937 = vadd.f32 0.0, %v5936
  %v5938 = vpop.f32.mrb[0].mxu0
  %5939 = vmatprep.mubr.bf16.mxu0 0
  %5940 = vmatmul.mubr.bf16.gmra.mrb[0].mxu0 %v5799
  %v5941 = vpop.f32.mrb[0].mxu0
  %v5942 = vadd.f32 0.0, %v5941
  %v5943 = vpop.f32.mrb[0].mxu0
  %v5944 = vpop.f32.mrb[0].mxu0
  %v5945 = vadd.f32 0.0, %v5944
  %v5946 = vpop.f32.mrb[0].mxu0
  %5947 = vmatprep.mubr.bf16.mxu0 0
  %5948 = vmatmul.mubr.bf16.gmra.mrb[0].mxu0 %v5802
  %v5949 = vpop.f32.mrb[0].mxu0
  %v5950 = vadd.f32 0.0, %v5949
  %v5951 = vpop.f32.mrb[0].mxu0
  %v5952 = vpop.f32.mrb[0].mxu0
  %v5953 = vadd.f32 0.0, %v5952
  %v5954 = vpop.f32.mrb[0].mxu0
  %5955 = vmatprep.mubr.bf16.mxu0 0
  %5956 = vmatmul.mubr.bf16.gmra.mrb[0].mxu0 %v5805
  %v5957 = vpop.f32.mrb[0].mxu0
  %v5958 = vadd.f32 0.0, %v5957
  %v5959 = vpop.f32.mrb[0].mxu0
  %v5960 = vpop.f32.mrb[0].mxu0
  %v5961 = vadd.f32 0.0, %v5960
  %v5962 = vpop.f32.mrb[0].mxu0
  %5963 = vmatprep.mubr.bf16.mxu0 0
  %5964 = vmatmul.mubr.bf16.gmra.mrb[0].mxu0 %v5808
  %v5965 = vpop.f32.mrb[0].mxu0
  %v5966 = vadd.f32 0.0, %v5965
  %v5967 = vpop.f32.mrb[0].mxu0
  %v5968 = vpop.f32.mrb[0].mxu0
  %v5969 = vadd.f32 0.0, %v5968
  %v5970 = vpop.f32.mrb[0].mxu0
  %5971 = vmatprep.mubr.bf16.mxu0 0
  %5972 = vmatmul.mubr.bf16.gmra.mrb[0].mxu0 %v5811
  %v5973 = vpop.f32.mrb[0].mxu0
  %v5974 = vadd.f32 0.0, %v5973
  %v5975 = vpop.f32.mrb[0].mxu0
  %v5976 = vpop.f32.mrb[0].mxu0
  %v5977 = vadd.f32 0.0, %v5976
  %v5978 = vpop.f32.mrb[0].mxu0
  %5979 = vmatprep.mubr.bf16.mxu0 0
  %5980 = vmatmul.mubr.bf16.gmra.mrb[0].mxu0 %v5814
  %v5981 = vpop.f32.mrb[0].mxu0
  %v5982 = vadd.f32 0.0, %v5981
  %v5983 = vpop.f32.mrb[0].mxu0
  %v5984 = vpop.f32.mrb[0].mxu0
  %v5985 = vadd.f32 0.0, %v5984
  %v5986 = vpop.f32.mrb[0].mxu0
  %5987 = vmatprep.mubr.bf16.mxu0 0
  %5988 = vmatmul.mubr.bf16.gmra.mrb[0].mxu0 %v5817
  %v5989 = vpop.f32.mrb[0].mxu0
  %v5990 = vadd.f32 0.0, %v5989
  %v5991 = vpop.f32.mrb[0].mxu0
  %v5992 = vpop.f32.mrb[0].mxu0
  %v5993 = vadd.f32 0.0, %v5992
  %v5994 = vpop.f32.mrb[0].mxu0
  %5995 = vmatprep.mubr.bf16.mxu0 0
  %5996 = vmatmul.mubr.bf16.gmra.mrb[0].mxu0 %v5820
  %v5997 = vpop.f32.mrb[0].mxu0
  %v5998 = vadd.f32 0.0, %v5997
  %v5999 = vpop.f32.mrb[0].mxu0
  %v6000 = vpop.f32.mrb[0].mxu0
  %v6001 = vadd.f32 0.0, %v6000
  %v6002 = vpop.f32.mrb[0].mxu0
  %6003 = vmatprep.mubr.bf16.mxu0 0
  %6004 = vmatmul.mubr.bf16.gmra.mrb[0].mxu0 %v5823
  %v6005 = vpop.f32.mrb[0].mxu0
  %v6006 = vadd.f32 0.0, %v6005
  %v6007 = vpop.f32.mrb[0].mxu0
  %v6008 = vpop.f32.mrb[0].mxu0
  %v6009 = vadd.f32 0.0, %v6008
  %v6010 = vpop.f32.mrb[0].mxu0
  %6011 = vmatprep.mubr.bf16.mxu0 0
  %6012 = vmatmul.mubr.bf16.gmra.mrb[0].mxu0 %v5826
  %v6013 = vpop.f32.mrb[0].mxu0
  %v6014 = vadd.f32 0.0, %v6013
  %v6015 = vpop.f32.mrb[0].mxu0
  %v6016 = vpop.f32.mrb[0].mxu0
  %v6017 = vadd.f32 0.0, %v6016
  %v6018 = vpop.f32.mrb[0].mxu0
  %6019 = vmatprep.mubr.bf16.mxu0 0
  %6020 = vmatmul.mubr.bf16.gmra.mrb[0].mxu0 %v5829
  %v6021 = vpop.f32.mrb[0].mxu0
  %v6022 = vadd.f32 0.0, %v6021
  %v6023 = vpop.f32.mrb[0].mxu0
  %v6024 = vpop.f32.mrb[0].mxu0
  %v6025 = vadd.f32 0.0, %v6024
  %v6026 = vpop.f32.mrb[0].mxu0
  %6027 = vmatprep.mubr.bf16.mxu0 0
  %6028 = vmatmul.mubr.bf16.gmra.mrb[0].mxu0 %v5832
  %v6029 = vpop.f32.mrb[0].mxu0
  %v6030 = vadd.f32 0.0, %v6029
  %v6031 = vpop.f32.mrb[0].mxu0
  %v6032 = vpop.f32.mrb[0].mxu0
  %v6033 = vadd.f32 0.0, %v6032
  %v6034 = vpop.f32.mrb[0].mxu0
  %6035 = vmatprep.mubr.bf16.mxu0 0
  %6036 = vmatmul.mubr.bf16.gmra.mrb[0].mxu0 %v5835
  %v6037 = vpop.f32.mrb[0].mxu0
  %v6038 = vadd.f32 0.0, %v6037
  %v6039 = vpop.f32.mrb[0].mxu0
  %v6040 = vpop.f32.mrb[0].mxu0
  %v6041 = vadd.f32 0.0, %v6040
  %v6042 = vpop.f32.mrb[0].mxu0
  %6043 = vmatprep.mubr.bf16.mxu0 0
  %6044 = vmatmul.mubr.bf16.gmra.mrb[0].mxu0 %v5838
  %v6045 = vpop.f32.mrb[0].mxu0
  %v6046 = vadd.f32 0.0, %v6045
  %v6047 = vpop.f32.mrb[0].mxu0
  %v6048 = vpop.f32.mrb[0].mxu0
  %v6049 = vadd.f32 0.0, %v6048
  %v6050 = vpop.f32.mrb[0].mxu0
  %6051 = vmatprep.mubr.bf16.mxu0 0
  %6052 = vmatmul.mubr.bf16.gmra.mrb[0].mxu0 %v5841
  %v6053 = vpop.f32.mrb[0].mxu0
  %v6054 = vadd.f32 0.0, %v6053
  %v6055 = vpop.f32.mrb[0].mxu0
  %v6056 = vpop.f32.mrb[0].mxu0
  %v6057 = vadd.f32 0.0, %v6056
  %v6058 = vpop.f32.mrb[0].mxu0
  %6059 = vmatprep.mubr.bf16.mxu0 0
  %6060 = vmatmul.mubr.bf16.gmra.mrb[0].mxu0 %v5844
  %v6061 = vpop.f32.mrb[0].mxu0
  %v6062 = vadd.f32 0.0, %v6061
  %v6063 = vpop.f32.mrb[0].mxu0
  %v6064 = vpop.f32.mrb[0].mxu0
  %v6065 = vadd.f32 0.0, %v6064
  %v6066 = vpop.f32.mrb[0].mxu0
  %6067 = vmatprep.mubr.bf16.mxu0 0
  %6068 = vmatmul.mubr.bf16.gmra.mrb[0].mxu0 %v5847
  %v6069 = vpop.f32.mrb[0].mxu0
  %v6070 = vadd.f32 0.0, %v6069
  %v6071 = vpop.f32.mrb[0].mxu0
  %v6072 = vpop.f32.mrb[0].mxu0
  %v6073 = vadd.f32 0.0, %v6072
  %v6074 = vpop.f32.mrb[0].mxu0
  %6075 = vmatprep.mubr.bf16.mxu0 0
  %6076 = vmatmul.mubr.bf16.gmra.mrb[0].mxu0 %v5850
  %v6077 = vpop.f32.mrb[0].mxu0
  %v6078 = vadd.f32 0.0, %v6077
  %v6079 = vpop.f32.mrb[0].mxu0
  %v6080 = vpop.f32.mrb[0].mxu0
  %v6081 = vadd.f32 0.0, %v6080
  %v6082 = vpop.f32.mrb[0].mxu0
  %6083 = vmatprep.mubr.bf16.mxu0 0
  %6084 = vmatmul.mubr.bf16.gmra.mrb[0].mxu0 %v5853
  %v6085 = vpop.f32.mrb[0].mxu0
  %v6086 = vadd.f32 0.0, %v6085
  %v6087 = vpop.f32.mrb[0].mxu0
  %v6088 = vpop.f32.mrb[0].mxu0
  %v6089 = vadd.f32 0.0, %v6088
  %v6090 = vpop.f32.mrb[0].mxu0
  %6091 = vmatprep.mubr.bf16.mxu0 0
  %6092 = vmatmul.mubr.bf16.gmra.mrb[0].mxu0 %v5856
  %v6093 = vpop.f32.mrb[0].mxu0
  %v6094 = vadd.f32 0.0, %v6093
  %v6095 = vpop.f32.mrb[0].mxu0
  %v6096 = vpop.f32.mrb[0].mxu0
  %v6097 = vadd.f32 0.0, %v6096
  %v6098 = vpop.f32.mrb[0].mxu0
  %6099 = vmatprep.mubr.bf16.mxu0 0
  %6100 = vmatmul.mubr.bf16.gmra.mrb[0].mxu0 %v5859
  %v6101 = vpop.f32.mrb[0].mxu0
  %v6102 = vadd.f32 0.0, %v6101
  %v6103 = vpop.f32.mrb[0].mxu0
  %v6104 = vpop.f32.mrb[0].mxu0
  %v6105 = vadd.f32 0.0, %v6104
  %v6106 = vpop.f32.mrb[0].mxu0
  %6107 = vmatprep.mubr.bf16.mxu0 0
  %6108 = vmatmul.mubr.bf16.gmra.mrb[0].mxu0 %v5862
  %v6109 = vpop.f32.mrb[0].mxu0
  %v6110 = vadd.f32 0.0, %v6109
  %v6111 = vpop.f32.mrb[0].mxu0
  %v6112 = vpop.f32.mrb[0].mxu0
  %v6113 = vadd.f32 0.0, %v6112
  %v6114 = vpop.f32.mrb[0].mxu0
  %6115 = vmatprep.mubr.bf16.mxu0 0
  %6116 = vmatmul.mubr.bf16.gmra.mrb[0].mxu0 %v5865
  %v6117 = vpop.f32.mrb[0].mxu0
  %v6118 = vadd.f32 0.0, %v6117
  %v6119 = vpop.f32.mrb[0].mxu0
  %v6120 = vpop.f32.mrb[0].mxu0
  %v6121 = vadd.f32 0.0, %v6120
  %v6122 = vpop.f32.mrb[0].mxu0
  %6123 = vmatprep.mubr.bf16.mxu0 0
  %6124 = vmatmul.mubr.bf16.gmra.mrb[0].mxu0 %v5868
  %v6125 = vpop.f32.mrb[0].mxu0
  %v6126 = vadd.f32 0.0, %v6125
  %v6127 = vpop.f32.mrb[0].mxu0
  %v6128 = vpop.f32.mrb[0].mxu0
  %v6129 = vadd.f32 0.0, %v6128
  %v6130 = vpop.f32.mrb[0].mxu0
  %6131 = vmatprep.mubr.bf16.mxu0 0
  %6132 = vmatmul.mubr.bf16.gmra.mrb[0].mxu0 %v5871
  %v6133 = vpop.f32.mrb[0].mxu0
  %v6134 = vadd.f32 0.0, %v6133
  %v6135 = vpop.f32.mrb[0].mxu0
  %v6136 = vpop.f32.mrb[0].mxu0
  %v6137 = vadd.f32 0.0, %v6136
  %v6138 = vpop.f32.mrb[0].mxu0
  %6139 = vmatprep.mubr.bf16.mxu0 0
  %6140 = vmatmul.mubr.bf16.gmra.mrb[0].mxu0 %v5874
  %v6141 = vpop.f32.mrb[0].mxu0
  %v6142 = vadd.f32 0.0, %v6141
  %v6143 = vpop.f32.mrb[0].mxu0
  %v6144 = vpop.f32.mrb[0].mxu0
  %v6145 = vadd.f32 0.0, %v6144
  %v6146 = vpop.f32.mrb[0].mxu0
  %6147 = vmatprep.mubr.bf16.mxu0 0
  %6148 = vmatmul.mubr.bf16.gmra.mrb[0].mxu0 %v5877
  %v6149 = vpop.f32.mrb[0].mxu0
  %v6150 = vadd.f32 0.0, %v6149
  %v6151 = vpop.f32.mrb[0].mxu0
  %v6152 = vpop.f32.mrb[0].mxu0
  %v6153 = vadd.f32 0.0, %v6152
  %v6154 = vpop.f32.mrb[0].mxu0
  %6155 = vmatprep.mubr.bf16.mxu0 0
  %6156 = vmatmul.mubr.bf16.gmra.mrb[0].mxu0 %v5880
  %v6157 = vpop.f32.mrb[0].mxu0
  %v6158 = vadd.f32 0.0, %v6157
  %v6159 = vpop.f32.mrb[0].mxu0
  %v6160 = vpop.f32.mrb[0].mxu0
  %v6161 = vadd.f32 0.0, %v6160
  %v6162 = vpop.f32.mrb[0].mxu0
  %6163 = vmatprep.mubr.bf16.mxu0 0
  %6164 = vmatmul.mubr.bf16.gmra.mrb[0].mxu0 %v5883
  %v6165 = vpop.f32.mrb[0].mxu0
  %v6166 = vadd.f32 0.0, %v6165
  %v6167 = vpop.f32.mrb[0].mxu0
  %v6168 = vpop.f32.mrb[0].mxu0
  %v6169 = vadd.f32 0.0, %v6168
  %v6170 = vpop.f32.mrb[0].mxu0
  %6171 = vmatprep.mubr.bf16.mxu0 0
  %6172 = vmatmul.mubr.bf16.gmra.mrb[0].mxu0 %v5886
  %v6173 = vpop.f32.mrb[0].mxu0
  %v6174 = vadd.f32 0.0, %v6173
  %v6175 = vpop.f32.mrb[0].mxu0
  %v6176 = vpop.f32.mrb[0].mxu0
  %v6177 = vadd.f32 0.0, %v6176
  %v6178 = vpop.f32.mrb[0].mxu0
  %6179 = vdwg.mxu0
  %v6180 = vld [vmem:[#allocation2] sm:$0xff]
  %v6181 = vld [vmem:[#allocation2 + $0x8] sm:$0xff]
  %v6182 = vld [vmem:[#allocation2 + $0x10] sm:$0xff]
  %v6183 = vld [vmem:[#allocation2 + $0x18] sm:$0xff]
  %v6184 = vld [vmem:[#allocation2 + $0x20] sm:$0xff]
  %v6185 = vld [vmem:[#allocation2 + $0x28] sm:$0xff]
  %v6186 = vld [vmem:[#allocation2 + $0x30] sm:$0xff]
  %v6187 = vld [vmem:[#allocation2 + $0x38] sm:$0xff]
  %v6188 = vld [vmem:[#allocation2 + $0x40] sm:$0xff]
  %v6189 = vld [vmem:[#allocation2 + $0x48] sm:$0xff]
  %v6190 = vld [vmem:[#allocation2 + $0x50] sm:$0xff]
  %v6191 = vld [vmem:[#allocation2 + $0x58] sm:$0xff]
  %v6192 = vld [vmem:[#allocation2 + $0x60] sm:$0xff]
  %v6193 = vld [vmem:[#allocation2 + $0x68] sm:$0xff]
  %v6194 = vld [vmem:[#allocation2 + $0x70] sm:$0xff]
  %v6195 = vld [vmem:[#allocation2 + $0x78] sm:$0xff]
  %v6196 = vld [vmem:[#allocation2 + $0x80] sm:$0xff]
  %v6197 = vld [vmem:[#allocation2 + $0x88] sm:$0xff]
  %v6198 = vld [vmem:[#allocation2 + $0x90] sm:$0xff]
  %v6199 = vld [vmem:[#allocation2 + $0x98] sm:$0xff]
  %v6200 = vld [vmem:[#allocation2 + $0xa0] sm:$0xff]
  %v6201 = vld [vmem:[#allocation2 + $0xa8] sm:$0xff]
  %v6202 = vld [vmem:[#allocation2 + $0xb0] sm:$0xff]
  %v6203 = vld [vmem:[#allocation2 + $0xb8] sm:$0xff]
  %v6204 = vld [vmem:[#allocation2 + $0xc0] sm:$0xff]
  %v6205 = vld [vmem:[#allocation2 + $0xc8] sm:$0xff]
  %v6206 = vld [vmem:[#allocation2 + $0xd0] sm:$0xff]
  %v6207 = vld [vmem:[#allocation2 + $0xd8] sm:$0xff]
  %v6208 = vld [vmem:[#allocation2 + $0xe0] sm:$0xff]
  %v6209 = vld [vmem:[#allocation2 + $0xe8] sm:$0xff]
  %v6210 = vld [vmem:[#allocation2 + $0xf0] sm:$0xff]
  %v6211 = vld [vmem:[#allocation2 + $0xf8] sm:$0xff]
  %v6212 = vld [vmem:[#allocation2 + $0x100] sm:$0xff]
  %v6213 = vld [vmem:[#allocation2 + $0x108] sm:$0xff]
  %v6214 = vld [vmem:[#allocation2 + $0x110] sm:$0xff]
  %v6215 = vld [vmem:[#allocation2 + $0x118] sm:$0xff]
  %v6216 = vld [vmem:[#allocation2 + $0x120] sm:$0xff]
  %v6217 = vld [vmem:[#allocation2 + $0x128] sm:$0xff]
  %v6218 = vld [vmem:[#allocation2 + $0x130] sm:$0xff]
  %v6219 = vld [vmem:[#allocation2 + $0x138] sm:$0xff]
  %v6220 = vld [vmem:[#allocation2 + $0x140] sm:$0xff]
  %v6221 = vld [vmem:[#allocation2 + $0x148] sm:$0xff]
  %v6222 = vld [vmem:[#allocation2 + $0x150] sm:$0xff]
  %v6223 = vld [vmem:[#allocation2 + $0x158] sm:$0xff]
  %v6224 = vld [vmem:[#allocation2 + $0x160] sm:$0xff]
  %v6225 = vld [vmem:[#allocation2 + $0x168] sm:$0xff]
  %v6226 = vld [vmem:[#allocation2 + $0x170] sm:$0xff]
  %v6227 = vld [vmem:[#allocation2 + $0x178] sm:$0xff]
  %v6228 = vld [vmem:[#allocation2 + $0x180] sm:$0xff]
  %v6229 = vld [vmem:[#allocation2 + $0x188] sm:$0xff]
  %v6230 = vld [vmem:[#allocation2 + $0x190] sm:$0xff]
  %v6231 = vld [vmem:[#allocation2 + $0x198] sm:$0xff]
  %v6232 = vld [vmem:[#allocation2 + $0x1a0] sm:$0xff]
  %v6233 = vld [vmem:[#allocation2 + $0x1a8] sm:$0xff]
  %v6234 = vld [vmem:[#allocation2 + $0x1b0] sm:$0xff]
  %v6235 = vld [vmem:[#allocation2 + $0x1b8] sm:$0xff]
  %v6236 = vld [vmem:[#allocation2 + $0x1c0] sm:$0xff]
  %v6237 = vld [vmem:[#allocation2 + $0x1c8] sm:$0xff]
  %v6238 = vld [vmem:[#allocation2 + $0x1d0] sm:$0xff]
  %v6239 = vld [vmem:[#allocation2 + $0x1d8] sm:$0xff]
  %v6240 = vld [vmem:[#allocation2 + $0x1e0] sm:$0xff]
  %v6241 = vld [vmem:[#allocation2 + $0x1e8] sm:$0xff]
  %v6242 = vld [vmem:[#allocation2 + $0x1f0] sm:$0xff]
  %v6243 = vld [vmem:[#allocation2 + $0x1f8] sm:$0x7f]
  %v6244 = vadd.f32 %v6180, %v5926
  %v6245 = vadd.f32 %v6181, %v5929
  %v6246 = vadd.f32 %v6182, %v5934
  %v6247 = vadd.f32 %v6183, %v5937
  %v6248 = vadd.f32 %v6184, %v5942
  %v6249 = vadd.f32 %v6185, %v5945
  %v6250 = vadd.f32 %v6186, %v5950
  %v6251 = vadd.f32 %v6187, %v5953
  %v6252 = vadd.f32 %v6188, %v5958
  %v6253 = vadd.f32 %v6189, %v5961
  %v6254 = vadd.f32 %v6190, %v5966
  %v6255 = vadd.f32 %v6191, %v5969
  %v6256 = vadd.f32 %v6192, %v5974
  %v6257 = vadd.f32 %v6193, %v5977
  %v6258 = vadd.f32 %v6194, %v5982
  %v6259 = vadd.f32 %v6195, %v5985
  %v6260 = vadd.f32 %v6196, %v5990
  %v6261 = vadd.f32 %v6197, %v5993
  %v6262 = vadd.f32 %v6198, %v5998
  %v6263 = vadd.f32 %v6199, %v6001
  %v6264 = vadd.f32 %v6200, %v6006
  %v6265 = vadd.f32 %v6201, %v6009
  %v6266 = vadd.f32 %v6202, %v6014
  %v6267 = vadd.f32 %v6203, %v6017
  %v6268 = vadd.f32 %v6204, %v6022
  %v6269 = vadd.f32 %v6205, %v6025
  %v6270 = vadd.f32 %v6206, %v6030
  %v6271 = vadd.f32 %v6207, %v6033
  %v6272 = vadd.f32 %v6208, %v6038
  %v6273 = vadd.f32 %v6209, %v6041
  %v6274 = vadd.f32 %v6210, %v6046
  %v6275 = vadd.f32 %v6211, %v6049
  %v6276 = vadd.f32 %v6212, %v6054
  %v6277 = vadd.f32 %v6213, %v6057
  %v6278 = vadd.f32 %v6214, %v6062
  %v6279 = vadd.f32 %v6215, %v6065
  %v6280 = vadd.f32 %v6216, %v6070
  %v6281 = vadd.f32 %v6217, %v6073
  %v6282 = vadd.f32 %v6218, %v6078
  %v6283 = vadd.f32 %v6219, %v6081
  %v6284 = vadd.f32 %v6220, %v6086
  %v6285 = vadd.f32 %v6221, %v6089
  %v6286 = vadd.f32 %v6222, %v6094
  %v6287 = vadd.f32 %v6223, %v6097
  %v6288 = vadd.f32 %v6224, %v6102
  %v6289 = vadd.f32 %v6225, %v6105
  %v6290 = vadd.f32 %v6226, %v6110
  %v6291 = vadd.f32 %v6227, %v6113
  %v6292 = vadd.f32 %v6228, %v6118
  %v6293 = vadd.f32 %v6229, %v6121
  %v6294 = vadd.f32 %v6230, %v6126
  %v6295 = vadd.f32 %v6231, %v6129
  %v6296 = vadd.f32 %v6232, %v6134
  %v6297 = vadd.f32 %v6233, %v6137
  %v6298 = vadd.f32 %v6234, %v6142
  %v6299 = vadd.f32 %v6235, %v6145
  %v6300 = vadd.f32 %v6236, %v6150
  %v6301 = vadd.f32 %v6237, %v6153
  %v6302 = vadd.f32 %v6238, %v6158
  %v6303 = vadd.f32 %v6239, %v6161
  %v6304 = vadd.f32 %v6240, %v6166
  %v6305 = vadd.f32 %v6241, %v6169
  %v6306 = vadd.f32 %v6242, %v6174
  %v6307 = vadd.f32 %v6243, %v6177
  %6308 = vst.msk [vmem:[#allocation2] sm:$0xff] %vm509, %v6244
  %6309 = vst.msk [vmem:[#allocation2 + $0x8] sm:$0xff] %vm509, %v6245
  %6310 = vst.msk [vmem:[#allocation2 + $0x10] sm:$0xff] %vm509, %v6246
  %6311 = vst.msk [vmem:[#allocation2 + $0x18] sm:$0xff] %vm509, %v6247
  %6312 = vst.msk [vmem:[#allocation2 + $0x20] sm:$0xff] %vm509, %v6248
  %6313 = vst.msk [vmem:[#allocation2 + $0x28] sm:$0xff] %vm509, %v6249
  %6314 = vst.msk [vmem:[#allocation2 + $0x30] sm:$0xff] %vm509, %v6250
  %6315 = vst.msk [vmem:[#allocation2 + $0x38] sm:$0xff] %vm509, %v6251
  %6316 = vst.msk [vmem:[#allocation2 + $0x40] sm:$0xff] %vm509, %v6252
  %6317 = vst.msk [vmem:[#allocation2 + $0x48] sm:$0xff] %vm509, %v6253
  %6318 = vst.msk [vmem:[#allocation2 + $0x50] sm:$0xff] %vm509, %v6254
  %6319 = vst.msk [vmem:[#allocation2 + $0x58] sm:$0xff] %vm509, %v6255
  %6320 = vst.msk [vmem:[#allocation2 + $0x60] sm:$0xff] %vm509, %v6256
  %6321 = vst.msk [vmem:[#allocation2 + $0x68] sm:$0xff] %vm509, %v6257
  %6322 = vst.msk [vmem:[#allocation2 + $0x70] sm:$0xff] %vm509, %v6258
  %6323 = vst.msk [vmem:[#allocation2 + $0x78] sm:$0xff] %vm509, %v6259
  %6324 = vst.msk [vmem:[#allocation2 + $0x80] sm:$0xff] %vm509, %v6260
  %6325 = vst.msk [vmem:[#allocation2 + $0x88] sm:$0xff] %vm509, %v6261
  %6326 = vst.msk [vmem:[#allocation2 + $0x90] sm:$0xff] %vm509, %v6262
  %6327 = vst.msk [vmem:[#allocation2 + $0x98] sm:$0xff] %vm509, %v6263
  %6328 = vst.msk [vmem:[#allocation2 + $0xa0] sm:$0xff] %vm509, %v6264
  %6329 = vst.msk [vmem:[#allocation2 + $0xa8] sm:$0xff] %vm509, %v6265
  %6330 = vst.msk [vmem:[#allocation2 + $0xb0] sm:$0xff] %vm509, %v6266
  %6331 = vst.msk [vmem:[#allocation2 + $0xb8] sm:$0xff] %vm509, %v6267
  %6332 = vst.msk [vmem:[#allocation2 + $0xc0] sm:$0xff] %vm509, %v6268
  %6333 = vst.msk [vmem:[#allocation2 + $0xc8] sm:$0xff] %vm509, %v6269
  %6334 = vst.msk [vmem:[#allocation2 + $0xd0] sm:$0xff] %vm509, %v6270
  %6335 = vst.msk [vmem:[#allocation2 + $0xd8] sm:$0xff] %vm509, %v6271
  %6336 = vst.msk [vmem:[#allocation2 + $0xe0] sm:$0xff] %vm509, %v6272
  %6337 = vst.msk [vmem:[#allocation2 + $0xe8] sm:$0xff] %vm509, %v6273
  %6338 = vst.msk [vmem:[#allocation2 + $0xf0] sm:$0xff] %vm509, %v6274
  %6339 = vst.msk [vmem:[#allocation2 + $0xf8] sm:$0xff] %vm509, %v6275
  %6340 = vst.msk [vmem:[#allocation2 + $0x100] sm:$0xff] %vm509, %v6276
  %6341 = vst.msk [vmem:[#allocation2 + $0x108] sm:$0xff] %vm509, %v6277
  %6342 = vst.msk [vmem:[#allocation2 + $0x110] sm:$0xff] %vm509, %v6278
  %6343 = vst.msk [vmem:[#allocation2 + $0x118] sm:$0xff] %vm509, %v6279
  %6344 = vst.msk [vmem:[#allocation2 + $0x120] sm:$0xff] %vm509, %v6280
  %6345 = vst.msk [vmem:[#allocation2 + $0x128] sm:$0xff] %vm509, %v6281
  %6346 = vst.msk [vmem:[#allocation2 + $0x130] sm:$0xff] %vm509, %v6282
  %6347 = vst.msk [vmem:[#allocation2 + $0x138] sm:$0xff] %vm509, %v6283
  %6348 = vst.msk [vmem:[#allocation2 + $0x140] sm:$0xff] %vm509, %v6284
  %6349 = vst.msk [vmem:[#allocation2 + $0x148] sm:$0xff] %vm509, %v6285
  %6350 = vst.msk [vmem:[#allocation2 + $0x150] sm:$0xff] %vm509, %v6286
  %6351 = vst.msk [vmem:[#allocation2 + $0x158] sm:$0xff] %vm509, %v6287
  %6352 = vst.msk [vmem:[#allocation2 + $0x160] sm:$0xff] %vm509, %v6288
  %6353 = vst.msk [vmem:[#allocation2 + $0x168] sm:$0xff] %vm509, %v6289
  %6354 = vst.msk [vmem:[#allocation2 + $0x170] sm:$0xff] %vm509, %v6290
  %6355 = vst.msk [vmem:[#allocation2 + $0x178] sm:$0xff] %vm509, %v6291
  %6356 = vst.msk [vmem:[#allocation2 + $0x180] sm:$0xff] %vm509, %v6292
  %6357 = vst.msk [vmem:[#allocation2 + $0x188] sm:$0xff] %vm509, %v6293
  %6358 = vst.msk [vmem:[#allocation2 + $0x190] sm:$0xff] %vm509, %v6294
  %6359 = vst.msk [vmem:[#allocation2 + $0x198] sm:$0xff] %vm509, %v6295
  %6360 = vst.msk [vmem:[#allocation2 + $0x1a0] sm:$0xff] %vm509, %v6296
  %6361 = vst.msk [vmem:[#allocation2 + $0x1a8] sm:$0xff] %vm509, %v6297
  %6362 = vst.msk [vmem:[#allocation2 + $0x1b0] sm:$0xff] %vm509, %v6298
  %6363 = vst.msk [vmem:[#allocation2 + $0x1b8] sm:$0xff] %vm509, %v6299
  %6364 = vst.msk [vmem:[#allocation2 + $0x1c0] sm:$0xff] %vm509, %v6300
  %6365 = vst.msk [vmem:[#allocation2 + $0x1c8] sm:$0xff] %vm509, %v6301
  %6366 = vst.msk [vmem:[#allocation2 + $0x1d0] sm:$0xff] %vm509, %v6302
  %6367 = vst.msk [vmem:[#allocation2 + $0x1d8] sm:$0xff] %vm509, %v6303
  %6368 = vst.msk [vmem:[#allocation2 + $0x1e0] sm:$0xff] %vm509, %v6304
  %6369 = vst.msk [vmem:[#allocation2 + $0x1e8] sm:$0xff] %vm509, %v6305
  %6370 = vst.msk [vmem:[#allocation2 + $0x1f0] sm:$0xff] %vm509, %v6306
  %6371 = vst.msk [vmem:[#allocation2 + $0x1f8] sm:$0x7f] %vm1913, %v6307
  %v6372 = vld [vmem:[%s0 + $0xf] sm:$0xff]
  %v6373 = vld [vmem:[%s0 + $0x17] sm:$0xff]
  %v6374 = vld [vmem:[%s0 + $0x1f] sm:$0xff]
  %v6375 = vld [vmem:[%s0 + $0x27] sm:$0xff]
  %v6376 = vld [vmem:[%s0 + $0x2f] sm:$0xff]
  %v6377 = vld [vmem:[%s0 + $0x37] sm:$0xff]
  %v6378 = vld [vmem:[%s0 + $0x3f] sm:$0xff]
  %v6379 = vld [vmem:[%s0 + $0x47] sm:$0xff]
  %v6380 = vld [vmem:[%s0 + $0x4f] sm:$0xff]
  %v6381 = vld [vmem:[%s0 + $0x57] sm:$0xff]
  %v6382 = vld [vmem:[%s0 + $0x5f] sm:$0xff]
  %v6383 = vld [vmem:[%s0 + $0x67] sm:$0xff]
  %v6384 = vld [vmem:[%s0 + $0x6f] sm:$0xff]
  %v6385 = vld [vmem:[%s0 + $0x77] sm:$0xff]
  %v6386 = vld [vmem:[%s0 + $0x7f] sm:$0xff]
  %v6387 = vld [vmem:[%s0 + $0x87] sm:$0xff]
  %v6388 = vld [vmem:[%s0 + $0x8f] sm:$0xff]
  %v6389 = vld [vmem:[%s0 + $0x97] sm:$0xff]
  %v6390 = vld [vmem:[%s0 + $0x9f] sm:$0xff]
  %v6391 = vld [vmem:[%s0 + $0xa7] sm:$0xff]
  %v6392 = vld [vmem:[%s0 + $0xaf] sm:$0xff]
  %v6393 = vld [vmem:[%s0 + $0xb7] sm:$0xff]
  %v6394 = vld [vmem:[%s0 + $0xbf] sm:$0xff]
  %v6395 = vld [vmem:[%s0 + $0xc7] sm:$0xff]
  %v6396 = vld [vmem:[%s0 + $0xcf] sm:$0xff]
  %v6397 = vld [vmem:[%s0 + $0xd7] sm:$0xff]
  %v6398 = vld [vmem:[%s0 + $0xdf] sm:$0xff]
  %v6399 = vld [vmem:[%s0 + $0xe7] sm:$0xff]
  %v6400 = vld [vmem:[%s0 + $0xef] sm:$0xff]
  %v6401 = vld [vmem:[%s0 + $0xf7] sm:$0xff]
  %v6402 = vld [vmem:[%s0 + $0xff] sm:$0xff]
  %v6403 = vld [vmem:[%s0 + $0x107] sm:$0xff]
  %v6404 = vld [vmem:[%s0 + $0x10f] sm:$0xff]
  %v6405 = vld [vmem:[%s0 + $0x117] sm:$0xff]
  %v6406 = vld [vmem:[%s0 + $0x11f] sm:$0xff]
  %v6407 = vld [vmem:[%s0 + $0x127] sm:$0xff]
  %v6408 = vld [vmem:[%s0 + $0x12f] sm:$0xff]
  %v6409 = vld [vmem:[%s0 + $0x137] sm:$0xff]
  %v6410 = vld [vmem:[%s0 + $0x13f] sm:$0xff]
  %v6411 = vld [vmem:[%s0 + $0x147] sm:$0xff]
  %v6412 = vld [vmem:[%s0 + $0x14f] sm:$0xff]
  %v6413 = vld [vmem:[%s0 + $0x157] sm:$0xff]
  %v6414 = vld [vmem:[%s0 + $0x15f] sm:$0xff]
  %v6415 = vld [vmem:[%s0 + $0x167] sm:$0xff]
  %v6416 = vld [vmem:[%s0 + $0x16f] sm:$0xff]
  %v6417 = vld [vmem:[%s0 + $0x177] sm:$0xff]
  %v6418 = vld [vmem:[%s0 + $0x17f] sm:$0xff]
  %v6419 = vld [vmem:[%s0 + $0x187] sm:$0xff]
  %v6420 = vld [vmem:[%s0 + $0x18f] sm:$0xff]
  %v6421 = vld [vmem:[%s0 + $0x197] sm:$0xff]
  %v6422 = vld [vmem:[%s0 + $0x19f] sm:$0xff]
  %v6423 = vld [vmem:[%s0 + $0x1a7] sm:$0xff]
  %v6424 = vld [vmem:[%s0 + $0x1af] sm:$0xff]
  %v6425 = vld [vmem:[%s0 + $0x1b7] sm:$0xff]
  %v6426 = vld [vmem:[%s0 + $0x1bf] sm:$0xff]
  %v6427 = vld [vmem:[%s0 + $0x1c7] sm:$0xff]
  %v6428 = vld [vmem:[%s0 + $0x1cf] sm:$0xff]
  %v6429 = vld [vmem:[%s0 + $0x1d7] sm:$0xff]
  %v6430 = vld [vmem:[%s0 + $0x1df] sm:$0xff]
  %v6431 = vld [vmem:[%s0 + $0x1e7] sm:$0xff]
  %v6432 = vld [vmem:[%s0 + $0x1ef] sm:$0xff]
  %v6433 = vld [vmem:[%s0 + $0x1f7] sm:$0xff]
  %v6434 = vld [vmem:[%s0 + $0x1ff] sm:$0x1]
  %vm6435 = vcmp.ne.s32.totalorder %v5438, 0
  %vm6436 = vcmp.ne.s32.totalorder %v5439, 0
  %vm6437 = vcmp.ne.s32.totalorder %v5440, 0
  %vm6438 = vcmp.ne.s32.totalorder %v5441, 0
  %vm6439 = vcmp.ne.s32.totalorder %v5442, 0
  %vm6440 = vcmp.ne.s32.totalorder %v5443, 0
  %vm6441 = vcmp.ne.s32.totalorder %v5444, 0
  %vm6442 = vcmp.ne.s32.totalorder %v5445, 0
  %vm6443 = vcmp.ne.s32.totalorder %v5446, 0
  %vm6444 = vcmp.ne.s32.totalorder %v5447, 0
  %vm6445 = vcmp.ne.s32.totalorder %v5448, 0
  %vm6446 = vcmp.ne.s32.totalorder %v5449, 0
  %vm6447 = vcmp.ne.s32.totalorder %v5450, 0
  %vm6448 = vcmp.ne.s32.totalorder %v5451, 0
  %vm6449 = vcmp.ne.s32.totalorder %v5452, 0
  %vm6450 = vcmp.ne.s32.totalorder %v5453, 0
  %vm6451 = vcmp.ne.s32.totalorder %v5454, 0
  %vm6452 = vcmp.ne.s32.totalorder %v5455, 0
  %vm6453 = vcmp.ne.s32.totalorder %v5456, 0
  %vm6454 = vcmp.ne.s32.totalorder %v5457, 0
  %vm6455 = vcmp.ne.s32.totalorder %v5458, 0
  %vm6456 = vcmp.ne.s32.totalorder %v5459, 0
  %vm6457 = vcmp.ne.s32.totalorder %v5460, 0
  %vm6458 = vcmp.ne.s32.totalorder %v5461, 0
  %vm6459 = vcmp.ne.s32.totalorder %v5462, 0
  %vm6460 = vcmp.ne.s32.totalorder %v5463, 0
  %vm6461 = vcmp.ne.s32.totalorder %v5464, 0
  %vm6462 = vcmp.ne.s32.totalorder %v5465, 0
  %vm6463 = vcmp.ne.s32.totalorder %v5466, 0
  %vm6464 = vcmp.ne.s32.totalorder %v5467, 0
  %vm6465 = vcmp.ne.s32.totalorder %v5468, 0
  %vm6466 = vcmp.ne.s32.totalorder %v5469, 0
  %vm6467 = vcmp.ne.s32.totalorder %v5470, 0
  %vm6468 = vcmp.ne.s32.totalorder %v5471, 0
  %vm6469 = vcmp.ne.s32.totalorder %v5472, 0
  %vm6470 = vcmp.ne.s32.totalorder %v5473, 0
  %vm6471 = vcmp.ne.s32.totalorder %v5474, 0
  %vm6472 = vcmp.ne.s32.totalorder %v5475, 0
  %vm6473 = vcmp.ne.s32.totalorder %v5476, 0
  %vm6474 = vcmp.ne.s32.totalorder %v5477, 0
  %vm6475 = vcmp.ne.s32.totalorder %v5478, 0
  %vm6476 = vcmp.ne.s32.totalorder %v5479, 0
  %vm6477 = vcmp.ne.s32.totalorder %v5480, 0
  %vm6478 = vcmp.ne.s32.totalorder %v5481, 0
  %vm6479 = vcmp.ne.s32.totalorder %v5482, 0
  %vm6480 = vcmp.ne.s32.totalorder %v5483, 0
  %vm6481 = vcmp.ne.s32.totalorder %v5484, 0
  %vm6482 = vcmp.ne.s32.totalorder %v5485, 0
  %vm6483 = vcmp.ne.s32.totalorder %v5486, 0
  %vm6484 = vcmp.ne.s32.totalorder %v5487, 0
  %vm6485 = vcmp.ne.s32.totalorder %v5488, 0
  %vm6486 = vcmp.ne.s32.totalorder %v5489, 0
  %vm6487 = vcmp.ne.s32.totalorder %v5490, 0
  %vm6488 = vcmp.ne.s32.totalorder %v5491, 0
  %vm6489 = vcmp.ne.s32.totalorder %v5492, 0
  %vm6490 = vcmp.ne.s32.totalorder %v5493, 0
  %vm6491 = vcmp.ne.s32.totalorder %v5494, 0
  %vm6492 = vcmp.ne.s32.totalorder %v5495, 0
  %vm6493 = vcmp.ne.s32.totalorder %v5496, 0
  %vm6494 = vcmp.ne.s32.totalorder %v5497, 0
  %vm6495 = vcmp.ne.s32.totalorder %v5498, 0
  %vm6496 = vcmp.ne.s32.totalorder %v5499, 0
  %vm6497 = vcmp.ne.s32.totalorder %v5500, 0
  %v6498 = vshra.s32 %v637, 4
  %v6499 = vshra.s32 %v638, 4
  %v6500 = vshra.s32 %v640, 4
  %v6501 = vshra.s32 %v641, 4
  %v6502 = vshra.s32 %v642, 4
  %v6503 = vshra.s32 %v643, 4
  %v6504 = vshra.s32 %v644, 4
  %v6505 = vshra.s32 %v645, 4
  %v6506 = vshra.s32 %v646, 4
  %v6507 = vshra.s32 %v647, 4
  %v6508 = vshra.s32 %v648, 4
  %v6509 = vshra.s32 %v649, 4
  %v6510 = vshra.s32 %v650, 4
  %v6511 = vshra.s32 %v651, 4
  %v6512 = vshra.s32 %v652, 4
  %v6513 = vshra.s32 %v653, 4
  %v6514 = vshra.s32 %v654, 4
  %v6515 = vshra.s32 %v655, 4
  %v6516 = vshra.s32 %v656, 4
  %v6517 = vshra.s32 %v657, 4
  %v6518 = vshra.s32 %v658, 4
  %v6519 = vshra.s32 %v659, 4
  %v6520 = vshra.s32 %v660, 4
  %v6521 = vshra.s32 %v661, 4
  %v6522 = vshra.s32 %v662, 4
  %v6523 = vshra.s32 %v663, 4
  %v6524 = vshra.s32 %v664, 4
  %v6525 = vshra.s32 %v665, 4
  %v6526 = vshra.s32 %v666, 4
  %v6527 = vshra.s32 %v667, 4
  %v6528 = vshra.s32 %v668, 4
  %v6529 = vshra.s32 %v669, 4
  %v6530 = vshra.s32 %v670, 4
  %v6531 = vshra.s32 %v671, 4
  %v6532 = vshra.s32 %v672, 4
  %v6533 = vshra.s32 %v673, 4
  %v6534 = vshra.s32 %v674, 4
  %v6535 = vshra.s32 %v675, 4
  %v6536 = vshra.s32 %v676, 4
  %v6537 = vshra.s32 %v677, 4
  %v6538 = vshra.s32 %v678, 4
  %v6539 = vshra.s32 %v679, 4
  %v6540 = vshra.s32 %v680, 4
  %v6541 = vshra.s32 %v681, 4
  %v6542 = vshra.s32 %v682, 4
  %v6543 = vshra.s32 %v683, 4
  %v6544 = vshra.s32 %v684, 4
  %v6545 = vshra.s32 %v685, 4
  %v6546 = vshra.s32 %v686, 4
  %v6547 = vshra.s32 %v687, 4
  %v6548 = vshra.s32 %v688, 4
  %v6549 = vshra.s32 %v689, 4
  %v6550 = vshra.s32 %v690, 4
  %v6551 = vshra.s32 %v691, 4
  %v6552 = vshra.s32 %v692, 4
  %v6553 = vshra.s32 %v693, 4
  %v6554 = vshra.s32 %v694, 4
  %v6555 = vshra.s32 %v695, 4
  %v6556 = vshra.s32 %v696, 4
  %v6557 = vshra.s32 %v697, 4
  %v6558 = vshra.s32 %v698, 4
  %v6559 = vshra.s32 %v3069, 4
  %v6560 = vand.u32 %v6498, 15
  %v6561 = vand.u32 %v6499, 15
  %v6562 = vand.u32 %v6500, 15
  %v6563 = vand.u32 %v6501, 15
  %v6564 = vand.u32 %v6502, 15
  %v6565 = vand.u32 %v6503, 15
  %v6566 = vand.u32 %v6504, 15
  %v6567 = vand.u32 %v6505, 15
  %v6568 = vand.u32 %v6506, 15
  %v6569 = vand.u32 %v6507, 15
  %v6570 = vand.u32 %v6508, 15
  %v6571 = vand.u32 %v6509, 15
  %v6572 = vand.u32 %v6510, 15
  %v6573 = vand.u32 %v6511, 15
  %v6574 = vand.u32 %v6512, 15
  %v6575 = vand.u32 %v6513, 15
  %v6576 = vand.u32 %v6514, 15
  %v6577 = vand.u32 %v6515, 15
  %v6578 = vand.u32 %v6516, 15
  %v6579 = vand.u32 %v6517, 15
  %v6580 = vand.u32 %v6518, 15
  %v6581 = vand.u32 %v6519, 15
  %v6582 = vand.u32 %v6520, 15
  %v6583 = vand.u32 %v6521, 15
  %v6584 = vand.u32 %v6522, 15
  %v6585 = vand.u32 %v6523, 15
  %v6586 = vand.u32 %v6524, 15
  %v6587 = vand.u32 %v6525, 15
  %v6588 = vand.u32 %v6526, 15
  %v6589 = vand.u32 %v6527, 15
  %v6590 = vand.u32 %v6528, 15
  %v6591 = vand.u32 %v6529, 15
  %v6592 = vand.u32 %v6530, 15
  %v6593 = vand.u32 %v6531, 15
  %v6594 = vand.u32 %v6532, 15
  %v6595 = vand.u32 %v6533, 15
  %v6596 = vand.u32 %v6534, 15
  %v6597 = vand.u32 %v6535, 15
  %v6598 = vand.u32 %v6536, 15
  %v6599 = vand.u32 %v6537, 15
  %v6600 = vand.u32 %v6538, 15
  %v6601 = vand.u32 %v6539, 15
  %v6602 = vand.u32 %v6540, 15
  %v6603 = vand.u32 %v6541, 15
  %v6604 = vand.u32 %v6542, 15
  %v6605 = vand.u32 %v6543, 15
  %v6606 = vand.u32 %v6544, 15
  %v6607 = vand.u32 %v6545, 15
  %v6608 = vand.u32 %v6546, 15
  %v6609 = vand.u32 %v6547, 15
  %v6610 = vand.u32 %v6548, 15
  %v6611 = vand.u32 %v6549, 15
  %v6612 = vand.u32 %v6550, 15
  %v6613 = vand.u32 %v6551, 15
  %v6614 = vand.u32 %v6552, 15
  %v6615 = vand.u32 %v6553, 15
  %v6616 = vand.u32 %v6554, 15
  %v6617 = vand.u32 %v6555, 15
  %v6618 = vand.u32 %v6556, 15
  %v6619 = vand.u32 %v6557, 15
  %v6620 = vand.u32 %v6558, 15
  %v6621 = vand.u32 %v6559, 15
  %vm6622 = vcmp.ne.s32.totalorder %v6560, 15
  %vm6623 = vcmp.ne.s32.totalorder %v6561, 15
  %vm6624 = vcmp.ne.s32.totalorder %v2100, 15
  %vm6625 = vcmp.ne.s32.totalorder %v6562, 15
  %vm6626 = vcmp.ne.s32.totalorder %v6563, 15
  %vm6627 = vcmp.ne.s32.totalorder %v6564, 15
  %vm6628 = vcmp.ne.s32.totalorder %v6565, 15
  %vm6629 = vcmp.ne.s32.totalorder %v6566, 15
  %vm6630 = vcmp.ne.s32.totalorder %v6567, 15
  %vm6631 = vcmp.ne.s32.totalorder %v6568, 15
  %vm6632 = vcmp.ne.s32.totalorder %v6569, 15
  %vm6633 = vcmp.ne.s32.totalorder %v6570, 15
  %vm6634 = vcmp.ne.s32.totalorder %v6571, 15
  %vm6635 = vcmp.ne.s32.totalorder %v6572, 15
  %vm6636 = vcmp.ne.s32.totalorder %v6573, 15
  %vm6637 = vcmp.ne.s32.totalorder %v6574, 15
  %vm6638 = vcmp.ne.s32.totalorder %v6575, 15
  %vm6639 = vcmp.ne.s32.totalorder %v6576, 15
  %vm6640 = vcmp.ne.s32.totalorder %v6577, 15
  %vm6641 = vcmp.ne.s32.totalorder %v6578, 15
  %vm6642 = vcmp.ne.s32.totalorder %v6579, 15
  %vm6643 = vcmp.ne.s32.totalorder %v6580, 15
  %vm6644 = vcmp.ne.s32.totalorder %v6581, 15
  %vm6645 = vcmp.ne.s32.totalorder %v6582, 15
  %vm6646 = vcmp.ne.s32.totalorder %v6583, 15
  %vm6647 = vcmp.ne.s32.totalorder %v6584, 15
  %vm6648 = vcmp.ne.s32.totalorder %v6585, 15
  %vm6649 = vcmp.ne.s32.totalorder %v6586, 15
  %vm6650 = vcmp.ne.s32.totalorder %v6587, 15
  %vm6651 = vcmp.ne.s32.totalorder %v6588, 15
  %vm6652 = vcmp.ne.s32.totalorder %v6589, 15
  %vm6653 = vcmp.ne.s32.totalorder %v6590, 15
  %vm6654 = vcmp.ne.s32.totalorder %v6591, 15
  %vm6655 = vcmp.ne.s32.totalorder %v6592, 15
  %vm6656 = vcmp.ne.s32.totalorder %v6593, 15
  %vm6657 = vcmp.ne.s32.totalorder %v6594, 15
  %vm6658 = vcmp.ne.s32.totalorder %v6595, 15
  %vm6659 = vcmp.ne.s32.totalorder %v6596, 15
  %vm6660 = vcmp.ne.s32.totalorder %v6597, 15
  %vm6661 = vcmp.ne.s32.totalorder %v6598, 15
  %vm6662 = vcmp.ne.s32.totalorder %v6599, 15
  %vm6663 = vcmp.ne.s32.totalorder %v6600, 15
  %vm6664 = vcmp.ne.s32.totalorder %v6601, 15
  %vm6665 = vcmp.ne.s32.totalorder %v6602, 15
  %vm6666 = vcmp.ne.s32.totalorder %v6603, 15
  %vm6667 = vcmp.ne.s32.totalorder %v6604, 15
  %vm6668 = vcmp.ne.s32.totalorder %v6605, 15
  %vm6669 = vcmp.ne.s32.totalorder %v6606, 15
  %vm6670 = vcmp.ne.s32.totalorder %v6607, 15
  %vm6671 = vcmp.ne.s32.totalorder %v6608, 15
  %vm6672 = vcmp.ne.s32.totalorder %v6609, 15
  %vm6673 = vcmp.ne.s32.totalorder %v6610, 15
  %vm6674 = vcmp.ne.s32.totalorder %v6611, 15
  %vm6675 = vcmp.ne.s32.totalorder %v6612, 15
  %vm6676 = vcmp.ne.s32.totalorder %v6613, 15
  %vm6677 = vcmp.ne.s32.totalorder %v6614, 15
  %vm6678 = vcmp.ne.s32.totalorder %v6615, 15
  %vm6679 = vcmp.ne.s32.totalorder %v6616, 15
  %vm6680 = vcmp.ne.s32.totalorder %v6617, 15
  %vm6681 = vcmp.ne.s32.totalorder %v6618, 15
  %vm6682 = vcmp.ne.s32.totalorder %v6619, 15
  %vm6683 = vcmp.ne.s32.totalorder %v6620, 15
  %vm6684 = vcmp.ne.s32.totalorder %v6621, 15
  %vm6685 = vmand %vm6435, %vm6622
  %vm6686 = vmand %vm6436, %vm6623
  %vm6687 = vmand %vm6437, %vm6624
  %vm6688 = vmand %vm6438, %vm6625
  %vm6689 = vmand %vm6439, %vm6626
  %vm6690 = vmand %vm6440, %vm6627
  %vm6691 = vmand %vm6441, %vm6628
  %vm6692 = vmand %vm6442, %vm6629
  %vm6693 = vmand %vm6443, %vm6630
  %vm6694 = vmand %vm6444, %vm6631
  %vm6695 = vmand %vm6445, %vm6632
  %vm6696 = vmand %vm6446, %vm6633
  %vm6697 = vmand %vm6447, %vm6634
  %vm6698 = vmand %vm6448, %vm6635
  %vm6699 = vmand %vm6449, %vm6636
  %vm6700 = vmand %vm6450, %vm6637
  %vm6701 = vmand %vm6451, %vm6638
  %vm6702 = vmand %vm6452, %vm6639
  %vm6703 = vmand %vm6453, %vm6640
  %vm6704 = vmand %vm6454, %vm6641
  %vm6705 = vmand %vm6455, %vm6642
  %vm6706 = vmand %vm6456, %vm6643
  %vm6707 = vmand %vm6457, %vm6644
  %vm6708 = vmand %vm6458, %vm6645
  %vm6709 = vmand %vm6459, %vm6646
  %vm6710 = vmand %vm6460, %vm6647
  %vm6711 = vmand %vm6461, %vm6648
  %vm6712 = vmand %vm6462, %vm6649
  %vm6713 = vmand %vm6463, %vm6650
  %vm6714 = vmand %vm6464, %vm6651
  %vm6715 = vmand %vm6465, %vm6652
  %vm6716 = vmand %vm6466, %vm6653
  %vm6717 = vmand %vm6467, %vm6654
  %vm6718 = vmand %vm6468, %vm6655
  %vm6719 = vmand %vm6469, %vm6656
  %vm6720 = vmand %vm6470, %vm6657
  %vm6721 = vmand %vm6471, %vm6658
  %vm6722 = vmand %vm6472, %vm6659
  %vm6723 = vmand %vm6473, %vm6660
  %vm6724 = vmand %vm6474, %vm6661
  %vm6725 = vmand %vm6475, %vm6662
  %vm6726 = vmand %vm6476, %vm6663
  %vm6727 = vmand %vm6477, %vm6664
  %vm6728 = vmand %vm6478, %vm6665
  %vm6729 = vmand %vm6479, %vm6666
  %vm6730 = vmand %vm6480, %vm6667
  %vm6731 = vmand %vm6481, %vm6668
  %vm6732 = vmand %vm6482, %vm6669
  %vm6733 = vmand %vm6483, %vm6670
  %vm6734 = vmand %vm6484, %vm6671
  %vm6735 = vmand %vm6485, %vm6672
  %vm6736 = vmand %vm6486, %vm6673
  %vm6737 = vmand %vm6487, %vm6674
  %vm6738 = vmand %vm6488, %vm6675
  %vm6739 = vmand %vm6489, %vm6676
  %vm6740 = vmand %vm6490, %vm6677
  %vm6741 = vmand %vm6491, %vm6678
  %vm6742 = vmand %vm6492, %vm6679
  %vm6743 = vmand %vm6493, %vm6680
  %vm6744 = vmand %vm6494, %vm6681
  %vm6745 = vmand %vm6495, %vm6682
  %vm6746 = vmand %vm6496, %vm6683
  %vm6747 = vmand %vm6497, %vm6684
  %v6748 = vsel %vm6685, 1, 0
  %v6749 = vsel %vm6686, 1, 0
  %v6750 = vsel %vm6687, 1, 0
  %v6751 = vsel %vm6688, 1, 0
  %v6752 = vsel %vm6689, 1, 0
  %v6753 = vsel %vm6690, 1, 0
  %v6754 = vsel %vm6691, 1, 0
  %v6755 = vsel %vm6692, 1, 0
  %v6756 = vsel %vm6693, 1, 0
  %v6757 = vsel %vm6694, 1, 0
  %v6758 = vsel %vm6695, 1, 0
  %v6759 = vsel %vm6696, 1, 0
  %v6760 = vsel %vm6697, 1, 0
  %v6761 = vsel %vm6698, 1, 0
  %v6762 = vsel %vm6699, 1, 0
  %v6763 = vsel %vm6700, 1, 0
  %v6764 = vsel %vm6701, 1, 0
  %v6765 = vsel %vm6702, 1, 0
  %v6766 = vsel %vm6703, 1, 0
  %v6767 = vsel %vm6704, 1, 0
  %v6768 = vsel %vm6705, 1, 0
  %v6769 = vsel %vm6706, 1, 0
  %v6770 = vsel %vm6707, 1, 0
  %v6771 = vsel %vm6708, 1, 0
  %v6772 = vsel %vm6709, 1, 0
  %v6773 = vsel %vm6710, 1, 0
  %v6774 = vsel %vm6711, 1, 0
  %v6775 = vsel %vm6712, 1, 0
  %v6776 = vsel %vm6713, 1, 0
  %v6777 = vsel %vm6714, 1, 0
  %v6778 = vsel %vm6715, 1, 0
  %v6779 = vsel %vm6716, 1, 0
  %v6780 = vsel %vm6717, 1, 0
  %v6781 = vsel %vm6718, 1, 0
  %v6782 = vsel %vm6719, 1, 0
  %v6783 = vsel %vm6720, 1, 0
  %v6784 = vsel %vm6721, 1, 0
  %v6785 = vsel %vm6722, 1, 0
  %v6786 = vsel %vm6723, 1, 0
  %v6787 = vsel %vm6724, 1, 0
  %v6788 = vsel %vm6725, 1, 0
  %v6789 = vsel %vm6726, 1, 0
  %v6790 = vsel %vm6727, 1, 0
  %v6791 = vsel %vm6728, 1, 0
  %v6792 = vsel %vm6729, 1, 0
  %v6793 = vsel %vm6730, 1, 0
  %v6794 = vsel %vm6731, 1, 0
  %v6795 = vsel %vm6732, 1, 0
  %v6796 = vsel %vm6733, 1, 0
  %v6797 = vsel %vm6734, 1, 0
  %v6798 = vsel %vm6735, 1, 0
  %v6799 = vsel %vm6736, 1, 0
  %v6800 = vsel %vm6737, 1, 0
  %v6801 = vsel %vm6738, 1, 0
  %v6802 = vsel %vm6739, 1, 0
  %v6803 = vsel %vm6740, 1, 0
  %v6804 = vsel %vm6741, 1, 0
  %v6805 = vsel %vm6742, 1, 0
  %v6806 = vsel %vm6743, 1, 0
  %v6807 = vsel %vm6744, 1, 0
  %v6808 = vsel %vm6745, 1, 0
  %v6809 = vsel %vm6746, 1, 0
  %v6810 = vsel %vm6747, 1, 0
  %vm6811 = vcmp.eq.s32.totalorder %v6748, 1
  %vm6812 = vcmp.eq.s32.totalorder %v6749, 1
  %vm6813 = vcmp.eq.s32.totalorder %v6750, 1
  %vm6814 = vcmp.eq.s32.totalorder %v6751, 1
  %vm6815 = vcmp.eq.s32.totalorder %v6752, 1
  %vm6816 = vcmp.eq.s32.totalorder %v6753, 1
  %vm6817 = vcmp.eq.s32.totalorder %v6754, 1
  %vm6818 = vcmp.eq.s32.totalorder %v6755, 1
  %vm6819 = vcmp.eq.s32.totalorder %v6756, 1
  %vm6820 = vcmp.eq.s32.totalorder %v6757, 1
  %vm6821 = vcmp.eq.s32.totalorder %v6758, 1
  %vm6822 = vcmp.eq.s32.totalorder %v6759, 1
  %vm6823 = vcmp.eq.s32.totalorder %v6760, 1
  %vm6824 = vcmp.eq.s32.totalorder %v6761, 1
  %vm6825 = vcmp.eq.s32.totalorder %v6762, 1
  %vm6826 = vcmp.eq.s32.totalorder %v6763, 1
  %vm6827 = vcmp.eq.s32.totalorder %v6764, 1
  %vm6828 = vcmp.eq.s32.totalorder %v6765, 1
  %vm6829 = vcmp.eq.s32.totalorder %v6766, 1
  %vm6830 = vcmp.eq.s32.totalorder %v6767, 1
  %vm6831 = vcmp.eq.s32.totalorder %v6768, 1
  %vm6832 = vcmp.eq.s32.totalorder %v6769, 1
  %vm6833 = vcmp.eq.s32.totalorder %v6770, 1
  %vm6834 = vcmp.eq.s32.totalorder %v6771, 1
  %vm6835 = vcmp.eq.s32.totalorder %v6772, 1
  %vm6836 = vcmp.eq.s32.totalorder %v6773, 1
  %vm6837 = vcmp.eq.s32.totalorder %v6774, 1
  %vm6838 = vcmp.eq.s32.totalorder %v6775, 1
  %vm6839 = vcmp.eq.s32.totalorder %v6776, 1
  %vm6840 = vcmp.eq.s32.totalorder %v6777, 1
  %vm6841 = vcmp.eq.s32.totalorder %v6778, 1
  %vm6842 = vcmp.eq.s32.totalorder %v6779, 1
  %vm6843 = vcmp.eq.s32.totalorder %v6780, 1
  %vm6844 = vcmp.eq.s32.totalorder %v6781, 1
  %vm6845 = vcmp.eq.s32.totalorder %v6782, 1
  %vm6846 = vcmp.eq.s32.totalorder %v6783, 1
  %vm6847 = vcmp.eq.s32.totalorder %v6784, 1
  %vm6848 = vcmp.eq.s32.totalorder %v6785, 1
  %vm6849 = vcmp.eq.s32.totalorder %v6786, 1
  %vm6850 = vcmp.eq.s32.totalorder %v6787, 1
  %vm6851 = vcmp.eq.s32.totalorder %v6788, 1
  %vm6852 = vcmp.eq.s32.totalorder %v6789, 1
  %vm6853 = vcmp.eq.s32.totalorder %v6790, 1
  %vm6854 = vcmp.eq.s32.totalorder %v6791, 1
  %vm6855 = vcmp.eq.s32.totalorder %v6792, 1
  %vm6856 = vcmp.eq.s32.totalorder %v6793, 1
  %vm6857 = vcmp.eq.s32.totalorder %v6794, 1
  %vm6858 = vcmp.eq.s32.totalorder %v6795, 1
  %vm6859 = vcmp.eq.s32.totalorder %v6796, 1
  %vm6860 = vcmp.eq.s32.totalorder %v6797, 1
  %vm6861 = vcmp.eq.s32.totalorder %v6798, 1
  %vm6862 = vcmp.eq.s32.totalorder %v6799, 1
  %vm6863 = vcmp.eq.s32.totalorder %v6800, 1
  %vm6864 = vcmp.eq.s32.totalorder %v6801, 1
  %vm6865 = vcmp.eq.s32.totalorder %v6802, 1
  %vm6866 = vcmp.eq.s32.totalorder %v6803, 1
  %vm6867 = vcmp.eq.s32.totalorder %v6804, 1
  %vm6868 = vcmp.eq.s32.totalorder %v6805, 1
  %vm6869 = vcmp.eq.s32.totalorder %v6806, 1
  %vm6870 = vcmp.eq.s32.totalorder %v6807, 1
  %vm6871 = vcmp.eq.s32.totalorder %v6808, 1
  %vm6872 = vcmp.eq.s32.totalorder %v6809, 1
  %vm6873 = vcmp.eq.s32.totalorder %v6810, 1
  %v6874 = vsel %vm6811, %v6372, 0.0
  %v6875 = vsel %vm6812, %v6373, 0.0
  %v6876 = vsel %vm6813, %v6374, 0.0
  %v6877 = vsel %vm6814, %v6375, 0.0
  %v6878 = vsel %vm6815, %v6376, 0.0
  %v6879 = vsel %vm6816, %v6377, 0.0
  %v6880 = vsel %vm6817, %v6378, 0.0
  %v6881 = vsel %vm6818, %v6379, 0.0
  %v6882 = vsel %vm6819, %v6380, 0.0
  %v6883 = vsel %vm6820, %v6381, 0.0
  %v6884 = vsel %vm6821, %v6382, 0.0
  %v6885 = vsel %vm6822, %v6383, 0.0
  %v6886 = vsel %vm6823, %v6384, 0.0
  %v6887 = vsel %vm6824, %v6385, 0.0
  %v6888 = vsel %vm6825, %v6386, 0.0
  %v6889 = vsel %vm6826, %v6387, 0.0
  %v6890 = vsel %vm6827, %v6388, 0.0
  %v6891 = vsel %vm6828, %v6389, 0.0
  %v6892 = vsel %vm6829, %v6390, 0.0
  %v6893 = vsel %vm6830, %v6391, 0.0
  %v6894 = vsel %vm6831, %v6392, 0.0
  %v6895 = vsel %vm6832, %v6393, 0.0
  %v6896 = vsel %vm6833, %v6394, 0.0
  %v6897 = vsel %vm6834, %v6395, 0.0
  %v6898 = vsel %vm6835, %v6396, 0.0
  %v6899 = vsel %vm6836, %v6397, 0.0
  %v6900 = vsel %vm6837, %v6398, 0.0
  %v6901 = vsel %vm6838, %v6399, 0.0
  %v6902 = vsel %vm6839, %v6400, 0.0
  %v6903 = vsel %vm6840, %v6401, 0.0
  %v6904 = vsel %vm6841, %v6402, 0.0
  %v6905 = vsel %vm6842, %v6403, 0.0
  %v6906 = vsel %vm6843, %v6404, 0.0
  %v6907 = vsel %vm6844, %v6405, 0.0
  %v6908 = vsel %vm6845, %v6406, 0.0
  %v6909 = vsel %vm6846, %v6407, 0.0
  %v6910 = vsel %vm6847, %v6408, 0.0
  %v6911 = vsel %vm6848, %v6409, 0.0
  %v6912 = vsel %vm6849, %v6410, 0.0
  %v6913 = vsel %vm6850, %v6411, 0.0
  %v6914 = vsel %vm6851, %v6412, 0.0
  %v6915 = vsel %vm6852, %v6413, 0.0
  %v6916 = vsel %vm6853, %v6414, 0.0
  %v6917 = vsel %vm6854, %v6415, 0.0
  %v6918 = vsel %vm6855, %v6416, 0.0
  %v6919 = vsel %vm6856, %v6417, 0.0
  %v6920 = vsel %vm6857, %v6418, 0.0
  %v6921 = vsel %vm6858, %v6419, 0.0
  %v6922 = vsel %vm6859, %v6420, 0.0
  %v6923 = vsel %vm6860, %v6421, 0.0
  %v6924 = vsel %vm6861, %v6422, 0.0
  %v6925 = vsel %vm6862, %v6423, 0.0
  %v6926 = vsel %vm6863, %v6424, 0.0
  %v6927 = vsel %vm6864, %v6425, 0.0
  %v6928 = vsel %vm6865, %v6426, 0.0
  %v6929 = vsel %vm6866, %v6427, 0.0
  %v6930 = vsel %vm6867, %v6428, 0.0
  %v6931 = vsel %vm6868, %v6429, 0.0
  %v6932 = vsel %vm6869, %v6430, 0.0
  %v6933 = vsel %vm6870, %v6431, 0.0
  %v6934 = vsel %vm6871, %v6432, 0.0
  %v6935 = vsel %vm6872, %v6433, 0.0
  %v6936 = vsel %vm6873, %v6434, 0.0
  %v6937 = vpack.c.bf16 %v6875, %v6874
  %v6938 = vpack.c.bf16 %v6877, %v6876
  %v6939 = vpack.c.bf16 %v6879, %v6878
  %v6940 = vpack.c.bf16 %v6881, %v6880
  %v6941 = vpack.c.bf16 %v6883, %v6882
  %v6942 = vpack.c.bf16 %v6885, %v6884
  %v6943 = vpack.c.bf16 %v6887, %v6886
  %v6944 = vpack.c.bf16 %v6889, %v6888
  %v6945 = vpack.c.bf16 %v6891, %v6890
  %v6946 = vpack.c.bf16 %v6893, %v6892
  %v6947 = vpack.c.bf16 %v6895, %v6894
  %v6948 = vpack.c.bf16 %v6897, %v6896
  %v6949 = vpack.c.bf16 %v6899, %v6898
  %v6950 = vpack.c.bf16 %v6901, %v6900
  %v6951 = vpack.c.bf16 %v6903, %v6902
  %v6952 = vpack.c.bf16 %v6905, %v6904
  %v6953 = vpack.c.bf16 %v6907, %v6906
  %v6954 = vpack.c.bf16 %v6909, %v6908
  %v6955 = vpack.c.bf16 %v6911, %v6910
  %v6956 = vpack.c.bf16 %v6913, %v6912
  %v6957 = vpack.c.bf16 %v6915, %v6914
  %v6958 = vpack.c.bf16 %v6917, %v6916
  %v6959 = vpack.c.bf16 %v6919, %v6918
  %v6960 = vpack.c.bf16 %v6921, %v6920
  %v6961 = vpack.c.bf16 %v6923, %v6922
  %v6962 = vpack.c.bf16 %v6925, %v6924
  %v6963 = vpack.c.bf16 %v6927, %v6926
  %v6964 = vpack.c.bf16 %v6929, %v6928
  %v6965 = vpack.c.bf16 %v6931, %v6930
  %v6966 = vpack.c.bf16 %v6933, %v6932
  %v6967 = vpack.c.bf16 %v6935, %v6934
  %v6968 = vpack.c.bf16 %v6936, %v6936
  %s6969 = scalar_lea.vmem %s1, 12
  %v6970 = vld [vmem:[%s6969] sm:$0x3]
  %v6972 = vsel %vm116, %v6937, 0
  %v6975 = vsel %vm116, %v6938, 0
  %v6978 = vsel %vm116, %v6939, 0
  %v6981 = vsel %vm116, %v6940, 0
  %v6984 = vsel %vm116, %v6941, 0
  %v6987 = vsel %vm116, %v6942, 0
  %v6990 = vsel %vm116, %v6943, 0
  %v6993 = vsel %vm116, %v6944, 0
  %v6996 = vsel %vm116, %v6945, 0
  %v6999 = vsel %vm116, %v6946, 0
  %v7002 = vsel %vm116, %v6947, 0
  %v7005 = vsel %vm116, %v6948, 0
  %v7008 = vsel %vm116, %v6949, 0
  %v7011 = vsel %vm116, %v6950, 0
  %v7014 = vsel %vm116, %v6951, 0
  %v7017 = vsel %vm116, %v6952, 0
  %v7020 = vsel %vm116, %v6953, 0
  %v7023 = vsel %vm116, %v6954, 0
  %v7026 = vsel %vm116, %v6955, 0
  %v7029 = vsel %vm116, %v6956, 0
  %v7032 = vsel %vm116, %v6957, 0
  %v7035 = vsel %vm116, %v6958, 0
  %v7038 = vsel %vm116, %v6959, 0
  %v7041 = vsel %vm116, %v6960, 0
  %v7044 = vsel %vm116, %v6961, 0
  %v7047 = vsel %vm116, %v6962, 0
  %v7050 = vsel %vm116, %v6963, 0
  %v7053 = vsel %vm116, %v6964, 0
  %v7056 = vsel %vm116, %v6965, 0
  %v7059 = vsel %vm116, %v6966, 0
  %v7062 = vsel %vm116, %v6967, 0
  %v7065 = vsel %vm116, %v6968, 0
  %v7068 = vand.u32 %v6970, %v216
  %7070 = vmatprep.subr.bf16.mxu0 0
  %7071 = vmatpush1.bf16.msra.mxu0 %v7068
  %7072 = vmatprep.subr.bf16.mxu0 0
  %7073 = vmatpush1.bf16.msra.mxu0 0
  %7074 = vmatprep.subr.bf16.mxu0 0
  %7075 = vmatpush1.bf16.msra.mxu0 0
  %7076 = vmatprep.subr.bf16.mxu0 0
  %7077 = vmatpush1.bf16.msra.mxu0 0
  %7078 = vmatprep.subr.bf16.mxu0 0
  %7079 = vmatpush1.bf16.msra.mxu0 0
  %7080 = vmatprep.subr.bf16.mxu0 0
  %7081 = vmatpush1.bf16.msra.mxu0 0
  %7082 = vmatprep.subr.bf16.mxu0 0
  %7083 = vmatpush1.bf16.msra.mxu0 0
  %7084 = vmatprep.subr.bf16.mxu0 0
  %7085 = vmatpush1.bf16.msra.mxu0 0
  %7086 = vmatprep.subr.bf16.mxu0 0
  %7087 = vmatpush1.bf16.msra.mxu0 0
  %7088 = vmatprep.subr.bf16.mxu0 0
  %7089 = vmatpush1.bf16.msra.mxu0 0
  %7090 = vmatprep.subr.bf16.mxu0 0
  %7091 = vmatpush1.bf16.msra.mxu0 0
  %7092 = vmatprep.subr.bf16.mxu0 0
  %7093 = vmatpush1.bf16.msra.mxu0 0
  %7094 = vmatprep.subr.bf16.mxu0 0
  %7095 = vmatpush1.bf16.msra.mxu0 0
  %7096 = vmatprep.subr.bf16.mxu0 0
  %7097 = vmatpush1.bf16.msra.mxu0 0
  %7098 = vmatprep.subr.bf16.mxu0 0
  %7099 = vmatpush1.bf16.msra.mxu0 0
  %7100 = vmatprep.subr.bf16.mxu0 0
  %7101 = vmatpush1.bf16.msra.mxu0 0
  %7102 = vmatprep.mubr.bf16.mxu0 0
  %7103 = vmatmul.mubr.bf16.gmra.mrb[0].mxu0 %v6972
  %v7104 = vpop.f32.mrb[0].mxu0
  %v7105 = vadd.f32 0.0, %v7104
  %v7106 = vpop.f32.mrb[0].mxu0
  %v7107 = vpop.f32.mrb[0].mxu0
  %v7108 = vadd.f32 0.0, %v7107
  %v7109 = vpop.f32.mrb[0].mxu0
  %7110 = vmatprep.mubr.bf16.mxu0 0
  %7111 = vmatmul.mubr.bf16.gmra.mrb[0].mxu0 %v6975
  %v7112 = vpop.f32.mrb[0].mxu0
  %v7113 = vadd.f32 0.0, %v7112
  %v7114 = vpop.f32.mrb[0].mxu0
  %v7115 = vpop.f32.mrb[0].mxu0
  %v7116 = vadd.f32 0.0, %v7115
  %v7117 = vpop.f32.mrb[0].mxu0
  %7118 = vmatprep.mubr.bf16.mxu0 0
  %7119 = vmatmul.mubr.bf16.gmra.mrb[0].mxu0 %v6978
  %v7120 = vpop.f32.mrb[0].mxu0
  %v7121 = vadd.f32 0.0, %v7120
  %v7122 = vpop.f32.mrb[0].mxu0
  %v7123 = vpop.f32.mrb[0].mxu0
  %v7124 = vadd.f32 0.0, %v7123
  %v7125 = vpop.f32.mrb[0].mxu0
  %7126 = vmatprep.mubr.bf16.mxu0 0
  %7127 = vmatmul.mubr.bf16.gmra.mrb[0].mxu0 %v6981
  %v7128 = vpop.f32.mrb[0].mxu0
  %v7129 = vadd.f32 0.0, %v7128
  %v7130 = vpop.f32.mrb[0].mxu0
  %v7131 = vpop.f32.mrb[0].mxu0
  %v7132 = vadd.f32 0.0, %v7131
  %v7133 = vpop.f32.mrb[0].mxu0
  %7134 = vmatprep.mubr.bf16.mxu0 0
  %7135 = vmatmul.mubr.bf16.gmra.mrb[0].mxu0 %v6984
  %v7136 = vpop.f32.mrb[0].mxu0
  %v7137 = vadd.f32 0.0, %v7136
  %v7138 = vpop.f32.mrb[0].mxu0
  %v7139 = vpop.f32.mrb[0].mxu0
  %v7140 = vadd.f32 0.0, %v7139
  %v7141 = vpop.f32.mrb[0].mxu0
  %7142 = vmatprep.mubr.bf16.mxu0 0
  %7143 = vmatmul.mubr.bf16.gmra.mrb[0].mxu0 %v6987
  %v7144 = vpop.f32.mrb[0].mxu0
  %v7145 = vadd.f32 0.0, %v7144
  %v7146 = vpop.f32.mrb[0].mxu0
  %v7147 = vpop.f32.mrb[0].mxu0
  %v7148 = vadd.f32 0.0, %v7147
  %v7149 = vpop.f32.mrb[0].mxu0
  %7150 = vmatprep.mubr.bf16.mxu0 0
  %7151 = vmatmul.mubr.bf16.gmra.mrb[0].mxu0 %v6990
  %v7152 = vpop.f32.mrb[0].mxu0
  %v7153 = vadd.f32 0.0, %v7152
  %v7154 = vpop.f32.mrb[0].mxu0
  %v7155 = vpop.f32.mrb[0].mxu0
  %v7156 = vadd.f32 0.0, %v7155
  %v7157 = vpop.f32.mrb[0].mxu0
  %7158 = vmatprep.mubr.bf16.mxu0 0
  %7159 = vmatmul.mubr.bf16.gmra.mrb[0].mxu0 %v6993
  %v7160 = vpop.f32.mrb[0].mxu0
  %v7161 = vadd.f32 0.0, %v7160
  %v7162 = vpop.f32.mrb[0].mxu0
  %v7163 = vpop.f32.mrb[0].mxu0
  %v7164 = vadd.f32 0.0, %v7163
  %v7165 = vpop.f32.mrb[0].mxu0
  %7166 = vmatprep.mubr.bf16.mxu0 0
  %7167 = vmatmul.mubr.bf16.gmra.mrb[0].mxu0 %v6996
  %v7168 = vpop.f32.mrb[0].mxu0
  %v7169 = vadd.f32 0.0, %v7168
  %v7170 = vpop.f32.mrb[0].mxu0
  %v7171 = vpop.f32.mrb[0].mxu0
  %v7172 = vadd.f32 0.0, %v7171
  %v7173 = vpop.f32.mrb[0].mxu0
  %7174 = vmatprep.mubr.bf16.mxu0 0
  %7175 = vmatmul.mubr.bf16.gmra.mrb[0].mxu0 %v6999
  %v7176 = vpop.f32.mrb[0].mxu0
  %v7177 = vadd.f32 0.0, %v7176
  %v7178 = vpop.f32.mrb[0].mxu0
  %v7179 = vpop.f32.mrb[0].mxu0
  %v7180 = vadd.f32 0.0, %v7179
  %v7181 = vpop.f32.mrb[0].mxu0
  %7182 = vmatprep.mubr.bf16.mxu0 0
  %7183 = vmatmul.mubr.bf16.gmra.mrb[0].mxu0 %v7002
  %v7184 = vpop.f32.mrb[0].mxu0
  %v7185 = vadd.f32 0.0, %v7184
  %v7186 = vpop.f32.mrb[0].mxu0
  %v7187 = vpop.f32.mrb[0].mxu0
  %v7188 = vadd.f32 0.0, %v7187
  %v7189 = vpop.f32.mrb[0].mxu0
  %7190 = vmatprep.mubr.bf16.mxu0 0
  %7191 = vmatmul.mubr.bf16.gmra.mrb[0].mxu0 %v7005
  %v7192 = vpop.f32.mrb[0].mxu0
  %v7193 = vadd.f32 0.0, %v7192
  %v7194 = vpop.f32.mrb[0].mxu0
  %v7195 = vpop.f32.mrb[0].mxu0
  %v7196 = vadd.f32 0.0, %v7195
  %v7197 = vpop.f32.mrb[0].mxu0
  %7198 = vmatprep.mubr.bf16.mxu0 0
  %7199 = vmatmul.mubr.bf16.gmra.mrb[0].mxu0 %v7008
  %v7200 = vpop.f32.mrb[0].mxu0
  %v7201 = vadd.f32 0.0, %v7200
  %v7202 = vpop.f32.mrb[0].mxu0
  %v7203 = vpop.f32.mrb[0].mxu0
  %v7204 = vadd.f32 0.0, %v7203
  %v7205 = vpop.f32.mrb[0].mxu0
  %7206 = vmatprep.mubr.bf16.mxu0 0
  %7207 = vmatmul.mubr.bf16.gmra.mrb[0].mxu0 %v7011
  %v7208 = vpop.f32.mrb[0].mxu0
  %v7209 = vadd.f32 0.0, %v7208
  %v7210 = vpop.f32.mrb[0].mxu0
  %v7211 = vpop.f32.mrb[0].mxu0
  %v7212 = vadd.f32 0.0, %v7211
  %v7213 = vpop.f32.mrb[0].mxu0
  %7214 = vmatprep.mubr.bf16.mxu0 0
  %7215 = vmatmul.mubr.bf16.gmra.mrb[0].mxu0 %v7014
  %v7216 = vpop.f32.mrb[0].mxu0
  %v7217 = vadd.f32 0.0, %v7216
  %v7218 = vpop.f32.mrb[0].mxu0
  %v7219 = vpop.f32.mrb[0].mxu0
  %v7220 = vadd.f32 0.0, %v7219
  %v7221 = vpop.f32.mrb[0].mxu0
  %7222 = vmatprep.mubr.bf16.mxu0 0
  %7223 = vmatmul.mubr.bf16.gmra.mrb[0].mxu0 %v7017
  %v7224 = vpop.f32.mrb[0].mxu0
  %v7225 = vadd.f32 0.0, %v7224
  %v7226 = vpop.f32.mrb[0].mxu0
  %v7227 = vpop.f32.mrb[0].mxu0
  %v7228 = vadd.f32 0.0, %v7227
  %v7229 = vpop.f32.mrb[0].mxu0
  %7230 = vmatprep.mubr.bf16.mxu0 0
  %7231 = vmatmul.mubr.bf16.gmra.mrb[0].mxu0 %v7020
  %v7232 = vpop.f32.mrb[0].mxu0
  %v7233 = vadd.f32 0.0, %v7232
  %v7234 = vpop.f32.mrb[0].mxu0
  %v7235 = vpop.f32.mrb[0].mxu0
  %v7236 = vadd.f32 0.0, %v7235
  %v7237 = vpop.f32.mrb[0].mxu0
  %7238 = vmatprep.mubr.bf16.mxu0 0
  %7239 = vmatmul.mubr.bf16.gmra.mrb[0].mxu0 %v7023
  %v7240 = vpop.f32.mrb[0].mxu0
  %v7241 = vadd.f32 0.0, %v7240
  %v7242 = vpop.f32.mrb[0].mxu0
  %v7243 = vpop.f32.mrb[0].mxu0
  %v7244 = vadd.f32 0.0, %v7243
  %v7245 = vpop.f32.mrb[0].mxu0
  %7246 = vmatprep.mubr.bf16.mxu0 0
  %7247 = vmatmul.mubr.bf16.gmra.mrb[0].mxu0 %v7026
  %v7248 = vpop.f32.mrb[0].mxu0
  %v7249 = vadd.f32 0.0, %v7248
  %v7250 = vpop.f32.mrb[0].mxu0
  %v7251 = vpop.f32.mrb[0].mxu0
  %v7252 = vadd.f32 0.0, %v7251
  %v7253 = vpop.f32.mrb[0].mxu0
  %7254 = vmatprep.mubr.bf16.mxu0 0
  %7255 = vmatmul.mubr.bf16.gmra.mrb[0].mxu0 %v7029
  %v7256 = vpop.f32.mrb[0].mxu0
  %v7257 = vadd.f32 0.0, %v7256
  %v7258 = vpop.f32.mrb[0].mxu0
  %v7259 = vpop.f32.mrb[0].mxu0
  %v7260 = vadd.f32 0.0, %v7259
  %v7261 = vpop.f32.mrb[0].mxu0
  %7262 = vmatprep.mubr.bf16.mxu0 0
  %7263 = vmatmul.mubr.bf16.gmra.mrb[0].mxu0 %v7032
  %v7264 = vpop.f32.mrb[0].mxu0
  %v7265 = vadd.f32 0.0, %v7264
  %v7266 = vpop.f32.mrb[0].mxu0
  %v7267 = vpop.f32.mrb[0].mxu0
  %v7268 = vadd.f32 0.0, %v7267
  %v7269 = vpop.f32.mrb[0].mxu0
  %7270 = vmatprep.mubr.bf16.mxu0 0
  %7271 = vmatmul.mubr.bf16.gmra.mrb[0].mxu0 %v7035
  %v7272 = vpop.f32.mrb[0].mxu0
  %v7273 = vadd.f32 0.0, %v7272
  %v7274 = vpop.f32.mrb[0].mxu0
  %v7275 = vpop.f32.mrb[0].mxu0
  %v7276 = vadd.f32 0.0, %v7275
  %v7277 = vpop.f32.mrb[0].mxu0
  %7278 = vmatprep.mubr.bf16.mxu0 0
  %7279 = vmatmul.mubr.bf16.gmra.mrb[0].mxu0 %v7038
  %v7280 = vpop.f32.mrb[0].mxu0
  %v7281 = vadd.f32 0.0, %v7280
  %v7282 = vpop.f32.mrb[0].mxu0
  %v7283 = vpop.f32.mrb[0].mxu0
  %v7284 = vadd.f32 0.0, %v7283
  %v7285 = vpop.f32.mrb[0].mxu0
  %7286 = vmatprep.mubr.bf16.mxu0 0
  %7287 = vmatmul.mubr.bf16.gmra.mrb[0].mxu0 %v7041
  %v7288 = vpop.f32.mrb[0].mxu0
  %v7289 = vadd.f32 0.0, %v7288
  %v7290 = vpop.f32.mrb[0].mxu0
  %v7291 = vpop.f32.mrb[0].mxu0
  %v7292 = vadd.f32 0.0, %v7291
  %v7293 = vpop.f32.mrb[0].mxu0
  %7294 = vmatprep.mubr.bf16.mxu0 0
  %7295 = vmatmul.mubr.bf16.gmra.mrb[0].mxu0 %v7044
  %v7296 = vpop.f32.mrb[0].mxu0
  %v7297 = vadd.f32 0.0, %v7296
  %v7298 = vpop.f32.mrb[0].mxu0
  %v7299 = vpop.f32.mrb[0].mxu0
  %v7300 = vadd.f32 0.0, %v7299
  %v7301 = vpop.f32.mrb[0].mxu0
  %7302 = vmatprep.mubr.bf16.mxu0 0
  %7303 = vmatmul.mubr.bf16.gmra.mrb[0].mxu0 %v7047
  %v7304 = vpop.f32.mrb[0].mxu0
  %v7305 = vadd.f32 0.0, %v7304
  %v7306 = vpop.f32.mrb[0].mxu0
  %v7307 = vpop.f32.mrb[0].mxu0
  %v7308 = vadd.f32 0.0, %v7307
  %v7309 = vpop.f32.mrb[0].mxu0
  %7310 = vmatprep.mubr.bf16.mxu0 0
  %7311 = vmatmul.mubr.bf16.gmra.mrb[0].mxu0 %v7050
  %v7312 = vpop.f32.mrb[0].mxu0
  %v7313 = vadd.f32 0.0, %v7312
  %v7314 = vpop.f32.mrb[0].mxu0
  %v7315 = vpop.f32.mrb[0].mxu0
  %v7316 = vadd.f32 0.0, %v7315
  %v7317 = vpop.f32.mrb[0].mxu0
  %7318 = vmatprep.mubr.bf16.mxu0 0
  %7319 = vmatmul.mubr.bf16.gmra.mrb[0].mxu0 %v7053
  %v7320 = vpop.f32.mrb[0].mxu0
  %v7321 = vadd.f32 0.0, %v7320
  %v7322 = vpop.f32.mrb[0].mxu0
  %v7323 = vpop.f32.mrb[0].mxu0
  %v7324 = vadd.f32 0.0, %v7323
  %v7325 = vpop.f32.mrb[0].mxu0
  %7326 = vmatprep.mubr.bf16.mxu0 0
  %7327 = vmatmul.mubr.bf16.gmra.mrb[0].mxu0 %v7056
  %v7328 = vpop.f32.mrb[0].mxu0
  %v7329 = vadd.f32 0.0, %v7328
  %v7330 = vpop.f32.mrb[0].mxu0
  %v7331 = vpop.f32.mrb[0].mxu0
  %v7332 = vadd.f32 0.0, %v7331
  %v7333 = vpop.f32.mrb[0].mxu0
  %7334 = vmatprep.mubr.bf16.mxu0 0
  %7335 = vmatmul.mubr.bf16.gmra.mrb[0].mxu0 %v7059
  %v7336 = vpop.f32.mrb[0].mxu0
  %v7337 = vadd.f32 0.0, %v7336
  %v7338 = vpop.f32.mrb[0].mxu0
  %v7339 = vpop.f32.mrb[0].mxu0
  %v7340 = vadd.f32 0.0, %v7339
  %v7341 = vpop.f32.mrb[0].mxu0
  %7342 = vmatprep.mubr.bf16.mxu0 0
  %7343 = vmatmul.mubr.bf16.gmra.mrb[0].mxu0 %v7062
  %v7344 = vpop.f32.mrb[0].mxu0
  %v7345 = vadd.f32 0.0, %v7344
  %v7346 = vpop.f32.mrb[0].mxu0
  %v7347 = vpop.f32.mrb[0].mxu0
  %v7348 = vadd.f32 0.0, %v7347
  %v7349 = vpop.f32.mrb[0].mxu0
  %7350 = vmatprep.mubr.bf16.mxu0 0
  %7351 = vmatmul.mubr.bf16.gmra.mrb[0].mxu0 %v7065
  %v7352 = vpop.f32.mrb[0].mxu0
  %v7353 = vadd.f32 0.0, %v7352
  %v7354 = vpop.f32.mrb[0].mxu0
  %v7355 = vpop.f32.mrb[0].mxu0
  %v7356 = vpop.f32.mrb[0].mxu0
  %7357 = vdwg.mxu0
  %v7358 = vld [vmem:[#allocation2] sm:$0xff]
  %v7359 = vld [vmem:[#allocation2 + $0x8] sm:$0xff]
  %v7360 = vld [vmem:[#allocation2 + $0x10] sm:$0xff]
  %v7361 = vld [vmem:[#allocation2 + $0x18] sm:$0xff]
  %v7362 = vld [vmem:[#allocation2 + $0x20] sm:$0xff]
  %v7363 = vld [vmem:[#allocation2 + $0x28] sm:$0xff]
  %v7364 = vld [vmem:[#allocation2 + $0x30] sm:$0xff]
  %v7365 = vld [vmem:[#allocation2 + $0x38] sm:$0xff]
  %v7366 = vld [vmem:[#allocation2 + $0x40] sm:$0xff]
  %v7367 = vld [vmem:[#allocation2 + $0x48] sm:$0xff]
  %v7368 = vld [vmem:[#allocation2 + $0x50] sm:$0xff]
  %v7369 = vld [vmem:[#allocation2 + $0x58] sm:$0xff]
  %v7370 = vld [vmem:[#allocation2 + $0x60] sm:$0xff]
  %v7371 = vld [vmem:[#allocation2 + $0x68] sm:$0xff]
  %v7372 = vld [vmem:[#allocation2 + $0x70] sm:$0xff]
  %v7373 = vld [vmem:[#allocation2 + $0x78] sm:$0xff]
  %v7374 = vld [vmem:[#allocation2 + $0x80] sm:$0xff]
  %v7375 = vld [vmem:[#allocation2 + $0x88] sm:$0xff]
  %v7376 = vld [vmem:[#allocation2 + $0x90] sm:$0xff]
  %v7377 = vld [vmem:[#allocation2 + $0x98] sm:$0xff]
  %v7378 = vld [vmem:[#allocation2 + $0xa0] sm:$0xff]
  %v7379 = vld [vmem:[#allocation2 + $0xa8] sm:$0xff]
  %v7380 = vld [vmem:[#allocation2 + $0xb0] sm:$0xff]
  %v7381 = vld [vmem:[#allocation2 + $0xb8] sm:$0xff]
  %v7382 = vld [vmem:[#allocation2 + $0xc0] sm:$0xff]
  %v7383 = vld [vmem:[#allocation2 + $0xc8] sm:$0xff]
  %v7384 = vld [vmem:[#allocation2 + $0xd0] sm:$0xff]
  %v7385 = vld [vmem:[#allocation2 + $0xd8] sm:$0xff]
  %v7386 = vld [vmem:[#allocation2 + $0xe0] sm:$0xff]
  %v7387 = vld [vmem:[#allocation2 + $0xe8] sm:$0xff]
  %v7388 = vld [vmem:[#allocation2 + $0xf0] sm:$0xff]
  %v7389 = vld [vmem:[#allocation2 + $0xf8] sm:$0xff]
  %v7390 = vld [vmem:[#allocation2 + $0x100] sm:$0xff]
  %v7391 = vld [vmem:[#allocation2 + $0x108] sm:$0xff]
  %v7392 = vld [vmem:[#allocation2 + $0x110] sm:$0xff]
  %v7393 = vld [vmem:[#allocation2 + $0x118] sm:$0xff]
  %v7394 = vld [vmem:[#allocation2 + $0x120] sm:$0xff]
  %v7395 = vld [vmem:[#allocation2 + $0x128] sm:$0xff]
  %v7396 = vld [vmem:[#allocation2 + $0x130] sm:$0xff]
  %v7397 = vld [vmem:[#allocation2 + $0x138] sm:$0xff]
  %v7398 = vld [vmem:[#allocation2 + $0x140] sm:$0xff]
  %v7399 = vld [vmem:[#allocation2 + $0x148] sm:$0xff]
  %v7400 = vld [vmem:[#allocation2 + $0x150] sm:$0xff]
  %v7401 = vld [vmem:[#allocation2 + $0x158] sm:$0xff]
  %v7402 = vld [vmem:[#allocation2 + $0x160] sm:$0xff]
  %v7403 = vld [vmem:[#allocation2 + $0x168] sm:$0xff]
  %v7404 = vld [vmem:[#allocation2 + $0x170] sm:$0xff]
  %v7405 = vld [vmem:[#allocation2 + $0x178] sm:$0xff]
  %v7406 = vld [vmem:[#allocation2 + $0x180] sm:$0xff]
  %v7407 = vld [vmem:[#allocation2 + $0x188] sm:$0xff]
  %v7408 = vld [vmem:[#allocation2 + $0x190] sm:$0xff]
  %v7409 = vld [vmem:[#allocation2 + $0x198] sm:$0xff]
  %v7410 = vld [vmem:[#allocation2 + $0x1a0] sm:$0xff]
  %v7411 = vld [vmem:[#allocation2 + $0x1a8] sm:$0xff]
  %v7412 = vld [vmem:[#allocation2 + $0x1b0] sm:$0xff]
  %v7413 = vld [vmem:[#allocation2 + $0x1b8] sm:$0xff]
  %v7414 = vld [vmem:[#allocation2 + $0x1c0] sm:$0xff]
  %v7415 = vld [vmem:[#allocation2 + $0x1c8] sm:$0xff]
  %v7416 = vld [vmem:[#allocation2 + $0x1d0] sm:$0xff]
  %v7417 = vld [vmem:[#allocation2 + $0x1d8] sm:$0xff]
  %v7418 = vld [vmem:[#allocation2 + $0x1e0] sm:$0xff]
  %v7419 = vld [vmem:[#allocation2 + $0x1e8] sm:$0xff]
  %v7420 = vld [vmem:[#allocation2 + $0x1f0] sm:$0x1]
  %v7421 = vadd.f32 %v7358, %v7105
  %v7422 = vadd.f32 %v7359, %v7108
  %v7423 = vadd.f32 %v7360, %v7113
  %v7424 = vadd.f32 %v7361, %v7116
  %v7425 = vadd.f32 %v7362, %v7121
  %v7426 = vadd.f32 %v7363, %v7124
  %v7427 = vadd.f32 %v7364, %v7129
  %v7428 = vadd.f32 %v7365, %v7132
  %v7429 = vadd.f32 %v7366, %v7137
  %v7430 = vadd.f32 %v7367, %v7140
  %v7431 = vadd.f32 %v7368, %v7145
  %v7432 = vadd.f32 %v7369, %v7148
  %v7433 = vadd.f32 %v7370, %v7153
  %v7434 = vadd.f32 %v7371, %v7156
  %v7435 = vadd.f32 %v7372, %v7161
  %v7436 = vadd.f32 %v7373, %v7164
  %v7437 = vadd.f32 %v7374, %v7169
  %v7438 = vadd.f32 %v7375, %v7172
  %v7439 = vadd.f32 %v7376, %v7177
  %v7440 = vadd.f32 %v7377, %v7180
  %v7441 = vadd.f32 %v7378, %v7185
  %v7442 = vadd.f32 %v7379, %v7188
  %v7443 = vadd.f32 %v7380, %v7193
  %v7444 = vadd.f32 %v7381, %v7196
  %v7445 = vadd.f32 %v7382, %v7201
  %v7446 = vadd.f32 %v7383, %v7204
  %v7447 = vadd.f32 %v7384, %v7209
  %v7448 = vadd.f32 %v7385, %v7212
  %v7449 = vadd.f32 %v7386, %v7217
  %v7450 = vadd.f32 %v7387, %v7220
  %v7451 = vadd.f32 %v7388, %v7225
  %v7452 = vadd.f32 %v7389, %v7228
  %v7453 = vadd.f32 %v7390, %v7233
  %v7454 = vadd.f32 %v7391, %v7236
  %v7455 = vadd.f32 %v7392, %v7241
  %v7456 = vadd.f32 %v7393, %v7244
  %v7457 = vadd.f32 %v7394, %v7249
  %v7458 = vadd.f32 %v7395, %v7252
  %v7459 = vadd.f32 %v7396, %v7257
  %v7460 = vadd.f32 %v7397, %v7260
  %v7461 = vadd.f32 %v7398, %v7265
  %v7462 = vadd.f32 %v7399, %v7268
  %v7463 = vadd.f32 %v7400, %v7273
  %v7464 = vadd.f32 %v7401, %v7276
  %v7465 = vadd.f32 %v7402, %v7281
  %v7466 = vadd.f32 %v7403, %v7284
  %v7467 = vadd.f32 %v7404, %v7289
  %v7468 = vadd.f32 %v7405, %v7292
  %v7469 = vadd.f32 %v7406, %v7297
  %v7470 = vadd.f32 %v7407, %v7300
  %v7471 = vadd.f32 %v7408, %v7305
  %v7472 = vadd.f32 %v7409, %v7308
  %v7473 = vadd.f32 %v7410, %v7313
  %v7474 = vadd.f32 %v7411, %v7316
  %v7475 = vadd.f32 %v7412, %v7321
  %v7476 = vadd.f32 %v7413, %v7324
  %v7477 = vadd.f32 %v7414, %v7329
  %v7478 = vadd.f32 %v7415, %v7332
  %v7479 = vadd.f32 %v7416, %v7337
  %v7480 = vadd.f32 %v7417, %v7340
  %v7481 = vadd.f32 %v7418, %v7345
  %v7482 = vadd.f32 %v7419, %v7348
  %v7483 = vadd.f32 %v7420, %v7353
  %7484 = vst.msk [vmem:[#allocation2] sm:$0xff] %vm509, %v7421
  %7485 = vst.msk [vmem:[#allocation2 + $0x8] sm:$0xff] %vm509, %v7422
  %7486 = vst.msk [vmem:[#allocation2 + $0x10] sm:$0xff] %vm509, %v7423
  %7487 = vst.msk [vmem:[#allocation2 + $0x18] sm:$0xff] %vm509, %v7424
  %7488 = vst.msk [vmem:[#allocation2 + $0x20] sm:$0xff] %vm509, %v7425
  %7489 = vst.msk [vmem:[#allocation2 + $0x28] sm:$0xff] %vm509, %v7426
  %7490 = vst.msk [vmem:[#allocation2 + $0x30] sm:$0xff] %vm509, %v7427
  %7491 = vst.msk [vmem:[#allocation2 + $0x38] sm:$0xff] %vm509, %v7428
  %7492 = vst.msk [vmem:[#allocation2 + $0x40] sm:$0xff] %vm509, %v7429
  %7493 = vst.msk [vmem:[#allocation2 + $0x48] sm:$0xff] %vm509, %v7430
  %7494 = vst.msk [vmem:[#allocation2 + $0x50] sm:$0xff] %vm509, %v7431
  %7495 = vst.msk [vmem:[#allocation2 + $0x58] sm:$0xff] %vm509, %v7432
  %7496 = vst.msk [vmem:[#allocation2 + $0x60] sm:$0xff] %vm509, %v7433
  %7497 = vst.msk [vmem:[#allocation2 + $0x68] sm:$0xff] %vm509, %v7434
  %7498 = vst.msk [vmem:[#allocation2 + $0x70] sm:$0xff] %vm509, %v7435
  %7499 = vst.msk [vmem:[#allocation2 + $0x78] sm:$0xff] %vm509, %v7436
  %7500 = vst.msk [vmem:[#allocation2 + $0x80] sm:$0xff] %vm509, %v7437
  %7501 = vst.msk [vmem:[#allocation2 + $0x88] sm:$0xff] %vm509, %v7438
  %7502 = vst.msk [vmem:[#allocation2 + $0x90] sm:$0xff] %vm509, %v7439
  %7503 = vst.msk [vmem:[#allocation2 + $0x98] sm:$0xff] %vm509, %v7440
  %7504 = vst.msk [vmem:[#allocation2 + $0xa0] sm:$0xff] %vm509, %v7441
  %7505 = vst.msk [vmem:[#allocation2 + $0xa8] sm:$0xff] %vm509, %v7442
  %7506 = vst.msk [vmem:[#allocation2 + $0xb0] sm:$0xff] %vm509, %v7443
  %7507 = vst.msk [vmem:[#allocation2 + $0xb8] sm:$0xff] %vm509, %v7444
  %7508 = vst.msk [vmem:[#allocation2 + $0xc0] sm:$0xff] %vm509, %v7445
  %7509 = vst.msk [vmem:[#allocation2 + $0xc8] sm:$0xff] %vm509, %v7446
  %7510 = vst.msk [vmem:[#allocation2 + $0xd0] sm:$0xff] %vm509, %v7447
  %7511 = vst.msk [vmem:[#allocation2 + $0xd8] sm:$0xff] %vm509, %v7448
  %7512 = vst.msk [vmem:[#allocation2 + $0xe0] sm:$0xff] %vm509, %v7449
  %7513 = vst.msk [vmem:[#allocation2 + $0xe8] sm:$0xff] %vm509, %v7450
  %7514 = vst.msk [vmem:[#allocation2 + $0xf0] sm:$0xff] %vm509, %v7451
  %7515 = vst.msk [vmem:[#allocation2 + $0xf8] sm:$0xff] %vm509, %v7452
  %7516 = vst.msk [vmem:[#allocation2 + $0x100] sm:$0xff] %vm509, %v7453
  %7517 = vst.msk [vmem:[#allocation2 + $0x108] sm:$0xff] %vm509, %v7454
  %7518 = vst.msk [vmem:[#allocation2 + $0x110] sm:$0xff] %vm509, %v7455
  %7519 = vst.msk [vmem:[#allocation2 + $0x118] sm:$0xff] %vm509, %v7456
  %7520 = vst.msk [vmem:[#allocation2 + $0x120] sm:$0xff] %vm509, %v7457
  %7521 = vst.msk [vmem:[#allocation2 + $0x128] sm:$0xff] %vm509, %v7458
  %7522 = vst.msk [vmem:[#allocation2 + $0x130] sm:$0xff] %vm509, %v7459
  %7523 = vst.msk [vmem:[#allocation2 + $0x138] sm:$0xff] %vm509, %v7460
  %7524 = vst.msk [vmem:[#allocation2 + $0x140] sm:$0xff] %vm509, %v7461
  %7525 = vst.msk [vmem:[#allocation2 + $0x148] sm:$0xff] %vm509, %v7462
  %7526 = vst.msk [vmem:[#allocation2 + $0x150] sm:$0xff] %vm509, %v7463
  %7527 = vst.msk [vmem:[#allocation2 + $0x158] sm:$0xff] %vm509, %v7464
  %7528 = vst.msk [vmem:[#allocation2 + $0x160] sm:$0xff] %vm509, %v7465
  %7529 = vst.msk [vmem:[#allocation2 + $0x168] sm:$0xff] %vm509, %v7466
  %7530 = vst.msk [vmem:[#allocation2 + $0x170] sm:$0xff] %vm509, %v7467
  %7531 = vst.msk [vmem:[#allocation2 + $0x178] sm:$0xff] %vm509, %v7468
  %7532 = vst.msk [vmem:[#allocation2 + $0x180] sm:$0xff] %vm509, %v7469
  %7533 = vst.msk [vmem:[#allocation2 + $0x188] sm:$0xff] %vm509, %v7470
  %7534 = vst.msk [vmem:[#allocation2 + $0x190] sm:$0xff] %vm509, %v7471
  %7535 = vst.msk [vmem:[#allocation2 + $0x198] sm:$0xff] %vm509, %v7472
  %7536 = vst.msk [vmem:[#allocation2 + $0x1a0] sm:$0xff] %vm509, %v7473
  %7537 = vst.msk [vmem:[#allocation2 + $0x1a8] sm:$0xff] %vm509, %v7474
  %7538 = vst.msk [vmem:[#allocation2 + $0x1b0] sm:$0xff] %vm509, %v7475
  %7539 = vst.msk [vmem:[#allocation2 + $0x1b8] sm:$0xff] %vm509, %v7476
  %7540 = vst.msk [vmem:[#allocation2 + $0x1c0] sm:$0xff] %vm509, %v7477
  %7541 = vst.msk [vmem:[#allocation2 + $0x1c8] sm:$0xff] %vm509, %v7478
  %7542 = vst.msk [vmem:[#allocation2 + $0x1d0] sm:$0xff] %vm509, %v7479
  %7543 = vst.msk [vmem:[#allocation2 + $0x1d8] sm:$0xff] %vm509, %v7480
  %7544 = vst.msk [vmem:[#allocation2 + $0x1e0] sm:$0xff] %vm509, %v7481
  %7545 = vst.msk [vmem:[#allocation2 + $0x1e8] sm:$0xff] %vm509, %v7482
  %7546 = vst.msk [vmem:[#allocation2 + $0x1f0] sm:$0x1] %vm4309, %v7483
  %v7547 = vld [vmem:[%s0 + $0x10] sm:$0xff]
  %v7548 = vld [vmem:[%s0 + $0x18] sm:$0xff]
  %v7549 = vld [vmem:[%s0 + $0x20] sm:$0xff]
  %v7550 = vld [vmem:[%s0 + $0x28] sm:$0xff]
  %v7551 = vld [vmem:[%s0 + $0x30] sm:$0xff]
  %v7552 = vld [vmem:[%s0 + $0x38] sm:$0xff]
  %v7553 = vld [vmem:[%s0 + $0x40] sm:$0xff]
  %v7554 = vld [vmem:[%s0 + $0x48] sm:$0xff]
  %v7555 = vld [vmem:[%s0 + $0x50] sm:$0xff]
  %v7556 = vld [vmem:[%s0 + $0x58] sm:$0xff]
  %v7557 = vld [vmem:[%s0 + $0x60] sm:$0xff]
  %v7558 = vld [vmem:[%s0 + $0x68] sm:$0xff]
  %v7559 = vld [vmem:[%s0 + $0x70] sm:$0xff]
  %v7560 = vld [vmem:[%s0 + $0x78] sm:$0xff]
  %v7561 = vld [vmem:[%s0 + $0x80] sm:$0xff]
  %v7562 = vld [vmem:[%s0 + $0x88] sm:$0xff]
  %v7563 = vld [vmem:[%s0 + $0x90] sm:$0xff]
  %v7564 = vld [vmem:[%s0 + $0x98] sm:$0xff]
  %v7565 = vld [vmem:[%s0 + $0xa0] sm:$0xff]
  %v7566 = vld [vmem:[%s0 + $0xa8] sm:$0xff]
  %v7567 = vld [vmem:[%s0 + $0xb0] sm:$0xff]
  %v7568 = vld [vmem:[%s0 + $0xb8] sm:$0xff]
  %v7569 = vld [vmem:[%s0 + $0xc0] sm:$0xff]
  %v7570 = vld [vmem:[%s0 + $0xc8] sm:$0xff]
  %v7571 = vld [vmem:[%s0 + $0xd0] sm:$0xff]
  %v7572 = vld [vmem:[%s0 + $0xd8] sm:$0xff]
  %v7573 = vld [vmem:[%s0 + $0xe0] sm:$0xff]
  %v7574 = vld [vmem:[%s0 + $0xe8] sm:$0xff]
  %v7575 = vld [vmem:[%s0 + $0xf0] sm:$0xff]
  %v7576 = vld [vmem:[%s0 + $0xf8] sm:$0xff]
  %v7577 = vld [vmem:[%s0 + $0x100] sm:$0xff]
  %v7578 = vld [vmem:[%s0 + $0x108] sm:$0xff]
  %v7579 = vld [vmem:[%s0 + $0x110] sm:$0xff]
  %v7580 = vld [vmem:[%s0 + $0x118] sm:$0xff]
  %v7581 = vld [vmem:[%s0 + $0x120] sm:$0xff]
  %v7582 = vld [vmem:[%s0 + $0x128] sm:$0xff]
  %v7583 = vld [vmem:[%s0 + $0x130] sm:$0xff]
  %v7584 = vld [vmem:[%s0 + $0x138] sm:$0xff]
  %v7585 = vld [vmem:[%s0 + $0x140] sm:$0xff]
  %v7586 = vld [vmem:[%s0 + $0x148] sm:$0xff]
  %v7587 = vld [vmem:[%s0 + $0x150] sm:$0xff]
  %v7588 = vld [vmem:[%s0 + $0x158] sm:$0xff]
  %v7589 = vld [vmem:[%s0 + $0x160] sm:$0xff]
  %v7590 = vld [vmem:[%s0 + $0x168] sm:$0xff]
  %v7591 = vld [vmem:[%s0 + $0x170] sm:$0xff]
  %v7592 = vld [vmem:[%s0 + $0x178] sm:$0xff]
  %v7593 = vld [vmem:[%s0 + $0x180] sm:$0xff]
  %v7594 = vld [vmem:[%s0 + $0x188] sm:$0xff]
  %v7595 = vld [vmem:[%s0 + $0x190] sm:$0xff]
  %v7596 = vld [vmem:[%s0 + $0x198] sm:$0xff]
  %v7597 = vld [vmem:[%s0 + $0x1a0] sm:$0xff]
  %v7598 = vld [vmem:[%s0 + $0x1a8] sm:$0xff]
  %v7599 = vld [vmem:[%s0 + $0x1b0] sm:$0xff]
  %v7600 = vld [vmem:[%s0 + $0x1b8] sm:$0xff]
  %v7601 = vld [vmem:[%s0 + $0x1c0] sm:$0xff]
  %v7602 = vld [vmem:[%s0 + $0x1c8] sm:$0xff]
  %v7603 = vld [vmem:[%s0 + $0x1d0] sm:$0xff]
  %v7604 = vld [vmem:[%s0 + $0x1d8] sm:$0xff]
  %v7605 = vld [vmem:[%s0 + $0x1e0] sm:$0xff]
  %v7606 = vld [vmem:[%s0 + $0x1e8] sm:$0xff]
  %v7607 = vld [vmem:[%s0 + $0x1f0] sm:$0xff]
  %v7608 = vld [vmem:[%s0 + $0x1f8] sm:$0xff]
  %v7609 = vsel %vm6622, 1, 0
  %v7610 = vsel %vm6623, 1, 0
  %v7611 = vsel %vm6624, 1, 0
  %v7612 = vsel %vm6625, 1, 0
  %v7613 = vsel %vm6626, 1, 0
  %v7614 = vsel %vm6627, 1, 0
  %v7615 = vsel %vm6628, 1, 0
  %v7616 = vsel %vm6629, 1, 0
  %v7617 = vsel %vm6630, 1, 0
  %v7618 = vsel %vm6631, 1, 0
  %v7619 = vsel %vm6632, 1, 0
  %v7620 = vsel %vm6633, 1, 0
  %v7621 = vsel %vm6634, 1, 0
  %v7622 = vsel %vm6635, 1, 0
  %v7623 = vsel %vm6636, 1, 0
  %v7624 = vsel %vm6637, 1, 0
  %v7625 = vsel %vm6638, 1, 0
  %v7626 = vsel %vm6639, 1, 0
  %v7627 = vsel %vm6640, 1, 0
  %v7628 = vsel %vm6641, 1, 0
  %v7629 = vsel %vm6642, 1, 0
  %v7630 = vsel %vm6643, 1, 0
  %v7631 = vsel %vm6644, 1, 0
  %v7632 = vsel %vm6645, 1, 0
  %v7633 = vsel %vm6646, 1, 0
  %v7634 = vsel %vm6647, 1, 0
  %v7635 = vsel %vm6648, 1, 0
  %v7636 = vsel %vm6649, 1, 0
  %v7637 = vsel %vm6650, 1, 0
  %v7638 = vsel %vm6651, 1, 0
  %v7639 = vsel %vm6652, 1, 0
  %v7640 = vsel %vm6653, 1, 0
  %v7641 = vsel %vm6654, 1, 0
  %v7642 = vsel %vm6655, 1, 0
  %v7643 = vsel %vm6656, 1, 0
  %v7644 = vsel %vm6657, 1, 0
  %v7645 = vsel %vm6658, 1, 0
  %v7646 = vsel %vm6659, 1, 0
  %v7647 = vsel %vm6660, 1, 0
  %v7648 = vsel %vm6661, 1, 0
  %v7649 = vsel %vm6662, 1, 0
  %v7650 = vsel %vm6663, 1, 0
  %v7651 = vsel %vm6664, 1, 0
  %v7652 = vsel %vm6665, 1, 0
  %v7653 = vsel %vm6666, 1, 0
  %v7654 = vsel %vm6667, 1, 0
  %v7655 = vsel %vm6668, 1, 0
  %v7656 = vsel %vm6669, 1, 0
  %v7657 = vsel %vm6670, 1, 0
  %v7658 = vsel %vm6671, 1, 0
  %v7659 = vsel %vm6672, 1, 0
  %v7660 = vsel %vm6673, 1, 0
  %v7661 = vsel %vm6674, 1, 0
  %v7662 = vsel %vm6675, 1, 0
  %v7663 = vsel %vm6676, 1, 0
  %v7664 = vsel %vm6677, 1, 0
  %v7665 = vsel %vm6678, 1, 0
  %v7666 = vsel %vm6679, 1, 0
  %v7667 = vsel %vm6680, 1, 0
  %v7668 = vsel %vm6681, 1, 0
  %v7669 = vsel %vm6682, 1, 0
  %v7670 = vsel %vm6683, 1, 0
  %vm7671 = vcmp.eq.s32.totalorder %v7609, 1
  %vm7672 = vcmp.eq.s32.totalorder %v7610, 1
  %vm7673 = vcmp.eq.s32.totalorder %v7611, 1
  %vm7674 = vcmp.eq.s32.totalorder %v7612, 1
  %vm7675 = vcmp.eq.s32.totalorder %v7613, 1
  %vm7676 = vcmp.eq.s32.totalorder %v7614, 1
  %vm7677 = vcmp.eq.s32.totalorder %v7615, 1
  %vm7678 = vcmp.eq.s32.totalorder %v7616, 1
  %vm7679 = vcmp.eq.s32.totalorder %v7617, 1
  %vm7680 = vcmp.eq.s32.totalorder %v7618, 1
  %vm7681 = vcmp.eq.s32.totalorder %v7619, 1
  %vm7682 = vcmp.eq.s32.totalorder %v7620, 1
  %vm7683 = vcmp.eq.s32.totalorder %v7621, 1
  %vm7684 = vcmp.eq.s32.totalorder %v7622, 1
  %vm7685 = vcmp.eq.s32.totalorder %v7623, 1
  %vm7686 = vcmp.eq.s32.totalorder %v7624, 1
  %vm7687 = vcmp.eq.s32.totalorder %v7625, 1
  %vm7688 = vcmp.eq.s32.totalorder %v7626, 1
  %vm7689 = vcmp.eq.s32.totalorder %v7627, 1
  %vm7690 = vcmp.eq.s32.totalorder %v7628, 1
  %vm7691 = vcmp.eq.s32.totalorder %v7629, 1
  %vm7692 = vcmp.eq.s32.totalorder %v7630, 1
  %vm7693 = vcmp.eq.s32.totalorder %v7631, 1
  %vm7694 = vcmp.eq.s32.totalorder %v7632, 1
  %vm7695 = vcmp.eq.s32.totalorder %v7633, 1
  %vm7696 = vcmp.eq.s32.totalorder %v7634, 1
  %vm7697 = vcmp.eq.s32.totalorder %v7635, 1
  %vm7698 = vcmp.eq.s32.totalorder %v7636, 1
  %vm7699 = vcmp.eq.s32.totalorder %v7637, 1
  %vm7700 = vcmp.eq.s32.totalorder %v7638, 1
  %vm7701 = vcmp.eq.s32.totalorder %v7639, 1
  %vm7702 = vcmp.eq.s32.totalorder %v7640, 1
  %vm7703 = vcmp.eq.s32.totalorder %v7641, 1
  %vm7704 = vcmp.eq.s32.totalorder %v7642, 1
  %vm7705 = vcmp.eq.s32.totalorder %v7643, 1
  %vm7706 = vcmp.eq.s32.totalorder %v7644, 1
  %vm7707 = vcmp.eq.s32.totalorder %v7645, 1
  %vm7708 = vcmp.eq.s32.totalorder %v7646, 1
  %vm7709 = vcmp.eq.s32.totalorder %v7647, 1
  %vm7710 = vcmp.eq.s32.totalorder %v7648, 1
  %vm7711 = vcmp.eq.s32.totalorder %v7649, 1
  %vm7712 = vcmp.eq.s32.totalorder %v7650, 1
  %vm7713 = vcmp.eq.s32.totalorder %v7651, 1
  %vm7714 = vcmp.eq.s32.totalorder %v7652, 1
  %vm7715 = vcmp.eq.s32.totalorder %v7653, 1
  %vm7716 = vcmp.eq.s32.totalorder %v7654, 1
  %vm7717 = vcmp.eq.s32.totalorder %v7655, 1
  %vm7718 = vcmp.eq.s32.totalorder %v7656, 1
  %vm7719 = vcmp.eq.s32.totalorder %v7657, 1
  %vm7720 = vcmp.eq.s32.totalorder %v7658, 1
  %vm7721 = vcmp.eq.s32.totalorder %v7659, 1
  %vm7722 = vcmp.eq.s32.totalorder %v7660, 1
  %vm7723 = vcmp.eq.s32.totalorder %v7661, 1
  %vm7724 = vcmp.eq.s32.totalorder %v7662, 1
  %vm7725 = vcmp.eq.s32.totalorder %v7663, 1
  %vm7726 = vcmp.eq.s32.totalorder %v7664, 1
  %vm7727 = vcmp.eq.s32.totalorder %v7665, 1
  %vm7728 = vcmp.eq.s32.totalorder %v7666, 1
  %vm7729 = vcmp.eq.s32.totalorder %v7667, 1
  %vm7730 = vcmp.eq.s32.totalorder %v7668, 1
  %vm7731 = vcmp.eq.s32.totalorder %v7669, 1
  %vm7732 = vcmp.eq.s32.totalorder %v7670, 1
  %v7733 = vsel %vm7671, %v7547, 0.0
  %v7734 = vsel %vm7672, %v7548, 0.0
  %v7735 = vsel %vm7673, %v7549, 0.0
  %v7736 = vsel %vm7674, %v7550, 0.0
  %v7737 = vsel %vm7675, %v7551, 0.0
  %v7738 = vsel %vm7676, %v7552, 0.0
  %v7739 = vsel %vm7677, %v7553, 0.0
  %v7740 = vsel %vm7678, %v7554, 0.0
  %v7741 = vsel %vm7679, %v7555, 0.0
  %v7742 = vsel %vm7680, %v7556, 0.0
  %v7743 = vsel %vm7681, %v7557, 0.0
  %v7744 = vsel %vm7682, %v7558, 0.0
  %v7745 = vsel %vm7683, %v7559, 0.0
  %v7746 = vsel %vm7684, %v7560, 0.0
  %v7747 = vsel %vm7685, %v7561, 0.0
  %v7748 = vsel %vm7686, %v7562, 0.0
  %v7749 = vsel %vm7687, %v7563, 0.0
  %v7750 = vsel %vm7688, %v7564, 0.0
  %v7751 = vsel %vm7689, %v7565, 0.0
  %v7752 = vsel %vm7690, %v7566, 0.0
  %v7753 = vsel %vm7691, %v7567, 0.0
  %v7754 = vsel %vm7692, %v7568, 0.0
  %v7755 = vsel %vm7693, %v7569, 0.0
  %v7756 = vsel %vm7694, %v7570, 0.0
  %v7757 = vsel %vm7695, %v7571, 0.0
  %v7758 = vsel %vm7696, %v7572, 0.0
  %v7759 = vsel %vm7697, %v7573, 0.0
  %v7760 = vsel %vm7698, %v7574, 0.0
  %v7761 = vsel %vm7699, %v7575, 0.0
  %v7762 = vsel %vm7700, %v7576, 0.0
  %v7763 = vsel %vm7701, %v7577, 0.0
  %v7764 = vsel %vm7702, %v7578, 0.0
  %v7765 = vsel %vm7703, %v7579, 0.0
  %v7766 = vsel %vm7704, %v7580, 0.0
  %v7767 = vsel %vm7705, %v7581, 0.0
  %v7768 = vsel %vm7706, %v7582, 0.0
  %v7769 = vsel %vm7707, %v7583, 0.0
  %v7770 = vsel %vm7708, %v7584, 0.0
  %v7771 = vsel %vm7709, %v7585, 0.0
  %v7772 = vsel %vm7710, %v7586, 0.0
  %v7773 = vsel %vm7711, %v7587, 0.0
  %v7774 = vsel %vm7712, %v7588, 0.0
  %v7775 = vsel %vm7713, %v7589, 0.0
  %v7776 = vsel %vm7714, %v7590, 0.0
  %v7777 = vsel %vm7715, %v7591, 0.0
  %v7778 = vsel %vm7716, %v7592, 0.0
  %v7779 = vsel %vm7717, %v7593, 0.0
  %v7780 = vsel %vm7718, %v7594, 0.0
  %v7781 = vsel %vm7719, %v7595, 0.0
  %v7782 = vsel %vm7720, %v7596, 0.0
  %v7783 = vsel %vm7721, %v7597, 0.0
  %v7784 = vsel %vm7722, %v7598, 0.0
  %v7785 = vsel %vm7723, %v7599, 0.0
  %v7786 = vsel %vm7724, %v7600, 0.0
  %v7787 = vsel %vm7725, %v7601, 0.0
  %v7788 = vsel %vm7726, %v7602, 0.0
  %v7789 = vsel %vm7727, %v7603, 0.0
  %v7790 = vsel %vm7728, %v7604, 0.0
  %v7791 = vsel %vm7729, %v7605, 0.0
  %v7792 = vsel %vm7730, %v7606, 0.0
  %v7793 = vsel %vm7731, %v7607, 0.0
  %v7794 = vsel %vm7732, %v7608, 0.0
  %v7795 = vpack.c.bf16 %v7734, %v7733
  %v7796 = vpack.c.bf16 %v7736, %v7735
  %v7797 = vpack.c.bf16 %v7738, %v7737
  %v7798 = vpack.c.bf16 %v7740, %v7739
  %v7799 = vpack.c.bf16 %v7742, %v7741
  %v7800 = vpack.c.bf16 %v7744, %v7743
  %v7801 = vpack.c.bf16 %v7746, %v7745
  %v7802 = vpack.c.bf16 %v7748, %v7747
  %v7803 = vpack.c.bf16 %v7750, %v7749
  %v7804 = vpack.c.bf16 %v7752, %v7751
  %v7805 = vpack.c.bf16 %v7754, %v7753
  %v7806 = vpack.c.bf16 %v7756, %v7755
  %v7807 = vpack.c.bf16 %v7758, %v7757
  %v7808 = vpack.c.bf16 %v7760, %v7759
  %v7809 = vpack.c.bf16 %v7762, %v7761
  %v7810 = vpack.c.bf16 %v7764, %v7763
  %v7811 = vpack.c.bf16 %v7766, %v7765
  %v7812 = vpack.c.bf16 %v7768, %v7767
  %v7813 = vpack.c.bf16 %v7770, %v7769
  %v7814 = vpack.c.bf16 %v7772, %v7771
  %v7815 = vpack.c.bf16 %v7774, %v7773
  %v7816 = vpack.c.bf16 %v7776, %v7775
  %v7817 = vpack.c.bf16 %v7778, %v7777
  %v7818 = vpack.c.bf16 %v7780, %v7779
  %v7819 = vpack.c.bf16 %v7782, %v7781
  %v7820 = vpack.c.bf16 %v7784, %v7783
  %v7821 = vpack.c.bf16 %v7786, %v7785
  %v7822 = vpack.c.bf16 %v7788, %v7787
  %v7823 = vpack.c.bf16 %v7790, %v7789
  %v7824 = vpack.c.bf16 %v7792, %v7791
  %v7825 = vpack.c.bf16 %v7794, %v7793
  %s7826 = scalar_lea.vmem %s1, 14
  %v7827 = vld [vmem:[%s7826] sm:$0x3]
  %v7829 = vsel %vm116, %v7795, 0
  %v7832 = vsel %vm116, %v7796, 0
  %v7835 = vsel %vm116, %v7797, 0
  %v7838 = vsel %vm116, %v7798, 0
  %v7841 = vsel %vm116, %v7799, 0
  %v7844 = vsel %vm116, %v7800, 0
  %v7847 = vsel %vm116, %v7801, 0
  %v7850 = vsel %vm116, %v7802, 0
  %v7853 = vsel %vm116, %v7803, 0
  %v7856 = vsel %vm116, %v7804, 0
  %v7859 = vsel %vm116, %v7805, 0
  %v7862 = vsel %vm116, %v7806, 0
  %v7865 = vsel %vm116, %v7807, 0
  %v7868 = vsel %vm116, %v7808, 0
  %v7871 = vsel %vm116, %v7809, 0
  %v7874 = vsel %vm116, %v7810, 0
  %v7877 = vsel %vm116, %v7811, 0
  %v7880 = vsel %vm116, %v7812, 0
  %v7883 = vsel %vm116, %v7813, 0
  %v7886 = vsel %vm116, %v7814, 0
  %v7889 = vsel %vm116, %v7815, 0
  %v7892 = vsel %vm116, %v7816, 0
  %v7895 = vsel %vm116, %v7817, 0
  %v7898 = vsel %vm116, %v7818, 0
  %v7901 = vsel %vm116, %v7819, 0
  %v7904 = vsel %vm116, %v7820, 0
  %v7907 = vsel %vm116, %v7821, 0
  %v7910 = vsel %vm116, %v7822, 0
  %v7913 = vsel %vm116, %v7823, 0
  %v7916 = vsel %vm116, %v7824, 0
  %v7919 = vsel %vm116, %v7825, 0
  %v7922 = vand.u32 %v7827, %v216
  %7924 = vmatprep.subr.bf16.mxu0 0
  %7925 = vmatpush1.bf16.msra.mxu0 %v7922
  %7926 = vmatprep.subr.bf16.mxu0 0
  %7927 = vmatpush1.bf16.msra.mxu0 0
  %7928 = vmatprep.subr.bf16.mxu0 0
  %7929 = vmatpush1.bf16.msra.mxu0 0
  %7930 = vmatprep.subr.bf16.mxu0 0
  %7931 = vmatpush1.bf16.msra.mxu0 0
  %7932 = vmatprep.subr.bf16.mxu0 0
  %7933 = vmatpush1.bf16.msra.mxu0 0
  %7934 = vmatprep.subr.bf16.mxu0 0
  %7935 = vmatpush1.bf16.msra.mxu0 0
  %7936 = vmatprep.subr.bf16.mxu0 0
  %7937 = vmatpush1.bf16.msra.mxu0 0
  %7938 = vmatprep.subr.bf16.mxu0 0
  %7939 = vmatpush1.bf16.msra.mxu0 0
  %7940 = vmatprep.subr.bf16.mxu0 0
  %7941 = vmatpush1.bf16.msra.mxu0 0
  %7942 = vmatprep.subr.bf16.mxu0 0
  %7943 = vmatpush1.bf16.msra.mxu0 0
  %7944 = vmatprep.subr.bf16.mxu0 0
  %7945 = vmatpush1.bf16.msra.mxu0 0
  %7946 = vmatprep.subr.bf16.mxu0 0
  %7947 = vmatpush1.bf16.msra.mxu0 0
  %7948 = vmatprep.subr.bf16.mxu0 0
  %7949 = vmatpush1.bf16.msra.mxu0 0
  %7950 = vmatprep.subr.bf16.mxu0 0
  %7951 = vmatpush1.bf16.msra.mxu0 0
  %7952 = vmatprep.subr.bf16.mxu0 0
  %7953 = vmatpush1.bf16.msra.mxu0 0
  %7954 = vmatprep.subr.bf16.mxu0 0
  %7955 = vmatpush1.bf16.msra.mxu0 0
  %7956 = vmatprep.mubr.bf16.mxu0 0
  %7957 = vmatmul.mubr.bf16.gmra.mrb[0].mxu0 %v7829
  %v7958 = vpop.f32.mrb[0].mxu0
  %v7959 = vadd.f32 0.0, %v7958
  %v7960 = vpop.f32.mrb[0].mxu0
  %v7961 = vpop.f32.mrb[0].mxu0
  %v7962 = vadd.f32 0.0, %v7961
  %v7963 = vpop.f32.mrb[0].mxu0
  %7964 = vmatprep.mubr.bf16.mxu0 0
  %7965 = vmatmul.mubr.bf16.gmra.mrb[0].mxu0 %v7832
  %v7966 = vpop.f32.mrb[0].mxu0
  %v7967 = vadd.f32 0.0, %v7966
  %v7968 = vpop.f32.mrb[0].mxu0
  %v7969 = vpop.f32.mrb[0].mxu0
  %v7970 = vadd.f32 0.0, %v7969
  %v7971 = vpop.f32.mrb[0].mxu0
  %7972 = vmatprep.mubr.bf16.mxu0 0
  %7973 = vmatmul.mubr.bf16.gmra.mrb[0].mxu0 %v7835
  %v7974 = vpop.f32.mrb[0].mxu0
  %v7975 = vadd.f32 0.0, %v7974
  %v7976 = vpop.f32.mrb[0].mxu0
  %v7977 = vpop.f32.mrb[0].mxu0
  %v7978 = vadd.f32 0.0, %v7977
  %v7979 = vpop.f32.mrb[0].mxu0
  %7980 = vmatprep.mubr.bf16.mxu0 0
  %7981 = vmatmul.mubr.bf16.gmra.mrb[0].mxu0 %v7838
  %v7982 = vpop.f32.mrb[0].mxu0
  %v7983 = vadd.f32 0.0, %v7982
  %v7984 = vpop.f32.mrb[0].mxu0
  %v7985 = vpop.f32.mrb[0].mxu0
  %v7986 = vadd.f32 0.0, %v7985
  %v7987 = vpop.f32.mrb[0].mxu0
  %7988 = vmatprep.mubr.bf16.mxu0 0
  %7989 = vmatmul.mubr.bf16.gmra.mrb[0].mxu0 %v7841
  %v7990 = vpop.f32.mrb[0].mxu0
  %v7991 = vadd.f32 0.0, %v7990
  %v7992 = vpop.f32.mrb[0].mxu0
  %v7993 = vpop.f32.mrb[0].mxu0
  %v7994 = vadd.f32 0.0, %v7993
  %v7995 = vpop.f32.mrb[0].mxu0
  %7996 = vmatprep.mubr.bf16.mxu0 0
  %7997 = vmatmul.mubr.bf16.gmra.mrb[0].mxu0 %v7844
  %v7998 = vpop.f32.mrb[0].mxu0
  %v7999 = vadd.f32 0.0, %v7998
  %v8000 = vpop.f32.mrb[0].mxu0
  %v8001 = vpop.f32.mrb[0].mxu0
  %v8002 = vadd.f32 0.0, %v8001
  %v8003 = vpop.f32.mrb[0].mxu0
  %8004 = vmatprep.mubr.bf16.mxu0 0
  %8005 = vmatmul.mubr.bf16.gmra.mrb[0].mxu0 %v7847
  %v8006 = vpop.f32.mrb[0].mxu0
  %v8007 = vadd.f32 0.0, %v8006
  %v8008 = vpop.f32.mrb[0].mxu0
  %v8009 = vpop.f32.mrb[0].mxu0
  %v8010 = vadd.f32 0.0, %v8009
  %v8011 = vpop.f32.mrb[0].mxu0
  %8012 = vmatprep.mubr.bf16.mxu0 0
  %8013 = vmatmul.mubr.bf16.gmra.mrb[0].mxu0 %v7850
  %v8014 = vpop.f32.mrb[0].mxu0
  %v8015 = vadd.f32 0.0, %v8014
  %v8016 = vpop.f32.mrb[0].mxu0
  %v8017 = vpop.f32.mrb[0].mxu0
  %v8018 = vadd.f32 0.0, %v8017
  %v8019 = vpop.f32.mrb[0].mxu0
  %8020 = vmatprep.mubr.bf16.mxu0 0
  %8021 = vmatmul.mubr.bf16.gmra.mrb[0].mxu0 %v7853
  %v8022 = vpop.f32.mrb[0].mxu0
  %v8023 = vadd.f32 0.0, %v8022
  %v8024 = vpop.f32.mrb[0].mxu0
  %v8025 = vpop.f32.mrb[0].mxu0
  %v8026 = vadd.f32 0.0, %v8025
  %v8027 = vpop.f32.mrb[0].mxu0
  %8028 = vmatprep.mubr.bf16.mxu0 0
  %8029 = vmatmul.mubr.bf16.gmra.mrb[0].mxu0 %v7856
  %v8030 = vpop.f32.mrb[0].mxu0
  %v8031 = vadd.f32 0.0, %v8030
  %v8032 = vpop.f32.mrb[0].mxu0
  %v8033 = vpop.f32.mrb[0].mxu0
  %v8034 = vadd.f32 0.0, %v8033
  %v8035 = vpop.f32.mrb[0].mxu0
  %8036 = vmatprep.mubr.bf16.mxu0 0
  %8037 = vmatmul.mubr.bf16.gmra.mrb[0].mxu0 %v7859
  %v8038 = vpop.f32.mrb[0].mxu0
  %v8039 = vadd.f32 0.0, %v8038
  %v8040 = vpop.f32.mrb[0].mxu0
  %v8041 = vpop.f32.mrb[0].mxu0
  %v8042 = vadd.f32 0.0, %v8041
  %v8043 = vpop.f32.mrb[0].mxu0
  %8044 = vmatprep.mubr.bf16.mxu0 0
  %8045 = vmatmul.mubr.bf16.gmra.mrb[0].mxu0 %v7862
  %v8046 = vpop.f32.mrb[0].mxu0
  %v8047 = vadd.f32 0.0, %v8046
  %v8048 = vpop.f32.mrb[0].mxu0
  %v8049 = vpop.f32.mrb[0].mxu0
  %v8050 = vadd.f32 0.0, %v8049
  %v8051 = vpop.f32.mrb[0].mxu0
  %8052 = vmatprep.mubr.bf16.mxu0 0
  %8053 = vmatmul.mubr.bf16.gmra.mrb[0].mxu0 %v7865
  %v8054 = vpop.f32.mrb[0].mxu0
  %v8055 = vadd.f32 0.0, %v8054
  %v8056 = vpop.f32.mrb[0].mxu0
  %v8057 = vpop.f32.mrb[0].mxu0
  %v8058 = vadd.f32 0.0, %v8057
  %v8059 = vpop.f32.mrb[0].mxu0
  %8060 = vmatprep.mubr.bf16.mxu0 0
  %8061 = vmatmul.mubr.bf16.gmra.mrb[0].mxu0 %v7868
  %v8062 = vpop.f32.mrb[0].mxu0
  %v8063 = vadd.f32 0.0, %v8062
  %v8064 = vpop.f32.mrb[0].mxu0
  %v8065 = vpop.f32.mrb[0].mxu0
  %v8066 = vadd.f32 0.0, %v8065
  %v8067 = vpop.f32.mrb[0].mxu0
  %8068 = vmatprep.mubr.bf16.mxu0 0
  %8069 = vmatmul.mubr.bf16.gmra.mrb[0].mxu0 %v7871
  %v8070 = vpop.f32.mrb[0].mxu0
  %v8071 = vadd.f32 0.0, %v8070
  %v8072 = vpop.f32.mrb[0].mxu0
  %v8073 = vpop.f32.mrb[0].mxu0
  %v8074 = vadd.f32 0.0, %v8073
  %v8075 = vpop.f32.mrb[0].mxu0
  %8076 = vmatprep.mubr.bf16.mxu0 0
  %8077 = vmatmul.mubr.bf16.gmra.mrb[0].mxu0 %v7874
  %v8078 = vpop.f32.mrb[0].mxu0
  %v8079 = vadd.f32 0.0, %v8078
  %v8080 = vpop.f32.mrb[0].mxu0
  %v8081 = vpop.f32.mrb[0].mxu0
  %v8082 = vadd.f32 0.0, %v8081
  %v8083 = vpop.f32.mrb[0].mxu0
  %8084 = vmatprep.mubr.bf16.mxu0 0
  %8085 = vmatmul.mubr.bf16.gmra.mrb[0].mxu0 %v7877
  %v8086 = vpop.f32.mrb[0].mxu0
  %v8087 = vadd.f32 0.0, %v8086
  %v8088 = vpop.f32.mrb[0].mxu0
  %v8089 = vpop.f32.mrb[0].mxu0
  %v8090 = vadd.f32 0.0, %v8089
  %v8091 = vpop.f32.mrb[0].mxu0
  %8092 = vmatprep.mubr.bf16.mxu0 0
  %8093 = vmatmul.mubr.bf16.gmra.mrb[0].mxu0 %v7880
  %v8094 = vpop.f32.mrb[0].mxu0
  %v8095 = vadd.f32 0.0, %v8094
  %v8096 = vpop.f32.mrb[0].mxu0
  %v8097 = vpop.f32.mrb[0].mxu0
  %v8098 = vadd.f32 0.0, %v8097
  %v8099 = vpop.f32.mrb[0].mxu0
  %8100 = vmatprep.mubr.bf16.mxu0 0
  %8101 = vmatmul.mubr.bf16.gmra.mrb[0].mxu0 %v7883
  %v8102 = vpop.f32.mrb[0].mxu0
  %v8103 = vadd.f32 0.0, %v8102
  %v8104 = vpop.f32.mrb[0].mxu0
  %v8105 = vpop.f32.mrb[0].mxu0
  %v8106 = vadd.f32 0.0, %v8105
  %v8107 = vpop.f32.mrb[0].mxu0
  %8108 = vmatprep.mubr.bf16.mxu0 0
  %8109 = vmatmul.mubr.bf16.gmra.mrb[0].mxu0 %v7886
  %v8110 = vpop.f32.mrb[0].mxu0
  %v8111 = vadd.f32 0.0, %v8110
  %v8112 = vpop.f32.mrb[0].mxu0
  %v8113 = vpop.f32.mrb[0].mxu0
  %v8114 = vadd.f32 0.0, %v8113
  %v8115 = vpop.f32.mrb[0].mxu0
  %8116 = vmatprep.mubr.bf16.mxu0 0
  %8117 = vmatmul.mubr.bf16.gmra.mrb[0].mxu0 %v7889
  %v8118 = vpop.f32.mrb[0].mxu0
  %v8119 = vadd.f32 0.0, %v8118
  %v8120 = vpop.f32.mrb[0].mxu0
  %v8121 = vpop.f32.mrb[0].mxu0
  %v8122 = vadd.f32 0.0, %v8121
  %v8123 = vpop.f32.mrb[0].mxu0
  %8124 = vmatprep.mubr.bf16.mxu0 0
  %8125 = vmatmul.mubr.bf16.gmra.mrb[0].mxu0 %v7892
  %v8126 = vpop.f32.mrb[0].mxu0
  %v8127 = vadd.f32 0.0, %v8126
  %v8128 = vpop.f32.mrb[0].mxu0
  %v8129 = vpop.f32.mrb[0].mxu0
  %v8130 = vadd.f32 0.0, %v8129
  %v8131 = vpop.f32.mrb[0].mxu0
  %8132 = vmatprep.mubr.bf16.mxu0 0
  %8133 = vmatmul.mubr.bf16.gmra.mrb[0].mxu0 %v7895
  %v8134 = vpop.f32.mrb[0].mxu0
  %v8135 = vadd.f32 0.0, %v8134
  %v8136 = vpop.f32.mrb[0].mxu0
  %v8137 = vpop.f32.mrb[0].mxu0
  %v8138 = vadd.f32 0.0, %v8137
  %v8139 = vpop.f32.mrb[0].mxu0
  %8140 = vmatprep.mubr.bf16.mxu0 0
  %8141 = vmatmul.mubr.bf16.gmra.mrb[0].mxu0 %v7898
  %v8142 = vpop.f32.mrb[0].mxu0
  %v8143 = vadd.f32 0.0, %v8142
  %v8144 = vpop.f32.mrb[0].mxu0
  %v8145 = vpop.f32.mrb[0].mxu0
  %v8146 = vadd.f32 0.0, %v8145
  %v8147 = vpop.f32.mrb[0].mxu0
  %8148 = vmatprep.mubr.bf16.mxu0 0
  %8149 = vmatmul.mubr.bf16.gmra.mrb[0].mxu0 %v7901
  %v8150 = vpop.f32.mrb[0].mxu0
  %v8151 = vadd.f32 0.0, %v8150
  %v8152 = vpop.f32.mrb[0].mxu0
  %v8153 = vpop.f32.mrb[0].mxu0
  %v8154 = vadd.f32 0.0, %v8153
  %v8155 = vpop.f32.mrb[0].mxu0
  %8156 = vmatprep.mubr.bf16.mxu0 0
  %8157 = vmatmul.mubr.bf16.gmra.mrb[0].mxu0 %v7904
  %v8158 = vpop.f32.mrb[0].mxu0
  %v8159 = vadd.f32 0.0, %v8158
  %v8160 = vpop.f32.mrb[0].mxu0
  %v8161 = vpop.f32.mrb[0].mxu0
  %v8162 = vadd.f32 0.0, %v8161
  %v8163 = vpop.f32.mrb[0].mxu0
  %8164 = vmatprep.mubr.bf16.mxu0 0
  %8165 = vmatmul.mubr.bf16.gmra.mrb[0].mxu0 %v7907
  %v8166 = vpop.f32.mrb[0].mxu0
  %v8167 = vadd.f32 0.0, %v8166
  %v8168 = vpop.f32.mrb[0].mxu0
  %v8169 = vpop.f32.mrb[0].mxu0
  %v8170 = vadd.f32 0.0, %v8169
  %v8171 = vpop.f32.mrb[0].mxu0
  %8172 = vmatprep.mubr.bf16.mxu0 0
  %8173 = vmatmul.mubr.bf16.gmra.mrb[0].mxu0 %v7910
  %v8174 = vpop.f32.mrb[0].mxu0
  %v8175 = vadd.f32 0.0, %v8174
  %v8176 = vpop.f32.mrb[0].mxu0
  %v8177 = vpop.f32.mrb[0].mxu0
  %v8178 = vadd.f32 0.0, %v8177
  %v8179 = vpop.f32.mrb[0].mxu0
  %8180 = vmatprep.mubr.bf16.mxu0 0
  %8181 = vmatmul.mubr.bf16.gmra.mrb[0].mxu0 %v7913
  %v8182 = vpop.f32.mrb[0].mxu0
  %v8183 = vadd.f32 0.0, %v8182
  %v8184 = vpop.f32.mrb[0].mxu0
  %v8185 = vpop.f32.mrb[0].mxu0
  %v8186 = vadd.f32 0.0, %v8185
  %v8187 = vpop.f32.mrb[0].mxu0
  %8188 = vmatprep.mubr.bf16.mxu0 0
  %8189 = vmatmul.mubr.bf16.gmra.mrb[0].mxu0 %v7916
  %v8190 = vpop.f32.mrb[0].mxu0
  %v8191 = vadd.f32 0.0, %v8190
  %v8192 = vpop.f32.mrb[0].mxu0
  %v8193 = vpop.f32.mrb[0].mxu0
  %v8194 = vadd.f32 0.0, %v8193
  %v8195 = vpop.f32.mrb[0].mxu0
  %8196 = vmatprep.mubr.bf16.mxu0 0
  %8197 = vmatmul.mubr.bf16.gmra.mrb[0].mxu0 %v7919
  %v8198 = vpop.f32.mrb[0].mxu0
  %v8199 = vadd.f32 0.0, %v8198
  %v8200 = vpop.f32.mrb[0].mxu0
  %v8201 = vpop.f32.mrb[0].mxu0
  %v8202 = vadd.f32 0.0, %v8201
  %v8203 = vpop.f32.mrb[0].mxu0
  %8204 = vdwg.mxu0
  %v8205 = vld [vmem:[#allocation2] sm:$0xff]
  %v8206 = vld [vmem:[#allocation2 + $0x8] sm:$0xff]
  %v8207 = vld [vmem:[#allocation2 + $0x10] sm:$0xff]
  %v8208 = vld [vmem:[#allocation2 + $0x18] sm:$0xff]
  %v8209 = vld [vmem:[#allocation2 + $0x20] sm:$0xff]
  %v8210 = vld [vmem:[#allocation2 + $0x28] sm:$0xff]
  %v8211 = vld [vmem:[#allocation2 + $0x30] sm:$0xff]
  %v8212 = vld [vmem:[#allocation2 + $0x38] sm:$0xff]
  %v8213 = vld [vmem:[#allocation2 + $0x40] sm:$0xff]
  %v8214 = vld [vmem:[#allocation2 + $0x48] sm:$0xff]
  %v8215 = vld [vmem:[#allocation2 + $0x50] sm:$0xff]
  %v8216 = vld [vmem:[#allocation2 + $0x58] sm:$0xff]
  %v8217 = vld [vmem:[#allocation2 + $0x60] sm:$0xff]
  %v8218 = vld [vmem:[#allocation2 + $0x68] sm:$0xff]
  %v8219 = vld [vmem:[#allocation2 + $0x70] sm:$0xff]
  %v8220 = vld [vmem:[#allocation2 + $0x78] sm:$0xff]
  %v8221 = vld [vmem:[#allocation2 + $0x80] sm:$0xff]
  %v8222 = vld [vmem:[#allocation2 + $0x88] sm:$0xff]
  %v8223 = vld [vmem:[#allocation2 + $0x90] sm:$0xff]
  %v8224 = vld [vmem:[#allocation2 + $0x98] sm:$0xff]
  %v8225 = vld [vmem:[#allocation2 + $0xa0] sm:$0xff]
  %v8226 = vld [vmem:[#allocation2 + $0xa8] sm:$0xff]
  %v8227 = vld [vmem:[#allocation2 + $0xb0] sm:$0xff]
  %v8228 = vld [vmem:[#allocation2 + $0xb8] sm:$0xff]
  %v8229 = vld [vmem:[#allocation2 + $0xc0] sm:$0xff]
  %v8230 = vld [vmem:[#allocation2 + $0xc8] sm:$0xff]
  %v8231 = vld [vmem:[#allocation2 + $0xd0] sm:$0xff]
  %v8232 = vld [vmem:[#allocation2 + $0xd8] sm:$0xff]
  %v8233 = vld [vmem:[#allocation2 + $0xe0] sm:$0xff]
  %v8234 = vld [vmem:[#allocation2 + $0xe8] sm:$0xff]
  %v8235 = vld [vmem:[#allocation2 + $0xf0] sm:$0xff]
  %v8236 = vld [vmem:[#allocation2 + $0xf8] sm:$0xff]
  %v8237 = vld [vmem:[#allocation2 + $0x100] sm:$0xff]
  %v8238 = vld [vmem:[#allocation2 + $0x108] sm:$0xff]
  %v8239 = vld [vmem:[#allocation2 + $0x110] sm:$0xff]
  %v8240 = vld [vmem:[#allocation2 + $0x118] sm:$0xff]
  %v8241 = vld [vmem:[#allocation2 + $0x120] sm:$0xff]
  %v8242 = vld [vmem:[#allocation2 + $0x128] sm:$0xff]
  %v8243 = vld [vmem:[#allocation2 + $0x130] sm:$0xff]
  %v8244 = vld [vmem:[#allocation2 + $0x138] sm:$0xff]
  %v8245 = vld [vmem:[#allocation2 + $0x140] sm:$0xff]
  %v8246 = vld [vmem:[#allocation2 + $0x148] sm:$0xff]
  %v8247 = vld [vmem:[#allocation2 + $0x150] sm:$0xff]
  %v8248 = vld [vmem:[#allocation2 + $0x158] sm:$0xff]
  %v8249 = vld [vmem:[#allocation2 + $0x160] sm:$0xff]
  %v8250 = vld [vmem:[#allocation2 + $0x168] sm:$0xff]
  %v8251 = vld [vmem:[#allocation2 + $0x170] sm:$0xff]
  %v8252 = vld [vmem:[#allocation2 + $0x178] sm:$0xff]
  %v8253 = vld [vmem:[#allocation2 + $0x180] sm:$0xff]
  %v8254 = vld [vmem:[#allocation2 + $0x188] sm:$0xff]
  %v8255 = vld [vmem:[#allocation2 + $0x190] sm:$0xff]
  %v8256 = vld [vmem:[#allocation2 + $0x198] sm:$0xff]
  %v8257 = vld [vmem:[#allocation2 + $0x1a0] sm:$0xff]
  %v8258 = vld [vmem:[#allocation2 + $0x1a8] sm:$0xff]
  %v8259 = vld [vmem:[#allocation2 + $0x1b0] sm:$0xff]
  %v8260 = vld [vmem:[#allocation2 + $0x1b8] sm:$0xff]
  %v8261 = vld [vmem:[#allocation2 + $0x1c0] sm:$0xff]
  %v8262 = vld [vmem:[#allocation2 + $0x1c8] sm:$0xff]
  %v8263 = vld [vmem:[#allocation2 + $0x1d0] sm:$0xff]
  %v8264 = vld [vmem:[#allocation2 + $0x1d8] sm:$0xff]
  %v8265 = vld [vmem:[#allocation2 + $0x1e0] sm:$0xff]
  %v8266 = vld [vmem:[#allocation2 + $0x1e8] sm:$0xff]
  %v8267 = vadd.f32 %v8205, %v7959
  %v8268 = vadd.f32 %v8206, %v7962
  %v8269 = vadd.f32 %v8207, %v7967
  %v8270 = vadd.f32 %v8208, %v7970
  %v8271 = vadd.f32 %v8209, %v7975
  %v8272 = vadd.f32 %v8210, %v7978
  %v8273 = vadd.f32 %v8211, %v7983
  %v8274 = vadd.f32 %v8212, %v7986
  %v8275 = vadd.f32 %v8213, %v7991
  %v8276 = vadd.f32 %v8214, %v7994
  %v8277 = vadd.f32 %v8215, %v7999
  %v8278 = vadd.f32 %v8216, %v8002
  %v8279 = vadd.f32 %v8217, %v8007
  %v8280 = vadd.f32 %v8218, %v8010
  %v8281 = vadd.f32 %v8219, %v8015
  %v8282 = vadd.f32 %v8220, %v8018
  %v8283 = vadd.f32 %v8221, %v8023
  %v8284 = vadd.f32 %v8222, %v8026
  %v8285 = vadd.f32 %v8223, %v8031
  %v8286 = vadd.f32 %v8224, %v8034
  %v8287 = vadd.f32 %v8225, %v8039
  %v8288 = vadd.f32 %v8226, %v8042
  %v8289 = vadd.f32 %v8227, %v8047
  %v8290 = vadd.f32 %v8228, %v8050
  %v8291 = vadd.f32 %v8229, %v8055
  %v8292 = vadd.f32 %v8230, %v8058
  %v8293 = vadd.f32 %v8231, %v8063
  %v8294 = vadd.f32 %v8232, %v8066
  %v8295 = vadd.f32 %v8233, %v8071
  %v8296 = vadd.f32 %v8234, %v8074
  %v8297 = vadd.f32 %v8235, %v8079
  %v8298 = vadd.f32 %v8236, %v8082
  %v8299 = vadd.f32 %v8237, %v8087
  %v8300 = vadd.f32 %v8238, %v8090
  %v8301 = vadd.f32 %v8239, %v8095
  %v8302 = vadd.f32 %v8240, %v8098
  %v8303 = vadd.f32 %v8241, %v8103
  %v8304 = vadd.f32 %v8242, %v8106
  %v8305 = vadd.f32 %v8243, %v8111
  %v8306 = vadd.f32 %v8244, %v8114
  %v8307 = vadd.f32 %v8245, %v8119
  %v8308 = vadd.f32 %v8246, %v8122
  %v8309 = vadd.f32 %v8247, %v8127
  %v8310 = vadd.f32 %v8248, %v8130
  %v8311 = vadd.f32 %v8249, %v8135
  %v8312 = vadd.f32 %v8250, %v8138
  %v8313 = vadd.f32 %v8251, %v8143
  %v8314 = vadd.f32 %v8252, %v8146
  %v8315 = vadd.f32 %v8253, %v8151
  %v8316 = vadd.f32 %v8254, %v8154
  %v8317 = vadd.f32 %v8255, %v8159
  %v8318 = vadd.f32 %v8256, %v8162
  %v8319 = vadd.f32 %v8257, %v8167
  %v8320 = vadd.f32 %v8258, %v8170
  %v8321 = vadd.f32 %v8259, %v8175
  %v8322 = vadd.f32 %v8260, %v8178
  %v8323 = vadd.f32 %v8261, %v8183
  %v8324 = vadd.f32 %v8262, %v8186
  %v8325 = vadd.f32 %v8263, %v8191
  %v8326 = vadd.f32 %v8264, %v8194
  %v8327 = vadd.f32 %v8265, %v8199
  %v8328 = vadd.f32 %v8266, %v8202
  %8329 = vst.msk [vmem:[#allocation2] sm:$0xff] %vm509, %v8267
  %8330 = vst.msk [vmem:[#allocation2 + $0x8] sm:$0xff] %vm509, %v8268
  %8331 = vst.msk [vmem:[#allocation2 + $0x10] sm:$0xff] %vm509, %v8269
  %8332 = vst.msk [vmem:[#allocation2 + $0x18] sm:$0xff] %vm509, %v8270
  %8333 = vst.msk [vmem:[#allocation2 + $0x20] sm:$0xff] %vm509, %v8271
  %8334 = vst.msk [vmem:[#allocation2 + $0x28] sm:$0xff] %vm509, %v8272
  %8335 = vst.msk [vmem:[#allocation2 + $0x30] sm:$0xff] %vm509, %v8273
  %8336 = vst.msk [vmem:[#allocation2 + $0x38] sm:$0xff] %vm509, %v8274
  %8337 = vst.msk [vmem:[#allocation2 + $0x40] sm:$0xff] %vm509, %v8275
  %8338 = vst.msk [vmem:[#allocation2 + $0x48] sm:$0xff] %vm509, %v8276
  %8339 = vst.msk [vmem:[#allocation2 + $0x50] sm:$0xff] %vm509, %v8277
  %8340 = vst.msk [vmem:[#allocation2 + $0x58] sm:$0xff] %vm509, %v8278
  %8341 = vst.msk [vmem:[#allocation2 + $0x60] sm:$0xff] %vm509, %v8279
  %8342 = vst.msk [vmem:[#allocation2 + $0x68] sm:$0xff] %vm509, %v8280
  %8343 = vst.msk [vmem:[#allocation2 + $0x70] sm:$0xff] %vm509, %v8281
  %8344 = vst.msk [vmem:[#allocation2 + $0x78] sm:$0xff] %vm509, %v8282
  %8345 = vst.msk [vmem:[#allocation2 + $0x80] sm:$0xff] %vm509, %v8283
  %8346 = vst.msk [vmem:[#allocation2 + $0x88] sm:$0xff] %vm509, %v8284
  %8347 = vst.msk [vmem:[#allocation2 + $0x90] sm:$0xff] %vm509, %v8285
  %8348 = vst.msk [vmem:[#allocation2 + $0x98] sm:$0xff] %vm509, %v8286
  %8349 = vst.msk [vmem:[#allocation2 + $0xa0] sm:$0xff] %vm509, %v8287
  %8350 = vst.msk [vmem:[#allocation2 + $0xa8] sm:$0xff] %vm509, %v8288
  %8351 = vst.msk [vmem:[#allocation2 + $0xb0] sm:$0xff] %vm509, %v8289
  %8352 = vst.msk [vmem:[#allocation2 + $0xb8] sm:$0xff] %vm509, %v8290
  %8353 = vst.msk [vmem:[#allocation2 + $0xc0] sm:$0xff] %vm509, %v8291
  %8354 = vst.msk [vmem:[#allocation2 + $0xc8] sm:$0xff] %vm509, %v8292
  %8355 = vst.msk [vmem:[#allocation2 + $0xd0] sm:$0xff] %vm509, %v8293
  %8356 = vst.msk [vmem:[#allocation2 + $0xd8] sm:$0xff] %vm509, %v8294
  %8357 = vst.msk [vmem:[#allocation2 + $0xe0] sm:$0xff] %vm509, %v8295
  %8358 = vst.msk [vmem:[#allocation2 + $0xe8] sm:$0xff] %vm509, %v8296
  %8359 = vst.msk [vmem:[#allocation2 + $0xf0] sm:$0xff] %vm509, %v8297
  %8360 = vst.msk [vmem:[#allocation2 + $0xf8] sm:$0xff] %vm509, %v8298
  %8361 = vst.msk [vmem:[#allocation2 + $0x100] sm:$0xff] %vm509, %v8299
  %8362 = vst.msk [vmem:[#allocation2 + $0x108] sm:$0xff] %vm509, %v8300
  %8363 = vst.msk [vmem:[#allocation2 + $0x110] sm:$0xff] %vm509, %v8301
  %8364 = vst.msk [vmem:[#allocation2 + $0x118] sm:$0xff] %vm509, %v8302
  %8365 = vst.msk [vmem:[#allocation2 + $0x120] sm:$0xff] %vm509, %v8303
  %8366 = vst.msk [vmem:[#allocation2 + $0x128] sm:$0xff] %vm509, %v8304
  %8367 = vst.msk [vmem:[#allocation2 + $0x130] sm:$0xff] %vm509, %v8305
  %8368 = vst.msk [vmem:[#allocation2 + $0x138] sm:$0xff] %vm509, %v8306
  %8369 = vst.msk [vmem:[#allocation2 + $0x140] sm:$0xff] %vm509, %v8307
  %8370 = vst.msk [vmem:[#allocation2 + $0x148] sm:$0xff] %vm509, %v8308
  %8371 = vst.msk [vmem:[#allocation2 + $0x150] sm:$0xff] %vm509, %v8309
  %8372 = vst.msk [vmem:[#allocation2 + $0x158] sm:$0xff] %vm509, %v8310
  %8373 = vst.msk [vmem:[#allocation2 + $0x160] sm:$0xff] %vm509, %v8311
  %8374 = vst.msk [vmem:[#allocation2 + $0x168] sm:$0xff] %vm509, %v8312
  %8375 = vst.msk [vmem:[#allocation2 + $0x170] sm:$0xff] %vm509, %v8313
  %8376 = vst.msk [vmem:[#allocation2 + $0x178] sm:$0xff] %vm509, %v8314
  %8377 = vst.msk [vmem:[#allocation2 + $0x180] sm:$0xff] %vm509, %v8315
  %8378 = vst.msk [vmem:[#allocation2 + $0x188] sm:$0xff] %vm509, %v8316
  %8379 = vst.msk [vmem:[#allocation2 + $0x190] sm:$0xff] %vm509, %v8317
  %8380 = vst.msk [vmem:[#allocation2 + $0x198] sm:$0xff] %vm509, %v8318
  %8381 = vst.msk [vmem:[#allocation2 + $0x1a0] sm:$0xff] %vm509, %v8319
  %8382 = vst.msk [vmem:[#allocation2 + $0x1a8] sm:$0xff] %vm509, %v8320
  %8383 = vst.msk [vmem:[#allocation2 + $0x1b0] sm:$0xff] %vm509, %v8321
  %8384 = vst.msk [vmem:[#allocation2 + $0x1b8] sm:$0xff] %vm509, %v8322
  %8385 = vst.msk [vmem:[#allocation2 + $0x1c0] sm:$0xff] %vm509, %v8323
  %8386 = vst.msk [vmem:[#allocation2 + $0x1c8] sm:$0xff] %vm509, %v8324
  %8387 = vst.msk [vmem:[#allocation2 + $0x1d0] sm:$0xff] %vm509, %v8325
  %8388 = vst.msk [vmem:[#allocation2 + $0x1d8] sm:$0xff] %vm509, %v8326
  %8389 = vst.msk [vmem:[#allocation2 + $0x1e0] sm:$0xff] %vm509, %v8327
  %8390 = vst.msk [vmem:[#allocation2 + $0x1e8] sm:$0xff] %vm509, %v8328
  %v8391 = vld [vmem:[%s0 + $0x11] sm:$0xff]
  %v8392 = vld [vmem:[%s0 + $0x19] sm:$0xff]
  %v8393 = vld [vmem:[%s0 + $0x21] sm:$0xff]
  %v8394 = vld [vmem:[%s0 + $0x29] sm:$0xff]
  %v8395 = vld [vmem:[%s0 + $0x31] sm:$0xff]
  %v8396 = vld [vmem:[%s0 + $0x39] sm:$0xff]
  %v8397 = vld [vmem:[%s0 + $0x41] sm:$0xff]
  %v8398 = vld [vmem:[%s0 + $0x49] sm:$0xff]
  %v8399 = vld [vmem:[%s0 + $0x51] sm:$0xff]
  %v8400 = vld [vmem:[%s0 + $0x59] sm:$0xff]
  %v8401 = vld [vmem:[%s0 + $0x61] sm:$0xff]
  %v8402 = vld [vmem:[%s0 + $0x69] sm:$0xff]
  %v8403 = vld [vmem:[%s0 + $0x71] sm:$0xff]
  %v8404 = vld [vmem:[%s0 + $0x79] sm:$0xff]
  %v8405 = vld [vmem:[%s0 + $0x81] sm:$0xff]
  %v8406 = vld [vmem:[%s0 + $0x89] sm:$0xff]
  %v8407 = vld [vmem:[%s0 + $0x91] sm:$0xff]
  %v8408 = vld [vmem:[%s0 + $0x99] sm:$0xff]
  %v8409 = vld [vmem:[%s0 + $0xa1] sm:$0xff]
  %v8410 = vld [vmem:[%s0 + $0xa9] sm:$0xff]
  %v8411 = vld [vmem:[%s0 + $0xb1] sm:$0xff]
  %v8412 = vld [vmem:[%s0 + $0xb9] sm:$0xff]
  %v8413 = vld [vmem:[%s0 + $0xc1] sm:$0xff]
  %v8414 = vld [vmem:[%s0 + $0xc9] sm:$0xff]
  %v8415 = vld [vmem:[%s0 + $0xd1] sm:$0xff]
  %v8416 = vld [vmem:[%s0 + $0xd9] sm:$0xff]
  %v8417 = vld [vmem:[%s0 + $0xe1] sm:$0xff]
  %v8418 = vld [vmem:[%s0 + $0xe9] sm:$0xff]
  %v8419 = vld [vmem:[%s0 + $0xf1] sm:$0xff]
  %v8420 = vld [vmem:[%s0 + $0xf9] sm:$0xff]
  %v8421 = vld [vmem:[%s0 + $0x101] sm:$0xff]
  %v8422 = vld [vmem:[%s0 + $0x109] sm:$0xff]
  %v8423 = vld [vmem:[%s0 + $0x111] sm:$0xff]
  %v8424 = vld [vmem:[%s0 + $0x119] sm:$0xff]
  %v8425 = vld [vmem:[%s0 + $0x121] sm:$0xff]
  %v8426 = vld [vmem:[%s0 + $0x129] sm:$0xff]
  %v8427 = vld [vmem:[%s0 + $0x131] sm:$0xff]
  %v8428 = vld [vmem:[%s0 + $0x139] sm:$0xff]
  %v8429 = vld [vmem:[%s0 + $0x141] sm:$0xff]
  %v8430 = vld [vmem:[%s0 + $0x149] sm:$0xff]
  %v8431 = vld [vmem:[%s0 + $0x151] sm:$0xff]
  %v8432 = vld [vmem:[%s0 + $0x159] sm:$0xff]
  %v8433 = vld [vmem:[%s0 + $0x161] sm:$0xff]
  %v8434 = vld [vmem:[%s0 + $0x169] sm:$0xff]
  %v8435 = vld [vmem:[%s0 + $0x171] sm:$0xff]
  %v8436 = vld [vmem:[%s0 + $0x179] sm:$0xff]
  %v8437 = vld [vmem:[%s0 + $0x181] sm:$0xff]
  %v8438 = vld [vmem:[%s0 + $0x189] sm:$0xff]
  %v8439 = vld [vmem:[%s0 + $0x191] sm:$0xff]
  %v8440 = vld [vmem:[%s0 + $0x199] sm:$0xff]
  %v8441 = vld [vmem:[%s0 + $0x1a1] sm:$0xff]
  %v8442 = vld [vmem:[%s0 + $0x1a9] sm:$0xff]
  %v8443 = vld [vmem:[%s0 + $0x1b1] sm:$0xff]
  %v8444 = vld [vmem:[%s0 + $0x1b9] sm:$0xff]
  %v8445 = vld [vmem:[%s0 + $0x1c1] sm:$0xff]
  %v8446 = vld [vmem:[%s0 + $0x1c9] sm:$0xff]
  %v8447 = vld [vmem:[%s0 + $0x1d1] sm:$0xff]
  %v8448 = vld [vmem:[%s0 + $0x1d9] sm:$0xff]
  %v8449 = vld [vmem:[%s0 + $0x1e1] sm:$0xff]
  %v8450 = vld [vmem:[%s0 + $0x1e9] sm:$0xff]
  %v8451 = vld [vmem:[%s0 + $0x1f1] sm:$0xff]
  %v8452 = vld [vmem:[%s0 + $0x1f9] sm:$0x7f]
  %vm8453 = vmand %vm5502, %vm6622
  %vm8454 = vmand %vm5503, %vm6623
  %vm8455 = vmand %vm5504, %vm6624
  %vm8456 = vmand %vm5505, %vm6625
  %vm8457 = vmand %vm5506, %vm6626
  %vm8458 = vmand %vm5507, %vm6627
  %vm8459 = vmand %vm5508, %vm6628
  %vm8460 = vmand %vm5509, %vm6629
  %vm8461 = vmand %vm5510, %vm6630
  %vm8462 = vmand %vm5511, %vm6631
  %vm8463 = vmand %vm5512, %vm6632
  %vm8464 = vmand %vm5513, %vm6633
  %vm8465 = vmand %vm5514, %vm6634
  %vm8466 = vmand %vm5515, %vm6635
  %vm8467 = vmand %vm5516, %vm6636
  %vm8468 = vmand %vm5517, %vm6637
  %vm8469 = vmand %vm5518, %vm6638
  %vm8470 = vmand %vm5519, %vm6639
  %vm8471 = vmand %vm5520, %vm6640
  %vm8472 = vmand %vm5521, %vm6641
  %vm8473 = vmand %vm5522, %vm6642
  %vm8474 = vmand %vm5523, %vm6643
  %vm8475 = vmand %vm5524, %vm6644
  %vm8476 = vmand %vm5525, %vm6645
  %vm8477 = vmand %vm5526, %vm6646
  %vm8478 = vmand %vm5527, %vm6647
  %vm8479 = vmand %vm5528, %vm6648
  %vm8480 = vmand %vm5529, %vm6649
  %vm8481 = vmand %vm5530, %vm6650
  %vm8482 = vmand %vm5531, %vm6651
  %vm8483 = vmand %vm5532, %vm6652
  %vm8484 = vmand %vm5533, %vm6653
  %vm8485 = vmand %vm5534, %vm6654
  %vm8486 = vmand %vm5535, %vm6655
  %vm8487 = vmand %vm5536, %vm6656
  %vm8488 = vmand %vm5537, %vm6657
  %vm8489 = vmand %vm5538, %vm6658
  %vm8490 = vmand %vm5539, %vm6659
  %vm8491 = vmand %vm5540, %vm6660
  %vm8492 = vmand %vm5541, %vm6661
  %vm8493 = vmand %vm5542, %vm6662
  %vm8494 = vmand %vm5543, %vm6663
  %vm8495 = vmand %vm5544, %vm6664
  %vm8496 = vmand %vm5545, %vm6665
  %vm8497 = vmand %vm5546, %vm6666
  %vm8498 = vmand %vm5547, %vm6667
  %vm8499 = vmand %vm5548, %vm6668
  %vm8500 = vmand %vm5549, %vm6669
  %vm8501 = vmand %vm5550, %vm6670
  %vm8502 = vmand %vm5551, %vm6671
  %vm8503 = vmand %vm5552, %vm6672
  %vm8504 = vmand %vm5553, %vm6673
  %vm8505 = vmand %vm5554, %vm6674
  %vm8506 = vmand %vm5555, %vm6675
  %vm8507 = vmand %vm5556, %vm6676
  %vm8508 = vmand %vm5557, %vm6677
  %vm8509 = vmand %vm5558, %vm6678
  %vm8510 = vmand %vm5559, %vm6679
  %vm8511 = vmand %vm5560, %vm6680
  %vm8512 = vmand %vm5561, %vm6681
  %vm8513 = vmand %vm5562, %vm6682
  %vm8514 = vmand %vm5563, %vm6683
  %v8515 = vsel %vm8453, 1, 0
  %v8516 = vsel %vm8454, 1, 0
  %v8517 = vsel %vm8455, 1, 0
  %v8518 = vsel %vm8456, 1, 0
  %v8519 = vsel %vm8457, 1, 0
  %v8520 = vsel %vm8458, 1, 0
  %v8521 = vsel %vm8459, 1, 0
  %v8522 = vsel %vm8460, 1, 0
  %v8523 = vsel %vm8461, 1, 0
  %v8524 = vsel %vm8462, 1, 0
  %v8525 = vsel %vm8463, 1, 0
  %v8526 = vsel %vm8464, 1, 0
  %v8527 = vsel %vm8465, 1, 0
  %v8528 = vsel %vm8466, 1, 0
  %v8529 = vsel %vm8467, 1, 0
  %v8530 = vsel %vm8468, 1, 0
  %v8531 = vsel %vm8469, 1, 0
  %v8532 = vsel %vm8470, 1, 0
  %v8533 = vsel %vm8471, 1, 0
  %v8534 = vsel %vm8472, 1, 0
  %v8535 = vsel %vm8473, 1, 0
  %v8536 = vsel %vm8474, 1, 0
  %v8537 = vsel %vm8475, 1, 0
  %v8538 = vsel %vm8476, 1, 0
  %v8539 = vsel %vm8477, 1, 0
  %v8540 = vsel %vm8478, 1, 0
  %v8541 = vsel %vm8479, 1, 0
  %v8542 = vsel %vm8480, 1, 0
  %v8543 = vsel %vm8481, 1, 0
  %v8544 = vsel %vm8482, 1, 0
  %v8545 = vsel %vm8483, 1, 0
  %v8546 = vsel %vm8484, 1, 0
  %v8547 = vsel %vm8485, 1, 0
  %v8548 = vsel %vm8486, 1, 0
  %v8549 = vsel %vm8487, 1, 0
  %v8550 = vsel %vm8488, 1, 0
  %v8551 = vsel %vm8489, 1, 0
  %v8552 = vsel %vm8490, 1, 0
  %v8553 = vsel %vm8491, 1, 0
  %v8554 = vsel %vm8492, 1, 0
  %v8555 = vsel %vm8493, 1, 0
  %v8556 = vsel %vm8494, 1, 0
  %v8557 = vsel %vm8495, 1, 0
  %v8558 = vsel %vm8496, 1, 0
  %v8559 = vsel %vm8497, 1, 0
  %v8560 = vsel %vm8498, 1, 0
  %v8561 = vsel %vm8499, 1, 0
  %v8562 = vsel %vm8500, 1, 0
  %v8563 = vsel %vm8501, 1, 0
  %v8564 = vsel %vm8502, 1, 0
  %v8565 = vsel %vm8503, 1, 0
  %v8566 = vsel %vm8504, 1, 0
  %v8567 = vsel %vm8505, 1, 0
  %v8568 = vsel %vm8506, 1, 0
  %v8569 = vsel %vm8507, 1, 0
  %v8570 = vsel %vm8508, 1, 0
  %v8571 = vsel %vm8509, 1, 0
  %v8572 = vsel %vm8510, 1, 0
  %v8573 = vsel %vm8511, 1, 0
  %v8574 = vsel %vm8512, 1, 0
  %v8575 = vsel %vm8513, 1, 0
  %v8576 = vsel %vm8514, 1, 0
  %vm8577 = vcmp.eq.s32.totalorder %v8515, 1
  %vm8578 = vcmp.eq.s32.totalorder %v8516, 1
  %vm8579 = vcmp.eq.s32.totalorder %v8517, 1
  %vm8580 = vcmp.eq.s32.totalorder %v8518, 1
  %vm8581 = vcmp.eq.s32.totalorder %v8519, 1
  %vm8582 = vcmp.eq.s32.totalorder %v8520, 1
  %vm8583 = vcmp.eq.s32.totalorder %v8521, 1
  %vm8584 = vcmp.eq.s32.totalorder %v8522, 1
  %vm8585 = vcmp.eq.s32.totalorder %v8523, 1
  %vm8586 = vcmp.eq.s32.totalorder %v8524, 1
  %vm8587 = vcmp.eq.s32.totalorder %v8525, 1
  %vm8588 = vcmp.eq.s32.totalorder %v8526, 1
  %vm8589 = vcmp.eq.s32.totalorder %v8527, 1
  %vm8590 = vcmp.eq.s32.totalorder %v8528, 1
  %vm8591 = vcmp.eq.s32.totalorder %v8529, 1
  %vm8592 = vcmp.eq.s32.totalorder %v8530, 1
  %vm8593 = vcmp.eq.s32.totalorder %v8531, 1
  %vm8594 = vcmp.eq.s32.totalorder %v8532, 1
  %vm8595 = vcmp.eq.s32.totalorder %v8533, 1
  %vm8596 = vcmp.eq.s32.totalorder %v8534, 1
  %vm8597 = vcmp.eq.s32.totalorder %v8535, 1
  %vm8598 = vcmp.eq.s32.totalorder %v8536, 1
  %vm8599 = vcmp.eq.s32.totalorder %v8537, 1
  %vm8600 = vcmp.eq.s32.totalorder %v8538, 1
  %vm8601 = vcmp.eq.s32.totalorder %v8539, 1
  %vm8602 = vcmp.eq.s32.totalorder %v8540, 1
  %vm8603 = vcmp.eq.s32.totalorder %v8541, 1
  %vm8604 = vcmp.eq.s32.totalorder %v8542, 1
  %vm8605 = vcmp.eq.s32.totalorder %v8543, 1
  %vm8606 = vcmp.eq.s32.totalorder %v8544, 1
  %vm8607 = vcmp.eq.s32.totalorder %v8545, 1
  %vm8608 = vcmp.eq.s32.totalorder %v8546, 1
  %vm8609 = vcmp.eq.s32.totalorder %v8547, 1
  %vm8610 = vcmp.eq.s32.totalorder %v8548, 1
  %vm8611 = vcmp.eq.s32.totalorder %v8549, 1
  %vm8612 = vcmp.eq.s32.totalorder %v8550, 1
  %vm8613 = vcmp.eq.s32.totalorder %v8551, 1
  %vm8614 = vcmp.eq.s32.totalorder %v8552, 1
  %vm8615 = vcmp.eq.s32.totalorder %v8553, 1
  %vm8616 = vcmp.eq.s32.totalorder %v8554, 1
  %vm8617 = vcmp.eq.s32.totalorder %v8555, 1
  %vm8618 = vcmp.eq.s32.totalorder %v8556, 1
  %vm8619 = vcmp.eq.s32.totalorder %v8557, 1
  %vm8620 = vcmp.eq.s32.totalorder %v8558, 1
  %vm8621 = vcmp.eq.s32.totalorder %v8559, 1
  %vm8622 = vcmp.eq.s32.totalorder %v8560, 1
  %vm8623 = vcmp.eq.s32.totalorder %v8561, 1
  %vm8624 = vcmp.eq.s32.totalorder %v8562, 1
  %vm8625 = vcmp.eq.s32.totalorder %v8563, 1
  %vm8626 = vcmp.eq.s32.totalorder %v8564, 1
  %vm8627 = vcmp.eq.s32.totalorder %v8565, 1
  %vm8628 = vcmp.eq.s32.totalorder %v8566, 1
  %vm8629 = vcmp.eq.s32.totalorder %v8567, 1
  %vm8630 = vcmp.eq.s32.totalorder %v8568, 1
  %vm8631 = vcmp.eq.s32.totalorder %v8569, 1
  %vm8632 = vcmp.eq.s32.totalorder %v8570, 1
  %vm8633 = vcmp.eq.s32.totalorder %v8571, 1
  %vm8634 = vcmp.eq.s32.totalorder %v8572, 1
  %vm8635 = vcmp.eq.s32.totalorder %v8573, 1
  %vm8636 = vcmp.eq.s32.totalorder %v8574, 1
  %vm8637 = vcmp.eq.s32.totalorder %v8575, 1
  %vm8638 = vcmp.eq.s32.totalorder %v8576, 1
  %v8639 = vsel %vm8577, %v8391, 0.0
  %v8640 = vsel %vm8578, %v8392, 0.0
  %v8641 = vsel %vm8579, %v8393, 0.0
  %v8642 = vsel %vm8580, %v8394, 0.0
  %v8643 = vsel %vm8581, %v8395, 0.0
  %v8644 = vsel %vm8582, %v8396, 0.0
  %v8645 = vsel %vm8583, %v8397, 0.0
  %v8646 = vsel %vm8584, %v8398, 0.0
  %v8647 = vsel %vm8585, %v8399, 0.0
  %v8648 = vsel %vm8586, %v8400, 0.0
  %v8649 = vsel %vm8587, %v8401, 0.0
  %v8650 = vsel %vm8588, %v8402, 0.0
  %v8651 = vsel %vm8589, %v8403, 0.0
  %v8652 = vsel %vm8590, %v8404, 0.0
  %v8653 = vsel %vm8591, %v8405, 0.0
  %v8654 = vsel %vm8592, %v8406, 0.0
  %v8655 = vsel %vm8593, %v8407, 0.0
  %v8656 = vsel %vm8594, %v8408, 0.0
  %v8657 = vsel %vm8595, %v8409, 0.0
  %v8658 = vsel %vm8596, %v8410, 0.0
  %v8659 = vsel %vm8597, %v8411, 0.0
  %v8660 = vsel %vm8598, %v8412, 0.0
  %v8661 = vsel %vm8599, %v8413, 0.0
  %v8662 = vsel %vm8600, %v8414, 0.0
  %v8663 = vsel %vm8601, %v8415, 0.0
  %v8664 = vsel %vm8602, %v8416, 0.0
  %v8665 = vsel %vm8603, %v8417, 0.0
  %v8666 = vsel %vm8604, %v8418, 0.0
  %v8667 = vsel %vm8605, %v8419, 0.0
  %v8668 = vsel %vm8606, %v8420, 0.0
  %v8669 = vsel %vm8607, %v8421, 0.0
  %v8670 = vsel %vm8608, %v8422, 0.0
  %v8671 = vsel %vm8609, %v8423, 0.0
  %v8672 = vsel %vm8610, %v8424, 0.0
  %v8673 = vsel %vm8611, %v8425, 0.0
  %v8674 = vsel %vm8612, %v8426, 0.0
  %v8675 = vsel %vm8613, %v8427, 0.0
  %v8676 = vsel %vm8614, %v8428, 0.0
  %v8677 = vsel %vm8615, %v8429, 0.0
  %v8678 = vsel %vm8616, %v8430, 0.0
  %v8679 = vsel %vm8617, %v8431, 0.0
  %v8680 = vsel %vm8618, %v8432, 0.0
  %v8681 = vsel %vm8619, %v8433, 0.0
  %v8682 = vsel %vm8620, %v8434, 0.0
  %v8683 = vsel %vm8621, %v8435, 0.0
  %v8684 = vsel %vm8622, %v8436, 0.0
  %v8685 = vsel %vm8623, %v8437, 0.0
  %v8686 = vsel %vm8624, %v8438, 0.0
  %v8687 = vsel %vm8625, %v8439, 0.0
  %v8688 = vsel %vm8626, %v8440, 0.0
  %v8689 = vsel %vm8627, %v8441, 0.0
  %v8690 = vsel %vm8628, %v8442, 0.0
  %v8691 = vsel %vm8629, %v8443, 0.0
  %v8692 = vsel %vm8630, %v8444, 0.0
  %v8693 = vsel %vm8631, %v8445, 0.0
  %v8694 = vsel %vm8632, %v8446, 0.0
  %v8695 = vsel %vm8633, %v8447, 0.0
  %v8696 = vsel %vm8634, %v8448, 0.0
  %v8697 = vsel %vm8635, %v8449, 0.0
  %v8698 = vsel %vm8636, %v8450, 0.0
  %v8699 = vsel %vm8637, %v8451, 0.0
  %v8700 = vsel %vm8638, %v8452, 0.0
  %v8701 = vpack.c.bf16 %v8640, %v8639
  %v8702 = vpack.c.bf16 %v8642, %v8641
  %v8703 = vpack.c.bf16 %v8644, %v8643
  %v8704 = vpack.c.bf16 %v8646, %v8645
  %v8705 = vpack.c.bf16 %v8648, %v8647
  %v8706 = vpack.c.bf16 %v8650, %v8649
  %v8707 = vpack.c.bf16 %v8652, %v8651
  %v8708 = vpack.c.bf16 %v8654, %v8653
  %v8709 = vpack.c.bf16 %v8656, %v8655
  %v8710 = vpack.c.bf16 %v8658, %v8657
  %v8711 = vpack.c.bf16 %v8660, %v8659
  %v8712 = vpack.c.bf16 %v8662, %v8661
  %v8713 = vpack.c.bf16 %v8664, %v8663
  %v8714 = vpack.c.bf16 %v8666, %v8665
  %v8715 = vpack.c.bf16 %v8668, %v8667
  %v8716 = vpack.c.bf16 %v8670, %v8669
  %v8717 = vpack.c.bf16 %v8672, %v8671
  %v8718 = vpack.c.bf16 %v8674, %v8673
  %v8719 = vpack.c.bf16 %v8676, %v8675
  %v8720 = vpack.c.bf16 %v8678, %v8677
  %v8721 = vpack.c.bf16 %v8680, %v8679
  %v8722 = vpack.c.bf16 %v8682, %v8681
  %v8723 = vpack.c.bf16 %v8684, %v8683
  %v8724 = vpack.c.bf16 %v8686, %v8685
  %v8725 = vpack.c.bf16 %v8688, %v8687
  %v8726 = vpack.c.bf16 %v8690, %v8689
  %v8727 = vpack.c.bf16 %v8692, %v8691
  %v8728 = vpack.c.bf16 %v8694, %v8693
  %v8729 = vpack.c.bf16 %v8696, %v8695
  %v8730 = vpack.c.bf16 %v8698, %v8697
  %v8731 = vpack.c.bf16 %v8700, %v8699
  %s8732 = scalar_lea.vmem %s1, 16
  %v8733 = vld [vmem:[%s8732] sm:$0x3]
  %v8735 = vsel %vm116, %v8701, 0
  %v8738 = vsel %vm116, %v8702, 0
  %v8741 = vsel %vm116, %v8703, 0
  %v8744 = vsel %vm116, %v8704, 0
  %v8747 = vsel %vm116, %v8705, 0
  %v8750 = vsel %vm116, %v8706, 0
  %v8753 = vsel %vm116, %v8707, 0
  %v8756 = vsel %vm116, %v8708, 0
  %v8759 = vsel %vm116, %v8709, 0
  %v8762 = vsel %vm116, %v8710, 0
  %v8765 = vsel %vm116, %v8711, 0
  %v8768 = vsel %vm116, %v8712, 0
  %v8771 = vsel %vm116, %v8713, 0
  %v8774 = vsel %vm116, %v8714, 0
  %v8777 = vsel %vm116, %v8715, 0
  %v8780 = vsel %vm116, %v8716, 0
  %v8783 = vsel %vm116, %v8717, 0
  %v8786 = vsel %vm116, %v8718, 0
  %v8789 = vsel %vm116, %v8719, 0
  %v8792 = vsel %vm116, %v8720, 0
  %v8795 = vsel %vm116, %v8721, 0
  %v8798 = vsel %vm116, %v8722, 0
  %v8801 = vsel %vm116, %v8723, 0
  %v8804 = vsel %vm116, %v8724, 0
  %v8807 = vsel %vm116, %v8725, 0
  %v8810 = vsel %vm116, %v8726, 0
  %v8813 = vsel %vm116, %v8727, 0
  %v8816 = vsel %vm116, %v8728, 0
  %v8819 = vsel %vm116, %v8729, 0
  %v8822 = vsel %vm116, %v8730, 0
  %v8825 = vsel %vm116, %v8731, 0
  %v8828 = vand.u32 %v8733, %v216
  %8830 = vmatprep.subr.bf16.mxu0 0
  %8831 = vmatpush1.bf16.msra.mxu0 %v8828
  %8832 = vmatprep.subr.bf16.mxu0 0
  %8833 = vmatpush1.bf16.msra.mxu0 0
  %8834 = vmatprep.subr.bf16.mxu0 0
  %8835 = vmatpush1.bf16.msra.mxu0 0
  %8836 = vmatprep.subr.bf16.mxu0 0
  %8837 = vmatpush1.bf16.msra.mxu0 0
  %8838 = vmatprep.subr.bf16.mxu0 0
  %8839 = vmatpush1.bf16.msra.mxu0 0
  %8840 = vmatprep.subr.bf16.mxu0 0
  %8841 = vmatpush1.bf16.msra.mxu0 0
  %8842 = vmatprep.subr.bf16.mxu0 0
  %8843 = vmatpush1.bf16.msra.mxu0 0
  %8844 = vmatprep.subr.bf16.mxu0 0
  %8845 = vmatpush1.bf16.msra.mxu0 0
  %8846 = vmatprep.subr.bf16.mxu0 0
  %8847 = vmatpush1.bf16.msra.mxu0 0
  %8848 = vmatprep.subr.bf16.mxu0 0
  %8849 = vmatpush1.bf16.msra.mxu0 0
  %8850 = vmatprep.subr.bf16.mxu0 0
  %8851 = vmatpush1.bf16.msra.mxu0 0
  %8852 = vmatprep.subr.bf16.mxu0 0
  %8853 = vmatpush1.bf16.msra.mxu0 0
  %8854 = vmatprep.subr.bf16.mxu0 0
  %8855 = vmatpush1.bf16.msra.mxu0 0
  %8856 = vmatprep.subr.bf16.mxu0 0
  %8857 = vmatpush1.bf16.msra.mxu0 0
  %8858 = vmatprep.subr.bf16.mxu0 0
  %8859 = vmatpush1.bf16.msra.mxu0 0
  %8860 = vmatprep.subr.bf16.mxu0 0
  %8861 = vmatpush1.bf16.msra.mxu0 0
  %8862 = vmatprep.mubr.bf16.mxu0 0
  %8863 = vmatmul.mubr.bf16.gmra.mrb[0].mxu0 %v8735
  %v8864 = vpop.f32.mrb[0].mxu0
  %v8865 = vadd.f32 0.0, %v8864
  %v8866 = vpop.f32.mrb[0].mxu0
  %v8867 = vpop.f32.mrb[0].mxu0
  %v8868 = vadd.f32 0.0, %v8867
  %v8869 = vpop.f32.mrb[0].mxu0
  %8870 = vmatprep.mubr.bf16.mxu0 0
  %8871 = vmatmul.mubr.bf16.gmra.mrb[0].mxu0 %v8738
  %v8872 = vpop.f32.mrb[0].mxu0
  %v8873 = vadd.f32 0.0, %v8872
  %v8874 = vpop.f32.mrb[0].mxu0
  %v8875 = vpop.f32.mrb[0].mxu0
  %v8876 = vadd.f32 0.0, %v8875
  %v8877 = vpop.f32.mrb[0].mxu0
  %8878 = vmatprep.mubr.bf16.mxu0 0
  %8879 = vmatmul.mubr.bf16.gmra.mrb[0].mxu0 %v8741
  %v8880 = vpop.f32.mrb[0].mxu0
  %v8881 = vadd.f32 0.0, %v8880
  %v8882 = vpop.f32.mrb[0].mxu0
  %v8883 = vpop.f32.mrb[0].mxu0
  %v8884 = vadd.f32 0.0, %v8883
  %v8885 = vpop.f32.mrb[0].mxu0
  %8886 = vmatprep.mubr.bf16.mxu0 0
  %8887 = vmatmul.mubr.bf16.gmra.mrb[0].mxu0 %v8744
  %v8888 = vpop.f32.mrb[0].mxu0
  %v8889 = vadd.f32 0.0, %v8888
  %v8890 = vpop.f32.mrb[0].mxu0
  %v8891 = vpop.f32.mrb[0].mxu0
  %v8892 = vadd.f32 0.0, %v8891
  %v8893 = vpop.f32.mrb[0].mxu0
  %8894 = vmatprep.mubr.bf16.mxu0 0
  %8895 = vmatmul.mubr.bf16.gmra.mrb[0].mxu0 %v8747
  %v8896 = vpop.f32.mrb[0].mxu0
  %v8897 = vadd.f32 0.0, %v8896
  %v8898 = vpop.f32.mrb[0].mxu0
  %v8899 = vpop.f32.mrb[0].mxu0
  %v8900 = vadd.f32 0.0, %v8899
  %v8901 = vpop.f32.mrb[0].mxu0
  %8902 = vmatprep.mubr.bf16.mxu0 0
  %8903 = vmatmul.mubr.bf16.gmra.mrb[0].mxu0 %v8750
  %v8904 = vpop.f32.mrb[0].mxu0
  %v8905 = vadd.f32 0.0, %v8904
  %v8906 = vpop.f32.mrb[0].mxu0
  %v8907 = vpop.f32.mrb[0].mxu0
  %v8908 = vadd.f32 0.0, %v8907
  %v8909 = vpop.f32.mrb[0].mxu0
  %8910 = vmatprep.mubr.bf16.mxu0 0
  %8911 = vmatmul.mubr.bf16.gmra.mrb[0].mxu0 %v8753
  %v8912 = vpop.f32.mrb[0].mxu0
  %v8913 = vadd.f32 0.0, %v8912
  %v8914 = vpop.f32.mrb[0].mxu0
  %v8915 = vpop.f32.mrb[0].mxu0
  %v8916 = vadd.f32 0.0, %v8915
  %v8917 = vpop.f32.mrb[0].mxu0
  %8918 = vmatprep.mubr.bf16.mxu0 0
  %8919 = vmatmul.mubr.bf16.gmra.mrb[0].mxu0 %v8756
  %v8920 = vpop.f32.mrb[0].mxu0
  %v8921 = vadd.f32 0.0, %v8920
  %v8922 = vpop.f32.mrb[0].mxu0
  %v8923 = vpop.f32.mrb[0].mxu0
  %v8924 = vadd.f32 0.0, %v8923
  %v8925 = vpop.f32.mrb[0].mxu0
  %8926 = vmatprep.mubr.bf16.mxu0 0
  %8927 = vmatmul.mubr.bf16.gmra.mrb[0].mxu0 %v8759
  %v8928 = vpop.f32.mrb[0].mxu0
  %v8929 = vadd.f32 0.0, %v8928
  %v8930 = vpop.f32.mrb[0].mxu0
  %v8931 = vpop.f32.mrb[0].mxu0
  %v8932 = vadd.f32 0.0, %v8931
  %v8933 = vpop.f32.mrb[0].mxu0
  %8934 = vmatprep.mubr.bf16.mxu0 0
  %8935 = vmatmul.mubr.bf16.gmra.mrb[0].mxu0 %v8762
  %v8936 = vpop.f32.mrb[0].mxu0
  %v8937 = vadd.f32 0.0, %v8936
  %v8938 = vpop.f32.mrb[0].mxu0
  %v8939 = vpop.f32.mrb[0].mxu0
  %v8940 = vadd.f32 0.0, %v8939
  %v8941 = vpop.f32.mrb[0].mxu0
  %8942 = vmatprep.mubr.bf16.mxu0 0
  %8943 = vmatmul.mubr.bf16.gmra.mrb[0].mxu0 %v8765
  %v8944 = vpop.f32.mrb[0].mxu0
  %v8945 = vadd.f32 0.0, %v8944
  %v8946 = vpop.f32.mrb[0].mxu0
  %v8947 = vpop.f32.mrb[0].mxu0
  %v8948 = vadd.f32 0.0, %v8947
  %v8949 = vpop.f32.mrb[0].mxu0
  %8950 = vmatprep.mubr.bf16.mxu0 0
  %8951 = vmatmul.mubr.bf16.gmra.mrb[0].mxu0 %v8768
  %v8952 = vpop.f32.mrb[0].mxu0
  %v8953 = vadd.f32 0.0, %v8952
  %v8954 = vpop.f32.mrb[0].mxu0
  %v8955 = vpop.f32.mrb[0].mxu0
  %v8956 = vadd.f32 0.0, %v8955
  %v8957 = vpop.f32.mrb[0].mxu0
  %8958 = vmatprep.mubr.bf16.mxu0 0
  %8959 = vmatmul.mubr.bf16.gmra.mrb[0].mxu0 %v8771
  %v8960 = vpop.f32.mrb[0].mxu0
  %v8961 = vadd.f32 0.0, %v8960
  %v8962 = vpop.f32.mrb[0].mxu0
  %v8963 = vpop.f32.mrb[0].mxu0
  %v8964 = vadd.f32 0.0, %v8963
  %v8965 = vpop.f32.mrb[0].mxu0
  %8966 = vmatprep.mubr.bf16.mxu0 0
  %8967 = vmatmul.mubr.bf16.gmra.mrb[0].mxu0 %v8774
  %v8968 = vpop.f32.mrb[0].mxu0
  %v8969 = vadd.f32 0.0, %v8968
  %v8970 = vpop.f32.mrb[0].mxu0
  %v8971 = vpop.f32.mrb[0].mxu0
  %v8972 = vadd.f32 0.0, %v8971
  %v8973 = vpop.f32.mrb[0].mxu0
  %8974 = vmatprep.mubr.bf16.mxu0 0
  %8975 = vmatmul.mubr.bf16.gmra.mrb[0].mxu0 %v8777
  %v8976 = vpop.f32.mrb[0].mxu0
  %v8977 = vadd.f32 0.0, %v8976
  %v8978 = vpop.f32.mrb[0].mxu0
  %v8979 = vpop.f32.mrb[0].mxu0
  %v8980 = vadd.f32 0.0, %v8979
  %v8981 = vpop.f32.mrb[0].mxu0
  %8982 = vmatprep.mubr.bf16.mxu0 0
  %8983 = vmatmul.mubr.bf16.gmra.mrb[0].mxu0 %v8780
  %v8984 = vpop.f32.mrb[0].mxu0
  %v8985 = vadd.f32 0.0, %v8984
  %v8986 = vpop.f32.mrb[0].mxu0
  %v8987 = vpop.f32.mrb[0].mxu0
  %v8988 = vadd.f32 0.0, %v8987
  %v8989 = vpop.f32.mrb[0].mxu0
  %8990 = vmatprep.mubr.bf16.mxu0 0
  %8991 = vmatmul.mubr.bf16.gmra.mrb[0].mxu0 %v8783
  %v8992 = vpop.f32.mrb[0].mxu0
  %v8993 = vadd.f32 0.0, %v8992
  %v8994 = vpop.f32.mrb[0].mxu0
  %v8995 = vpop.f32.mrb[0].mxu0
  %v8996 = vadd.f32 0.0, %v8995
  %v8997 = vpop.f32.mrb[0].mxu0
  %8998 = vmatprep.mubr.bf16.mxu0 0
  %8999 = vmatmul.mubr.bf16.gmra.mrb[0].mxu0 %v8786
  %v9000 = vpop.f32.mrb[0].mxu0
  %v9001 = vadd.f32 0.0, %v9000
  %v9002 = vpop.f32.mrb[0].mxu0
  %v9003 = vpop.f32.mrb[0].mxu0
  %v9004 = vadd.f32 0.0, %v9003
  %v9005 = vpop.f32.mrb[0].mxu0
  %9006 = vmatprep.mubr.bf16.mxu0 0
  %9007 = vmatmul.mubr.bf16.gmra.mrb[0].mxu0 %v8789
  %v9008 = vpop.f32.mrb[0].mxu0
  %v9009 = vadd.f32 0.0, %v9008
  %v9010 = vpop.f32.mrb[0].mxu0
  %v9011 = vpop.f32.mrb[0].mxu0
  %v9012 = vadd.f32 0.0, %v9011
  %v9013 = vpop.f32.mrb[0].mxu0
  %9014 = vmatprep.mubr.bf16.mxu0 0
  %9015 = vmatmul.mubr.bf16.gmra.mrb[0].mxu0 %v8792
  %v9016 = vpop.f32.mrb[0].mxu0
  %v9017 = vadd.f32 0.0, %v9016
  %v9018 = vpop.f32.mrb[0].mxu0
  %v9019 = vpop.f32.mrb[0].mxu0
  %v9020 = vadd.f32 0.0, %v9019
  %v9021 = vpop.f32.mrb[0].mxu0
  %9022 = vmatprep.mubr.bf16.mxu0 0
  %9023 = vmatmul.mubr.bf16.gmra.mrb[0].mxu0 %v8795
  %v9024 = vpop.f32.mrb[0].mxu0
  %v9025 = vadd.f32 0.0, %v9024
  %v9026 = vpop.f32.mrb[0].mxu0
  %v9027 = vpop.f32.mrb[0].mxu0
  %v9028 = vadd.f32 0.0, %v9027
  %v9029 = vpop.f32.mrb[0].mxu0
  %9030 = vmatprep.mubr.bf16.mxu0 0
  %9031 = vmatmul.mubr.bf16.gmra.mrb[0].mxu0 %v8798
  %v9032 = vpop.f32.mrb[0].mxu0
  %v9033 = vadd.f32 0.0, %v9032
  %v9034 = vpop.f32.mrb[0].mxu0
  %v9035 = vpop.f32.mrb[0].mxu0
  %v9036 = vadd.f32 0.0, %v9035
  %v9037 = vpop.f32.mrb[0].mxu0
  %9038 = vmatprep.mubr.bf16.mxu0 0
  %9039 = vmatmul.mubr.bf16.gmra.mrb[0].mxu0 %v8801
  %v9040 = vpop.f32.mrb[0].mxu0
  %v9041 = vadd.f32 0.0, %v9040
  %v9042 = vpop.f32.mrb[0].mxu0
  %v9043 = vpop.f32.mrb[0].mxu0
  %v9044 = vadd.f32 0.0, %v9043
  %v9045 = vpop.f32.mrb[0].mxu0
  %9046 = vmatprep.mubr.bf16.mxu0 0
  %9047 = vmatmul.mubr.bf16.gmra.mrb[0].mxu0 %v8804
  %v9048 = vpop.f32.mrb[0].mxu0
  %v9049 = vadd.f32 0.0, %v9048
  %v9050 = vpop.f32.mrb[0].mxu0
  %v9051 = vpop.f32.mrb[0].mxu0
  %v9052 = vadd.f32 0.0, %v9051
  %v9053 = vpop.f32.mrb[0].mxu0
  %9054 = vmatprep.mubr.bf16.mxu0 0
  %9055 = vmatmul.mubr.bf16.gmra.mrb[0].mxu0 %v8807
  %v9056 = vpop.f32.mrb[0].mxu0
  %v9057 = vadd.f32 0.0, %v9056
  %v9058 = vpop.f32.mrb[0].mxu0
  %v9059 = vpop.f32.mrb[0].mxu0
  %v9060 = vadd.f32 0.0, %v9059
  %v9061 = vpop.f32.mrb[0].mxu0
  %9062 = vmatprep.mubr.bf16.mxu0 0
  %9063 = vmatmul.mubr.bf16.gmra.mrb[0].mxu0 %v8810
  %v9064 = vpop.f32.mrb[0].mxu0
  %v9065 = vadd.f32 0.0, %v9064
  %v9066 = vpop.f32.mrb[0].mxu0
  %v9067 = vpop.f32.mrb[0].mxu0
  %v9068 = vadd.f32 0.0, %v9067
  %v9069 = vpop.f32.mrb[0].mxu0
  %9070 = vmatprep.mubr.bf16.mxu0 0
  %9071 = vmatmul.mubr.bf16.gmra.mrb[0].mxu0 %v8813
  %v9072 = vpop.f32.mrb[0].mxu0
  %v9073 = vadd.f32 0.0, %v9072
  %v9074 = vpop.f32.mrb[0].mxu0
  %v9075 = vpop.f32.mrb[0].mxu0
  %v9076 = vadd.f32 0.0, %v9075
  %v9077 = vpop.f32.mrb[0].mxu0
  %9078 = vmatprep.mubr.bf16.mxu0 0
  %9079 = vmatmul.mubr.bf16.gmra.mrb[0].mxu0 %v8816
  %v9080 = vpop.f32.mrb[0].mxu0
  %v9081 = vadd.f32 0.0, %v9080
  %v9082 = vpop.f32.mrb[0].mxu0
  %v9083 = vpop.f32.mrb[0].mxu0
  %v9084 = vadd.f32 0.0, %v9083
  %v9085 = vpop.f32.mrb[0].mxu0
  %9086 = vmatprep.mubr.bf16.mxu0 0
  %9087 = vmatmul.mubr.bf16.gmra.mrb[0].mxu0 %v8819
  %v9088 = vpop.f32.mrb[0].mxu0
  %v9089 = vadd.f32 0.0, %v9088
  %v9090 = vpop.f32.mrb[0].mxu0
  %v9091 = vpop.f32.mrb[0].mxu0
  %v9092 = vadd.f32 0.0, %v9091
  %v9093 = vpop.f32.mrb[0].mxu0
  %9094 = vmatprep.mubr.bf16.mxu0 0
  %9095 = vmatmul.mubr.bf16.gmra.mrb[0].mxu0 %v8822
  %v9096 = vpop.f32.mrb[0].mxu0
  %v9097 = vadd.f32 0.0, %v9096
  %v9098 = vpop.f32.mrb[0].mxu0
  %v9099 = vpop.f32.mrb[0].mxu0
  %v9100 = vadd.f32 0.0, %v9099
  %v9101 = vpop.f32.mrb[0].mxu0
  %9102 = vmatprep.mubr.bf16.mxu0 0
  %9103 = vmatmul.mubr.bf16.gmra.mrb[0].mxu0 %v8825
  %v9104 = vpop.f32.mrb[0].mxu0
  %v9105 = vadd.f32 0.0, %v9104
  %v9106 = vpop.f32.mrb[0].mxu0
  %v9107 = vpop.f32.mrb[0].mxu0
  %v9108 = vadd.f32 0.0, %v9107
  %v9109 = vpop.f32.mrb[0].mxu0
  %9110 = vdwg.mxu0
  %v9111 = vld [vmem:[#allocation2] sm:$0xff]
  %v9112 = vld [vmem:[#allocation2 + $0x8] sm:$0xff]
  %v9113 = vld [vmem:[#allocation2 + $0x10] sm:$0xff]
  %v9114 = vld [vmem:[#allocation2 + $0x18] sm:$0xff]
  %v9115 = vld [vmem:[#allocation2 + $0x20] sm:$0xff]
  %v9116 = vld [vmem:[#allocation2 + $0x28] sm:$0xff]
  %v9117 = vld [vmem:[#allocation2 + $0x30] sm:$0xff]
  %v9118 = vld [vmem:[#allocation2 + $0x38] sm:$0xff]
  %v9119 = vld [vmem:[#allocation2 + $0x40] sm:$0xff]
  %v9120 = vld [vmem:[#allocation2 + $0x48] sm:$0xff]
  %v9121 = vld [vmem:[#allocation2 + $0x50] sm:$0xff]
  %v9122 = vld [vmem:[#allocation2 + $0x58] sm:$0xff]
  %v9123 = vld [vmem:[#allocation2 + $0x60] sm:$0xff]
  %v9124 = vld [vmem:[#allocation2 + $0x68] sm:$0xff]
  %v9125 = vld [vmem:[#allocation2 + $0x70] sm:$0xff]
  %v9126 = vld [vmem:[#allocation2 + $0x78] sm:$0xff]
  %v9127 = vld [vmem:[#allocation2 + $0x80] sm:$0xff]
  %v9128 = vld [vmem:[#allocation2 + $0x88] sm:$0xff]
  %v9129 = vld [vmem:[#allocation2 + $0x90] sm:$0xff]
  %v9130 = vld [vmem:[#allocation2 + $0x98] sm:$0xff]
  %v9131 = vld [vmem:[#allocation2 + $0xa0] sm:$0xff]
  %v9132 = vld [vmem:[#allocation2 + $0xa8] sm:$0xff]
  %v9133 = vld [vmem:[#allocation2 + $0xb0] sm:$0xff]
  %v9134 = vld [vmem:[#allocation2 + $0xb8] sm:$0xff]
  %v9135 = vld [vmem:[#allocation2 + $0xc0] sm:$0xff]
  %v9136 = vld [vmem:[#allocation2 + $0xc8] sm:$0xff]
  %v9137 = vld [vmem:[#allocation2 + $0xd0] sm:$0xff]
  %v9138 = vld [vmem:[#allocation2 + $0xd8] sm:$0xff]
  %v9139 = vld [vmem:[#allocation2 + $0xe0] sm:$0xff]
  %v9140 = vld [vmem:[#allocation2 + $0xe8] sm:$0xff]
  %v9141 = vld [vmem:[#allocation2 + $0xf0] sm:$0xff]
  %v9142 = vld [vmem:[#allocation2 + $0xf8] sm:$0xff]
  %v9143 = vld [vmem:[#allocation2 + $0x100] sm:$0xff]
  %v9144 = vld [vmem:[#allocation2 + $0x108] sm:$0xff]
  %v9145 = vld [vmem:[#allocation2 + $0x110] sm:$0xff]
  %v9146 = vld [vmem:[#allocation2 + $0x118] sm:$0xff]
  %v9147 = vld [vmem:[#allocation2 + $0x120] sm:$0xff]
  %v9148 = vld [vmem:[#allocation2 + $0x128] sm:$0xff]
  %v9149 = vld [vmem:[#allocation2 + $0x130] sm:$0xff]
  %v9150 = vld [vmem:[#allocation2 + $0x138] sm:$0xff]
  %v9151 = vld [vmem:[#allocation2 + $0x140] sm:$0xff]
  %v9152 = vld [vmem:[#allocation2 + $0x148] sm:$0xff]
  %v9153 = vld [vmem:[#allocation2 + $0x150] sm:$0xff]
  %v9154 = vld [vmem:[#allocation2 + $0x158] sm:$0xff]
  %v9155 = vld [vmem:[#allocation2 + $0x160] sm:$0xff]
  %v9156 = vld [vmem:[#allocation2 + $0x168] sm:$0xff]
  %v9157 = vld [vmem:[#allocation2 + $0x170] sm:$0xff]
  %v9158 = vld [vmem:[#allocation2 + $0x178] sm:$0xff]
  %v9159 = vld [vmem:[#allocation2 + $0x180] sm:$0xff]
  %v9160 = vld [vmem:[#allocation2 + $0x188] sm:$0xff]
  %v9161 = vld [vmem:[#allocation2 + $0x190] sm:$0xff]
  %v9162 = vld [vmem:[#allocation2 + $0x198] sm:$0xff]
  %v9163 = vld [vmem:[#allocation2 + $0x1a0] sm:$0xff]
  %v9164 = vld [vmem:[#allocation2 + $0x1a8] sm:$0xff]
  %v9165 = vld [vmem:[#allocation2 + $0x1b0] sm:$0xff]
  %v9166 = vld [vmem:[#allocation2 + $0x1b8] sm:$0xff]
  %v9167 = vld [vmem:[#allocation2 + $0x1c0] sm:$0xff]
  %v9168 = vld [vmem:[#allocation2 + $0x1c8] sm:$0xff]
  %v9169 = vld [vmem:[#allocation2 + $0x1d0] sm:$0xff]
  %v9170 = vld [vmem:[#allocation2 + $0x1d8] sm:$0xff]
  %v9171 = vld [vmem:[#allocation2 + $0x1e0] sm:$0xff]
  %v9172 = vld [vmem:[#allocation2 + $0x1e8] sm:$0x7f]
  %v9173 = vadd.f32 %v9111, %v8865
  %v9174 = vadd.f32 %v9112, %v8868
  %v9175 = vadd.f32 %v9113, %v8873
  %v9176 = vadd.f32 %v9114, %v8876
  %v9177 = vadd.f32 %v9115, %v8881
  %v9178 = vadd.f32 %v9116, %v8884
  %v9179 = vadd.f32 %v9117, %v8889
  %v9180 = vadd.f32 %v9118, %v8892
  %v9181 = vadd.f32 %v9119, %v8897
  %v9182 = vadd.f32 %v9120, %v8900
  %v9183 = vadd.f32 %v9121, %v8905
  %v9184 = vadd.f32 %v9122, %v8908
  %v9185 = vadd.f32 %v9123, %v8913
  %v9186 = vadd.f32 %v9124, %v8916
  %v9187 = vadd.f32 %v9125, %v8921
  %v9188 = vadd.f32 %v9126, %v8924
  %v9189 = vadd.f32 %v9127, %v8929
  %v9190 = vadd.f32 %v9128, %v8932
  %v9191 = vadd.f32 %v9129, %v8937
  %v9192 = vadd.f32 %v9130, %v8940
  %v9193 = vadd.f32 %v9131, %v8945
  %v9194 = vadd.f32 %v9132, %v8948
  %v9195 = vadd.f32 %v9133, %v8953
  %v9196 = vadd.f32 %v9134, %v8956
  %v9197 = vadd.f32 %v9135, %v8961
  %v9198 = vadd.f32 %v9136, %v8964
  %v9199 = vadd.f32 %v9137, %v8969
  %v9200 = vadd.f32 %v9138, %v8972
  %v9201 = vadd.f32 %v9139, %v8977
  %v9202 = vadd.f32 %v9140, %v8980
  %v9203 = vadd.f32 %v9141, %v8985
  %v9204 = vadd.f32 %v9142, %v8988
  %v9205 = vadd.f32 %v9143, %v8993
  %v9206 = vadd.f32 %v9144, %v8996
  %v9207 = vadd.f32 %v9145, %v9001
  %v9208 = vadd.f32 %v9146, %v9004
  %v9209 = vadd.f32 %v9147, %v9009
  %v9210 = vadd.f32 %v9148, %v9012
  %v9211 = vadd.f32 %v9149, %v9017
  %v9212 = vadd.f32 %v9150, %v9020
  %v9213 = vadd.f32 %v9151, %v9025
  %v9214 = vadd.f32 %v9152, %v9028
  %v9215 = vadd.f32 %v9153, %v9033
  %v9216 = vadd.f32 %v9154, %v9036
  %v9217 = vadd.f32 %v9155, %v9041
  %v9218 = vadd.f32 %v9156, %v9044
  %v9219 = vadd.f32 %v9157, %v9049
  %v9220 = vadd.f32 %v9158, %v9052
  %v9221 = vadd.f32 %v9159, %v9057
  %v9222 = vadd.f32 %v9160, %v9060
  %v9223 = vadd.f32 %v9161, %v9065
  %v9224 = vadd.f32 %v9162, %v9068
  %v9225 = vadd.f32 %v9163, %v9073
  %v9226 = vadd.f32 %v9164, %v9076
  %v9227 = vadd.f32 %v9165, %v9081
  %v9228 = vadd.f32 %v9166, %v9084
  %v9229 = vadd.f32 %v9167, %v9089
  %v9230 = vadd.f32 %v9168, %v9092
  %v9231 = vadd.f32 %v9169, %v9097
  %v9232 = vadd.f32 %v9170, %v9100
  %v9233 = vadd.f32 %v9171, %v9105
  %v9234 = vadd.f32 %v9172, %v9108
  %9235 = vst.msk [vmem:[#allocation2] sm:$0xff] %vm509, %v9173
  %9236 = vst.msk [vmem:[#allocation2 + $0x8] sm:$0xff] %vm509, %v9174
  %9237 = vst.msk [vmem:[#allocation2 + $0x10] sm:$0xff] %vm509, %v9175
  %9238 = vst.msk [vmem:[#allocation2 + $0x18] sm:$0xff] %vm509, %v9176
  %9239 = vst.msk [vmem:[#allocation2 + $0x20] sm:$0xff] %vm509, %v9177
  %9240 = vst.msk [vmem:[#allocation2 + $0x28] sm:$0xff] %vm509, %v9178
  %9241 = vst.msk [vmem:[#allocation2 + $0x30] sm:$0xff] %vm509, %v9179
  %9242 = vst.msk [vmem:[#allocation2 + $0x38] sm:$0xff] %vm509, %v9180
  %9243 = vst.msk [vmem:[#allocation2 + $0x40] sm:$0xff] %vm509, %v9181
  %9244 = vst.msk [vmem:[#allocation2 + $0x48] sm:$0xff] %vm509, %v9182
  %9245 = vst.msk [vmem:[#allocation2 + $0x50] sm:$0xff] %vm509, %v9183
  %9246 = vst.msk [vmem:[#allocation2 + $0x58] sm:$0xff] %vm509, %v9184
  %9247 = vst.msk [vmem:[#allocation2 + $0x60] sm:$0xff] %vm509, %v9185
  %9248 = vst.msk [vmem:[#allocation2 + $0x68] sm:$0xff] %vm509, %v9186
  %9249 = vst.msk [vmem:[#allocation2 + $0x70] sm:$0xff] %vm509, %v9187
  %9250 = vst.msk [vmem:[#allocation2 + $0x78] sm:$0xff] %vm509, %v9188
  %9251 = vst.msk [vmem:[#allocation2 + $0x80] sm:$0xff] %vm509, %v9189
  %9252 = vst.msk [vmem:[#allocation2 + $0x88] sm:$0xff] %vm509, %v9190
  %9253 = vst.msk [vmem:[#allocation2 + $0x90] sm:$0xff] %vm509, %v9191
  %9254 = vst.msk [vmem:[#allocation2 + $0x98] sm:$0xff] %vm509, %v9192
  %9255 = vst.msk [vmem:[#allocation2 + $0xa0] sm:$0xff] %vm509, %v9193
  %9256 = vst.msk [vmem:[#allocation2 + $0xa8] sm:$0xff] %vm509, %v9194
  %9257 = vst.msk [vmem:[#allocation2 + $0xb0] sm:$0xff] %vm509, %v9195
  %9258 = vst.msk [vmem:[#allocation2 + $0xb8] sm:$0xff] %vm509, %v9196
  %9259 = vst.msk [vmem:[#allocation2 + $0xc0] sm:$0xff] %vm509, %v9197
  %9260 = vst.msk [vmem:[#allocation2 + $0xc8] sm:$0xff] %vm509, %v9198
  %9261 = vst.msk [vmem:[#allocation2 + $0xd0] sm:$0xff] %vm509, %v9199
  %9262 = vst.msk [vmem:[#allocation2 + $0xd8] sm:$0xff] %vm509, %v9200
  %9263 = vst.msk [vmem:[#allocation2 + $0xe0] sm:$0xff] %vm509, %v9201
  %9264 = vst.msk [vmem:[#allocation2 + $0xe8] sm:$0xff] %vm509, %v9202
  %9265 = vst.msk [vmem:[#allocation2 + $0xf0] sm:$0xff] %vm509, %v9203
  %9266 = vst.msk [vmem:[#allocation2 + $0xf8] sm:$0xff] %vm509, %v9204
  %9267 = vst.msk [vmem:[#allocation2 + $0x100] sm:$0xff] %vm509, %v9205
  %9268 = vst.msk [vmem:[#allocation2 + $0x108] sm:$0xff] %vm509, %v9206
  %9269 = vst.msk [vmem:[#allocation2 + $0x110] sm:$0xff] %vm509, %v9207
  %9270 = vst.msk [vmem:[#allocation2 + $0x118] sm:$0xff] %vm509, %v9208
  %9271 = vst.msk [vmem:[#allocation2 + $0x120] sm:$0xff] %vm509, %v9209
  %9272 = vst.msk [vmem:[#allocation2 + $0x128] sm:$0xff] %vm509, %v9210
  %9273 = vst.msk [vmem:[#allocation2 + $0x130] sm:$0xff] %vm509, %v9211
  %9274 = vst.msk [vmem:[#allocation2 + $0x138] sm:$0xff] %vm509, %v9212
  %9275 = vst.msk [vmem:[#allocation2 + $0x140] sm:$0xff] %vm509, %v9213
  %9276 = vst.msk [vmem:[#allocation2 + $0x148] sm:$0xff] %vm509, %v9214
  %9277 = vst.msk [vmem:[#allocation2 + $0x150] sm:$0xff] %vm509, %v9215
  %9278 = vst.msk [vmem:[#allocation2 + $0x158] sm:$0xff] %vm509, %v9216
  %9279 = vst.msk [vmem:[#allocation2 + $0x160] sm:$0xff] %vm509, %v9217
  %9280 = vst.msk [vmem:[#allocation2 + $0x168] sm:$0xff] %vm509, %v9218
  %9281 = vst.msk [vmem:[#allocation2 + $0x170] sm:$0xff] %vm509, %v9219
  %9282 = vst.msk [vmem:[#allocation2 + $0x178] sm:$0xff] %vm509, %v9220
  %9283 = vst.msk [vmem:[#allocation2 + $0x180] sm:$0xff] %vm509, %v9221
  %9284 = vst.msk [vmem:[#allocation2 + $0x188] sm:$0xff] %vm509, %v9222
  %9285 = vst.msk [vmem:[#allocation2 + $0x190] sm:$0xff] %vm509, %v9223
  %9286 = vst.msk [vmem:[#allocation2 + $0x198] sm:$0xff] %vm509, %v9224
  %9287 = vst.msk [vmem:[#allocation2 + $0x1a0] sm:$0xff] %vm509, %v9225
  %9288 = vst.msk [vmem:[#allocation2 + $0x1a8] sm:$0xff] %vm509, %v9226
  %9289 = vst.msk [vmem:[#allocation2 + $0x1b0] sm:$0xff] %vm509, %v9227
  %9290 = vst.msk [vmem:[#allocation2 + $0x1b8] sm:$0xff] %vm509, %v9228
  %9291 = vst.msk [vmem:[#allocation2 + $0x1c0] sm:$0xff] %vm509, %v9229
  %9292 = vst.msk [vmem:[#allocation2 + $0x1c8] sm:$0xff] %vm509, %v9230
  %9293 = vst.msk [vmem:[#allocation2 + $0x1d0] sm:$0xff] %vm509, %v9231
  %9294 = vst.msk [vmem:[#allocation2 + $0x1d8] sm:$0xff] %vm509, %v9232
  %9295 = vst.msk [vmem:[#allocation2 + $0x1e0] sm:$0xff] %vm509, %v9233
  %9296 = vst.msk [vmem:[#allocation2 + $0x1e8] sm:$0x7f] %vm1913, %v9234
  %v9297 = vld [vmem:[#allocation2] sm:$0xff]
  %v9298 = vld [vmem:[#allocation2 + $0x8] sm:$0xff]
  %v9299 = vld [vmem:[#allocation2 + $0x10] sm:$0xff]
  %v9300 = vld [vmem:[#allocation2 + $0x18] sm:$0xff]
  %v9301 = vld [vmem:[#allocation2 + $0x20] sm:$0xff]
  %v9302 = vld [vmem:[#allocation2 + $0x28] sm:$0xff]
  %v9303 = vld [vmem:[#allocation2 + $0x30] sm:$0xff]
  %v9304 = vld [vmem:[#allocation2 + $0x38] sm:$0xff]
  %v9305 = vld [vmem:[#allocation2 + $0x40] sm:$0xff]
  %v9306 = vld [vmem:[#allocation2 + $0x48] sm:$0xff]
  %v9307 = vld [vmem:[#allocation2 + $0x50] sm:$0xff]
  %v9308 = vld [vmem:[#allocation2 + $0x58] sm:$0xff]
  %v9309 = vld [vmem:[#allocation2 + $0x60] sm:$0xff]
  %v9310 = vld [vmem:[#allocation2 + $0x68] sm:$0xff]
  %v9311 = vld [vmem:[#allocation2 + $0x70] sm:$0xff]
  %v9312 = vld [vmem:[#allocation2 + $0x78] sm:$0xff]
  %v9313 = vld [vmem:[#allocation2 + $0x80] sm:$0xff]
  %v9314 = vld [vmem:[#allocation2 + $0x88] sm:$0xff]
  %v9315 = vld [vmem:[#allocation2 + $0x90] sm:$0xff]
  %v9316 = vld [vmem:[#allocation2 + $0x98] sm:$0xff]
  %v9317 = vld [vmem:[#allocation2 + $0xa0] sm:$0xff]
  %v9318 = vld [vmem:[#allocation2 + $0xa8] sm:$0xff]
  %v9319 = vld [vmem:[#allocation2 + $0xb0] sm:$0xff]
  %v9320 = vld [vmem:[#allocation2 + $0xb8] sm:$0xff]
  %v9321 = vld [vmem:[#allocation2 + $0xc0] sm:$0xff]
  %v9322 = vld [vmem:[#allocation2 + $0xc8] sm:$0xff]
  %v9323 = vld [vmem:[#allocation2 + $0xd0] sm:$0xff]
  %v9324 = vld [vmem:[#allocation2 + $0xd8] sm:$0xff]
  %v9325 = vld [vmem:[#allocation2 + $0xe0] sm:$0xff]
  %v9326 = vld [vmem:[#allocation2 + $0xe8] sm:$0xff]
  %v9327 = vld [vmem:[#allocation2 + $0xf0] sm:$0xff]
  %v9328 = vld [vmem:[#allocation2 + $0xf8] sm:$0xff]
  %v9329 = vld [vmem:[#allocation2 + $0x100] sm:$0xff]
  %v9330 = vld [vmem:[#allocation2 + $0x108] sm:$0xff]
  %v9331 = vld [vmem:[#allocation2 + $0x110] sm:$0xff]
  %v9332 = vld [vmem:[#allocation2 + $0x118] sm:$0xff]
  %v9333 = vld [vmem:[#allocation2 + $0x120] sm:$0xff]
  %v9334 = vld [vmem:[#allocation2 + $0x128] sm:$0xff]
  %v9335 = vld [vmem:[#allocation2 + $0x130] sm:$0xff]
  %v9336 = vld [vmem:[#allocation2 + $0x138] sm:$0xff]
  %v9337 = vld [vmem:[#allocation2 + $0x140] sm:$0xff]
  %v9338 = vld [vmem:[#allocation2 + $0x148] sm:$0xff]
  %v9339 = vld [vmem:[#allocation2 + $0x150] sm:$0xff]
  %v9340 = vld [vmem:[#allocation2 + $0x158] sm:$0xff]
  %v9341 = vld [vmem:[#allocation2 + $0x160] sm:$0xff]
  %v9342 = vld [vmem:[#allocation2 + $0x168] sm:$0xff]
  %v9343 = vld [vmem:[#allocation2 + $0x170] sm:$0xff]
  %v9344 = vld [vmem:[#allocation2 + $0x178] sm:$0xff]
  %v9345 = vld [vmem:[#allocation2 + $0x180] sm:$0xff]
  %v9346 = vld [vmem:[#allocation2 + $0x188] sm:$0xff]
  %v9347 = vld [vmem:[#allocation2 + $0x190] sm:$0xff]
  %v9348 = vld [vmem:[#allocation2 + $0x198] sm:$0xff]
  %v9349 = vld [vmem:[#allocation2 + $0x1a0] sm:$0xff]
  %v9350 = vld [vmem:[#allocation2 + $0x1a8] sm:$0xff]
  %v9351 = vld [vmem:[#allocation2 + $0x1b0] sm:$0xff]
  %v9352 = vld [vmem:[#allocation2 + $0x1b8] sm:$0xff]
  %v9353 = vld [vmem:[#allocation2 + $0x1c0] sm:$0xff]
  %v9354 = vld [vmem:[#allocation2 + $0x1c8] sm:$0xff]
  %v9355 = vld [vmem:[#allocation2 + $0x1d0] sm:$0xff]
  %v9356 = vld [vmem:[#allocation2 + $0x1d8] sm:$0xff]
  %v9357 = vld [vmem:[#allocation2 + $0x1e0] sm:$0xff]
  %v9358 = vld [vmem:[#allocation2 + $0x1e8] sm:$0xff]
  %v9359 = vld [vmem:[#allocation2 + $0x1f0] sm:$0xff]
  %v9360 = vld [vmem:[#allocation2 + $0x1f8] sm:$0xff]
  %v9361 = vsel %vm509, %v9297, 0.0
  %v9362 = vsel %vm509, %v9298, 0.0
  %v9363 = vadd.f32 %v9361, %v9362
  %v9364 = vsel %vm509, %v9299, 0.0
  %v9365 = vadd.f32 %v9363, %v9364
  %v9366 = vsel %vm509, %v9300, 0.0
  %v9367 = vadd.f32 %v9365, %v9366
  %v9368 = vsel %vm509, %v9301, 0.0
  %v9369 = vadd.f32 %v9367, %v9368
  %v9370 = vsel %vm509, %v9302, 0.0
  %v9371 = vadd.f32 %v9369, %v9370
  %v9372 = vsel %vm509, %v9303, 0.0
  %v9373 = vadd.f32 %v9371, %v9372
  %v9374 = vsel %vm509, %v9304, 0.0
  %v9375 = vadd.f32 %v9373, %v9374
  %v9376 = vsel %vm509, %v9305, 0.0
  %v9377 = vadd.f32 %v9375, %v9376
  %v9378 = vsel %vm509, %v9306, 0.0
  %v9379 = vadd.f32 %v9377, %v9378
  %v9380 = vsel %vm509, %v9307, 0.0
  %v9381 = vadd.f32 %v9379, %v9380
  %v9382 = vsel %vm509, %v9308, 0.0
  %v9383 = vadd.f32 %v9381, %v9382
  %v9384 = vsel %vm509, %v9309, 0.0
  %v9385 = vadd.f32 %v9383, %v9384
  %v9386 = vsel %vm509, %v9310, 0.0
  %v9387 = vadd.f32 %v9385, %v9386
  %v9388 = vsel %vm509, %v9311, 0.0
  %v9389 = vadd.f32 %v9387, %v9388
  %v9390 = vsel %vm509, %v9312, 0.0
  %v9391 = vadd.f32 %v9389, %v9390
  %v9392 = vsel %vm509, %v9313, 0.0
  %v9393 = vadd.f32 %v9391, %v9392
  %v9394 = vsel %vm509, %v9314, 0.0
  %v9395 = vadd.f32 %v9393, %v9394
  %v9396 = vsel %vm509, %v9315, 0.0
  %v9397 = vadd.f32 %v9395, %v9396
  %v9398 = vsel %vm509, %v9316, 0.0
  %v9399 = vadd.f32 %v9397, %v9398
  %v9400 = vsel %vm509, %v9317, 0.0
  %v9401 = vadd.f32 %v9399, %v9400
  %v9402 = vsel %vm509, %v9318, 0.0
  %v9403 = vadd.f32 %v9401, %v9402
  %v9404 = vsel %vm509, %v9319, 0.0
  %v9405 = vadd.f32 %v9403, %v9404
  %v9406 = vsel %vm509, %v9320, 0.0
  %v9407 = vadd.f32 %v9405, %v9406
  %v9408 = vsel %vm509, %v9321, 0.0
  %v9409 = vadd.f32 %v9407, %v9408
  %v9410 = vsel %vm509, %v9322, 0.0
  %v9411 = vadd.f32 %v9409, %v9410
  %v9412 = vsel %vm509, %v9323, 0.0
  %v9413 = vadd.f32 %v9411, %v9412
  %v9414 = vsel %vm509, %v9324, 0.0
  %v9415 = vadd.f32 %v9413, %v9414
  %v9416 = vsel %vm509, %v9325, 0.0
  %v9417 = vadd.f32 %v9415, %v9416
  %v9418 = vsel %vm509, %v9326, 0.0
  %v9419 = vadd.f32 %v9417, %v9418
  %v9420 = vsel %vm509, %v9327, 0.0
  %v9421 = vadd.f32 %v9419, %v9420
  %v9422 = vsel %vm509, %v9328, 0.0
  %v9423 = vadd.f32 %v9421, %v9422
  %v9424 = vsel %vm509, %v9329, 0.0
  %v9425 = vadd.f32 %v9423, %v9424
  %v9426 = vsel %vm509, %v9330, 0.0
  %v9427 = vadd.f32 %v9425, %v9426
  %v9428 = vsel %vm509, %v9331, 0.0
  %v9429 = vadd.f32 %v9427, %v9428
  %v9430 = vsel %vm509, %v9332, 0.0
  %v9431 = vadd.f32 %v9429, %v9430
  %v9432 = vsel %vm509, %v9333, 0.0
  %v9433 = vadd.f32 %v9431, %v9432
  %v9434 = vsel %vm509, %v9334, 0.0
  %v9435 = vadd.f32 %v9433, %v9434
  %v9436 = vsel %vm509, %v9335, 0.0
  %v9437 = vadd.f32 %v9435, %v9436
  %v9438 = vsel %vm509, %v9336, 0.0
  %v9439 = vadd.f32 %v9437, %v9438
  %v9440 = vsel %vm509, %v9337, 0.0
  %v9441 = vadd.f32 %v9439, %v9440
  %v9442 = vsel %vm509, %v9338, 0.0
  %v9443 = vadd.f32 %v9441, %v9442
  %v9444 = vsel %vm509, %v9339, 0.0
  %v9445 = vadd.f32 %v9443, %v9444
  %v9446 = vsel %vm509, %v9340, 0.0
  %v9447 = vadd.f32 %v9445, %v9446
  %v9448 = vsel %vm509, %v9341, 0.0
  %v9449 = vadd.f32 %v9447, %v9448
  %v9450 = vsel %vm509, %v9342, 0.0
  %v9451 = vadd.f32 %v9449, %v9450
  %v9452 = vsel %vm509, %v9343, 0.0
  %v9453 = vadd.f32 %v9451, %v9452
  %v9454 = vsel %vm509, %v9344, 0.0
  %v9455 = vadd.f32 %v9453, %v9454
  %v9456 = vsel %vm509, %v9345, 0.0
  %v9457 = vadd.f32 %v9455, %v9456
  %v9458 = vsel %vm509, %v9346, 0.0
  %v9459 = vadd.f32 %v9457, %v9458
  %v9460 = vsel %vm509, %v9347, 0.0
  %v9461 = vadd.f32 %v9459, %v9460
  %v9462 = vsel %vm509, %v9348, 0.0
  %v9463 = vadd.f32 %v9461, %v9462
  %v9464 = vsel %vm509, %v9349, 0.0
  %v9465 = vadd.f32 %v9463, %v9464
  %v9466 = vsel %vm509, %v9350, 0.0
  %v9467 = vadd.f32 %v9465, %v9466
  %v9468 = vsel %vm509, %v9351, 0.0
  %v9469 = vadd.f32 %v9467, %v9468
  %v9470 = vsel %vm509, %v9352, 0.0
  %v9471 = vadd.f32 %v9469, %v9470
  %v9472 = vsel %vm509, %v9353, 0.0
  %v9473 = vadd.f32 %v9471, %v9472
  %v9474 = vsel %vm509, %v9354, 0.0
  %v9475 = vadd.f32 %v9473, %v9474
  %v9476 = vsel %vm509, %v9355, 0.0
  %v9477 = vadd.f32 %v9475, %v9476
  %v9478 = vsel %vm509, %v9356, 0.0
  %v9479 = vadd.f32 %v9477, %v9478
  %v9480 = vsel %vm509, %v9357, 0.0
  %v9481 = vadd.f32 %v9479, %v9480
  %v9482 = vsel %vm509, %v9358, 0.0
  %v9483 = vadd.f32 %v9481, %v9482
  %v9484 = vsel %vm509, %v9359, 0.0
  %v9485 = vadd.f32 %v9483, %v9484
  %v9486 = vsel %vm509, %v9360, 0.0
  %v9487 = vadd.f32 %v9485, %v9486
  %v9488 = vrot.slane %v9487, 4
  %v9489 = vadd.f32 %v9487, %v9488
  %v9490 = vrot.slane %v9489, 2
  %v9491 = vadd.f32 %v9489, %v9490
  %v9492 = vrot.slane %v9491, 1
  %v9493 = vadd.f32 %v9491, %v9492
  %v9494 = vmul.f32 %v9297, %v9297
  %v9495 = vmul.f32 %v9298, %v9298
  %v9496 = vmul.f32 %v9299, %v9299
  %v9497 = vmul.f32 %v9300, %v9300
  %v9498 = vmul.f32 %v9301, %v9301
  %v9499 = vmul.f32 %v9302, %v9302
  %v9500 = vmul.f32 %v9303, %v9303
  %v9501 = vmul.f32 %v9304, %v9304
  %v9502 = vmul.f32 %v9305, %v9305
  %v9503 = vmul.f32 %v9306, %v9306
  %v9504 = vmul.f32 %v9307, %v9307
  %v9505 = vmul.f32 %v9308, %v9308
  %v9506 = vmul.f32 %v9309, %v9309
  %v9507 = vmul.f32 %v9310, %v9310
  %v9508 = vmul.f32 %v9311, %v9311
  %v9509 = vmul.f32 %v9312, %v9312
  %v9510 = vmul.f32 %v9313, %v9313
  %v9511 = vmul.f32 %v9314, %v9314
  %v9512 = vmul.f32 %v9315, %v9315
  %v9513 = vmul.f32 %v9316, %v9316
  %v9514 = vmul.f32 %v9317, %v9317
  %v9515 = vmul.f32 %v9318, %v9318
  %v9516 = vmul.f32 %v9319, %v9319
  %v9517 = vmul.f32 %v9320, %v9320
  %v9518 = vmul.f32 %v9321, %v9321
  %v9519 = vmul.f32 %v9322, %v9322
  %v9520 = vmul.f32 %v9323, %v9323
  %v9521 = vmul.f32 %v9324, %v9324
  %v9522 = vmul.f32 %v9325, %v9325
  %v9523 = vmul.f32 %v9326, %v9326
  %v9524 = vmul.f32 %v9327, %v9327
  %v9525 = vmul.f32 %v9328, %v9328
  %v9526 = vmul.f32 %v9329, %v9329
  %v9527 = vmul.f32 %v9330, %v9330
  %v9528 = vmul.f32 %v9331, %v9331
  %v9529 = vmul.f32 %v9332, %v9332
  %v9530 = vmul.f32 %v9333, %v9333
  %v9531 = vmul.f32 %v9334, %v9334
  %v9532 = vmul.f32 %v9335, %v9335
  %v9533 = vmul.f32 %v9336, %v9336
  %v9534 = vmul.f32 %v9337, %v9337
  %v9535 = vmul.f32 %v9338, %v9338
  %v9536 = vmul.f32 %v9339, %v9339
  %v9537 = vmul.f32 %v9340, %v9340
  %v9538 = vmul.f32 %v9341, %v9341
  %v9539 = vmul.f32 %v9342, %v9342
  %v9540 = vmul.f32 %v9343, %v9343
  %v9541 = vmul.f32 %v9344, %v9344
  %v9542 = vmul.f32 %v9345, %v9345
  %v9543 = vmul.f32 %v9346, %v9346
  %v9544 = vmul.f32 %v9347, %v9347
  %v9545 = vmul.f32 %v9348, %v9348
  %v9546 = vmul.f32 %v9349, %v9349
  %v9547 = vmul.f32 %v9350, %v9350
  %v9548 = vmul.f32 %v9351, %v9351
  %v9549 = vmul.f32 %v9352, %v9352
  %v9550 = vmul.f32 %v9353, %v9353
  %v9551 = vmul.f32 %v9354, %v9354
  %v9552 = vmul.f32 %v9355, %v9355
  %v9553 = vmul.f32 %v9356, %v9356
  %v9554 = vmul.f32 %v9357, %v9357
  %v9555 = vmul.f32 %v9358, %v9358
  %v9556 = vmul.f32 %v9359, %v9359
  %v9557 = vmul.f32 %v9360, %v9360
  %v9558 = vsel %vm509, %v9494, 0.0
  %v9559 = vsel %vm509, %v9495, 0.0
  %v9560 = vadd.f32 %v9558, %v9559
  %v9561 = vsel %vm509, %v9496, 0.0
  %v9562 = vadd.f32 %v9560, %v9561
  %v9563 = vsel %vm509, %v9497, 0.0
  %v9564 = vadd.f32 %v9562, %v9563
  %v9565 = vsel %vm509, %v9498, 0.0
  %v9566 = vadd.f32 %v9564, %v9565
  %v9567 = vsel %vm509, %v9499, 0.0
  %v9568 = vadd.f32 %v9566, %v9567
  %v9569 = vsel %vm509, %v9500, 0.0
  %v9570 = vadd.f32 %v9568, %v9569
  %v9571 = vsel %vm509, %v9501, 0.0
  %v9572 = vadd.f32 %v9570, %v9571
  %v9573 = vsel %vm509, %v9502, 0.0
  %v9574 = vadd.f32 %v9572, %v9573
  %v9575 = vsel %vm509, %v9503, 0.0
  %v9576 = vadd.f32 %v9574, %v9575
  %v9577 = vsel %vm509, %v9504, 0.0
  %v9578 = vadd.f32 %v9576, %v9577
  %v9579 = vsel %vm509, %v9505, 0.0
  %v9580 = vadd.f32 %v9578, %v9579
  %v9581 = vsel %vm509, %v9506, 0.0
  %v9582 = vadd.f32 %v9580, %v9581
  %v9583 = vsel %vm509, %v9507, 0.0
  %v9584 = vadd.f32 %v9582, %v9583
  %v9585 = vsel %vm509, %v9508, 0.0
  %v9586 = vadd.f32 %v9584, %v9585
  %v9587 = vsel %vm509, %v9509, 0.0
  %v9588 = vadd.f32 %v9586, %v9587
  %v9589 = vsel %vm509, %v9510, 0.0
  %v9590 = vadd.f32 %v9588, %v9589
  %v9591 = vsel %vm509, %v9511, 0.0
  %v9592 = vadd.f32 %v9590, %v9591
  %v9593 = vsel %vm509, %v9512, 0.0
  %v9594 = vadd.f32 %v9592, %v9593
  %v9595 = vsel %vm509, %v9513, 0.0
  %v9596 = vadd.f32 %v9594, %v9595
  %v9597 = vsel %vm509, %v9514, 0.0
  %v9598 = vadd.f32 %v9596, %v9597
  %v9599 = vsel %vm509, %v9515, 0.0
  %v9600 = vadd.f32 %v9598, %v9599
  %v9601 = vsel %vm509, %v9516, 0.0
  %v9602 = vadd.f32 %v9600, %v9601
  %v9603 = vsel %vm509, %v9517, 0.0
  %v9604 = vadd.f32 %v9602, %v9603
  %v9605 = vsel %vm509, %v9518, 0.0
  %v9606 = vadd.f32 %v9604, %v9605
  %v9607 = vsel %vm509, %v9519, 0.0
  %v9608 = vadd.f32 %v9606, %v9607
  %v9609 = vsel %vm509, %v9520, 0.0
  %v9610 = vadd.f32 %v9608, %v9609
  %v9611 = vsel %vm509, %v9521, 0.0
  %v9612 = vadd.f32 %v9610, %v9611
  %v9613 = vsel %vm509, %v9522, 0.0
  %v9614 = vadd.f32 %v9612, %v9613
  %v9615 = vsel %vm509, %v9523, 0.0
  %v9616 = vadd.f32 %v9614, %v9615
  %v9617 = vsel %vm509, %v9524, 0.0
  %v9618 = vadd.f32 %v9616, %v9617
  %v9619 = vsel %vm509, %v9525, 0.0
  %v9620 = vadd.f32 %v9618, %v9619
  %v9621 = vsel %vm509, %v9526, 0.0
  %v9622 = vadd.f32 %v9620, %v9621
  %v9623 = vsel %vm509, %v9527, 0.0
  %v9624 = vadd.f32 %v9622, %v9623
  %v9625 = vsel %vm509, %v9528, 0.0
  %v9626 = vadd.f32 %v9624, %v9625
  %v9627 = vsel %vm509, %v9529, 0.0
  %v9628 = vadd.f32 %v9626, %v9627
  %v9629 = vsel %vm509, %v9530, 0.0
  %v9630 = vadd.f32 %v9628, %v9629
  %v9631 = vsel %vm509, %v9531, 0.0
  %v9632 = vadd.f32 %v9630, %v9631
  %v9633 = vsel %vm509, %v9532, 0.0
  %v9634 = vadd.f32 %v9632, %v9633
  %v9635 = vsel %vm509, %v9533, 0.0
  %v9636 = vadd.f32 %v9634, %v9635
  %v9637 = vsel %vm509, %v9534, 0.0
  %v9638 = vadd.f32 %v9636, %v9637
  %v9639 = vsel %vm509, %v9535, 0.0
  %v9640 = vadd.f32 %v9638, %v9639
  %v9641 = vsel %vm509, %v9536, 0.0
  %v9642 = vadd.f32 %v9640, %v9641
  %v9643 = vsel %vm509, %v9537, 0.0
  %v9644 = vadd.f32 %v9642, %v9643
  %v9645 = vsel %vm509, %v9538, 0.0
  %v9646 = vadd.f32 %v9644, %v9645
  %v9647 = vsel %vm509, %v9539, 0.0
  %v9648 = vadd.f32 %v9646, %v9647
  %v9649 = vsel %vm509, %v9540, 0.0
  %v9650 = vadd.f32 %v9648, %v9649
  %v9651 = vsel %vm509, %v9541, 0.0
  %v9652 = vadd.f32 %v9650, %v9651
  %v9653 = vsel %vm509, %v9542, 0.0
  %v9654 = vadd.f32 %v9652, %v9653
  %v9655 = vsel %vm509, %v9543, 0.0
  %v9656 = vadd.f32 %v9654, %v9655
  %v9657 = vsel %vm509, %v9544, 0.0
  %v9658 = vadd.f32 %v9656, %v9657
  %v9659 = vsel %vm509, %v9545, 0.0
  %v9660 = vadd.f32 %v9658, %v9659
  %v9661 = vsel %vm509, %v9546, 0.0
  %v9662 = vadd.f32 %v9660, %v9661
  %v9663 = vsel %vm509, %v9547, 0.0
  %v9664 = vadd.f32 %v9662, %v9663
  %v9665 = vsel %vm509, %v9548, 0.0
  %v9666 = vadd.f32 %v9664, %v9665
  %v9667 = vsel %vm509, %v9549, 0.0
  %v9668 = vadd.f32 %v9666, %v9667
  %v9669 = vsel %vm509, %v9550, 0.0
  %v9670 = vadd.f32 %v9668, %v9669
  %v9671 = vsel %vm509, %v9551, 0.0
  %v9672 = vadd.f32 %v9670, %v9671
  %v9673 = vsel %vm509, %v9552, 0.0
  %v9674 = vadd.f32 %v9672, %v9673
  %v9675 = vsel %vm509, %v9553, 0.0
  %v9676 = vadd.f32 %v9674, %v9675
  %v9677 = vsel %vm509, %v9554, 0.0
  %v9678 = vadd.f32 %v9676, %v9677
  %v9679 = vsel %vm509, %v9555, 0.0
  %v9680 = vadd.f32 %v9678, %v9679
  %v9681 = vsel %vm509, %v9556, 0.0
  %v9682 = vadd.f32 %v9680, %v9681
  %v9683 = vsel %vm509, %v9557, 0.0
  %v9684 = vadd.f32 %v9682, %v9683
  %v9685 = vrot.slane %v9684, 4
  %v9686 = vadd.f32 %v9684, %v9685
  %v9687 = vrot.slane %v9686, 2
  %v9688 = vadd.f32 %v9686, %v9687
  %v9689 = vrot.slane %v9688, 1
  %v9690 = vadd.f32 %v9688, %v9689
  %v9691 = vmul.f32 %v9493, 0.001953125
  %v9692 = vmul.f32 %v9690, 0.001953125
  %v9693 = vmul.f32 %v9691, %v9691
  %v9694 = vsub.f32 %v9692, %v9693
  %v9695 = vmax.f32 %v9694, 0.0
  %v9696 = vld [vmem:[%s2] sm:$0x1]
  %v9697 = vadd.f32 %v9695, 1e-05
  %v9698 = vrsqrt.pop %v9697
  %v9699 = vmul.f32 %v9696, %v9698
  %v9700 = vld [vmem:[%s3] sm:$0x1]
  %v9701 = vmul.f32 %v9691, %v9699
  %v9702 = vsub.f32 %v9700, %v9701
  %v9704 = vlaneseq
  %v9705 = vshrl.u32 %v9704, 7
  %v9706 = vsub.s32 0, %v9705
  %v9707 = vrot.slane %v9699, %v9706
  %v9709 = vmul.f32 %v9297, %v9707
  %v9710 = vmul.f32 %v9298, %v9707
  %v9711 = vmul.f32 %v9299, %v9707
  %v9712 = vmul.f32 %v9300, %v9707
  %v9713 = vmul.f32 %v9301, %v9707
  %v9714 = vmul.f32 %v9302, %v9707
  %v9715 = vmul.f32 %v9303, %v9707
  %v9716 = vmul.f32 %v9304, %v9707
  %v9717 = vmul.f32 %v9305, %v9707
  %v9718 = vmul.f32 %v9306, %v9707
  %v9719 = vmul.f32 %v9307, %v9707
  %v9720 = vmul.f32 %v9308, %v9707
  %v9721 = vmul.f32 %v9309, %v9707
  %v9722 = vmul.f32 %v9310, %v9707
  %v9723 = vmul.f32 %v9311, %v9707
  %v9724 = vmul.f32 %v9312, %v9707
  %v9725 = vmul.f32 %v9313, %v9707
  %v9726 = vmul.f32 %v9314, %v9707
  %v9727 = vmul.f32 %v9315, %v9707
  %v9728 = vmul.f32 %v9316, %v9707
  %v9729 = vmul.f32 %v9317, %v9707
  %v9730 = vmul.f32 %v9318, %v9707
  %v9731 = vmul.f32 %v9319, %v9707
  %v9732 = vmul.f32 %v9320, %v9707
  %v9733 = vmul.f32 %v9321, %v9707
  %v9734 = vmul.f32 %v9322, %v9707
  %v9735 = vmul.f32 %v9323, %v9707
  %v9736 = vmul.f32 %v9324, %v9707
  %v9737 = vmul.f32 %v9325, %v9707
  %v9738 = vmul.f32 %v9326, %v9707
  %v9739 = vmul.f32 %v9327, %v9707
  %v9740 = vmul.f32 %v9328, %v9707
  %v9741 = vmul.f32 %v9329, %v9707
  %v9742 = vmul.f32 %v9330, %v9707
  %v9743 = vmul.f32 %v9331, %v9707
  %v9744 = vmul.f32 %v9332, %v9707
  %v9745 = vmul.f32 %v9333, %v9707
  %v9746 = vmul.f32 %v9334, %v9707
  %v9747 = vmul.f32 %v9335, %v9707
  %v9748 = vmul.f32 %v9336, %v9707
  %v9749 = vmul.f32 %v9337, %v9707
  %v9750 = vmul.f32 %v9338, %v9707
  %v9751 = vmul.f32 %v9339, %v9707
  %v9752 = vmul.f32 %v9340, %v9707
  %v9753 = vmul.f32 %v9341, %v9707
  %v9754 = vmul.f32 %v9342, %v9707
  %v9755 = vmul.f32 %v9343, %v9707
  %v9756 = vmul.f32 %v9344, %v9707
  %v9757 = vmul.f32 %v9345, %v9707
  %v9758 = vmul.f32 %v9346, %v9707
  %v9759 = vmul.f32 %v9347, %v9707
  %v9760 = vmul.f32 %v9348, %v9707
  %v9761 = vmul.f32 %v9349, %v9707
  %v9762 = vmul.f32 %v9350, %v9707
  %v9763 = vmul.f32 %v9351, %v9707
  %v9764 = vmul.f32 %v9352, %v9707
  %v9765 = vmul.f32 %v9353, %v9707
  %v9766 = vmul.f32 %v9354, %v9707
  %v9767 = vmul.f32 %v9355, %v9707
  %v9768 = vmul.f32 %v9356, %v9707
  %v9769 = vmul.f32 %v9357, %v9707
  %v9770 = vmul.f32 %v9358, %v9707
  %v9771 = vmul.f32 %v9359, %v9707
  %v9772 = vmul.f32 %v9360, %v9707
  %v9774 = vlaneseq
  %v9775 = vshrl.u32 %v9774, 7
  %v9776 = vsub.s32 0, %v9775
  %v9777 = vrot.slane %v9702, %v9776
  %v9779 = vadd.f32 %v9709, %v9777
  %v9780 = vadd.f32 %v9710, %v9777
  %v9781 = vadd.f32 %v9711, %v9777
  %v9782 = vadd.f32 %v9712, %v9777
  %v9783 = vadd.f32 %v9713, %v9777
  %v9784 = vadd.f32 %v9714, %v9777
  %v9785 = vadd.f32 %v9715, %v9777
  %v9786 = vadd.f32 %v9716, %v9777
  %v9787 = vadd.f32 %v9717, %v9777
  %v9788 = vadd.f32 %v9718, %v9777
  %v9789 = vadd.f32 %v9719, %v9777
  %v9790 = vadd.f32 %v9720, %v9777
  %v9791 = vadd.f32 %v9721, %v9777
  %v9792 = vadd.f32 %v9722, %v9777
  %v9793 = vadd.f32 %v9723, %v9777
  %v9794 = vadd.f32 %v9724, %v9777
  %v9795 = vadd.f32 %v9725, %v9777
  %v9796 = vadd.f32 %v9726, %v9777
  %v9797 = vadd.f32 %v9727, %v9777
  %v9798 = vadd.f32 %v9728, %v9777
  %v9799 = vadd.f32 %v9729, %v9777
  %v9800 = vadd.f32 %v9730, %v9777
  %v9801 = vadd.f32 %v9731, %v9777
  %v9802 = vadd.f32 %v9732, %v9777
  %v9803 = vadd.f32 %v9733, %v9777
  %v9804 = vadd.f32 %v9734, %v9777
  %v9805 = vadd.f32 %v9735, %v9777
  %v9806 = vadd.f32 %v9736, %v9777
  %v9807 = vadd.f32 %v9737, %v9777
  %v9808 = vadd.f32 %v9738, %v9777
  %v9809 = vadd.f32 %v9739, %v9777
  %v9810 = vadd.f32 %v9740, %v9777
  %v9811 = vadd.f32 %v9741, %v9777
  %v9812 = vadd.f32 %v9742, %v9777
  %v9813 = vadd.f32 %v9743, %v9777
  %v9814 = vadd.f32 %v9744, %v9777
  %v9815 = vadd.f32 %v9745, %v9777
  %v9816 = vadd.f32 %v9746, %v9777
  %v9817 = vadd.f32 %v9747, %v9777
  %v9818 = vadd.f32 %v9748, %v9777
  %v9819 = vadd.f32 %v9749, %v9777
  %v9820 = vadd.f32 %v9750, %v9777
  %v9821 = vadd.f32 %v9751, %v9777
  %v9822 = vadd.f32 %v9752, %v9777
  %v9823 = vadd.f32 %v9753, %v9777
  %v9824 = vadd.f32 %v9754, %v9777
  %v9825 = vadd.f32 %v9755, %v9777
  %v9826 = vadd.f32 %v9756, %v9777
  %v9827 = vadd.f32 %v9757, %v9777
  %v9828 = vadd.f32 %v9758, %v9777
  %v9829 = vadd.f32 %v9759, %v9777
  %v9830 = vadd.f32 %v9760, %v9777
  %v9831 = vadd.f32 %v9761, %v9777
  %v9832 = vadd.f32 %v9762, %v9777
  %v9833 = vadd.f32 %v9763, %v9777
  %v9834 = vadd.f32 %v9764, %v9777
  %v9835 = vadd.f32 %v9765, %v9777
  %v9836 = vadd.f32 %v9766, %v9777
  %v9837 = vadd.f32 %v9767, %v9777
  %v9838 = vadd.f32 %v9768, %v9777
  %v9839 = vadd.f32 %v9769, %v9777
  %v9840 = vadd.f32 %v9770, %v9777
  %v9841 = vadd.f32 %v9771, %v9777
  %v9842 = vadd.f32 %v9772, %v9777
  %v9843 = vmax.f32 %v9779, 0.0
  %v9844 = vmax.f32 %v9780, 0.0
  %v9845 = vmax.f32 %v9781, 0.0
  %v9846 = vmax.f32 %v9782, 0.0
  %v9847 = vmax.f32 %v9783, 0.0
  %v9848 = vmax.f32 %v9784, 0.0
  %v9849 = vmax.f32 %v9785, 0.0
  %v9850 = vmax.f32 %v9786, 0.0
  %v9851 = vmax.f32 %v9787, 0.0
  %v9852 = vmax.f32 %v9788, 0.0
  %v9853 = vmax.f32 %v9789, 0.0
  %v9854 = vmax.f32 %v9790, 0.0
  %v9855 = vmax.f32 %v9791, 0.0
  %v9856 = vmax.f32 %v9792, 0.0
  %v9857 = vmax.f32 %v9793, 0.0
  %v9858 = vmax.f32 %v9794, 0.0
  %v9859 = vmax.f32 %v9795, 0.0
  %v9860 = vmax.f32 %v9796, 0.0
  %v9861 = vmax.f32 %v9797, 0.0
  %v9862 = vmax.f32 %v9798, 0.0
  %v9863 = vmax.f32 %v9799, 0.0
  %v9864 = vmax.f32 %v9800, 0.0
  %v9865 = vmax.f32 %v9801, 0.0
  %v9866 = vmax.f32 %v9802, 0.0
  %v9867 = vmax.f32 %v9803, 0.0
  %v9868 = vmax.f32 %v9804, 0.0
  %v9869 = vmax.f32 %v9805, 0.0
  %v9870 = vmax.f32 %v9806, 0.0
  %v9871 = vmax.f32 %v9807, 0.0
  %v9872 = vmax.f32 %v9808, 0.0
  %v9873 = vmax.f32 %v9809, 0.0
  %v9874 = vmax.f32 %v9810, 0.0
  %v9875 = vmax.f32 %v9811, 0.0
  %v9876 = vmax.f32 %v9812, 0.0
  %v9877 = vmax.f32 %v9813, 0.0
  %v9878 = vmax.f32 %v9814, 0.0
  %v9879 = vmax.f32 %v9815, 0.0
  %v9880 = vmax.f32 %v9816, 0.0
  %v9881 = vmax.f32 %v9817, 0.0
  %v9882 = vmax.f32 %v9818, 0.0
  %v9883 = vmax.f32 %v9819, 0.0
  %v9884 = vmax.f32 %v9820, 0.0
  %v9885 = vmax.f32 %v9821, 0.0
  %v9886 = vmax.f32 %v9822, 0.0
  %v9887 = vmax.f32 %v9823, 0.0
  %v9888 = vmax.f32 %v9824, 0.0
  %v9889 = vmax.f32 %v9825, 0.0
  %v9890 = vmax.f32 %v9826, 0.0
  %v9891 = vmax.f32 %v9827, 0.0
  %v9892 = vmax.f32 %v9828, 0.0
  %v9893 = vmax.f32 %v9829, 0.0
  %v9894 = vmax.f32 %v9830, 0.0
  %v9895 = vmax.f32 %v9831, 0.0
  %v9896 = vmax.f32 %v9832, 0.0
  %v9897 = vmax.f32 %v9833, 0.0
  %v9898 = vmax.f32 %v9834, 0.0
  %v9899 = vmax.f32 %v9835, 0.0
  %v9900 = vmax.f32 %v9836, 0.0
  %v9901 = vmax.f32 %v9837, 0.0
  %v9902 = vmax.f32 %v9838, 0.0
  %v9903 = vmax.f32 %v9839, 0.0
  %v9904 = vmax.f32 %v9840, 0.0
  %v9905 = vmax.f32 %v9841, 0.0
  %v9906 = vmax.f32 %v9842, 0.0
  %9907 = vst.msk [vmem:[#allocation2] sm:$0xff] %vm509, %v9843
  %9908 = vst.msk [vmem:[#allocation2 + $0x8] sm:$0xff] %vm509, %v9844
  %9909 = vst.msk [vmem:[#allocation2 + $0x10] sm:$0xff] %vm509, %v9845
  %9910 = vst.msk [vmem:[#allocation2 + $0x18] sm:$0xff] %vm509, %v9846
  %9911 = vst.msk [vmem:[#allocation2 + $0x20] sm:$0xff] %vm509, %v9847
  %9912 = vst.msk [vmem:[#allocation2 + $0x28] sm:$0xff] %vm509, %v9848
  %9913 = vst.msk [vmem:[#allocation2 + $0x30] sm:$0xff] %vm509, %v9849
  %9914 = vst.msk [vmem:[#allocation2 + $0x38] sm:$0xff] %vm509, %v9850
  %9915 = vst.msk [vmem:[#allocation2 + $0x40] sm:$0xff] %vm509, %v9851
  %9916 = vst.msk [vmem:[#allocation2 + $0x48] sm:$0xff] %vm509, %v9852
  %9917 = vst.msk [vmem:[#allocation2 + $0x50] sm:$0xff] %vm509, %v9853
  %9918 = vst.msk [vmem:[#allocation2 + $0x58] sm:$0xff] %vm509, %v9854
  %9919 = vst.msk [vmem:[#allocation2 + $0x60] sm:$0xff] %vm509, %v9855
  %9920 = vst.msk [vmem:[#allocation2 + $0x68] sm:$0xff] %vm509, %v9856
  %9921 = vst.msk [vmem:[#allocation2 + $0x70] sm:$0xff] %vm509, %v9857
  %9922 = vst.msk [vmem:[#allocation2 + $0x78] sm:$0xff] %vm509, %v9858
  %9923 = vst.msk [vmem:[#allocation2 + $0x80] sm:$0xff] %vm509, %v9859
  %9924 = vst.msk [vmem:[#allocation2 + $0x88] sm:$0xff] %vm509, %v9860
  %9925 = vst.msk [vmem:[#allocation2 + $0x90] sm:$0xff] %vm509, %v9861
  %9926 = vst.msk [vmem:[#allocation2 + $0x98] sm:$0xff] %vm509, %v9862
  %9927 = vst.msk [vmem:[#allocation2 + $0xa0] sm:$0xff] %vm509, %v9863
  %9928 = vst.msk [vmem:[#allocation2 + $0xa8] sm:$0xff] %vm509, %v9864
  %9929 = vst.msk [vmem:[#allocation2 + $0xb0] sm:$0xff] %vm509, %v9865
  %9930 = vst.msk [vmem:[#allocation2 + $0xb8] sm:$0xff] %vm509, %v9866
  %9931 = vst.msk [vmem:[#allocation2 + $0xc0] sm:$0xff] %vm509, %v9867
  %9932 = vst.msk [vmem:[#allocation2 + $0xc8] sm:$0xff] %vm509, %v9868
  %9933 = vst.msk [vmem:[#allocation2 + $0xd0] sm:$0xff] %vm509, %v9869
  %9934 = vst.msk [vmem:[#allocation2 + $0xd8] sm:$0xff] %vm509, %v9870
  %9935 = vst.msk [vmem:[#allocation2 + $0xe0] sm:$0xff] %vm509, %v9871
  %9936 = vst.msk [vmem:[#allocation2 + $0xe8] sm:$0xff] %vm509, %v9872
  %9937 = vst.msk [vmem:[#allocation2 + $0xf0] sm:$0xff] %vm509, %v9873
  %9938 = vst.msk [vmem:[#allocation2 + $0xf8] sm:$0xff] %vm509, %v9874
  %9939 = vst.msk [vmem:[#allocation2 + $0x100] sm:$0xff] %vm509, %v9875
  %9940 = vst.msk [vmem:[#allocation2 + $0x108] sm:$0xff] %vm509, %v9876
  %9941 = vst.msk [vmem:[#allocation2 + $0x110] sm:$0xff] %vm509, %v9877
  %9942 = vst.msk [vmem:[#allocation2 + $0x118] sm:$0xff] %vm509, %v9878
  %9943 = vst.msk [vmem:[#allocation2 + $0x120] sm:$0xff] %vm509, %v9879
  %9944 = vst.msk [vmem:[#allocation2 + $0x128] sm:$0xff] %vm509, %v9880
  %9945 = vst.msk [vmem:[#allocation2 + $0x130] sm:$0xff] %vm509, %v9881
  %9946 = vst.msk [vmem:[#allocation2 + $0x138] sm:$0xff] %vm509, %v9882
  %9947 = vst.msk [vmem:[#allocation2 + $0x140] sm:$0xff] %vm509, %v9883
  %9948 = vst.msk [vmem:[#allocation2 + $0x148] sm:$0xff] %vm509, %v9884
  %9949 = vst.msk [vmem:[#allocation2 + $0x150] sm:$0xff] %vm509, %v9885
  %9950 = vst.msk [vmem:[#allocation2 + $0x158] sm:$0xff] %vm509, %v9886
  %9951 = vst.msk [vmem:[#allocation2 + $0x160] sm:$0xff] %vm509, %v9887
  %9952 = vst.msk [vmem:[#allocation2 + $0x168] sm:$0xff] %vm509, %v9888
  %9953 = vst.msk [vmem:[#allocation2 + $0x170] sm:$0xff] %vm509, %v9889
  %9954 = vst.msk [vmem:[#allocation2 + $0x178] sm:$0xff] %vm509, %v9890
  %9955 = vst.msk [vmem:[#allocation2 + $0x180] sm:$0xff] %vm509, %v9891
  %9956 = vst.msk [vmem:[#allocation2 + $0x188] sm:$0xff] %vm509, %v9892
  %9957 = vst.msk [vmem:[#allocation2 + $0x190] sm:$0xff] %vm509, %v9893
  %9958 = vst.msk [vmem:[#allocation2 + $0x198] sm:$0xff] %vm509, %v9894
  %9959 = vst.msk [vmem:[#allocation2 + $0x1a0] sm:$0xff] %vm509, %v9895
  %9960 = vst.msk [vmem:[#allocation2 + $0x1a8] sm:$0xff] %vm509, %v9896
  %9961 = vst.msk [vmem:[#allocation2 + $0x1b0] sm:$0xff] %vm509, %v9897
  %9962 = vst.msk [vmem:[#allocation2 + $0x1b8] sm:$0xff] %vm509, %v9898
  %9963 = vst.msk [vmem:[#allocation2 + $0x1c0] sm:$0xff] %vm509, %v9899
  %9964 = vst.msk [vmem:[#allocation2 + $0x1c8] sm:$0xff] %vm509, %v9900
  %9965 = vst.msk [vmem:[#allocation2 + $0x1d0] sm:$0xff] %vm509, %v9901
  %9966 = vst.msk [vmem:[#allocation2 + $0x1d8] sm:$0xff] %vm509, %v9902
  %9967 = vst.msk [vmem:[#allocation2 + $0x1e0] sm:$0xff] %vm509, %v9903
  %9968 = vst.msk [vmem:[#allocation2 + $0x1e8] sm:$0xff] %vm509, %v9904
  %9969 = vst.msk [vmem:[#allocation2 + $0x1f0] sm:$0xff] %vm509, %v9905
  %9970 = vst.msk [vmem:[#allocation2 + $0x1f8] sm:$0xff] %vm509, %v9906
  %v9971 = vld [vmem:[#allocation2] sm:$0xff]
  %v9972 = vld [vmem:[#allocation2 + $0x8] sm:$0xff]
  %v9973 = vld [vmem:[#allocation2 + $0x10] sm:$0xff]
  %v9974 = vld [vmem:[#allocation2 + $0x18] sm:$0xff]
  %v9975 = vld [vmem:[#allocation2 + $0x20] sm:$0xff]
  %v9976 = vld [vmem:[#allocation2 + $0x28] sm:$0xff]
  %v9977 = vld [vmem:[#allocation2 + $0x30] sm:$0xff]
  %v9978 = vld [vmem:[#allocation2 + $0x38] sm:$0xff]
  %v9979 = vld [vmem:[#allocation2 + $0x40] sm:$0xff]
  %v9980 = vld [vmem:[#allocation2 + $0x48] sm:$0xff]
  %v9981 = vld [vmem:[#allocation2 + $0x50] sm:$0xff]
  %v9982 = vld [vmem:[#allocation2 + $0x58] sm:$0xff]
  %v9983 = vld [vmem:[#allocation2 + $0x60] sm:$0xff]
  %v9984 = vld [vmem:[#allocation2 + $0x68] sm:$0xff]
  %v9985 = vld [vmem:[#allocation2 + $0x70] sm:$0xff]
  %v9986 = vld [vmem:[#allocation2 + $0x78] sm:$0xff]
  %v9987 = vld [vmem:[#allocation2 + $0x80] sm:$0xff]
  %v9988 = vld [vmem:[#allocation2 + $0x88] sm:$0xff]
  %v9989 = vld [vmem:[#allocation2 + $0x90] sm:$0xff]
  %v9990 = vld [vmem:[#allocation2 + $0x98] sm:$0xff]
  %v9991 = vld [vmem:[#allocation2 + $0xa0] sm:$0xff]
  %v9992 = vld [vmem:[#allocation2 + $0xa8] sm:$0xff]
  %v9993 = vld [vmem:[#allocation2 + $0xb0] sm:$0xff]
  %v9994 = vld [vmem:[#allocation2 + $0xb8] sm:$0xff]
  %v9995 = vld [vmem:[#allocation2 + $0xc0] sm:$0xff]
  %v9996 = vld [vmem:[#allocation2 + $0xc8] sm:$0xff]
  %v9997 = vld [vmem:[#allocation2 + $0xd0] sm:$0xff]
  %v9998 = vld [vmem:[#allocation2 + $0xd8] sm:$0xff]
  %v9999 = vld [vmem:[#allocation2 + $0xe0] sm:$0xff]
  %v10000 = vld [vmem:[#allocation2 + $0xe8] sm:$0xff]
  %v10001 = vld [vmem:[#allocation2 + $0xf0] sm:$0xff]
  %v10002 = vld [vmem:[#allocation2 + $0xf8] sm:$0xff]
  %v10003 = vld [vmem:[#allocation2 + $0x100] sm:$0xff]
  %v10004 = vld [vmem:[#allocation2 + $0x108] sm:$0xff]
  %v10005 = vld [vmem:[#allocation2 + $0x110] sm:$0xff]
  %v10006 = vld [vmem:[#allocation2 + $0x118] sm:$0xff]
  %v10007 = vld [vmem:[#allocation2 + $0x120] sm:$0xff]
  %v10008 = vld [vmem:[#allocation2 + $0x128] sm:$0xff]
  %v10009 = vld [vmem:[#allocation2 + $0x130] sm:$0xff]
  %v10010 = vld [vmem:[#allocation2 + $0x138] sm:$0xff]
  %v10011 = vld [vmem:[#allocation2 + $0x140] sm:$0xff]
  %v10012 = vld [vmem:[#allocation2 + $0x148] sm:$0xff]
  %v10013 = vld [vmem:[#allocation2 + $0x150] sm:$0xff]
  %v10014 = vld [vmem:[#allocation2 + $0x158] sm:$0xff]
  %v10015 = vld [vmem:[#allocation2 + $0x160] sm:$0xff]
  %v10016 = vld [vmem:[#allocation2 + $0x168] sm:$0xff]
  %v10017 = vld [vmem:[#allocation2 + $0x170] sm:$0xff]
  %v10018 = vld [vmem:[#allocation2 + $0x178] sm:$0xff]
  %v10019 = vld [vmem:[#allocation2 + $0x180] sm:$0xff]
  %v10020 = vld [vmem:[#allocation2 + $0x188] sm:$0xff]
  %v10021 = vld [vmem:[#allocation2 + $0x190] sm:$0xff]
  %v10022 = vld [vmem:[#allocation2 + $0x198] sm:$0xff]
  %v10023 = vld [vmem:[#allocation2 + $0x1a0] sm:$0xff]
  %v10024 = vld [vmem:[#allocation2 + $0x1a8] sm:$0xff]
  %v10025 = vld [vmem:[#allocation2 + $0x1b0] sm:$0xff]
  %v10026 = vld [vmem:[#allocation2 + $0x1b8] sm:$0xff]
  %v10027 = vld [vmem:[#allocation2 + $0x1c0] sm:$0xff]
  %v10028 = vld [vmem:[#allocation2 + $0x1c8] sm:$0xff]
  %v10029 = vld [vmem:[#allocation2 + $0x1d0] sm:$0xff]
  %v10030 = vld [vmem:[#allocation2 + $0x1d8] sm:$0xff]
  %v10031 = vld [vmem:[#allocation2 + $0x1e0] sm:$0xff]
  %v10032 = vld [vmem:[#allocation2 + $0x1e8] sm:$0xff]
  %v10033 = vld [vmem:[#allocation2 + $0x1f0] sm:$0xff]
  %v10034 = vld [vmem:[#allocation2 + $0x1f8] sm:$0xff]
  %v10035 = vmax.f32 %v9971, %v9973
  %v10036 = vmax.f32 %v9972, %v9974
  %v10037 = vmax.f32 %v9973, %v9975
  %v10038 = vmax.f32 %v9974, %v9976
  %v10039 = vmax.f32 %v9975, %v9977
  %v10040 = vmax.f32 %v9976, %v9978
  %v10041 = vmax.f32 %v9977, %v9979
  %v10042 = vmax.f32 %v9978, %v9980
  %v10043 = vmax.f32 %v9979, %v9981
  %v10044 = vmax.f32 %v9980, %v9982
  %v10045 = vmax.f32 %v9981, %v9983
  %v10046 = vmax.f32 %v9982, %v9984
  %v10047 = vmax.f32 %v9983, %v9985
  %v10048 = vmax.f32 %v9984, %v9986
  %v10049 = vmax.f32 %v9985, %v9987
  %v10050 = vmax.f32 %v9986, %v9988
  %v10051 = vmax.f32 %v9987, %v9989
  %v10052 = vmax.f32 %v9988, %v9990
  %v10053 = vmax.f32 %v9989, %v9991
  %v10054 = vmax.f32 %v9990, %v9992
  %v10055 = vmax.f32 %v9991, %v9993
  %v10056 = vmax.f32 %v9992, %v9994
  %v10057 = vmax.f32 %v9993, %v9995
  %v10058 = vmax.f32 %v9994, %v9996
  %v10059 = vmax.f32 %v9995, %v9997
  %v10060 = vmax.f32 %v9996, %v9998
  %v10061 = vmax.f32 %v9997, %v9999
  %v10062 = vmax.f32 %v9998, %v10000
  %v10063 = vmax.f32 %v9999, %v10001
  %v10064 = vmax.f32 %v10000, %v10002
  %v10065 = vmax.f32 %v10001, %v10003
  %v10066 = vmax.f32 %v10002, %v10004
  %v10067 = vmax.f32 %v10003, %v10005
  %v10068 = vmax.f32 %v10004, %v10006
  %v10069 = vmax.f32 %v10005, %v10007
  %v10070 = vmax.f32 %v10006, %v10008
  %v10071 = vmax.f32 %v10007, %v10009
  %v10072 = vmax.f32 %v10008, %v10010
  %v10073 = vmax.f32 %v10009, %v10011
  %v10074 = vmax.f32 %v10010, %v10012
  %v10075 = vmax.f32 %v10011, %v10013
  %v10076 = vmax.f32 %v10012, %v10014
  %v10077 = vmax.f32 %v10013, %v10015
  %v10078 = vmax.f32 %v10014, %v10016
  %v10079 = vmax.f32 %v10015, %v10017
  %v10080 = vmax.f32 %v10016, %v10018
  %v10081 = vmax.f32 %v10017, %v10019
  %v10082 = vmax.f32 %v10018, %v10020
  %v10083 = vmax.f32 %v10019, %v10021
  %v10084 = vmax.f32 %v10020, %v10022
  %v10085 = vmax.f32 %v10021, %v10023
  %v10086 = vmax.f32 %v10022, %v10024
  %v10087 = vmax.f32 %v10023, %v10025
  %v10088 = vmax.f32 %v10024, %v10026
  %v10089 = vmax.f32 %v10025, %v10027
  %v10090 = vmax.f32 %v10026, %v10028
  %v10091 = vmax.f32 %v10027, %v10029
  %v10092 = vmax.f32 %v10028, %v10030
  %v10093 = vmax.f32 %v10029, %v10031
  %v10094 = vmax.f32 %v10030, %v10032
  %v10095 = vmax.f32 %v10031, %v10033
  %v10096 = vmax.f32 %v10032, %v10034
  %10097 = vst.msk [vmem:[#allocation2] sm:$0xff] %vm509, %v10035
  %10098 = vst.msk [vmem:[#allocation2 + $0x8] sm:$0xff] %vm509, %v10036
  %10099 = vst.msk [vmem:[#allocation2 + $0x10] sm:$0xff] %vm509, %v10037
  %10100 = vst.msk [vmem:[#allocation2 + $0x18] sm:$0xff] %vm509, %v10038
  %10101 = vst.msk [vmem:[#allocation2 + $0x20] sm:$0xff] %vm509, %v10039
  %10102 = vst.msk [vmem:[#allocation2 + $0x28] sm:$0xff] %vm509, %v10040
  %10103 = vst.msk [vmem:[#allocation2 + $0x30] sm:$0xff] %vm509, %v10041
  %10104 = vst.msk [vmem:[#allocation2 + $0x38] sm:$0xff] %vm509, %v10042
  %10105 = vst.msk [vmem:[#allocation2 + $0x40] sm:$0xff] %vm509, %v10043
  %10106 = vst.msk [vmem:[#allocation2 + $0x48] sm:$0xff] %vm509, %v10044
  %10107 = vst.msk [vmem:[#allocation2 + $0x50] sm:$0xff] %vm509, %v10045
  %10108 = vst.msk [vmem:[#allocation2 + $0x58] sm:$0xff] %vm509, %v10046
  %10109 = vst.msk [vmem:[#allocation2 + $0x60] sm:$0xff] %vm509, %v10047
  %10110 = vst.msk [vmem:[#allocation2 + $0x68] sm:$0xff] %vm509, %v10048
  %10111 = vst.msk [vmem:[#allocation2 + $0x70] sm:$0xff] %vm509, %v10049
  %10112 = vst.msk [vmem:[#allocation2 + $0x78] sm:$0xff] %vm509, %v10050
  %10113 = vst.msk [vmem:[#allocation2 + $0x80] sm:$0xff] %vm509, %v10051
  %10114 = vst.msk [vmem:[#allocation2 + $0x88] sm:$0xff] %vm509, %v10052
  %10115 = vst.msk [vmem:[#allocation2 + $0x90] sm:$0xff] %vm509, %v10053
  %10116 = vst.msk [vmem:[#allocation2 + $0x98] sm:$0xff] %vm509, %v10054
  %10117 = vst.msk [vmem:[#allocation2 + $0xa0] sm:$0xff] %vm509, %v10055
  %10118 = vst.msk [vmem:[#allocation2 + $0xa8] sm:$0xff] %vm509, %v10056
  %10119 = vst.msk [vmem:[#allocation2 + $0xb0] sm:$0xff] %vm509, %v10057
  %10120 = vst.msk [vmem:[#allocation2 + $0xb8] sm:$0xff] %vm509, %v10058
  %10121 = vst.msk [vmem:[#allocation2 + $0xc0] sm:$0xff] %vm509, %v10059
  %10122 = vst.msk [vmem:[#allocation2 + $0xc8] sm:$0xff] %vm509, %v10060
  %10123 = vst.msk [vmem:[#allocation2 + $0xd0] sm:$0xff] %vm509, %v10061
  %10124 = vst.msk [vmem:[#allocation2 + $0xd8] sm:$0xff] %vm509, %v10062
  %10125 = vst.msk [vmem:[#allocation2 + $0xe0] sm:$0xff] %vm509, %v10063
  %10126 = vst.msk [vmem:[#allocation2 + $0xe8] sm:$0xff] %vm509, %v10064
  %10127 = vst.msk [vmem:[#allocation2 + $0xf0] sm:$0xff] %vm509, %v10065
  %10128 = vst.msk [vmem:[#allocation2 + $0xf8] sm:$0xff] %vm509, %v10066
  %10129 = vst.msk [vmem:[#allocation2 + $0x100] sm:$0xff] %vm509, %v10067
  %10130 = vst.msk [vmem:[#allocation2 + $0x108] sm:$0xff] %vm509, %v10068
  %10131 = vst.msk [vmem:[#allocation2 + $0x110] sm:$0xff] %vm509, %v10069
  %10132 = vst.msk [vmem:[#allocation2 + $0x118] sm:$0xff] %vm509, %v10070
  %10133 = vst.msk [vmem:[#allocation2 + $0x120] sm:$0xff] %vm509, %v10071
  %10134 = vst.msk [vmem:[#allocation2 + $0x128] sm:$0xff] %vm509, %v10072
  %10135 = vst.msk [vmem:[#allocation2 + $0x130] sm:$0xff] %vm509, %v10073
  %10136 = vst.msk [vmem:[#allocation2 + $0x138] sm:$0xff] %vm509, %v10074
  %10137 = vst.msk [vmem:[#allocation2 + $0x140] sm:$0xff] %vm509, %v10075
  %10138 = vst.msk [vmem:[#allocation2 + $0x148] sm:$0xff] %vm509, %v10076
  %10139 = vst.msk [vmem:[#allocation2 + $0x150] sm:$0xff] %vm509, %v10077
  %10140 = vst.msk [vmem:[#allocation2 + $0x158] sm:$0xff] %vm509, %v10078
  %10141 = vst.msk [vmem:[#allocation2 + $0x160] sm:$0xff] %vm509, %v10079
  %10142 = vst.msk [vmem:[#allocation2 + $0x168] sm:$0xff] %vm509, %v10080
  %10143 = vst.msk [vmem:[#allocation2 + $0x170] sm:$0xff] %vm509, %v10081
  %10144 = vst.msk [vmem:[#allocation2 + $0x178] sm:$0xff] %vm509, %v10082
  %10145 = vst.msk [vmem:[#allocation2 + $0x180] sm:$0xff] %vm509, %v10083
  %10146 = vst.msk [vmem:[#allocation2 + $0x188] sm:$0xff] %vm509, %v10084
  %10147 = vst.msk [vmem:[#allocation2 + $0x190] sm:$0xff] %vm509, %v10085
  %10148 = vst.msk [vmem:[#allocation2 + $0x198] sm:$0xff] %vm509, %v10086
  %10149 = vst.msk [vmem:[#allocation2 + $0x1a0] sm:$0xff] %vm509, %v10087
  %10150 = vst.msk [vmem:[#allocation2 + $0x1a8] sm:$0xff] %vm509, %v10088
  %10151 = vst.msk [vmem:[#allocation2 + $0x1b0] sm:$0xff] %vm509, %v10089
  %10152 = vst.msk [vmem:[#allocation2 + $0x1b8] sm:$0xff] %vm509, %v10090
  %10153 = vst.msk [vmem:[#allocation2 + $0x1c0] sm:$0xff] %vm509, %v10091
  %10154 = vst.msk [vmem:[#allocation2 + $0x1c8] sm:$0xff] %vm509, %v10092
  %10155 = vst.msk [vmem:[#allocation2 + $0x1d0] sm:$0xff] %vm509, %v10093
  %10156 = vst.msk [vmem:[#allocation2 + $0x1d8] sm:$0xff] %vm509, %v10094
  %10157 = vst.msk [vmem:[#allocation2 + $0x1e0] sm:$0xff] %vm509, %v10095
  %10158 = vst.msk [vmem:[#allocation2 + $0x1e8] sm:$0xff] %vm509, %v10096
  %v10159 = vld [vmem:[#allocation2] ss:$32 sm:$0x1]
  %v10160 = vld [vmem:[#allocation2] ss:$32 sm:$0x2]
  %v10161 = vor.u32 %v10159, %v10160
  %v10162 = vld [vmem:[#allocation2] ss:$32 sm:$0x4]
  %v10163 = vor.u32 %v10161, %v10162
  %v10164 = vld [vmem:[#allocation2] ss:$32 sm:$0x8]
  %v10165 = vor.u32 %v10163, %v10164
  %v10166 = vld [vmem:[#allocation2] ss:$32 sm:$0x10]
  %v10167 = vor.u32 %v10165, %v10166
  %v10168 = vld [vmem:[#allocation2] ss:$32 sm:$0x20]
  %v10169 = vor.u32 %v10167, %v10168
  %v10170 = vld [vmem:[#allocation2] ss:$32 sm:$0x40]
  %v10171 = vor.u32 %v10169, %v10170
  %v10172 = vld [vmem:[#allocation2] ss:$32 sm:$0x80]
  %v10173 = vor.u32 %v10171, %v10172
  %s10174 = scalar_lea.vmem [#allocation2], 256
  %v10175 = vld [vmem:[%s10174] ss:$32 sm:$0x1]
  %v10176 = vld [vmem:[%s10174] ss:$32 sm:$0x2]
  %v10177 = vor.u32 %v10175, %v10176
  %v10178 = vld [vmem:[%s10174] ss:$32 sm:$0x4]
  %v10179 = vor.u32 %v10177, %v10178
  %v10180 = vld [vmem:[%s10174] ss:$32 sm:$0x8]
  %v10181 = vor.u32 %v10179, %v10180
  %v10182 = vld [vmem:[%s10174] ss:$32 sm:$0x10]
  %v10183 = vor.u32 %v10181, %v10182
  %v10184 = vld [vmem:[%s10174] ss:$32 sm:$0x20]
  %v10185 = vor.u32 %v10183, %v10184
  %v10186 = vld [vmem:[%s10174] ss:$32 sm:$0x40]
  %v10187 = vor.u32 %v10185, %v10186
  %v10188 = vld [vmem:[%s10174] ss:$32 sm:$0x80]
  %v10189 = vor.u32 %v10187, %v10188
  %s10190 = scalar_lea.vmem [#allocation2], 1
  %v10191 = vld [vmem:[%s10190] ss:$32 sm:$0x1]
  %v10192 = vld [vmem:[%s10190] ss:$32 sm:$0x2]
  %v10193 = vor.u32 %v10191, %v10192
  %v10194 = vld [vmem:[%s10190] ss:$32 sm:$0x4]
  %v10195 = vor.u32 %v10193, %v10194
  %v10196 = vld [vmem:[%s10190] ss:$32 sm:$0x8]
  %v10197 = vor.u32 %v10195, %v10196
  %v10198 = vld [vmem:[%s10190] ss:$32 sm:$0x10]
  %v10199 = vor.u32 %v10197, %v10198
  %v10200 = vld [vmem:[%s10190] ss:$32 sm:$0x20]
  %v10201 = vor.u32 %v10199, %v10200
  %v10202 = vld [vmem:[%s10190] ss:$32 sm:$0x40]
  %v10203 = vor.u32 %v10201, %v10202
  %v10204 = vld [vmem:[%s10190] ss:$32 sm:$0x80]
  %v10205 = vor.u32 %v10203, %v10204
  %s10206 = scalar_lea.vmem [#allocation2], 257
  %v10207 = vld [vmem:[%s10206] ss:$32 sm:$0x1]
  %v10208 = vld [vmem:[%s10206] ss:$32 sm:$0x2]
  %v10209 = vor.u32 %v10207, %v10208
  %v10210 = vld [vmem:[%s10206] ss:$32 sm:$0x4]
  %v10211 = vor.u32 %v10209, %v10210
  %v10212 = vld [vmem:[%s10206] ss:$32 sm:$0x8]
  %v10213 = vor.u32 %v10211, %v10212
  %v10214 = vld [vmem:[%s10206] ss:$32 sm:$0x10]
  %v10215 = vor.u32 %v10213, %v10214
  %v10216 = vld [vmem:[%s10206] ss:$32 sm:$0x20]
  %v10217 = vor.u32 %v10215, %v10216
  %v10218 = vld [vmem:[%s10206] ss:$32 sm:$0x40]
  %v10219 = vor.u32 %v10217, %v10218
  %v10220 = vld [vmem:[%s10206] ss:$32 sm:$0x80]
  %v10221 = vor.u32 %v10219, %v10220
  %v10222 = vmax.f32 %v10173, %v10205
  %v10223 = vmax.f32 %v10189, %v10221
  %s10224 = scalar_lea.vmem [#allocation2], 2
  %v10225 = vld [vmem:[%s10224] ss:$32 sm:$0x1]
  %v10226 = vld [vmem:[%s10224] ss:$32 sm:$0x2]
  %v10227 = vor.u32 %v10225, %v10226
  %v10228 = vld [vmem:[%s10224] ss:$32 sm:$0x4]
  %v10229 = vor.u32 %v10227, %v10228
  %v10230 = vld [vmem:[%s10224] ss:$32 sm:$0x8]
  %v10231 = vor.u32 %v10229, %v10230
  %v10232 = vld [vmem:[%s10224] ss:$32 sm:$0x10]
  %v10233 = vor.u32 %v10231, %v10232
  %v10234 = vld [vmem:[%s10224] ss:$32 sm:$0x20]
  %v10235 = vor.u32 %v10233, %v10234
  %v10236 = vld [vmem:[%s10224] ss:$32 sm:$0x40]
  %v10237 = vor.u32 %v10235, %v10236
  %v10238 = vld [vmem:[%s10224] ss:$32 sm:$0x80]
  %v10239 = vor.u32 %v10237, %v10238
  %s10240 = scalar_lea.vmem [#allocation2], 258
  %v10241 = vld [vmem:[%s10240] ss:$32 sm:$0x1]
  %v10242 = vld [vmem:[%s10240] ss:$32 sm:$0x2]
  %v10243 = vor.u32 %v10241, %v10242
  %v10244 = vld [vmem:[%s10240] ss:$32 sm:$0x4]
  %v10245 = vor.u32 %v10243, %v10244
  %v10246 = vld [vmem:[%s10240] ss:$32 sm:$0x8]
  %v10247 = vor.u32 %v10245, %v10246
  %v10248 = vld [vmem:[%s10240] ss:$32 sm:$0x10]
  %v10249 = vor.u32 %v10247, %v10248
  %v10250 = vld [vmem:[%s10240] ss:$32 sm:$0x20]
  %v10251 = vor.u32 %v10249, %v10250
  %v10252 = vld [vmem:[%s10240] ss:$32 sm:$0x40]
  %v10253 = vor.u32 %v10251, %v10252
  %v10254 = vld [vmem:[%s10240] ss:$32 sm:$0x80]
  %v10255 = vor.u32 %v10253, %v10254
  %s10256 = scalar_lea.vmem [#allocation2], 3
  %v10257 = vld [vmem:[%s10256] ss:$32 sm:$0x1]
  %v10258 = vld [vmem:[%s10256] ss:$32 sm:$0x2]
  %v10259 = vor.u32 %v10257, %v10258
  %v10260 = vld [vmem:[%s10256] ss:$32 sm:$0x4]
  %v10261 = vor.u32 %v10259, %v10260
  %v10262 = vld [vmem:[%s10256] ss:$32 sm:$0x8]
  %v10263 = vor.u32 %v10261, %v10262
  %v10264 = vld [vmem:[%s10256] ss:$32 sm:$0x10]
  %v10265 = vor.u32 %v10263, %v10264
  %v10266 = vld [vmem:[%s10256] ss:$32 sm:$0x20]
  %v10267 = vor.u32 %v10265, %v10266
  %v10268 = vld [vmem:[%s10256] ss:$32 sm:$0x40]
  %v10269 = vor.u32 %v10267, %v10268
  %v10270 = vld [vmem:[%s10256] ss:$32 sm:$0x80]
  %v10271 = vor.u32 %v10269, %v10270
  %s10272 = scalar_lea.vmem [#allocation2], 259
  %v10273 = vld [vmem:[%s10272] ss:$32 sm:$0x1]
  %v10274 = vld [vmem:[%s10272] ss:$32 sm:$0x2]
  %v10275 = vor.u32 %v10273, %v10274
  %v10276 = vld [vmem:[%s10272] ss:$32 sm:$0x4]
  %v10277 = vor.u32 %v10275, %v10276
  %v10278 = vld [vmem:[%s10272] ss:$32 sm:$0x8]
  %v10279 = vor.u32 %v10277, %v10278
  %v10280 = vld [vmem:[%s10272] ss:$32 sm:$0x10]
  %v10281 = vor.u32 %v10279, %v10280
  %v10282 = vld [vmem:[%s10272] ss:$32 sm:$0x20]
  %v10283 = vor.u32 %v10281, %v10282
  %v10284 = vld [vmem:[%s10272] ss:$32 sm:$0x40]
  %v10285 = vor.u32 %v10283, %v10284
  %v10286 = vld [vmem:[%s10272] ss:$32 sm:$0x80]
  %v10287 = vor.u32 %v10285, %v10286
  %v10288 = vmax.f32 %v10239, %v10271
  %v10289 = vmax.f32 %v10255, %v10287
  %10292 = vrot.lane.b32.xlu0 %v10288, 64
  %v10293 = vpop.permute.xlu0 %10292
  %10294 = vrot.lane.b32.xlu0 %v10289, 64
  %v10295 = vpop.permute.xlu0 %10294
  %v10298 = vsel %vm509, %v10222, %v10293
  %v10299 = vsel %vm509, %v10223, %v10295
  %10300 = vst [vmem:[%s4] sm:$0xff] %v10298
  %10301 = vst [vmem:[%s4 + $0x20] sm:$0xff] %v10299
  %s10302 = scalar_lea.vmem [#allocation2], 4
  %v10303 = vld [vmem:[%s10302] ss:$32 sm:$0x1]
  %v10304 = vld [vmem:[%s10302] ss:$32 sm:$0x2]
  %v10305 = vor.u32 %v10303, %v10304
  %v10306 = vld [vmem:[%s10302] ss:$32 sm:$0x4]
  %v10307 = vor.u32 %v10305, %v10306
  %v10308 = vld [vmem:[%s10302] ss:$32 sm:$0x8]
  %v10309 = vor.u32 %v10307, %v10308
  %v10310 = vld [vmem:[%s10302] ss:$32 sm:$0x10]
  %v10311 = vor.u32 %v10309, %v10310
  %v10312 = vld [vmem:[%s10302] ss:$32 sm:$0x20]
  %v10313 = vor.u32 %v10311, %v10312
  %v10314 = vld [vmem:[%s10302] ss:$32 sm:$0x40]
  %v10315 = vor.u32 %v10313, %v10314
  %v10316 = vld [vmem:[%s10302] ss:$32 sm:$0x80]
  %v10317 = vor.u32 %v10315, %v10316
  %s10318 = scalar_lea.vmem [#allocation2], 260
  %v10319 = vld [vmem:[%s10318] ss:$32 sm:$0x1]
  %v10320 = vld [vmem:[%s10318] ss:$32 sm:$0x2]
  %v10321 = vor.u32 %v10319, %v10320
  %v10322 = vld [vmem:[%s10318] ss:$32 sm:$0x4]
  %v10323 = vor.u32 %v10321, %v10322
  %v10324 = vld [vmem:[%s10318] ss:$32 sm:$0x8]
  %v10325 = vor.u32 %v10323, %v10324
  %v10326 = vld [vmem:[%s10318] ss:$32 sm:$0x10]
  %v10327 = vor.u32 %v10325, %v10326
  %v10328 = vld [vmem:[%s10318] ss:$32 sm:$0x20]
  %v10329 = vor.u32 %v10327, %v10328
  %v10330 = vld [vmem:[%s10318] ss:$32 sm:$0x40]
  %v10331 = vor.u32 %v10329, %v10330
  %v10332 = vld [vmem:[%s10318] ss:$32 sm:$0x80]
  %v10333 = vor.u32 %v10331, %v10332
  %s10334 = scalar_lea.vmem [#allocation2], 5
  %v10335 = vld [vmem:[%s10334] ss:$32 sm:$0x1]
  %v10336 = vld [vmem:[%s10334] ss:$32 sm:$0x2]
  %v10337 = vor.u32 %v10335, %v10336
  %v10338 = vld [vmem:[%s10334] ss:$32 sm:$0x4]
  %v10339 = vor.u32 %v10337, %v10338
  %v10340 = vld [vmem:[%s10334] ss:$32 sm:$0x8]
  %v10341 = vor.u32 %v10339, %v10340
  %v10342 = vld [vmem:[%s10334] ss:$32 sm:$0x10]
  %v10343 = vor.u32 %v10341, %v10342
  %v10344 = vld [vmem:[%s10334] ss:$32 sm:$0x20]
  %v10345 = vor.u32 %v10343, %v10344
  %v10346 = vld [vmem:[%s10334] ss:$32 sm:$0x40]
  %v10347 = vor.u32 %v10345, %v10346
  %v10348 = vld [vmem:[%s10334] ss:$32 sm:$0x80]
  %v10349 = vor.u32 %v10347, %v10348
  %s10350 = scalar_lea.vmem [#allocation2], 261
  %v10351 = vld [vmem:[%s10350] ss:$32 sm:$0x1]
  %v10352 = vld [vmem:[%s10350] ss:$32 sm:$0x2]
  %v10353 = vor.u32 %v10351, %v10352
  %v10354 = vld [vmem:[%s10350] ss:$32 sm:$0x4]
  %v10355 = vor.u32 %v10353, %v10354
  %v10356 = vld [vmem:[%s10350] ss:$32 sm:$0x8]
  %v10357 = vor.u32 %v10355, %v10356
  %v10358 = vld [vmem:[%s10350] ss:$32 sm:$0x10]
  %v10359 = vor.u32 %v10357, %v10358
  %v10360 = vld [vmem:[%s10350] ss:$32 sm:$0x20]
  %v10361 = vor.u32 %v10359, %v10360
  %v10362 = vld [vmem:[%s10350] ss:$32 sm:$0x40]
  %v10363 = vor.u32 %v10361, %v10362
  %v10364 = vld [vmem:[%s10350] ss:$32 sm:$0x80]
  %v10365 = vor.u32 %v10363, %v10364
  %v10366 = vmax.f32 %v10317, %v10349
  %v10367 = vmax.f32 %v10333, %v10365
  %s10368 = scalar_lea.vmem [#allocation2], 6
  %v10369 = vld [vmem:[%s10368] ss:$32 sm:$0x1]
  %v10370 = vld [vmem:[%s10368] ss:$32 sm:$0x2]
  %v10371 = vor.u32 %v10369, %v10370
  %v10372 = vld [vmem:[%s10368] ss:$32 sm:$0x4]
  %v10373 = vor.u32 %v10371, %v10372
  %v10374 = vld [vmem:[%s10368] ss:$32 sm:$0x8]
  %v10375 = vor.u32 %v10373, %v10374
  %v10376 = vld [vmem:[%s10368] ss:$32 sm:$0x10]
  %v10377 = vor.u32 %v10375, %v10376
  %v10378 = vld [vmem:[%s10368] ss:$32 sm:$0x20]
  %v10379 = vor.u32 %v10377, %v10378
  %v10380 = vld [vmem:[%s10368] ss:$32 sm:$0x40]
  %v10381 = vor.u32 %v10379, %v10380
  %v10382 = vld [vmem:[%s10368] ss:$32 sm:$0x80]
  %v10383 = vor.u32 %v10381, %v10382
  %s10384 = scalar_lea.vmem [#allocation2], 262
  %v10385 = vld [vmem:[%s10384] ss:$32 sm:$0x1]
  %v10386 = vld [vmem:[%s10384] ss:$32 sm:$0x2]
  %v10387 = vor.u32 %v10385, %v10386
  %v10388 = vld [vmem:[%s10384] ss:$32 sm:$0x4]
  %v10389 = vor.u32 %v10387, %v10388
  %v10390 = vld [vmem:[%s10384] ss:$32 sm:$0x8]
  %v10391 = vor.u32 %v10389, %v10390
  %v10392 = vld [vmem:[%s10384] ss:$32 sm:$0x10]
  %v10393 = vor.u32 %v10391, %v10392
  %v10394 = vld [vmem:[%s10384] ss:$32 sm:$0x20]
  %v10395 = vor.u32 %v10393, %v10394
  %v10396 = vld [vmem:[%s10384] ss:$32 sm:$0x40]
  %v10397 = vor.u32 %v10395, %v10396
  %v10398 = vld [vmem:[%s10384] ss:$32 sm:$0x80]
  %v10399 = vor.u32 %v10397, %v10398
  %s10400 = scalar_lea.vmem [#allocation2], 7
  %v10401 = vld [vmem:[%s10400] ss:$32 sm:$0x1]
  %v10402 = vld [vmem:[%s10400] ss:$32 sm:$0x2]
  %v10403 = vor.u32 %v10401, %v10402
  %v10404 = vld [vmem:[%s10400] ss:$32 sm:$0x4]
  %v10405 = vor.u32 %v10403, %v10404
  %v10406 = vld [vmem:[%s10400] ss:$32 sm:$0x8]
  %v10407 = vor.u32 %v10405, %v10406
  %v10408 = vld [vmem:[%s10400] ss:$32 sm:$0x10]
  %v10409 = vor.u32 %v10407, %v10408
  %v10410 = vld [vmem:[%s10400] ss:$32 sm:$0x20]
  %v10411 = vor.u32 %v10409, %v10410
  %v10412 = vld [vmem:[%s10400] ss:$32 sm:$0x40]
  %v10413 = vor.u32 %v10411, %v10412
  %v10414 = vld [vmem:[%s10400] ss:$32 sm:$0x80]
  %v10415 = vor.u32 %v10413, %v10414
  %s10416 = scalar_lea.vmem [#allocation2], 263
  %v10417 = vld [vmem:[%s10416] ss:$32 sm:$0x1]
  %v10418 = vld [vmem:[%s10416] ss:$32 sm:$0x2]
  %v10419 = vor.u32 %v10417, %v10418
  %v10420 = vld [vmem:[%s10416] ss:$32 sm:$0x4]
  %v10421 = vor.u32 %v10419, %v10420
  %v10422 = vld [vmem:[%s10416] ss:$32 sm:$0x8]
  %v10423 = vor.u32 %v10421, %v10422
  %v10424 = vld [vmem:[%s10416] ss:$32 sm:$0x10]
  %v10425 = vor.u32 %v10423, %v10424
  %v10426 = vld [vmem:[%s10416] ss:$32 sm:$0x20]
  %v10427 = vor.u32 %v10425, %v10426
  %v10428 = vld [vmem:[%s10416] ss:$32 sm:$0x40]
  %v10429 = vor.u32 %v10427, %v10428
  %v10430 = vld [vmem:[%s10416] ss:$32 sm:$0x80]
  %v10431 = vor.u32 %v10429, %v10430
  %v10432 = vmax.f32 %v10383, %v10415
  %v10433 = vmax.f32 %v10399, %v10431
  %10436 = vrot.lane.b32.xlu0 %v10432, 64
  %v10437 = vpop.permute.xlu0 %10436
  %10438 = vrot.lane.b32.xlu0 %v10433, 64
  %v10439 = vpop.permute.xlu0 %10438
  %v10442 = vsel %vm509, %v10366, %v10437
  %v10443 = vsel %vm509, %v10367, %v10439
  %10444 = vst [vmem:[%s4 + $0x8] sm:$0xff] %v10442
  %10445 = vst [vmem:[%s4 + $0x28] sm:$0xff] %v10443
  %s10446 = scalar_lea.vmem [#allocation2], 8
  %v10447 = vld [vmem:[%s10446] ss:$32 sm:$0x1]
  %v10448 = vld [vmem:[%s10446] ss:$32 sm:$0x2]
  %v10449 = vor.u32 %v10447, %v10448
  %v10450 = vld [vmem:[%s10446] ss:$32 sm:$0x4]
  %v10451 = vor.u32 %v10449, %v10450
  %v10452 = vld [vmem:[%s10446] ss:$32 sm:$0x8]
  %v10453 = vor.u32 %v10451, %v10452
  %v10454 = vld [vmem:[%s10446] ss:$32 sm:$0x10]
  %v10455 = vor.u32 %v10453, %v10454
  %v10456 = vld [vmem:[%s10446] ss:$32 sm:$0x20]
  %v10457 = vor.u32 %v10455, %v10456
  %v10458 = vld [vmem:[%s10446] ss:$32 sm:$0x40]
  %v10459 = vor.u32 %v10457, %v10458
  %v10460 = vld [vmem:[%s10446] ss:$32 sm:$0x80]
  %v10461 = vor.u32 %v10459, %v10460
  %s10462 = scalar_lea.vmem [#allocation2], 264
  %v10463 = vld [vmem:[%s10462] ss:$32 sm:$0x1]
  %v10464 = vld [vmem:[%s10462] ss:$32 sm:$0x2]
  %v10465 = vor.u32 %v10463, %v10464
  %v10466 = vld [vmem:[%s10462] ss:$32 sm:$0x4]
  %v10467 = vor.u32 %v10465, %v10466
  %v10468 = vld [vmem:[%s10462] ss:$32 sm:$0x8]
  %v10469 = vor.u32 %v10467, %v10468
  %v10470 = vld [vmem:[%s10462] ss:$32 sm:$0x10]
  %v10471 = vor.u32 %v10469, %v10470
  %v10472 = vld [vmem:[%s10462] ss:$32 sm:$0x20]
  %v10473 = vor.u32 %v10471, %v10472
  %v10474 = vld [vmem:[%s10462] ss:$32 sm:$0x40]
  %v10475 = vor.u32 %v10473, %v10474
  %v10476 = vld [vmem:[%s10462] ss:$32 sm:$0x80]
  %v10477 = vor.u32 %v10475, %v10476
  %s10478 = scalar_lea.vmem [#allocation2], 9
  %v10479 = vld [vmem:[%s10478] ss:$32 sm:$0x1]
  %v10480 = vld [vmem:[%s10478] ss:$32 sm:$0x2]
  %v10481 = vor.u32 %v10479, %v10480
  %v10482 = vld [vmem:[%s10478] ss:$32 sm:$0x4]
  %v10483 = vor.u32 %v10481, %v10482
  %v10484 = vld [vmem:[%s10478] ss:$32 sm:$0x8]
  %v10485 = vor.u32 %v10483, %v10484
  %v10486 = vld [vmem:[%s10478] ss:$32 sm:$0x10]
  %v10487 = vor.u32 %v10485, %v10486
  %v10488 = vld [vmem:[%s10478] ss:$32 sm:$0x20]
  %v10489 = vor.u32 %v10487, %v10488
  %v10490 = vld [vmem:[%s10478] ss:$32 sm:$0x40]
  %v10491 = vor.u32 %v10489, %v10490
  %v10492 = vld [vmem:[%s10478] ss:$32 sm:$0x80]
  %v10493 = vor.u32 %v10491, %v10492
  %s10494 = scalar_lea.vmem [#allocation2], 265
  %v10495 = vld [vmem:[%s10494] ss:$32 sm:$0x1]
  %v10496 = vld [vmem:[%s10494] ss:$32 sm:$0x2]
  %v10497 = vor.u32 %v10495, %v10496
  %v10498 = vld [vmem:[%s10494] ss:$32 sm:$0x4]
  %v10499 = vor.u32 %v10497, %v10498
  %v10500 = vld [vmem:[%s10494] ss:$32 sm:$0x8]
  %v10501 = vor.u32 %v10499, %v10500
  %v10502 = vld [vmem:[%s10494] ss:$32 sm:$0x10]
  %v10503 = vor.u32 %v10501, %v10502
  %v10504 = vld [vmem:[%s10494] ss:$32 sm:$0x20]
  %v10505 = vor.u32 %v10503, %v10504
  %v10506 = vld [vmem:[%s10494] ss:$32 sm:$0x40]
  %v10507 = vor.u32 %v10505, %v10506
  %v10508 = vld [vmem:[%s10494] ss:$32 sm:$0x80]
  %v10509 = vor.u32 %v10507, %v10508
  %v10510 = vmax.f32 %v10461, %v10493
  %v10511 = vmax.f32 %v10477, %v10509
  %s10512 = scalar_lea.vmem [#allocation2], 10
  %v10513 = vld [vmem:[%s10512] ss:$32 sm:$0x1]
  %v10514 = vld [vmem:[%s10512] ss:$32 sm:$0x2]
  %v10515 = vor.u32 %v10513, %v10514
  %v10516 = vld [vmem:[%s10512] ss:$32 sm:$0x4]
  %v10517 = vor.u32 %v10515, %v10516
  %v10518 = vld [vmem:[%s10512] ss:$32 sm:$0x8]
  %v10519 = vor.u32 %v10517, %v10518
  %v10520 = vld [vmem:[%s10512] ss:$32 sm:$0x10]
  %v10521 = vor.u32 %v10519, %v10520
  %v10522 = vld [vmem:[%s10512] ss:$32 sm:$0x20]
  %v10523 = vor.u32 %v10521, %v10522
  %v10524 = vld [vmem:[%s10512] ss:$32 sm:$0x40]
  %v10525 = vor.u32 %v10523, %v10524
  %v10526 = vld [vmem:[%s10512] ss:$32 sm:$0x80]
  %v10527 = vor.u32 %v10525, %v10526
  %s10528 = scalar_lea.vmem [#allocation2], 266
  %v10529 = vld [vmem:[%s10528] ss:$32 sm:$0x1]
  %v10530 = vld [vmem:[%s10528] ss:$32 sm:$0x2]
  %v10531 = vor.u32 %v10529, %v10530
  %v10532 = vld [vmem:[%s10528] ss:$32 sm:$0x4]
  %v10533 = vor.u32 %v10531, %v10532
  %v10534 = vld [vmem:[%s10528] ss:$32 sm:$0x8]
  %v10535 = vor.u32 %v10533, %v10534
  %v10536 = vld [vmem:[%s10528] ss:$32 sm:$0x10]
  %v10537 = vor.u32 %v10535, %v10536
  %v10538 = vld [vmem:[%s10528] ss:$32 sm:$0x20]
  %v10539 = vor.u32 %v10537, %v10538
  %v10540 = vld [vmem:[%s10528] ss:$32 sm:$0x40]
  %v10541 = vor.u32 %v10539, %v10540
  %v10542 = vld [vmem:[%s10528] ss:$32 sm:$0x80]
  %v10543 = vor.u32 %v10541, %v10542
  %s10544 = scalar_lea.vmem [#allocation2], 11
  %v10545 = vld [vmem:[%s10544] ss:$32 sm:$0x1]
  %v10546 = vld [vmem:[%s10544] ss:$32 sm:$0x2]
  %v10547 = vor.u32 %v10545, %v10546
  %v10548 = vld [vmem:[%s10544] ss:$32 sm:$0x4]
  %v10549 = vor.u32 %v10547, %v10548
  %v10550 = vld [vmem:[%s10544] ss:$32 sm:$0x8]
  %v10551 = vor.u32 %v10549, %v10550
  %v10552 = vld [vmem:[%s10544] ss:$32 sm:$0x10]
  %v10553 = vor.u32 %v10551, %v10552
  %v10554 = vld [vmem:[%s10544] ss:$32 sm:$0x20]
  %v10555 = vor.u32 %v10553, %v10554
  %v10556 = vld [vmem:[%s10544] ss:$32 sm:$0x40]
  %v10557 = vor.u32 %v10555, %v10556
  %v10558 = vld [vmem:[%s10544] ss:$32 sm:$0x80]
  %v10559 = vor.u32 %v10557, %v10558
  %s10560 = scalar_lea.vmem [#allocation2], 267
  %v10561 = vld [vmem:[%s10560] ss:$32 sm:$0x1]
  %v10562 = vld [vmem:[%s10560] ss:$32 sm:$0x2]
  %v10563 = vor.u32 %v10561, %v10562
  %v10564 = vld [vmem:[%s10560] ss:$32 sm:$0x4]
  %v10565 = vor.u32 %v10563, %v10564
  %v10566 = vld [vmem:[%s10560] ss:$32 sm:$0x8]
  %v10567 = vor.u32 %v10565, %v10566
  %v10568 = vld [vmem:[%s10560] ss:$32 sm:$0x10]
  %v10569 = vor.u32 %v10567, %v10568
  %v10570 = vld [vmem:[%s10560] ss:$32 sm:$0x20]
  %v10571 = vor.u32 %v10569, %v10570
  %v10572 = vld [vmem:[%s10560] ss:$32 sm:$0x40]
  %v10573 = vor.u32 %v10571, %v10572
  %v10574 = vld [vmem:[%s10560] ss:$32 sm:$0x80]
  %v10575 = vor.u32 %v10573, %v10574
  %v10576 = vmax.f32 %v10527, %v10559
  %v10577 = vmax.f32 %v10543, %v10575
  %10580 = vrot.lane.b32.xlu0 %v10576, 64
  %v10581 = vpop.permute.xlu0 %10580
  %10582 = vrot.lane.b32.xlu0 %v10577, 64
  %v10583 = vpop.permute.xlu0 %10582
  %v10586 = vsel %vm509, %v10510, %v10581
  %v10587 = vsel %vm509, %v10511, %v10583
  %10588 = vst [vmem:[%s4 + $0x10] sm:$0xff] %v10586
  %10589 = vst [vmem:[%s4 + $0x30] sm:$0xff] %v10587
  %s10590 = scalar_lea.vmem [#allocation2], 12
  %v10591 = vld [vmem:[%s10590] ss:$32 sm:$0x1]
  %v10592 = vld [vmem:[%s10590] ss:$32 sm:$0x2]
  %v10593 = vor.u32 %v10591, %v10592
  %v10594 = vld [vmem:[%s10590] ss:$32 sm:$0x4]
  %v10595 = vor.u32 %v10593, %v10594
  %v10596 = vld [vmem:[%s10590] ss:$32 sm:$0x8]
  %v10597 = vor.u32 %v10595, %v10596
  %v10598 = vld [vmem:[%s10590] ss:$32 sm:$0x10]
  %v10599 = vor.u32 %v10597, %v10598
  %v10600 = vld [vmem:[%s10590] ss:$32 sm:$0x20]
  %v10601 = vor.u32 %v10599, %v10600
  %v10602 = vld [vmem:[%s10590] ss:$32 sm:$0x40]
  %v10603 = vor.u32 %v10601, %v10602
  %v10604 = vld [vmem:[%s10590] ss:$32 sm:$0x80]
  %v10605 = vor.u32 %v10603, %v10604
  %s10606 = scalar_lea.vmem [#allocation2], 268
  %v10607 = vld [vmem:[%s10606] ss:$32 sm:$0x1]
  %v10608 = vld [vmem:[%s10606] ss:$32 sm:$0x2]
  %v10609 = vor.u32 %v10607, %v10608
  %v10610 = vld [vmem:[%s10606] ss:$32 sm:$0x4]
  %v10611 = vor.u32 %v10609, %v10610
  %v10612 = vld [vmem:[%s10606] ss:$32 sm:$0x8]
  %v10613 = vor.u32 %v10611, %v10612
  %v10614 = vld [vmem:[%s10606] ss:$32 sm:$0x10]
  %v10615 = vor.u32 %v10613, %v10614
  %v10616 = vld [vmem:[%s10606] ss:$32 sm:$0x20]
  %v10617 = vor.u32 %v10615, %v10616
  %v10618 = vld [vmem:[%s10606] ss:$32 sm:$0x40]
  %v10619 = vor.u32 %v10617, %v10618
  %v10620 = vld [vmem:[%s10606] ss:$32 sm:$0x80]
  %v10621 = vor.u32 %v10619, %v10620
  %s10622 = scalar_lea.vmem [#allocation2], 13
  %v10623 = vld [vmem:[%s10622] ss:$32 sm:$0x1]
  %v10624 = vld [vmem:[%s10622] ss:$32 sm:$0x2]
  %v10625 = vor.u32 %v10623, %v10624
  %v10626 = vld [vmem:[%s10622] ss:$32 sm:$0x4]
  %v10627 = vor.u32 %v10625, %v10626
  %v10628 = vld [vmem:[%s10622] ss:$32 sm:$0x8]
  %v10629 = vor.u32 %v10627, %v10628
  %v10630 = vld [vmem:[%s10622] ss:$32 sm:$0x10]
  %v10631 = vor.u32 %v10629, %v10630
  %v10632 = vld [vmem:[%s10622] ss:$32 sm:$0x20]
  %v10633 = vor.u32 %v10631, %v10632
  %v10634 = vld [vmem:[%s10622] ss:$32 sm:$0x40]
  %v10635 = vor.u32 %v10633, %v10634
  %v10636 = vld [vmem:[%s10622] ss:$32 sm:$0x80]
  %v10637 = vor.u32 %v10635, %v10636
  %s10638 = scalar_lea.vmem [#allocation2], 269
  %v10639 = vld [vmem:[%s10638] ss:$32 sm:$0x1]
  %v10640 = vld [vmem:[%s10638] ss:$32 sm:$0x2]
  %v10641 = vor.u32 %v10639, %v10640
  %v10642 = vld [vmem:[%s10638] ss:$32 sm:$0x4]
  %v10643 = vor.u32 %v10641, %v10642
  %v10644 = vld [vmem:[%s10638] ss:$32 sm:$0x8]
  %v10645 = vor.u32 %v10643, %v10644
  %v10646 = vld [vmem:[%s10638] ss:$32 sm:$0x10]
  %v10647 = vor.u32 %v10645, %v10646
  %v10648 = vld [vmem:[%s10638] ss:$32 sm:$0x20]
  %v10649 = vor.u32 %v10647, %v10648
  %v10650 = vld [vmem:[%s10638] ss:$32 sm:$0x40]
  %v10651 = vor.u32 %v10649, %v10650
  %v10652 = vld [vmem:[%s10638] ss:$32 sm:$0x80]
  %v10653 = vor.u32 %v10651, %v10652
  %v10654 = vmax.f32 %v10605, %v10637
  %v10655 = vmax.f32 %v10621, %v10653
  %s10656 = scalar_lea.vmem [#allocation2], 14
  %v10657 = vld [vmem:[%s10656] ss:$32 sm:$0x1]
  %v10658 = vld [vmem:[%s10656] ss:$32 sm:$0x2]
  %v10659 = vor.u32 %v10657, %v10658
  %v10660 = vld [vmem:[%s10656] ss:$32 sm:$0x4]
  %v10661 = vor.u32 %v10659, %v10660
  %v10662 = vld [vmem:[%s10656] ss:$32 sm:$0x8]
  %v10663 = vor.u32 %v10661, %v10662
  %v10664 = vld [vmem:[%s10656] ss:$32 sm:$0x10]
  %v10665 = vor.u32 %v10663, %v10664
  %v10666 = vld [vmem:[%s10656] ss:$32 sm:$0x20]
  %v10667 = vor.u32 %v10665, %v10666
  %v10668 = vld [vmem:[%s10656] ss:$32 sm:$0x40]
  %v10669 = vor.u32 %v10667, %v10668
  %v10670 = vld [vmem:[%s10656] ss:$32 sm:$0x80]
  %v10671 = vor.u32 %v10669, %v10670
  %s10672 = scalar_lea.vmem [#allocation2], 270
  %v10673 = vld [vmem:[%s10672] ss:$32 sm:$0x1]
  %v10674 = vld [vmem:[%s10672] ss:$32 sm:$0x2]
  %v10675 = vor.u32 %v10673, %v10674
  %v10676 = vld [vmem:[%s10672] ss:$32 sm:$0x4]
  %v10677 = vor.u32 %v10675, %v10676
  %v10678 = vld [vmem:[%s10672] ss:$32 sm:$0x8]
  %v10679 = vor.u32 %v10677, %v10678
  %v10680 = vld [vmem:[%s10672] ss:$32 sm:$0x10]
  %v10681 = vor.u32 %v10679, %v10680
  %v10682 = vld [vmem:[%s10672] ss:$32 sm:$0x20]
  %v10683 = vor.u32 %v10681, %v10682
  %v10684 = vld [vmem:[%s10672] ss:$32 sm:$0x40]
  %v10685 = vor.u32 %v10683, %v10684
  %v10686 = vld [vmem:[%s10672] ss:$32 sm:$0x80]
  %v10687 = vor.u32 %v10685, %v10686
  %s10688 = scalar_lea.vmem [#allocation2], 15
  %v10689 = vld [vmem:[%s10688] ss:$32 sm:$0x1]
  %v10690 = vld [vmem:[%s10688] ss:$32 sm:$0x2]
  %v10691 = vor.u32 %v10689, %v10690
  %v10692 = vld [vmem:[%s10688] ss:$32 sm:$0x4]
  %v10693 = vor.u32 %v10691, %v10692
  %v10694 = vld [vmem:[%s10688] ss:$32 sm:$0x8]
  %v10695 = vor.u32 %v10693, %v10694
  %v10696 = vld [vmem:[%s10688] ss:$32 sm:$0x10]
  %v10697 = vor.u32 %v10695, %v10696
  %v10698 = vld [vmem:[%s10688] ss:$32 sm:$0x20]
  %v10699 = vor.u32 %v10697, %v10698
  %v10700 = vld [vmem:[%s10688] ss:$32 sm:$0x40]
  %v10701 = vor.u32 %v10699, %v10700
  %v10702 = vld [vmem:[%s10688] ss:$32 sm:$0x80]
  %v10703 = vor.u32 %v10701, %v10702
  %s10704 = scalar_lea.vmem [#allocation2], 271
  %v10705 = vld [vmem:[%s10704] ss:$32 sm:$0x1]
  %v10706 = vld [vmem:[%s10704] ss:$32 sm:$0x2]
  %v10707 = vor.u32 %v10705, %v10706
  %v10708 = vld [vmem:[%s10704] ss:$32 sm:$0x4]
  %v10709 = vor.u32 %v10707, %v10708
  %v10710 = vld [vmem:[%s10704] ss:$32 sm:$0x8]
  %v10711 = vor.u32 %v10709, %v10710
  %v10712 = vld [vmem:[%s10704] ss:$32 sm:$0x10]
  %v10713 = vor.u32 %v10711, %v10712
  %v10714 = vld [vmem:[%s10704] ss:$32 sm:$0x20]
  %v10715 = vor.u32 %v10713, %v10714
  %v10716 = vld [vmem:[%s10704] ss:$32 sm:$0x40]
  %v10717 = vor.u32 %v10715, %v10716
  %v10718 = vld [vmem:[%s10704] ss:$32 sm:$0x80]
  %v10719 = vor.u32 %v10717, %v10718
  %v10720 = vmax.f32 %v10671, %v10703
  %v10721 = vmax.f32 %v10687, %v10719
  %10724 = vrot.lane.b32.xlu0 %v10720, 64
  %v10725 = vpop.permute.xlu0 %10724
  %10726 = vrot.lane.b32.xlu0 %v10721, 64
  %v10727 = vpop.permute.xlu0 %10726
  %v10730 = vsel %vm509, %v10654, %v10725
  %v10731 = vsel %vm509, %v10655, %v10727
  %10732 = vst [vmem:[%s4 + $0x18] sm:$0xff] %v10730
  %10733 = vst [vmem:[%s4 + $0x38] sm:$0xff] %v10731
  // Predicated region
  $region18: #{conv_block_forward.1} parent=0 // pred_check
    _
  $region19: #{conv_block_forward.1} parent=0 // pred_check_branch
    %10735 = sbr.rel (0) target = $region21
  $region20: #{conv_block_forward.1} parent=0 // pred_region
    _
  $region21: #{conv_block_forward.1} parent=0 // pred_fallthru
    _
  // Predicated region
  $region22: #{conv_block_forward.1} parent=0 // pred_check
    _
  $region23: #{conv_block_forward.1} parent=0 // pred_check_branch
    %10737 = sbr.rel (0) target = $region25
  $region24: #{conv_block_forward.1} parent=0 // pred_region
    _
  $region25: #{conv_block_forward.1} parent=0 // pred_fallthru
    _

</llo_original>
